<compile_context>
chip_gen: v7x
topology: tpu7x:2x2x1
jax: 0.10.0
libtpu: 0.0.40
codegen_flags: <defaults>
</compile_context>

<pallas_src>
import functools
import math

import jax
import jax.numpy as jnp
from jax import lax
from jax.experimental import pallas as pl
from jax.experimental.pallas import tpu as pltpu


def _round_up(v, m):
    return ((v + m - 1) // m) * m


# ---------------------------------------------------------------------------
# Pallas kernel: one grid step == one batch tile.  Everything (fc1 -> IN ->
# relu -> fc2 -> IN -> relu -> fused GRU1/2/3 -> fc_last on last step) runs
# inside the kernel on VMEM.  Activations are time-major: row = t*Bt + b.
# ---------------------------------------------------------------------------
def rnn_walk_kernel(x_ref,
                    fc1_w, fc1_b, fc2_w, fc2_b,
                    g1_wih, g1_bih,
                    w12, b12,          # [Whh1 | Wih2], [bhh1 | bih2]
                    w23, b23,          # [Whh2 | Wih3], [bhh2 | bih3]
                    whh3, bhh3,
                    fcl_w, fcl_b,
                    x3_ref, pred_ref,
                    gates1_s,
                    *, T, Bt, H1, H2, H3):
    eps = 1e-5
    TB = T * Bt
    f32 = jnp.float32
    bf16 = jnp.bfloat16

    # ---- selector matrices for InstanceNorm over the time axis ------------
    # Row index is t*Bt + b (time-major), Bt is a power of two, so the batch
    # index of a row is (row & (Bt-1)).  S sums over t per (b, c); P scatters
    # the per-b statistics back to all T rows.  Both are tiny MXU matmuls,
    # which avoids any in-kernel reshape/transpose.
    bmask = Bt - 1
    row_s = lax.broadcasted_iota(jnp.int32, (Bt, TB), 1)
    b_s = lax.broadcasted_iota(jnp.int32, (Bt, TB), 0)
    S = ((row_s & bmask) == b_s).astype(f32)          # [Bt, TB]
    row_p = lax.broadcasted_iota(jnp.int32, (TB, Bt), 0)
    b_p = lax.broadcasted_iota(jnp.int32, (TB, Bt), 1)
    P = ((row_p & bmask) == b_p).astype(f32)          # [TB, Bt]
    inv_T = 1.0 / T

    def instance_norm(h):                              # h: [TB, C] float32
        m = jnp.dot(S, h, preferred_element_type=f32) * inv_T      # [Bt, C]
        mf = jnp.dot(P, m, preferred_element_type=f32)             # [TB, C]
        d = h - mf
        v = jnp.dot(S, d * d, preferred_element_type=f32) * inv_T  # biased var
        vf = jnp.dot(P, v, preferred_element_type=f32)
        return d * lax.rsqrt(vf + eps)

    # ---- MLP front-end: one big batched matmul per layer ------------------
    x = x_ref[...]                                                   # [TB, F] bf16
    h = jnp.dot(x, fc1_w[...], preferred_element_type=f32) + fc1_b[...]
    h = jnp.maximum(instance_norm(h), 0.0)                           # relu
    h = jnp.dot(h.astype(bf16), fc2_w[...],
                preferred_element_type=f32) + fc2_b[...]
    h = jnp.maximum(instance_norm(h), 0.0)                           # relu

    # ---- layer-1 input gates for the whole walk in one MXU pass ------------
    gates1_s[...] = (jnp.dot(h.astype(bf16), g1_wih[...],
                             preferred_element_type=f32) + g1_bih[...])

    # ---- hoisted loop-invariant recurrent weights --------------------------
    w12v = w12[...]; b12v = b12[...]
    w23v = w23[...]; b23v = b23[...]
    w3v = whh3[...]; b3v = bhh3[...]

    def gru_cell(xg, hg, h_prev, H):
        r = jax.nn.sigmoid(xg[:, 0:H] + hg[:, 0:H])
        z = jax.nn.sigmoid(xg[:, H:2 * H] + hg[:, H:2 * H])
        n = jnp.tanh(xg[:, 2 * H:3 * H] + r * hg[:, 2 * H:3 * H])
        return (1.0 - z) * n + z * h_prev

    # ---- fused, skewed GRU stack: T + 2 wall steps --------------------------
    # At wall step s the carries hold h1[s-1], h2[s-2], h3[s-3]; the three
    # per-step matmul groups are mutually independent.  Matmuls sharing an
    # LHS are merged (weights pre-concatenated along the output axis).
    def wall_step(s, carry):
        h1, h2, h3 = carry                              # [Bt, H] f32 each
        h1b = h1.astype(bf16)
        h2b = h2.astype(bf16)
        h3b = h3.astype(bf16)

        # h1[s-1] drives layer-1 hidden gates AND layer-2 input gates.
        hx1 = jnp.dot(h1b, w12v, preferred_element_type=f32) + b12v
        hg1 = hx1[:, :3 * H1]
        xg2 = hx1[:, 3 * H1:]
        # h2[s-2] drives layer-2 hidden gates AND layer-3 input gates.
        hx2 = jnp.dot(h2b, w23v, preferred_element_type=f32) + b23v
        hg2 = hx2[:, :3 * H2]
        xg3 = hx2[:, 3 * H2:]
        # h3[s-3] drives layer-3 hidden gates only.
        hg3 = jnp.dot(h3b, w3v, preferred_element_type=f32) + b3v

        # layer 1 at time t1 = s            (valid for s < T)
        t1 = jnp.minimum(s, T - 1)                      # clamp: no OOB read
        xg1 = gates1_s[pl.ds(pl.multiple_of(t1 * Bt, Bt), Bt), :]
        h1n = gru_cell(xg1, hg1, h1, H1)

        # layer 2 at time t2 = s - 1        (valid for 1 <= s <= T)
        h2n = gru_cell(xg2, hg2, h2, H2)

        # layer 3 at time t3 = s - 2        (valid for s >= 2)
        h3n = gru_cell(xg3, hg3, h3, H3)

        @pl.when(s >= 2)
        def _():
            t3 = jnp.maximum(s - 2, 0)
            x3_ref[pl.ds(pl.multiple_of(t3 * Bt, Bt), Bt), :] = h3n

        h1 = jnp.where(s < T, h1n, h1)
        h2 = jnp.where(jnp.logical_and(s >= 1, s <= T), h2n, h2)
        h3 = jnp.where(s >= 2, h3n, h3)
        return (h1, h2, h3)

    init = (jnp.zeros((Bt, H1), f32),
            jnp.zeros((Bt, H2), f32),
            jnp.zeros((Bt, H3), f32))
    unroll = True if (T + 2) <= 34 else 2
    _, _, h3_last = lax.fori_loop(0, T + 2, wall_step, init, unroll=unroll)

    # ---- classifier on the last time step (one_label_per_model=True) ------
    pred_ref[...] = (jnp.dot(h3_last.astype(bf16), fcl_w[...],
                             preferred_element_type=f32) + fcl_b[...])


# ---------------------------------------------------------------------------
# Wrapper: wrapper-side layout plumbing only (pad batch, time-major flatten,
# weight concatenation + bf16 casts, classifier lane padding), then one
# pallas_call.
# ---------------------------------------------------------------------------
def rnn_walk_forward(x, params):
    (fc1_w, fc1_b, fc2_w, fc2_b,
     g1_wih, g1_bih, g1_whh, g1_bhh,
     g2_wih, g2_bih, g2_whh, g2_bhh,
     g3_wih, g3_bih, g3_whh, g3_bhh,
     fcl_w, fcl_b) = params

    B, T, F = x.shape
    H1 = g1_whh.shape[0]
    H2 = g2_whh.shape[0]
    H3 = g3_whh.shape[0]
    C = fcl_w.shape[1]
    C_pad = _round_up(C, 128)

    f32 = jnp.float32
    bf16 = jnp.bfloat16

    # Batch tile: power of two, >= 8 (sublane-full), <= 128 (VMEM budget).
    Bt = max(8, min(128, pl.next_power_of_2(B)))
    B_pad = _round_up(B, Bt)
    nbt = B_pad // Bt
    TB = T * Bt

    # --- input: pad batch, cast bf16, time-major flatten per batch tile -----
    xp = x
    if B_pad != B:
        xp = jnp.pad(x, ((0, B_pad - B), (0, 0), (0, 0)))
    x_k = (xp.astype(bf16)
             .reshape(nbt, Bt, T, F)
             .transpose(0, 2, 1, 3)
             .reshape(nbt, TB, F))

    # --- weights: shared-LHS fusion, bf16 matmul operands, f32 biases -------
    def w(a):
        return a.astype(bf16)

    w12 = jnp.concatenate([g1_whh, g2_wih], axis=1)     # [H1, 3H1+3H2]
    b12 = jnp.concatenate([g1_bhh, g2_bih], axis=1)
    w23 = jnp.concatenate([g2_whh, g3_wih], axis=1)     # [H2, 3H2+3H3]
    b23 = jnp.concatenate([g2_bhh, g3_bih], axis=1)

    fclw_p = jnp.pad(fcl_w, ((0, 0), (0, C_pad - C))).astype(bf16)
    fclb_p = jnp.pad(fcl_b, ((0, 0), (0, C_pad - C))).astype(f32)
    kernel_params = (w(fc1_w), fc1_b.astype(f32), w(fc2_w), fc2_b.astype(f32),
                     w(g1_wih), g1_bih.astype(f32),
                     w(w12), b12.astype(f32),
                     w(w23), b23.astype(f32),
                     w(g3_whh), g3_bhh.astype(f32),
                     fclw_p, fclb_p)

    def full_spec(p):
        nd = p.ndim
        return pl.BlockSpec(p.shape, lambda b, _nd=nd: (0,) * _nd)

    in_specs = [pl.BlockSpec((None, TB, F), lambda b: (b, 0, 0))]       # x
    in_specs += [full_spec(p) for p in kernel_params]

    out_specs = [pl.BlockSpec((None, TB, H3), lambda b: (b, 0, 0)),     # x3
                 pl.BlockSpec((None, Bt, C_pad), lambda b: (b, 0, 0))]  # pred
    out_shape = (jax.ShapeDtypeStruct((nbt, TB, H3), f32),
                 jax.ShapeDtypeStruct((nbt, Bt, C_pad), f32))

    # Only the layer-1 input gates need a persistent scratch (layers 2/3 are
    # fused into the time loop).  TODO(synk): for very long walks with
    # Bt=128 on v7x (64 MiB VMEM), chunk this precompute along T and set
    # pltpu.CompilerParams(vmem_limit_bytes=...).
    scratch_shapes = [pltpu.VMEM((TB, 3 * H1), f32)]

    kernel = functools.partial(rnn_walk_kernel, T=T, Bt=Bt, H1=H1, H2=H2, H3=H3)

    x3_k, pred_k = pl.pallas_call(
        kernel,
        out_shape=out_shape,
        grid_spec=pltpu.PrefetchScalarGridSpec(
            num_scalar_prefetch=0,
            grid=(nbt,),
            in_specs=in_specs,
            out_specs=out_specs,
            scratch_shapes=scratch_shapes),
        compiler_params=pltpu.CompilerParams(
            dimension_semantics=("parallel",)),
    )(x_k, *kernel_params)

    # --- wrapper-side layout decode ------------------------------------------
    x3 = (x3_k.reshape(nbt, T, Bt, H3)
              .transpose(0, 2, 1, 3)
              .reshape(B_pad, T, H3)[:B])
    pred = pred_k.reshape(B_pad, C_pad)[:B, :C]
    return x3, pred


# ---------------------------------------------------------------------------
# Plain-JAX f32 reference (PyTorch semantics) for the correctness check.
# ---------------------------------------------------------------------------
def ref_forward(x, params):
    (fc1_w, fc1_b, fc2_w, fc2_b,
     g1_wih, g1_bih, g1_whh, g1_bhh,
     g2_wih, g2_bih, g2_whh, g2_bhh,
     g3_wih, g3_bih, g3_whh, g3_bhh,
     fcl_w, fcl_b) = params

    def inorm(h):  # h: [B, T, C]; InstanceNorm1d over T per (b, c), biased var
        m = h.mean(axis=1, keepdims=True)
        v = ((h - m) ** 2).mean(axis=1, keepdims=True)
        return (h - m) / jnp.sqrt(v + 1e-5)

    h = jax.nn.relu(inorm(x @ fc1_w + fc1_b))
    h = jax.nn.relu(inorm(h @ fc2_w + fc2_b))

    def gru(xs, wih, bih, whh, bhh):
        H = whh.shape[0]
        B = xs.shape[0]
        xg = xs @ wih + bih                                    # [B, T, 3H]

        def step(h_prev, xg_t):
            hg = h_prev @ whh + bhh
            r = jax.nn.sigmoid(xg_t[:, :H] + hg[:, :H])
            z = jax.nn.sigmoid(xg_t[:, H:2 * H] + hg[:, H:2 * H])
            n = jnp.tanh(xg_t[:, 2 * H:] + r * hg[:, 2 * H:])
            h_new = (1.0 - z) * n + z * h_prev
            return h_new, h_new

        _, ys = lax.scan(step, jnp.zeros((B, H), xs.dtype),
                         jnp.swapaxes(xg, 0, 1))
        return jnp.swapaxes(ys, 0, 1)

    x1 = gru(h, g1_wih, g1_bih, g1_whh, g1_bhh)
    x2 = gru(x1, g2_wih, g2_bih, g2_whh, g2_bhh)
    x3 = gru(x2, g3_wih, g3_bih, g3_whh, g3_bhh)
    pred = x3[:, -1, :] @ fcl_w + fcl_b
    return x3, pred


# ---------------------------------------------------------------------------
# Deterministic parameter init (shapes from RnnWalkNet._init_model; synthetic).
# ---------------------------------------------------------------------------
def init_params(key, F, fc1, fc2, H1, H2, H3, n_classes):
    def linear(k, fin, fout):
        k1, k2 = jax.random.split(k)
        b = 1.0 / math.sqrt(fin)
        return (jax.random.uniform(k1, (fin, fout), jnp.float32, -b, b),
                jax.random.uniform(k2, (1, fout), jnp.float32, -b, b))

    def gru(k, fin, H):
        ks = jax.random.split(k, 4)
        b = 1.0 / math.sqrt(H)
        wih = jax.random.uniform(ks[0], (fin, 3 * H), jnp.float32, -b, b)
        bih = jax.random.uniform(ks[1], (1, 3 * H), jnp.float32, -b, b)
        whh = jax.random.uniform(ks[2], (H, 3 * H), jnp.float32, -b, b)
        bhh = jax.random.uniform(ks[3], (1, 3 * H), jnp.float32, -b, b)
        return wih, bih, whh, bhh

    keys = jax.random.split(key, 6)
    fc1_w, fc1_b = linear(keys[0], F, fc1)
    fc2_w, fc2_b = linear(keys[1], fc1, fc2)
    g1 = gru(keys[2], fc2, H1)
    g2 = gru(keys[3], H1, H2)
    g3 = gru(keys[4], H2, H3)
    fcl_w, fcl_b = linear(keys[5], H3, n_classes)
    return (fc1_w, fc1_b, fc2_w, fc2_b, *g1, *g2, *g3, fcl_w, fcl_b)


if __name__ == "__main__":
    B, T, F = 2, 8, 16          # [Batch, Seq_len, Features]
    FC1, FC2 = 128, 256
    H1, H2, H3 = 128, 128, 128  # small layer_sizes for the synthetic test
    N_CLASSES = 10

    key = jax.random.PRNGKey(0)
    kx, kp = jax.random.split(key)
    x = jax.random.normal(kx, (B, T, F), jnp.float32)
    params = init_params(kp, F, FC1, FC2, H1, H2, H3, N_CLASSES)

    x3, pred = rnn_walk_forward(x, params)
    jax.block_until_ready((x3, pred))

    x3_ref, pred_ref = ref_forward(x, params)
    jax.block_until_ready((x3_ref, pred_ref))

    err_x3 = float(jnp.max(jnp.abs(x3 - x3_ref)))
    err_pr = float(jnp.max(jnp.abs(pred - pred_ref)))
    assert x3.shape == (B, T, H3) and pred.shape == (B, N_CLASSES)
    # kernel uses bf16 matmul operands (f32 accumulation); ref is pure f32.
    assert err_x3 < 2e-1 and err_pr < 2e-1, (err_x3, err_pr)

    print("KERNEL_OK")
</pallas_src>

<mosaic_0001>
module attributes {stable_mosaic.version = 11 : i64} {
  func.func @rnn_walk_kernel(%arg0: i32, %arg1: memref<1x64x16xbf16, #tpu.memory_space<vmem>>, %arg2: memref<16x128xbf16, #tpu.memory_space<vmem>>, %arg3: memref<1x128xf32, #tpu.memory_space<vmem>>, %arg4: memref<128x256xbf16, #tpu.memory_space<vmem>>, %arg5: memref<1x256xf32, #tpu.memory_space<vmem>>, %arg6: memref<256x384xbf16, #tpu.memory_space<vmem>>, %arg7: memref<1x384xf32, #tpu.memory_space<vmem>>, %arg8: memref<128x768xbf16, #tpu.memory_space<vmem>>, %arg9: memref<1x768xf32, #tpu.memory_space<vmem>>, %arg10: memref<128x768xbf16, #tpu.memory_space<vmem>>, %arg11: memref<1x768xf32, #tpu.memory_space<vmem>>, %arg12: memref<128x384xbf16, #tpu.memory_space<vmem>>, %arg13: memref<1x384xf32, #tpu.memory_space<vmem>>, %arg14: memref<128x128xbf16, #tpu.memory_space<vmem>>, %arg15: memref<1x128xf32, #tpu.memory_space<vmem>>, %arg16: memref<1x64x128xf32, #tpu.memory_space<vmem>>, %arg17: memref<1x8x128xf32, #tpu.memory_space<vmem>>, %arg18: memref<64x384xf32, #tpu.memory_space<vmem>>) attributes {dimension_semantics = [#tpu.dimension_semantics<parallel>], iteration_bounds = array<i64: 1>, scalar_prefetch = 0 : i64, scratch_operands = 1 : i64, tpu.core_type = #tpu.core_type<tc>, window_params = [{transform_indices = @transform_0, window_bounds = array<i64: 1, 64, 16>}, {pipeline_mode = #tpu.pipeline_mode<synchronous>, transform_indices = @transform_1, window_bounds = array<i64: 16, 128>}, {pipeline_mode = #tpu.pipeline_mode<synchronous>, transform_indices = @transform_2, window_bounds = array<i64: 1, 128>}, {pipeline_mode = #tpu.pipeline_mode<synchronous>, transform_indices = @transform_3, window_bounds = array<i64: 128, 256>}, {pipeline_mode = #tpu.pipeline_mode<synchronous>, transform_indices = @transform_4, window_bounds = array<i64: 1, 256>}, {pipeline_mode = #tpu.pipeline_mode<synchronous>, transform_indices = @transform_5, window_bounds = array<i64: 256, 384>}, {pipeline_mode = #tpu.pipeline_mode<synchronous>, transform_indices = @transform_6, window_bounds = array<i64: 1, 384>}, {pipeline_mode = #tpu.pipeline_mode<synchronous>, transform_indices = @transform_7, window_bounds = array<i64: 128, 768>}, {pipeline_mode = #tpu.pipeline_mode<synchronous>, transform_indices = @transform_8, window_bounds = array<i64: 1, 768>}, {pipeline_mode = #tpu.pipeline_mode<synchronous>, transform_indices = @transform_9, window_bounds = array<i64: 128, 768>}, {pipeline_mode = #tpu.pipeline_mode<synchronous>, transform_indices = @transform_10, window_bounds = array<i64: 1, 768>}, {pipeline_mode = #tpu.pipeline_mode<synchronous>, transform_indices = @transform_11, window_bounds = array<i64: 128, 384>}, {pipeline_mode = #tpu.pipeline_mode<synchronous>, transform_indices = @transform_12, window_bounds = array<i64: 1, 384>}, {pipeline_mode = #tpu.pipeline_mode<synchronous>, transform_indices = @transform_13, window_bounds = array<i64: 128, 128>}, {pipeline_mode = #tpu.pipeline_mode<synchronous>, transform_indices = @transform_14, window_bounds = array<i64: 1, 128>}, {transform_indices = @transform_15, window_bounds = array<i64: 1, 64, 128>}, {transform_indices = @transform_16, window_bounds = array<i64: 1, 8, 128>}]} {
    %0 = tpu.iota {dimensions = array<i32: 1>} : vector<8x64xi32>
    %1 = tpu.iota {dimensions = array<i32: 0>} : vector<8x64xi32>
    %c7_i32 = arith.constant 7 : i32
    %2 = vector.broadcast %c7_i32 : i32 to vector<8x64xi32>
    %3 = arith.andi %0, %2 : vector<8x64xi32>
    %4 = arith.cmpi eq, %3, %1 : vector<8x64xi32>
    %5 = arith.extui %4 : vector<8x64xi1> to vector<8x64xi32>
    %6 = arith.sitofp %5 : vector<8x64xi32> to vector<8x64xf32>
    %7 = tpu.iota {dimensions = array<i32: 0>} : vector<64x8xi32>
    %8 = tpu.iota {dimensions = array<i32: 1>} : vector<64x8xi32>
    %c7_i32_0 = arith.constant 7 : i32
    %9 = vector.broadcast %c7_i32_0 : i32 to vector<64x8xi32>
    %10 = arith.andi %7, %9 : vector<64x8xi32>
    %11 = arith.cmpi eq, %10, %8 : vector<64x8xi32>
    %12 = arith.extui %11 : vector<64x8xi1> to vector<64x8xi32>
    %13 = arith.sitofp %12 : vector<64x8xi32> to vector<64x8xf32>
    %c0 = arith.constant 0 : index
    %c0_1 = arith.constant 0 : index
    %c0_2 = arith.constant 0 : index
    %14 = vector.load %arg1[%c0, %c0_1, %c0_2] : memref<1x64x16xbf16, #tpu.memory_space<vmem>>, vector<1x64x16xbf16>
    %15 = vector.shape_cast %14 : vector<1x64x16xbf16> to vector<64x16xbf16>
    %c0_3 = arith.constant 0 : index
    %c0_4 = arith.constant 0 : index
    %16 = vector.load %arg2[%c0_3, %c0_4] : memref<16x128xbf16, #tpu.memory_space<vmem>>, vector<16x128xbf16>
    %cst = arith.constant dense<0.000000e+00> : vector<64x128xf32>
    %17 = tpu.matmul %15, %16, %cst {dimension_numbers = #tpu.dot_dimension_numbers<[1], [0], [0], [1], [0, 0, 1, 1], [], []>} : vector<64x16xbf16>, vector<16x128xbf16>, vector<64x128xf32> -> vector<64x128xf32>
    %c0_5 = arith.constant 0 : index
    %c0_6 = arith.constant 0 : index
    %18 = vector.load %arg3[%c0_5, %c0_6] : memref<1x128xf32, #tpu.memory_space<vmem>>, vector<1x128xf32>
    %19 = vector.broadcast %18 : vector<1x128xf32> to vector<64x128xf32>
    %20 = arith.addf %17, %19 : vector<64x128xf32>
    %cst_7 = arith.constant dense<0.000000e+00> : vector<8x128xf32>
    %21 = tpu.matmul %6, %20, %cst_7 {dimension_numbers = #tpu.dot_dimension_numbers<[1], [0], [0], [1], [0, 0, 1, 1], [], []>} : vector<8x64xf32>, vector<64x128xf32>, vector<8x128xf32> -> vector<8x128xf32>
    %cst_8 = arith.constant 1.250000e-01 : f32
    %22 = vector.broadcast %cst_8 : f32 to vector<8x128xf32>
    %23 = arith.mulf %21, %22 : vector<8x128xf32>
    %cst_9 = arith.constant dense<0.000000e+00> : vector<64x128xf32>
    %24 = tpu.matmul %13, %23, %cst_9 {dimension_numbers = #tpu.dot_dimension_numbers<[1], [0], [0], [1], [0, 0, 1, 1], [], []>} : vector<64x8xf32>, vector<8x128xf32>, vector<64x128xf32> -> vector<64x128xf32>
    %25 = arith.subf %20, %24 : vector<64x128xf32>
    %26 = arith.mulf %25, %25 : vector<64x128xf32>
    %cst_10 = arith.constant dense<0.000000e+00> : vector<8x128xf32>
    %27 = tpu.matmul %6, %26, %cst_10 {dimension_numbers = #tpu.dot_dimension_numbers<[1], [0], [0], [1], [0, 0, 1, 1], [], []>} : vector<8x64xf32>, vector<64x128xf32>, vector<8x128xf32> -> vector<8x128xf32>
    %cst_11 = arith.constant 1.250000e-01 : f32
    %28 = vector.broadcast %cst_11 : f32 to vector<8x128xf32>
    %29 = arith.mulf %27, %28 : vector<8x128xf32>
    %cst_12 = arith.constant dense<0.000000e+00> : vector<64x128xf32>
    %30 = tpu.matmul %13, %29, %cst_12 {dimension_numbers = #tpu.dot_dimension_numbers<[1], [0], [0], [1], [0, 0, 1, 1], [], []>} : vector<64x8xf32>, vector<8x128xf32>, vector<64x128xf32> -> vector<64x128xf32>
    %cst_13 = arith.constant 9.99999974E-6 : f32
    %31 = vector.broadcast %cst_13 : f32 to vector<64x128xf32>
    %32 = arith.addf %30, %31 : vector<64x128xf32>
    %33 = math.rsqrt %32 : vector<64x128xf32>
    %34 = arith.mulf %25, %33 : vector<64x128xf32>
    %cst_14 = arith.constant 0.000000e+00 : f32
    %35 = vector.broadcast %cst_14 : f32 to vector<64x128xf32>
    %36 = arith.maximumf %34, %35 : vector<64x128xf32>
    %37 = arith.truncf %36 : vector<64x128xf32> to vector<64x128xbf16>
    %c0_15 = arith.constant 0 : index
    %c0_16 = arith.constant 0 : index
    %38 = vector.load %arg4[%c0_15, %c0_16] : memref<128x256xbf16, #tpu.memory_space<vmem>>, vector<128x256xbf16>
    %cst_17 = arith.constant dense<0.000000e+00> : vector<64x256xf32>
    %39 = tpu.matmul %37, %38, %cst_17 {dimension_numbers = #tpu.dot_dimension_numbers<[1], [0], [0], [1], [0, 0, 1, 1], [], []>} : vector<64x128xbf16>, vector<128x256xbf16>, vector<64x256xf32> -> vector<64x256xf32>
    %c0_18 = arith.constant 0 : index
    %c0_19 = arith.constant 0 : index
    %40 = vector.load %arg5[%c0_18, %c0_19] : memref<1x256xf32, #tpu.memory_space<vmem>>, vector<1x256xf32>
    %41 = vector.broadcast %40 : vector<1x256xf32> to vector<64x256xf32>
    %42 = arith.addf %39, %41 : vector<64x256xf32>
    %cst_20 = arith.constant dense<0.000000e+00> : vector<8x256xf32>
    %43 = tpu.matmul %6, %42, %cst_20 {dimension_numbers = #tpu.dot_dimension_numbers<[1], [0], [0], [1], [0, 0, 1, 1], [], []>} : vector<8x64xf32>, vector<64x256xf32>, vector<8x256xf32> -> vector<8x256xf32>
    %cst_21 = arith.constant 1.250000e-01 : f32
    %44 = vector.broadcast %cst_21 : f32 to vector<8x256xf32>
    %45 = arith.mulf %43, %44 : vector<8x256xf32>
    %cst_22 = arith.constant dense<0.000000e+00> : vector<64x256xf32>
    %46 = tpu.matmul %13, %45, %cst_22 {dimension_numbers = #tpu.dot_dimension_numbers<[1], [0], [0], [1], [0, 0, 1, 1], [], []>} : vector<64x8xf32>, vector<8x256xf32>, vector<64x256xf32> -> vector<64x256xf32>
    %47 = arith.subf %42, %46 : vector<64x256xf32>
    %48 = arith.mulf %47, %47 : vector<64x256xf32>
    %cst_23 = arith.constant dense<0.000000e+00> : vector<8x256xf32>
    %49 = tpu.matmul %6, %48, %cst_23 {dimension_numbers = #tpu.dot_dimension_numbers<[1], [0], [0], [1], [0, 0, 1, 1], [], []>} : vector<8x64xf32>, vector<64x256xf32>, vector<8x256xf32> -> vector<8x256xf32>
    %cst_24 = arith.constant 1.250000e-01 : f32
    %50 = vector.broadcast %cst_24 : f32 to vector<8x256xf32>
    %51 = arith.mulf %49, %50 : vector<8x256xf32>
    %cst_25 = arith.constant dense<0.000000e+00> : vector<64x256xf32>
    %52 = tpu.matmul %13, %51, %cst_25 {dimension_numbers = #tpu.dot_dimension_numbers<[1], [0], [0], [1], [0, 0, 1, 1], [], []>} : vector<64x8xf32>, vector<8x256xf32>, vector<64x256xf32> -> vector<64x256xf32>
    %cst_26 = arith.constant 9.99999974E-6 : f32
    %53 = vector.broadcast %cst_26 : f32 to vector<64x256xf32>
    %54 = arith.addf %52, %53 : vector<64x256xf32>
    %55 = math.rsqrt %54 : vector<64x256xf32>
    %56 = arith.mulf %47, %55 : vector<64x256xf32>
    %cst_27 = arith.constant 0.000000e+00 : f32
    %57 = vector.broadcast %cst_27 : f32 to vector<64x256xf32>
    %58 = arith.maximumf %56, %57 : vector<64x256xf32>
    %59 = arith.truncf %58 : vector<64x256xf32> to vector<64x256xbf16>
    %c0_28 = arith.constant 0 : index
    %c0_29 = arith.constant 0 : index
    %60 = vector.load %arg6[%c0_28, %c0_29] : memref<256x384xbf16, #tpu.memory_space<vmem>>, vector<256x384xbf16>
    %cst_30 = arith.constant dense<0.000000e+00> : vector<64x384xf32>
    %61 = tpu.matmul %59, %60, %cst_30 {dimension_numbers = #tpu.dot_dimension_numbers<[1], [0], [0], [1], [0, 0, 1, 1], [], []>} : vector<64x256xbf16>, vector<256x384xbf16>, vector<64x384xf32> -> vector<64x384xf32>
    %c0_31 = arith.constant 0 : index
    %c0_32 = arith.constant 0 : index
    %62 = vector.load %arg7[%c0_31, %c0_32] : memref<1x384xf32, #tpu.memory_space<vmem>>, vector<1x384xf32>
    %63 = vector.broadcast %62 : vector<1x384xf32> to vector<64x384xf32>
    %64 = arith.addf %61, %63 : vector<64x384xf32>
    %c0_33 = arith.constant 0 : index
    %c0_34 = arith.constant 0 : index
    %65 = vector.load %arg18[%c0_33, %c0_34] : memref<64x384xf32, #tpu.memory_space<vmem>>, vector<64x384xf32>
    tpu.vector_store %arg18[%c0_33, %c0_34], %64 {strides = array<i32>} : memref<64x384xf32, #tpu.memory_space<vmem>>, vector<64x384xf32>,
    %c0_35 = arith.constant 0 : index
    %c0_36 = arith.constant 0 : index
    %66 = vector.load %arg8[%c0_35, %c0_36] : memref<128x768xbf16, #tpu.memory_space<vmem>>, vector<128x768xbf16>
    %c0_37 = arith.constant 0 : index
    %c0_38 = arith.constant 0 : index
    %67 = vector.load %arg9[%c0_37, %c0_38] : memref<1x768xf32, #tpu.memory_space<vmem>>, vector<1x768xf32>
    %c0_39 = arith.constant 0 : index
    %c0_40 = arith.constant 0 : index
    %68 = vector.load %arg10[%c0_39, %c0_40] : memref<128x768xbf16, #tpu.memory_space<vmem>>, vector<128x768xbf16>
    %c0_41 = arith.constant 0 : index
    %c0_42 = arith.constant 0 : index
    %69 = vector.load %arg11[%c0_41, %c0_42] : memref<1x768xf32, #tpu.memory_space<vmem>>, vector<1x768xf32>
    %c0_43 = arith.constant 0 : index
    %c0_44 = arith.constant 0 : index
    %70 = vector.load %arg12[%c0_43, %c0_44] : memref<128x384xbf16, #tpu.memory_space<vmem>>, vector<128x384xbf16>
    %c0_45 = arith.constant 0 : index
    %c0_46 = arith.constant 0 : index
    %71 = vector.load %arg13[%c0_45, %c0_46] : memref<1x384xf32, #tpu.memory_space<vmem>>, vector<1x384xf32>
    %cst_47 = arith.constant 0.000000e+00 : f32
    %72 = vector.broadcast %cst_47 : f32 to vector<8x128xf32>
    %cst_48 = arith.constant 0.000000e+00 : f32
    %73 = vector.broadcast %cst_48 : f32 to vector<8x128xf32>
    %cst_49 = arith.constant 0.000000e+00 : f32
    %74 = vector.broadcast %cst_49 : f32 to vector<8x128xf32>
    %c0_i32 = arith.constant 0 : i32
    %75 = arith.truncf %72 : vector<8x128xf32> to vector<8x128xbf16>
    %76 = arith.truncf %73 : vector<8x128xf32> to vector<8x128xbf16>
    %77 = arith.truncf %74 : vector<8x128xf32> to vector<8x128xbf16>
    %cst_50 = arith.constant dense<0.000000e+00> : vector<8x768xf32>
    %78 = tpu.matmul %75, %66, %cst_50 {dimension_numbers = #tpu.dot_dimension_numbers<[1], [0], [0], [1], [0, 0, 1, 1], [], []>} : vector<8x128xbf16>, vector<128x768xbf16>, vector<8x768xf32> -> vector<8x768xf32>
    %79 = vector.broadcast %67 : vector<1x768xf32> to vector<8x768xf32>
    %80 = arith.addf %78, %79 : vector<8x768xf32>
    %81 = vector.extract_strided_slice %80 {offsets = [0, 0], sizes = [8, 384], strides = [1, 1]} : vector<8x768xf32> to vector<8x384xf32>
    %82 = vector.extract_strided_slice %80 {offsets = [0, 384], sizes = [8, 384], strides = [1, 1]} : vector<8x768xf32> to vector<8x384xf32>
    %cst_51 = arith.constant dense<0.000000e+00> : vector<8x768xf32>
    %83 = tpu.matmul %76, %68, %cst_51 {dimension_numbers = #tpu.dot_dimension_numbers<[1], [0], [0], [1], [0, 0, 1, 1], [], []>} : vector<8x128xbf16>, vector<128x768xbf16>, vector<8x768xf32> -> vector<8x768xf32>
    %84 = vector.broadcast %69 : vector<1x768xf32> to vector<8x768xf32>
    %85 = arith.addf %83, %84 : vector<8x768xf32>
    %86 = vector.extract_strided_slice %85 {offsets = [0, 0], sizes = [8, 384], strides = [1, 1]} : vector<8x768xf32> to vector<8x384xf32>
    %87 = vector.extract_strided_slice %85 {offsets = [0, 384], sizes = [8, 384], strides = [1, 1]} : vector<8x768xf32> to vector<8x384xf32>
    %cst_52 = arith.constant dense<0.000000e+00> : vector<8x384xf32>
    %88 = tpu.matmul %77, %70, %cst_52 {dimension_numbers = #tpu.dot_dimension_numbers<[1], [0], [0], [1], [0, 0, 1, 1], [], []>} : vector<8x128xbf16>, vector<128x384xbf16>, vector<8x384xf32> -> vector<8x384xf32>
    %89 = vector.broadcast %71 : vector<1x384xf32> to vector<8x384xf32>
    %90 = arith.addf %88, %89 : vector<8x384xf32>
    %c7_i32_53 = arith.constant 7 : i32
    %91 = arith.minsi %c0_i32, %c7_i32_53 : i32
    %c8_i32 = arith.constant 8 : i32
    %92 = arith.muli %91, %c8_i32 : i32
    %93 = tpu.assume_multiple %92, 8 : i32
    %94 = arith.index_cast %93 : i32 to index
    %c0_54 = arith.constant 0 : index
    %95 = vector.load %arg18[%94, %c0_54] : memref<64x384xf32, #tpu.memory_space<vmem>>, vector<8x384xf32>
    %96 = vector.extract_strided_slice %95 {offsets = [0, 0], sizes = [8, 128], strides = [1, 1]} : vector<8x384xf32> to vector<8x128xf32>
    %97 = vector.extract_strided_slice %81 {offsets = [0, 0], sizes = [8, 128], strides = [1, 1]} : vector<8x384xf32> to vector<8x128xf32>
    %98 = arith.addf %96, %97 : vector<8x128xf32>
    %99 = arith.negf %98 : vector<8x128xf32>
    %100 = math.exp %99 : vector<8x128xf32>
    %cst_55 = arith.constant 1.000000e+00 : f32
    %101 = vector.broadcast %cst_55 : f32 to vector<8x128xf32>
    %102 = arith.addf %101, %100 : vector<8x128xf32>
    %103 = arith.divf %101, %102 : vector<8x128xf32>
    %104 = vector.extract_strided_slice %95 {offsets = [0, 128], sizes = [8, 128], strides = [1, 1]} : vector<8x384xf32> to vector<8x128xf32>
    %105 = vector.extract_strided_slice %81 {offsets = [0, 128], sizes = [8, 128], strides = [1, 1]} : vector<8x384xf32> to vector<8x128xf32>
    %106 = arith.addf %104, %105 : vector<8x128xf32>
    %107 = arith.negf %106 : vector<8x128xf32>
    %108 = math.exp %107 : vector<8x128xf32>
    %cst_56 = arith.constant 1.000000e+00 : f32
    %109 = vector.broadcast %cst_56 : f32 to vector<8x128xf32>
    %110 = arith.addf %109, %108 : vector<8x128xf32>
    %111 = arith.divf %109, %110 : vector<8x128xf32>
    %112 = vector.extract_strided_slice %95 {offsets = [0, 256], sizes = [8, 128], strides = [1, 1]} : vector<8x384xf32> to vector<8x128xf32>
    %113 = vector.extract_strided_slice %81 {offsets = [0, 256], sizes = [8, 128], strides = [1, 1]} : vector<8x384xf32> to vector<8x128xf32>
    %114 = arith.mulf %103, %113 : vector<8x128xf32>
    %115 = arith.addf %112, %114 : vector<8x128xf32>
    %116 = math.tanh %115 : vector<8x128xf32>
    %cst_57 = arith.constant 1.000000e+00 : f32
    %117 = vector.broadcast %cst_57 : f32 to vector<8x128xf32>
    %118 = arith.subf %117, %111 : vector<8x128xf32>
    %119 = arith.mulf %118, %116 : vector<8x128xf32>
    %120 = arith.mulf %111, %72 : vector<8x128xf32>
    %121 = arith.addf %119, %120 : vector<8x128xf32>
    %122 = vector.extract_strided_slice %82 {offsets = [0, 0], sizes = [8, 128], strides = [1, 1]} : vector<8x384xf32> to vector<8x128xf32>
    %123 = vector.extract_strided_slice %86 {offsets = [0, 0], sizes = [8, 128], strides = [1, 1]} : vector<8x384xf32> to vector<8x128xf32>
    %124 = arith.addf %122, %123 : vector<8x128xf32>
    %125 = arith.negf %124 : vector<8x128xf32>
    %126 = math.exp %125 : vector<8x128xf32>
    %cst_58 = arith.constant 1.000000e+00 : f32
    %127 = vector.broadcast %cst_58 : f32 to vector<8x128xf32>
    %128 = arith.addf %127, %126 : vector<8x128xf32>
    %129 = arith.divf %127, %128 : vector<8x128xf32>
    %130 = vector.extract_strided_slice %82 {offsets = [0, 128], sizes = [8, 128], strides = [1, 1]} : vector<8x384xf32> to vector<8x128xf32>
    %131 = vector.extract_strided_slice %86 {offsets = [0, 128], sizes = [8, 128], strides = [1, 1]} : vector<8x384xf32> to vector<8x128xf32>
    %132 = arith.addf %130, %131 : vector<8x128xf32>
    %133 = arith.negf %132 : vector<8x128xf32>
    %134 = math.exp %133 : vector<8x128xf32>
    %cst_59 = arith.constant 1.000000e+00 : f32
    %135 = vector.broadcast %cst_59 : f32 to vector<8x128xf32>
    %136 = arith.addf %135, %134 : vector<8x128xf32>
    %137 = arith.divf %135, %136 : vector<8x128xf32>
    %138 = vector.extract_strided_slice %82 {offsets = [0, 256], sizes = [8, 128], strides = [1, 1]} : vector<8x384xf32> to vector<8x128xf32>
    %139 = vector.extract_strided_slice %86 {offsets = [0, 256], sizes = [8, 128], strides = [1, 1]} : vector<8x384xf32> to vector<8x128xf32>
    %140 = arith.mulf %129, %139 : vector<8x128xf32>
    %141 = arith.addf %138, %140 : vector<8x128xf32>
    %142 = math.tanh %141 : vector<8x128xf32>
    %cst_60 = arith.constant 1.000000e+00 : f32
    %143 = vector.broadcast %cst_60 : f32 to vector<8x128xf32>
    %144 = arith.subf %143, %137 : vector<8x128xf32>
    %145 = arith.mulf %144, %142 : vector<8x128xf32>
    %146 = arith.mulf %137, %73 : vector<8x128xf32>
    %147 = arith.addf %145, %146 : vector<8x128xf32>
    %148 = vector.extract_strided_slice %87 {offsets = [0, 0], sizes = [8, 128], strides = [1, 1]} : vector<8x384xf32> to vector<8x128xf32>
    %149 = vector.extract_strided_slice %90 {offsets = [0, 0], sizes = [8, 128], strides = [1, 1]} : vector<8x384xf32> to vector<8x128xf32>
    %150 = arith.addf %148, %149 : vector<8x128xf32>
    %151 = arith.negf %150 : vector<8x128xf32>
    %152 = math.exp %151 : vector<8x128xf32>
    %cst_61 = arith.constant 1.000000e+00 : f32
    %153 = vector.broadcast %cst_61 : f32 to vector<8x128xf32>
    %154 = arith.addf %153, %152 : vector<8x128xf32>
    %155 = arith.divf %153, %154 : vector<8x128xf32>
    %156 = vector.extract_strided_slice %87 {offsets = [0, 128], sizes = [8, 128], strides = [1, 1]} : vector<8x384xf32> to vector<8x128xf32>
    %157 = vector.extract_strided_slice %90 {offsets = [0, 128], sizes = [8, 128], strides = [1, 1]} : vector<8x384xf32> to vector<8x128xf32>
    %158 = arith.addf %156, %157 : vector<8x128xf32>
    %159 = arith.negf %158 : vector<8x128xf32>
    %160 = math.exp %159 : vector<8x128xf32>
    %cst_62 = arith.constant 1.000000e+00 : f32
    %161 = vector.broadcast %cst_62 : f32 to vector<8x128xf32>
    %162 = arith.addf %161, %160 : vector<8x128xf32>
    %163 = arith.divf %161, %162 : vector<8x128xf32>
    %164 = vector.extract_strided_slice %87 {offsets = [0, 256], sizes = [8, 128], strides = [1, 1]} : vector<8x384xf32> to vector<8x128xf32>
    %165 = vector.extract_strided_slice %90 {offsets = [0, 256], sizes = [8, 128], strides = [1, 1]} : vector<8x384xf32> to vector<8x128xf32>
    %166 = arith.mulf %155, %165 : vector<8x128xf32>
    %167 = arith.addf %164, %166 : vector<8x128xf32>
    %168 = math.tanh %167 : vector<8x128xf32>
    %cst_63 = arith.constant 1.000000e+00 : f32
    %169 = vector.broadcast %cst_63 : f32 to vector<8x128xf32>
    %170 = arith.subf %169, %163 : vector<8x128xf32>
    %171 = arith.mulf %170, %168 : vector<8x128xf32>
    %172 = arith.mulf %163, %74 : vector<8x128xf32>
    %173 = arith.addf %171, %172 : vector<8x128xf32>
    %c2_i32 = arith.constant 2 : i32
    %174 = arith.cmpi sge, %c0_i32, %c2_i32 : i32
    %175 = arith.extui %174 : i1 to i32
    %c0_i32_64 = arith.constant 0 : i32
    %176 = arith.cmpi ne, %175, %c0_i32_64 : i32
    scf.if %176 {
      %c2_i32_269 = arith.constant 2 : i32
      %1184 = arith.subi %c0_i32, %c2_i32_269 : i32
      %c0_i32_270 = arith.constant 0 : i32
      %1185 = arith.maxsi %1184, %c0_i32_270 : i32
      %c8_i32_271 = arith.constant 8 : i32
      %1186 = arith.muli %1185, %c8_i32_271 : i32
      %1187 = tpu.assume_multiple %1186, 8 : i32
      %c0_272 = arith.constant 0 : index
      %1188 = arith.index_cast %1187 : i32 to index
      %c0_273 = arith.constant 0 : index
      %1189 = vector.load %arg16[%c0_272, %1188, %c0_273] : memref<1x64x128xf32, #tpu.memory_space<vmem>>, vector<1x8x128xf32>
      %1190 = vector.shape_cast %1189 : vector<1x8x128xf32> to vector<8x128xf32>
      %1191 = vector.shape_cast %173 : vector<8x128xf32> to vector<1x8x128xf32>
      tpu.vector_store %arg16[%c0_272, %1188, %c0_273], %1191 {strides = array<i32>} : memref<1x64x128xf32, #tpu.memory_space<vmem>>, vector<1x8x128xf32>,
    } else {
    }
    %c8_i32_65 = arith.constant 8 : i32
    %177 = arith.cmpi slt, %c0_i32, %c8_i32_65 : i32
    %178 = arith.select %177, %121, %72 : vector<8x128xf32>
    %c1_i32 = arith.constant 1 : i32
    %179 = arith.cmpi sge, %c0_i32, %c1_i32 : i32
    %c8_i32_66 = arith.constant 8 : i32
    %180 = arith.cmpi sle, %c0_i32, %c8_i32_66 : i32
    %181 = arith.andi %179, %180 : i1
    %182 = arith.select %181, %147, %73 : vector<8x128xf32>
    %c2_i32_67 = arith.constant 2 : i32
    %183 = arith.cmpi sge, %c0_i32, %c2_i32_67 : i32
    %184 = arith.select %183, %173, %74 : vector<8x128xf32>
    %c1_i32_68 = arith.constant 1 : i32
    %185 = arith.truncf %178 : vector<8x128xf32> to vector<8x128xbf16>
    %186 = arith.truncf %182 : vector<8x128xf32> to vector<8x128xbf16>
    %187 = arith.truncf %184 : vector<8x128xf32> to vector<8x128xbf16>
    %cst_69 = arith.constant dense<0.000000e+00> : vector<8x768xf32>
    %188 = tpu.matmul %185, %66, %cst_69 {dimension_numbers = #tpu.dot_dimension_numbers<[1], [0], [0], [1], [0, 0, 1, 1], [], []>} : vector<8x128xbf16>, vector<128x768xbf16>, vector<8x768xf32> -> vector<8x768xf32>
    %189 = vector.broadcast %67 : vector<1x768xf32> to vector<8x768xf32>
    %190 = arith.addf %188, %189 : vector<8x768xf32>
    %191 = vector.extract_strided_slice %190 {offsets = [0, 0], sizes = [8, 384], strides = [1, 1]} : vector<8x768xf32> to vector<8x384xf32>
    %192 = vector.extract_strided_slice %190 {offsets = [0, 384], sizes = [8, 384], strides = [1, 1]} : vector<8x768xf32> to vector<8x384xf32>
    %cst_70 = arith.constant dense<0.000000e+00> : vector<8x768xf32>
    %193 = tpu.matmul %186, %68, %cst_70 {dimension_numbers = #tpu.dot_dimension_numbers<[1], [0], [0], [1], [0, 0, 1, 1], [], []>} : vector<8x128xbf16>, vector<128x768xbf16>, vector<8x768xf32> -> vector<8x768xf32>
    %194 = vector.broadcast %69 : vector<1x768xf32> to vector<8x768xf32>
    %195 = arith.addf %193, %194 : vector<8x768xf32>
    %196 = vector.extract_strided_slice %195 {offsets = [0, 0], sizes = [8, 384], strides = [1, 1]} : vector<8x768xf32> to vector<8x384xf32>
    %197 = vector.extract_strided_slice %195 {offsets = [0, 384], sizes = [8, 384], strides = [1, 1]} : vector<8x768xf32> to vector<8x384xf32>
    %cst_71 = arith.constant dense<0.000000e+00> : vector<8x384xf32>
    %198 = tpu.matmul %187, %70, %cst_71 {dimension_numbers = #tpu.dot_dimension_numbers<[1], [0], [0], [1], [0, 0, 1, 1], [], []>} : vector<8x128xbf16>, vector<128x384xbf16>, vector<8x384xf32> -> vector<8x384xf32>
    %199 = vector.broadcast %71 : vector<1x384xf32> to vector<8x384xf32>
    %200 = arith.addf %198, %199 : vector<8x384xf32>
    %c7_i32_72 = arith.constant 7 : i32
    %201 = arith.minsi %c1_i32_68, %c7_i32_72 : i32
    %c8_i32_73 = arith.constant 8 : i32
    %202 = arith.muli %201, %c8_i32_73 : i32
    %203 = tpu.assume_multiple %202, 8 : i32
    %204 = arith.index_cast %203 : i32 to index
    %c0_74 = arith.constant 0 : index
    %205 = vector.load %arg18[%204, %c0_74] : memref<64x384xf32, #tpu.memory_space<vmem>>, vector<8x384xf32>
    %206 = vector.extract_strided_slice %205 {offsets = [0, 0], sizes = [8, 128], strides = [1, 1]} : vector<8x384xf32> to vector<8x128xf32>
    %207 = vector.extract_strided_slice %191 {offsets = [0, 0], sizes = [8, 128], strides = [1, 1]} : vector<8x384xf32> to vector<8x128xf32>
    %208 = arith.addf %206, %207 : vector<8x128xf32>
    %209 = arith.negf %208 : vector<8x128xf32>
    %210 = math.exp %209 : vector<8x128xf32>
    %cst_75 = arith.constant 1.000000e+00 : f32
    %211 = vector.broadcast %cst_75 : f32 to vector<8x128xf32>
    %212 = arith.addf %211, %210 : vector<8x128xf32>
    %213 = arith.divf %211, %212 : vector<8x128xf32>
    %214 = vector.extract_strided_slice %205 {offsets = [0, 128], sizes = [8, 128], strides = [1, 1]} : vector<8x384xf32> to vector<8x128xf32>
    %215 = vector.extract_strided_slice %191 {offsets = [0, 128], sizes = [8, 128], strides = [1, 1]} : vector<8x384xf32> to vector<8x128xf32>
    %216 = arith.addf %214, %215 : vector<8x128xf32>
    %217 = arith.negf %216 : vector<8x128xf32>
    %218 = math.exp %217 : vector<8x128xf32>
    %cst_76 = arith.constant 1.000000e+00 : f32
    %219 = vector.broadcast %cst_76 : f32 to vector<8x128xf32>
    %220 = arith.addf %219, %218 : vector<8x128xf32>
    %221 = arith.divf %219, %220 : vector<8x128xf32>
    %222 = vector.extract_strided_slice %205 {offsets = [0, 256], sizes = [8, 128], strides = [1, 1]} : vector<8x384xf32> to vector<8x128xf32>
    %223 = vector.extract_strided_slice %191 {offsets = [0, 256], sizes = [8, 128], strides = [1, 1]} : vector<8x384xf32> to vector<8x128xf32>
    %224 = arith.mulf %213, %223 : vector<8x128xf32>
    %225 = arith.addf %222, %224 : vector<8x128xf32>
    %226 = math.tanh %225 : vector<8x128xf32>
    %cst_77 = arith.constant 1.000000e+00 : f32
    %227 = vector.broadcast %cst_77 : f32 to vector<8x128xf32>
    %228 = arith.subf %227, %221 : vector<8x128xf32>
    %229 = arith.mulf %228, %226 : vector<8x128xf32>
    %230 = arith.mulf %221, %178 : vector<8x128xf32>
    %231 = arith.addf %229, %230 : vector<8x128xf32>
    %232 = vector.extract_strided_slice %192 {offsets = [0, 0], sizes = [8, 128], strides = [1, 1]} : vector<8x384xf32> to vector<8x128xf32>
    %233 = vector.extract_strided_slice %196 {offsets = [0, 0], sizes = [8, 128], strides = [1, 1]} : vector<8x384xf32> to vector<8x128xf32>
    %234 = arith.addf %232, %233 : vector<8x128xf32>
    %235 = arith.negf %234 : vector<8x128xf32>
    %236 = math.exp %235 : vector<8x128xf32>
    %cst_78 = arith.constant 1.000000e+00 : f32
    %237 = vector.broadcast %cst_78 : f32 to vector<8x128xf32>
    %238 = arith.addf %237, %236 : vector<8x128xf32>
    %239 = arith.divf %237, %238 : vector<8x128xf32>
    %240 = vector.extract_strided_slice %192 {offsets = [0, 128], sizes = [8, 128], strides = [1, 1]} : vector<8x384xf32> to vector<8x128xf32>
    %241 = vector.extract_strided_slice %196 {offsets = [0, 128], sizes = [8, 128], strides = [1, 1]} : vector<8x384xf32> to vector<8x128xf32>
    %242 = arith.addf %240, %241 : vector<8x128xf32>
    %243 = arith.negf %242 : vector<8x128xf32>
    %244 = math.exp %243 : vector<8x128xf32>
    %cst_79 = arith.constant 1.000000e+00 : f32
    %245 = vector.broadcast %cst_79 : f32 to vector<8x128xf32>
    %246 = arith.addf %245, %244 : vector<8x128xf32>
    %247 = arith.divf %245, %246 : vector<8x128xf32>
    %248 = vector.extract_strided_slice %192 {offsets = [0, 256], sizes = [8, 128], strides = [1, 1]} : vector<8x384xf32> to vector<8x128xf32>
    %249 = vector.extract_strided_slice %196 {offsets = [0, 256], sizes = [8, 128], strides = [1, 1]} : vector<8x384xf32> to vector<8x128xf32>
    %250 = arith.mulf %239, %249 : vector<8x128xf32>
    %251 = arith.addf %248, %250 : vector<8x128xf32>
    %252 = math.tanh %251 : vector<8x128xf32>
    %cst_80 = arith.constant 1.000000e+00 : f32
    %253 = vector.broadcast %cst_80 : f32 to vector<8x128xf32>
    %254 = arith.subf %253, %247 : vector<8x128xf32>
    %255 = arith.mulf %254, %252 : vector<8x128xf32>
    %256 = arith.mulf %247, %182 : vector<8x128xf32>
    %257 = arith.addf %255, %256 : vector<8x128xf32>
    %258 = vector.extract_strided_slice %197 {offsets = [0, 0], sizes = [8, 128], strides = [1, 1]} : vector<8x384xf32> to vector<8x128xf32>
    %259 = vector.extract_strided_slice %200 {offsets = [0, 0], sizes = [8, 128], strides = [1, 1]} : vector<8x384xf32> to vector<8x128xf32>
    %260 = arith.addf %258, %259 : vector<8x128xf32>
    %261 = arith.negf %260 : vector<8x128xf32>
    %262 = math.exp %261 : vector<8x128xf32>
    %cst_81 = arith.constant 1.000000e+00 : f32
    %263 = vector.broadcast %cst_81 : f32 to vector<8x128xf32>
    %264 = arith.addf %263, %262 : vector<8x128xf32>
    %265 = arith.divf %263, %264 : vector<8x128xf32>
    %266 = vector.extract_strided_slice %197 {offsets = [0, 128], sizes = [8, 128], strides = [1, 1]} : vector<8x384xf32> to vector<8x128xf32>
    %267 = vector.extract_strided_slice %200 {offsets = [0, 128], sizes = [8, 128], strides = [1, 1]} : vector<8x384xf32> to vector<8x128xf32>
    %268 = arith.addf %266, %267 : vector<8x128xf32>
    %269 = arith.negf %268 : vector<8x128xf32>
    %270 = math.exp %269 : vector<8x128xf32>
    %cst_82 = arith.constant 1.000000e+00 : f32
    %271 = vector.broadcast %cst_82 : f32 to vector<8x128xf32>
    %272 = arith.addf %271, %270 : vector<8x128xf32>
    %273 = arith.divf %271, %272 : vector<8x128xf32>
    %274 = vector.extract_strided_slice %197 {offsets = [0, 256], sizes = [8, 128], strides = [1, 1]} : vector<8x384xf32> to vector<8x128xf32>
    %275 = vector.extract_strided_slice %200 {offsets = [0, 256], sizes = [8, 128], strides = [1, 1]} : vector<8x384xf32> to vector<8x128xf32>
    %276 = arith.mulf %265, %275 : vector<8x128xf32>
    %277 = arith.addf %274, %276 : vector<8x128xf32>
    %278 = math.tanh %277 : vector<8x128xf32>
    %cst_83 = arith.constant 1.000000e+00 : f32
    %279 = vector.broadcast %cst_83 : f32 to vector<8x128xf32>
    %280 = arith.subf %279, %273 : vector<8x128xf32>
    %281 = arith.mulf %280, %278 : vector<8x128xf32>
    %282 = arith.mulf %273, %184 : vector<8x128xf32>
    %283 = arith.addf %281, %282 : vector<8x128xf32>
    %c2_i32_84 = arith.constant 2 : i32
    %284 = arith.cmpi sge, %c1_i32_68, %c2_i32_84 : i32
    %285 = arith.extui %284 : i1 to i32
    %c0_i32_85 = arith.constant 0 : i32
    %286 = arith.cmpi ne, %285, %c0_i32_85 : i32
    scf.if %286 {
      %c2_i32_269 = arith.constant 2 : i32
      %1184 = arith.subi %c1_i32_68, %c2_i32_269 : i32
      %c0_i32_270 = arith.constant 0 : i32
      %1185 = arith.maxsi %1184, %c0_i32_270 : i32
      %c8_i32_271 = arith.constant 8 : i32
      %1186 = arith.muli %1185, %c8_i32_271 : i32
      %1187 = tpu.assume_multiple %1186, 8 : i32
      %c0_272 = arith.constant 0 : index
      %1188 = arith.index_cast %1187 : i32 to index
      %c0_273 = arith.constant 0 : index
      %1189 = vector.load %arg16[%c0_272, %1188, %c0_273] : memref<1x64x128xf32, #tpu.memory_space<vmem>>, vector<1x8x128xf32>
      %1190 = vector.shape_cast %1189 : vector<1x8x128xf32> to vector<8x128xf32>
      %1191 = vector.shape_cast %283 : vector<8x128xf32> to vector<1x8x128xf32>
      tpu.vector_store %arg16[%c0_272, %1188, %c0_273], %1191 {strides = array<i32>} : memref<1x64x128xf32, #tpu.memory_space<vmem>>, vector<1x8x128xf32>,
    } else {
    }
    %c8_i32_86 = arith.constant 8 : i32
    %287 = arith.cmpi slt, %c1_i32_68, %c8_i32_86 : i32
    %288 = arith.select %287, %231, %178 : vector<8x128xf32>
    %c1_i32_87 = arith.constant 1 : i32
    %289 = arith.cmpi sge, %c1_i32_68, %c1_i32_87 : i32
    %c8_i32_88 = arith.constant 8 : i32
    %290 = arith.cmpi sle, %c1_i32_68, %c8_i32_88 : i32
    %291 = arith.andi %289, %290 : i1
    %292 = arith.select %291, %257, %182 : vector<8x128xf32>
    %c2_i32_89 = arith.constant 2 : i32
    %293 = arith.cmpi sge, %c1_i32_68, %c2_i32_89 : i32
    %294 = arith.select %293, %283, %184 : vector<8x128xf32>
    %c2_i32_90 = arith.constant 2 : i32
    %295 = arith.truncf %288 : vector<8x128xf32> to vector<8x128xbf16>
    %296 = arith.truncf %292 : vector<8x128xf32> to vector<8x128xbf16>
    %297 = arith.truncf %294 : vector<8x128xf32> to vector<8x128xbf16>
    %cst_91 = arith.constant dense<0.000000e+00> : vector<8x768xf32>
    %298 = tpu.matmul %295, %66, %cst_91 {dimension_numbers = #tpu.dot_dimension_numbers<[1], [0], [0], [1], [0, 0, 1, 1], [], []>} : vector<8x128xbf16>, vector<128x768xbf16>, vector<8x768xf32> -> vector<8x768xf32>
    %299 = vector.broadcast %67 : vector<1x768xf32> to vector<8x768xf32>
    %300 = arith.addf %298, %299 : vector<8x768xf32>
    %301 = vector.extract_strided_slice %300 {offsets = [0, 0], sizes = [8, 384], strides = [1, 1]} : vector<8x768xf32> to vector<8x384xf32>
    %302 = vector.extract_strided_slice %300 {offsets = [0, 384], sizes = [8, 384], strides = [1, 1]} : vector<8x768xf32> to vector<8x384xf32>
    %cst_92 = arith.constant dense<0.000000e+00> : vector<8x768xf32>
    %303 = tpu.matmul %296, %68, %cst_92 {dimension_numbers = #tpu.dot_dimension_numbers<[1], [0], [0], [1], [0, 0, 1, 1], [], []>} : vector<8x128xbf16>, vector<128x768xbf16>, vector<8x768xf32> -> vector<8x768xf32>
    %304 = vector.broadcast %69 : vector<1x768xf32> to vector<8x768xf32>
    %305 = arith.addf %303, %304 : vector<8x768xf32>
    %306 = vector.extract_strided_slice %305 {offsets = [0, 0], sizes = [8, 384], strides = [1, 1]} : vector<8x768xf32> to vector<8x384xf32>
    %307 = vector.extract_strided_slice %305 {offsets = [0, 384], sizes = [8, 384], strides = [1, 1]} : vector<8x768xf32> to vector<8x384xf32>
    %cst_93 = arith.constant dense<0.000000e+00> : vector<8x384xf32>
    %308 = tpu.matmul %297, %70, %cst_93 {dimension_numbers = #tpu.dot_dimension_numbers<[1], [0], [0], [1], [0, 0, 1, 1], [], []>} : vector<8x128xbf16>, vector<128x384xbf16>, vector<8x384xf32> -> vector<8x384xf32>
    %309 = vector.broadcast %71 : vector<1x384xf32> to vector<8x384xf32>
    %310 = arith.addf %308, %309 : vector<8x384xf32>
    %c7_i32_94 = arith.constant 7 : i32
    %311 = arith.minsi %c2_i32_90, %c7_i32_94 : i32
    %c8_i32_95 = arith.constant 8 : i32
    %312 = arith.muli %311, %c8_i32_95 : i32
    %313 = tpu.assume_multiple %312, 8 : i32
    %314 = arith.index_cast %313 : i32 to index
    %c0_96 = arith.constant 0 : index
    %315 = vector.load %arg18[%314, %c0_96] : memref<64x384xf32, #tpu.memory_space<vmem>>, vector<8x384xf32>
    %316 = vector.extract_strided_slice %315 {offsets = [0, 0], sizes = [8, 128], strides = [1, 1]} : vector<8x384xf32> to vector<8x128xf32>
    %317 = vector.extract_strided_slice %301 {offsets = [0, 0], sizes = [8, 128], strides = [1, 1]} : vector<8x384xf32> to vector<8x128xf32>
    %318 = arith.addf %316, %317 : vector<8x128xf32>
    %319 = arith.negf %318 : vector<8x128xf32>
    %320 = math.exp %319 : vector<8x128xf32>
    %cst_97 = arith.constant 1.000000e+00 : f32
    %321 = vector.broadcast %cst_97 : f32 to vector<8x128xf32>
    %322 = arith.addf %321, %320 : vector<8x128xf32>
    %323 = arith.divf %321, %322 : vector<8x128xf32>
    %324 = vector.extract_strided_slice %315 {offsets = [0, 128], sizes = [8, 128], strides = [1, 1]} : vector<8x384xf32> to vector<8x128xf32>
    %325 = vector.extract_strided_slice %301 {offsets = [0, 128], sizes = [8, 128], strides = [1, 1]} : vector<8x384xf32> to vector<8x128xf32>
    %326 = arith.addf %324, %325 : vector<8x128xf32>
    %327 = arith.negf %326 : vector<8x128xf32>
    %328 = math.exp %327 : vector<8x128xf32>
    %cst_98 = arith.constant 1.000000e+00 : f32
    %329 = vector.broadcast %cst_98 : f32 to vector<8x128xf32>
    %330 = arith.addf %329, %328 : vector<8x128xf32>
    %331 = arith.divf %329, %330 : vector<8x128xf32>
    %332 = vector.extract_strided_slice %315 {offsets = [0, 256], sizes = [8, 128], strides = [1, 1]} : vector<8x384xf32> to vector<8x128xf32>
    %333 = vector.extract_strided_slice %301 {offsets = [0, 256], sizes = [8, 128], strides = [1, 1]} : vector<8x384xf32> to vector<8x128xf32>
    %334 = arith.mulf %323, %333 : vector<8x128xf32>
    %335 = arith.addf %332, %334 : vector<8x128xf32>
    %336 = math.tanh %335 : vector<8x128xf32>
    %cst_99 = arith.constant 1.000000e+00 : f32
    %337 = vector.broadcast %cst_99 : f32 to vector<8x128xf32>
    %338 = arith.subf %337, %331 : vector<8x128xf32>
    %339 = arith.mulf %338, %336 : vector<8x128xf32>
    %340 = arith.mulf %331, %288 : vector<8x128xf32>
    %341 = arith.addf %339, %340 : vector<8x128xf32>
    %342 = vector.extract_strided_slice %302 {offsets = [0, 0], sizes = [8, 128], strides = [1, 1]} : vector<8x384xf32> to vector<8x128xf32>
    %343 = vector.extract_strided_slice %306 {offsets = [0, 0], sizes = [8, 128], strides = [1, 1]} : vector<8x384xf32> to vector<8x128xf32>
    %344 = arith.addf %342, %343 : vector<8x128xf32>
    %345 = arith.negf %344 : vector<8x128xf32>
    %346 = math.exp %345 : vector<8x128xf32>
    %cst_100 = arith.constant 1.000000e+00 : f32
    %347 = vector.broadcast %cst_100 : f32 to vector<8x128xf32>
    %348 = arith.addf %347, %346 : vector<8x128xf32>
    %349 = arith.divf %347, %348 : vector<8x128xf32>
    %350 = vector.extract_strided_slice %302 {offsets = [0, 128], sizes = [8, 128], strides = [1, 1]} : vector<8x384xf32> to vector<8x128xf32>
    %351 = vector.extract_strided_slice %306 {offsets = [0, 128], sizes = [8, 128], strides = [1, 1]} : vector<8x384xf32> to vector<8x128xf32>
    %352 = arith.addf %350, %351 : vector<8x128xf32>
    %353 = arith.negf %352 : vector<8x128xf32>
    %354 = math.exp %353 : vector<8x128xf32>
    %cst_101 = arith.constant 1.000000e+00 : f32
    %355 = vector.broadcast %cst_101 : f32 to vector<8x128xf32>
    %356 = arith.addf %355, %354 : vector<8x128xf32>
    %357 = arith.divf %355, %356 : vector<8x128xf32>
    %358 = vector.extract_strided_slice %302 {offsets = [0, 256], sizes = [8, 128], strides = [1, 1]} : vector<8x384xf32> to vector<8x128xf32>
    %359 = vector.extract_strided_slice %306 {offsets = [0, 256], sizes = [8, 128], strides = [1, 1]} : vector<8x384xf32> to vector<8x128xf32>
    %360 = arith.mulf %349, %359 : vector<8x128xf32>
    %361 = arith.addf %358, %360 : vector<8x128xf32>
    %362 = math.tanh %361 : vector<8x128xf32>
    %cst_102 = arith.constant 1.000000e+00 : f32
    %363 = vector.broadcast %cst_102 : f32 to vector<8x128xf32>
    %364 = arith.subf %363, %357 : vector<8x128xf32>
    %365 = arith.mulf %364, %362 : vector<8x128xf32>
    %366 = arith.mulf %357, %292 : vector<8x128xf32>
    %367 = arith.addf %365, %366 : vector<8x128xf32>
    %368 = vector.extract_strided_slice %307 {offsets = [0, 0], sizes = [8, 128], strides = [1, 1]} : vector<8x384xf32> to vector<8x128xf32>
    %369 = vector.extract_strided_slice %310 {offsets = [0, 0], sizes = [8, 128], strides = [1, 1]} : vector<8x384xf32> to vector<8x128xf32>
    %370 = arith.addf %368, %369 : vector<8x128xf32>
    %371 = arith.negf %370 : vector<8x128xf32>
    %372 = math.exp %371 : vector<8x128xf32>
    %cst_103 = arith.constant 1.000000e+00 : f32
    %373 = vector.broadcast %cst_103 : f32 to vector<8x128xf32>
    %374 = arith.addf %373, %372 : vector<8x128xf32>
    %375 = arith.divf %373, %374 : vector<8x128xf32>
    %376 = vector.extract_strided_slice %307 {offsets = [0, 128], sizes = [8, 128], strides = [1, 1]} : vector<8x384xf32> to vector<8x128xf32>
    %377 = vector.extract_strided_slice %310 {offsets = [0, 128], sizes = [8, 128], strides = [1, 1]} : vector<8x384xf32> to vector<8x128xf32>
    %378 = arith.addf %376, %377 : vector<8x128xf32>
    %379 = arith.negf %378 : vector<8x128xf32>
    %380 = math.exp %379 : vector<8x128xf32>
    %cst_104 = arith.constant 1.000000e+00 : f32
    %381 = vector.broadcast %cst_104 : f32 to vector<8x128xf32>
    %382 = arith.addf %381, %380 : vector<8x128xf32>
    %383 = arith.divf %381, %382 : vector<8x128xf32>
    %384 = vector.extract_strided_slice %307 {offsets = [0, 256], sizes = [8, 128], strides = [1, 1]} : vector<8x384xf32> to vector<8x128xf32>
    %385 = vector.extract_strided_slice %310 {offsets = [0, 256], sizes = [8, 128], strides = [1, 1]} : vector<8x384xf32> to vector<8x128xf32>
    %386 = arith.mulf %375, %385 : vector<8x128xf32>
    %387 = arith.addf %384, %386 : vector<8x128xf32>
    %388 = math.tanh %387 : vector<8x128xf32>
    %cst_105 = arith.constant 1.000000e+00 : f32
    %389 = vector.broadcast %cst_105 : f32 to vector<8x128xf32>
    %390 = arith.subf %389, %383 : vector<8x128xf32>
    %391 = arith.mulf %390, %388 : vector<8x128xf32>
    %392 = arith.mulf %383, %294 : vector<8x128xf32>
    %393 = arith.addf %391, %392 : vector<8x128xf32>
    %c2_i32_106 = arith.constant 2 : i32
    %394 = arith.cmpi sge, %c2_i32_90, %c2_i32_106 : i32
    %395 = arith.extui %394 : i1 to i32
    %c0_i32_107 = arith.constant 0 : i32
    %396 = arith.cmpi ne, %395, %c0_i32_107 : i32
    scf.if %396 {
      %c2_i32_269 = arith.constant 2 : i32
      %1184 = arith.subi %c2_i32_90, %c2_i32_269 : i32
      %c0_i32_270 = arith.constant 0 : i32
      %1185 = arith.maxsi %1184, %c0_i32_270 : i32
      %c8_i32_271 = arith.constant 8 : i32
      %1186 = arith.muli %1185, %c8_i32_271 : i32
      %1187 = tpu.assume_multiple %1186, 8 : i32
      %c0_272 = arith.constant 0 : index
      %1188 = arith.index_cast %1187 : i32 to index
      %c0_273 = arith.constant 0 : index
      %1189 = vector.load %arg16[%c0_272, %1188, %c0_273] : memref<1x64x128xf32, #tpu.memory_space<vmem>>, vector<1x8x128xf32>
      %1190 = vector.shape_cast %1189 : vector<1x8x128xf32> to vector<8x128xf32>
      %1191 = vector.shape_cast %393 : vector<8x128xf32> to vector<1x8x128xf32>
      tpu.vector_store %arg16[%c0_272, %1188, %c0_273], %1191 {strides = array<i32>} : memref<1x64x128xf32, #tpu.memory_space<vmem>>, vector<1x8x128xf32>,
    } else {
    }
    %c8_i32_108 = arith.constant 8 : i32
    %397 = arith.cmpi slt, %c2_i32_90, %c8_i32_108 : i32
    %398 = arith.select %397, %341, %288 : vector<8x128xf32>
    %c1_i32_109 = arith.constant 1 : i32
    %399 = arith.cmpi sge, %c2_i32_90, %c1_i32_109 : i32
    %c8_i32_110 = arith.constant 8 : i32
    %400 = arith.cmpi sle, %c2_i32_90, %c8_i32_110 : i32
    %401 = arith.andi %399, %400 : i1
    %402 = arith.select %401, %367, %292 : vector<8x128xf32>
    %c2_i32_111 = arith.constant 2 : i32
    %403 = arith.cmpi sge, %c2_i32_90, %c2_i32_111 : i32
    %404 = arith.select %403, %393, %294 : vector<8x128xf32>
    %c3_i32 = arith.constant 3 : i32
    %405 = arith.truncf %398 : vector<8x128xf32> to vector<8x128xbf16>
    %406 = arith.truncf %402 : vector<8x128xf32> to vector<8x128xbf16>
    %407 = arith.truncf %404 : vector<8x128xf32> to vector<8x128xbf16>
    %cst_112 = arith.constant dense<0.000000e+00> : vector<8x768xf32>
    %408 = tpu.matmul %405, %66, %cst_112 {dimension_numbers = #tpu.dot_dimension_numbers<[1], [0], [0], [1], [0, 0, 1, 1], [], []>} : vector<8x128xbf16>, vector<128x768xbf16>, vector<8x768xf32> -> vector<8x768xf32>
    %409 = vector.broadcast %67 : vector<1x768xf32> to vector<8x768xf32>
    %410 = arith.addf %408, %409 : vector<8x768xf32>
    %411 = vector.extract_strided_slice %410 {offsets = [0, 0], sizes = [8, 384], strides = [1, 1]} : vector<8x768xf32> to vector<8x384xf32>
    %412 = vector.extract_strided_slice %410 {offsets = [0, 384], sizes = [8, 384], strides = [1, 1]} : vector<8x768xf32> to vector<8x384xf32>
    %cst_113 = arith.constant dense<0.000000e+00> : vector<8x768xf32>
    %413 = tpu.matmul %406, %68, %cst_113 {dimension_numbers = #tpu.dot_dimension_numbers<[1], [0], [0], [1], [0, 0, 1, 1], [], []>} : vector<8x128xbf16>, vector<128x768xbf16>, vector<8x768xf32> -> vector<8x768xf32>
    %414 = vector.broadcast %69 : vector<1x768xf32> to vector<8x768xf32>
    %415 = arith.addf %413, %414 : vector<8x768xf32>
    %416 = vector.extract_strided_slice %415 {offsets = [0, 0], sizes = [8, 384], strides = [1, 1]} : vector<8x768xf32> to vector<8x384xf32>
    %417 = vector.extract_strided_slice %415 {offsets = [0, 384], sizes = [8, 384], strides = [1, 1]} : vector<8x768xf32> to vector<8x384xf32>
    %cst_114 = arith.constant dense<0.000000e+00> : vector<8x384xf32>
    %418 = tpu.matmul %407, %70, %cst_114 {dimension_numbers = #tpu.dot_dimension_numbers<[1], [0], [0], [1], [0, 0, 1, 1], [], []>} : vector<8x128xbf16>, vector<128x384xbf16>, vector<8x384xf32> -> vector<8x384xf32>
    %419 = vector.broadcast %71 : vector<1x384xf32> to vector<8x384xf32>
    %420 = arith.addf %418, %419 : vector<8x384xf32>
    %c7_i32_115 = arith.constant 7 : i32
    %421 = arith.minsi %c3_i32, %c7_i32_115 : i32
    %c8_i32_116 = arith.constant 8 : i32
    %422 = arith.muli %421, %c8_i32_116 : i32
    %423 = tpu.assume_multiple %422, 8 : i32
    %424 = arith.index_cast %423 : i32 to index
    %c0_117 = arith.constant 0 : index
    %425 = vector.load %arg18[%424, %c0_117] : memref<64x384xf32, #tpu.memory_space<vmem>>, vector<8x384xf32>
    %426 = vector.extract_strided_slice %425 {offsets = [0, 0], sizes = [8, 128], strides = [1, 1]} : vector<8x384xf32> to vector<8x128xf32>
    %427 = vector.extract_strided_slice %411 {offsets = [0, 0], sizes = [8, 128], strides = [1, 1]} : vector<8x384xf32> to vector<8x128xf32>
    %428 = arith.addf %426, %427 : vector<8x128xf32>
    %429 = arith.negf %428 : vector<8x128xf32>
    %430 = math.exp %429 : vector<8x128xf32>
    %cst_118 = arith.constant 1.000000e+00 : f32
    %431 = vector.broadcast %cst_118 : f32 to vector<8x128xf32>
    %432 = arith.addf %431, %430 : vector<8x128xf32>
    %433 = arith.divf %431, %432 : vector<8x128xf32>
    %434 = vector.extract_strided_slice %425 {offsets = [0, 128], sizes = [8, 128], strides = [1, 1]} : vector<8x384xf32> to vector<8x128xf32>
    %435 = vector.extract_strided_slice %411 {offsets = [0, 128], sizes = [8, 128], strides = [1, 1]} : vector<8x384xf32> to vector<8x128xf32>
    %436 = arith.addf %434, %435 : vector<8x128xf32>
    %437 = arith.negf %436 : vector<8x128xf32>
    %438 = math.exp %437 : vector<8x128xf32>
    %cst_119 = arith.constant 1.000000e+00 : f32
    %439 = vector.broadcast %cst_119 : f32 to vector<8x128xf32>
    %440 = arith.addf %439, %438 : vector<8x128xf32>
    %441 = arith.divf %439, %440 : vector<8x128xf32>
    %442 = vector.extract_strided_slice %425 {offsets = [0, 256], sizes = [8, 128], strides = [1, 1]} : vector<8x384xf32> to vector<8x128xf32>
    %443 = vector.extract_strided_slice %411 {offsets = [0, 256], sizes = [8, 128], strides = [1, 1]} : vector<8x384xf32> to vector<8x128xf32>
    %444 = arith.mulf %433, %443 : vector<8x128xf32>
    %445 = arith.addf %442, %444 : vector<8x128xf32>
    %446 = math.tanh %445 : vector<8x128xf32>
    %cst_120 = arith.constant 1.000000e+00 : f32
    %447 = vector.broadcast %cst_120 : f32 to vector<8x128xf32>
    %448 = arith.subf %447, %441 : vector<8x128xf32>
    %449 = arith.mulf %448, %446 : vector<8x128xf32>
    %450 = arith.mulf %441, %398 : vector<8x128xf32>
    %451 = arith.addf %449, %450 : vector<8x128xf32>
    %452 = vector.extract_strided_slice %412 {offsets = [0, 0], sizes = [8, 128], strides = [1, 1]} : vector<8x384xf32> to vector<8x128xf32>
    %453 = vector.extract_strided_slice %416 {offsets = [0, 0], sizes = [8, 128], strides = [1, 1]} : vector<8x384xf32> to vector<8x128xf32>
    %454 = arith.addf %452, %453 : vector<8x128xf32>
    %455 = arith.negf %454 : vector<8x128xf32>
    %456 = math.exp %455 : vector<8x128xf32>
    %cst_121 = arith.constant 1.000000e+00 : f32
    %457 = vector.broadcast %cst_121 : f32 to vector<8x128xf32>
    %458 = arith.addf %457, %456 : vector<8x128xf32>
    %459 = arith.divf %457, %458 : vector<8x128xf32>
    %460 = vector.extract_strided_slice %412 {offsets = [0, 128], sizes = [8, 128], strides = [1, 1]} : vector<8x384xf32> to vector<8x128xf32>
    %461 = vector.extract_strided_slice %416 {offsets = [0, 128], sizes = [8, 128], strides = [1, 1]} : vector<8x384xf32> to vector<8x128xf32>
    %462 = arith.addf %460, %461 : vector<8x128xf32>
    %463 = arith.negf %462 : vector<8x128xf32>
    %464 = math.exp %463 : vector<8x128xf32>
    %cst_122 = arith.constant 1.000000e+00 : f32
    %465 = vector.broadcast %cst_122 : f32 to vector<8x128xf32>
    %466 = arith.addf %465, %464 : vector<8x128xf32>
    %467 = arith.divf %465, %466 : vector<8x128xf32>
    %468 = vector.extract_strided_slice %412 {offsets = [0, 256], sizes = [8, 128], strides = [1, 1]} : vector<8x384xf32> to vector<8x128xf32>
    %469 = vector.extract_strided_slice %416 {offsets = [0, 256], sizes = [8, 128], strides = [1, 1]} : vector<8x384xf32> to vector<8x128xf32>
    %470 = arith.mulf %459, %469 : vector<8x128xf32>
    %471 = arith.addf %468, %470 : vector<8x128xf32>
    %472 = math.tanh %471 : vector<8x128xf32>
    %cst_123 = arith.constant 1.000000e+00 : f32
    %473 = vector.broadcast %cst_123 : f32 to vector<8x128xf32>
    %474 = arith.subf %473, %467 : vector<8x128xf32>
    %475 = arith.mulf %474, %472 : vector<8x128xf32>
    %476 = arith.mulf %467, %402 : vector<8x128xf32>
    %477 = arith.addf %475, %476 : vector<8x128xf32>
    %478 = vector.extract_strided_slice %417 {offsets = [0, 0], sizes = [8, 128], strides = [1, 1]} : vector<8x384xf32> to vector<8x128xf32>
    %479 = vector.extract_strided_slice %420 {offsets = [0, 0], sizes = [8, 128], strides = [1, 1]} : vector<8x384xf32> to vector<8x128xf32>
    %480 = arith.addf %478, %479 : vector<8x128xf32>
    %481 = arith.negf %480 : vector<8x128xf32>
    %482 = math.exp %481 : vector<8x128xf32>
    %cst_124 = arith.constant 1.000000e+00 : f32
    %483 = vector.broadcast %cst_124 : f32 to vector<8x128xf32>
    %484 = arith.addf %483, %482 : vector<8x128xf32>
    %485 = arith.divf %483, %484 : vector<8x128xf32>
    %486 = vector.extract_strided_slice %417 {offsets = [0, 128], sizes = [8, 128], strides = [1, 1]} : vector<8x384xf32> to vector<8x128xf32>
    %487 = vector.extract_strided_slice %420 {offsets = [0, 128], sizes = [8, 128], strides = [1, 1]} : vector<8x384xf32> to vector<8x128xf32>
    %488 = arith.addf %486, %487 : vector<8x128xf32>
    %489 = arith.negf %488 : vector<8x128xf32>
    %490 = math.exp %489 : vector<8x128xf32>
    %cst_125 = arith.constant 1.000000e+00 : f32
    %491 = vector.broadcast %cst_125 : f32 to vector<8x128xf32>
    %492 = arith.addf %491, %490 : vector<8x128xf32>
    %493 = arith.divf %491, %492 : vector<8x128xf32>
    %494 = vector.extract_strided_slice %417 {offsets = [0, 256], sizes = [8, 128], strides = [1, 1]} : vector<8x384xf32> to vector<8x128xf32>
    %495 = vector.extract_strided_slice %420 {offsets = [0, 256], sizes = [8, 128], strides = [1, 1]} : vector<8x384xf32> to vector<8x128xf32>
    %496 = arith.mulf %485, %495 : vector<8x128xf32>
    %497 = arith.addf %494, %496 : vector<8x128xf32>
    %498 = math.tanh %497 : vector<8x128xf32>
    %cst_126 = arith.constant 1.000000e+00 : f32
    %499 = vector.broadcast %cst_126 : f32 to vector<8x128xf32>
    %500 = arith.subf %499, %493 : vector<8x128xf32>
    %501 = arith.mulf %500, %498 : vector<8x128xf32>
    %502 = arith.mulf %493, %404 : vector<8x128xf32>
    %503 = arith.addf %501, %502 : vector<8x128xf32>
    %c2_i32_127 = arith.constant 2 : i32
    %504 = arith.cmpi sge, %c3_i32, %c2_i32_127 : i32
    %505 = arith.extui %504 : i1 to i32
    %c0_i32_128 = arith.constant 0 : i32
    %506 = arith.cmpi ne, %505, %c0_i32_128 : i32
    scf.if %506 {
      %c2_i32_269 = arith.constant 2 : i32
      %1184 = arith.subi %c3_i32, %c2_i32_269 : i32
      %c0_i32_270 = arith.constant 0 : i32
      %1185 = arith.maxsi %1184, %c0_i32_270 : i32
      %c8_i32_271 = arith.constant 8 : i32
      %1186 = arith.muli %1185, %c8_i32_271 : i32
      %1187 = tpu.assume_multiple %1186, 8 : i32
      %c0_272 = arith.constant 0 : index
      %1188 = arith.index_cast %1187 : i32 to index
      %c0_273 = arith.constant 0 : index
      %1189 = vector.load %arg16[%c0_272, %1188, %c0_273] : memref<1x64x128xf32, #tpu.memory_space<vmem>>, vector<1x8x128xf32>
      %1190 = vector.shape_cast %1189 : vector<1x8x128xf32> to vector<8x128xf32>
      %1191 = vector.shape_cast %503 : vector<8x128xf32> to vector<1x8x128xf32>
      tpu.vector_store %arg16[%c0_272, %1188, %c0_273], %1191 {strides = array<i32>} : memref<1x64x128xf32, #tpu.memory_space<vmem>>, vector<1x8x128xf32>,
    } else {
    }
    %c8_i32_129 = arith.constant 8 : i32
    %507 = arith.cmpi slt, %c3_i32, %c8_i32_129 : i32
    %508 = arith.select %507, %451, %398 : vector<8x128xf32>
    %c1_i32_130 = arith.constant 1 : i32
    %509 = arith.cmpi sge, %c3_i32, %c1_i32_130 : i32
    %c8_i32_131 = arith.constant 8 : i32
    %510 = arith.cmpi sle, %c3_i32, %c8_i32_131 : i32
    %511 = arith.andi %509, %510 : i1
    %512 = arith.select %511, %477, %402 : vector<8x128xf32>
    %c2_i32_132 = arith.constant 2 : i32
    %513 = arith.cmpi sge, %c3_i32, %c2_i32_132 : i32
    %514 = arith.select %513, %503, %404 : vector<8x128xf32>
    %c4_i32 = arith.constant 4 : i32
    %515 = arith.truncf %508 : vector<8x128xf32> to vector<8x128xbf16>
    %516 = arith.truncf %512 : vector<8x128xf32> to vector<8x128xbf16>
    %517 = arith.truncf %514 : vector<8x128xf32> to vector<8x128xbf16>
    %cst_133 = arith.constant dense<0.000000e+00> : vector<8x768xf32>
    %518 = tpu.matmul %515, %66, %cst_133 {dimension_numbers = #tpu.dot_dimension_numbers<[1], [0], [0], [1], [0, 0, 1, 1], [], []>} : vector<8x128xbf16>, vector<128x768xbf16>, vector<8x768xf32> -> vector<8x768xf32>
    %519 = vector.broadcast %67 : vector<1x768xf32> to vector<8x768xf32>
    %520 = arith.addf %518, %519 : vector<8x768xf32>
    %521 = vector.extract_strided_slice %520 {offsets = [0, 0], sizes = [8, 384], strides = [1, 1]} : vector<8x768xf32> to vector<8x384xf32>
    %522 = vector.extract_strided_slice %520 {offsets = [0, 384], sizes = [8, 384], strides = [1, 1]} : vector<8x768xf32> to vector<8x384xf32>
    %cst_134 = arith.constant dense<0.000000e+00> : vector<8x768xf32>
    %523 = tpu.matmul %516, %68, %cst_134 {dimension_numbers = #tpu.dot_dimension_numbers<[1], [0], [0], [1], [0, 0, 1, 1], [], []>} : vector<8x128xbf16>, vector<128x768xbf16>, vector<8x768xf32> -> vector<8x768xf32>
    %524 = vector.broadcast %69 : vector<1x768xf32> to vector<8x768xf32>
    %525 = arith.addf %523, %524 : vector<8x768xf32>
    %526 = vector.extract_strided_slice %525 {offsets = [0, 0], sizes = [8, 384], strides = [1, 1]} : vector<8x768xf32> to vector<8x384xf32>
    %527 = vector.extract_strided_slice %525 {offsets = [0, 384], sizes = [8, 384], strides = [1, 1]} : vector<8x768xf32> to vector<8x384xf32>
    %cst_135 = arith.constant dense<0.000000e+00> : vector<8x384xf32>
    %528 = tpu.matmul %517, %70, %cst_135 {dimension_numbers = #tpu.dot_dimension_numbers<[1], [0], [0], [1], [0, 0, 1, 1], [], []>} : vector<8x128xbf16>, vector<128x384xbf16>, vector<8x384xf32> -> vector<8x384xf32>
    %529 = vector.broadcast %71 : vector<1x384xf32> to vector<8x384xf32>
    %530 = arith.addf %528, %529 : vector<8x384xf32>
    %c7_i32_136 = arith.constant 7 : i32
    %531 = arith.minsi %c4_i32, %c7_i32_136 : i32
    %c8_i32_137 = arith.constant 8 : i32
    %532 = arith.muli %531, %c8_i32_137 : i32
    %533 = tpu.assume_multiple %532, 8 : i32
    %534 = arith.index_cast %533 : i32 to index
    %c0_138 = arith.constant 0 : index
    %535 = vector.load %arg18[%534, %c0_138] : memref<64x384xf32, #tpu.memory_space<vmem>>, vector<8x384xf32>
    %536 = vector.extract_strided_slice %535 {offsets = [0, 0], sizes = [8, 128], strides = [1, 1]} : vector<8x384xf32> to vector<8x128xf32>
    %537 = vector.extract_strided_slice %521 {offsets = [0, 0], sizes = [8, 128], strides = [1, 1]} : vector<8x384xf32> to vector<8x128xf32>
    %538 = arith.addf %536, %537 : vector<8x128xf32>
    %539 = arith.negf %538 : vector<8x128xf32>
    %540 = math.exp %539 : vector<8x128xf32>
    %cst_139 = arith.constant 1.000000e+00 : f32
    %541 = vector.broadcast %cst_139 : f32 to vector<8x128xf32>
    %542 = arith.addf %541, %540 : vector<8x128xf32>
    %543 = arith.divf %541, %542 : vector<8x128xf32>
    %544 = vector.extract_strided_slice %535 {offsets = [0, 128], sizes = [8, 128], strides = [1, 1]} : vector<8x384xf32> to vector<8x128xf32>
    %545 = vector.extract_strided_slice %521 {offsets = [0, 128], sizes = [8, 128], strides = [1, 1]} : vector<8x384xf32> to vector<8x128xf32>
    %546 = arith.addf %544, %545 : vector<8x128xf32>
    %547 = arith.negf %546 : vector<8x128xf32>
    %548 = math.exp %547 : vector<8x128xf32>
    %cst_140 = arith.constant 1.000000e+00 : f32
    %549 = vector.broadcast %cst_140 : f32 to vector<8x128xf32>
    %550 = arith.addf %549, %548 : vector<8x128xf32>
    %551 = arith.divf %549, %550 : vector<8x128xf32>
    %552 = vector.extract_strided_slice %535 {offsets = [0, 256], sizes = [8, 128], strides = [1, 1]} : vector<8x384xf32> to vector<8x128xf32>
    %553 = vector.extract_strided_slice %521 {offsets = [0, 256], sizes = [8, 128], strides = [1, 1]} : vector<8x384xf32> to vector<8x128xf32>
    %554 = arith.mulf %543, %553 : vector<8x128xf32>
    %555 = arith.addf %552, %554 : vector<8x128xf32>
    %556 = math.tanh %555 : vector<8x128xf32>
    %cst_141 = arith.constant 1.000000e+00 : f32
    %557 = vector.broadcast %cst_141 : f32 to vector<8x128xf32>
    %558 = arith.subf %557, %551 : vector<8x128xf32>
    %559 = arith.mulf %558, %556 : vector<8x128xf32>
    %560 = arith.mulf %551, %508 : vector<8x128xf32>
    %561 = arith.addf %559, %560 : vector<8x128xf32>
    %562 = vector.extract_strided_slice %522 {offsets = [0, 0], sizes = [8, 128], strides = [1, 1]} : vector<8x384xf32> to vector<8x128xf32>
    %563 = vector.extract_strided_slice %526 {offsets = [0, 0], sizes = [8, 128], strides = [1, 1]} : vector<8x384xf32> to vector<8x128xf32>
    %564 = arith.addf %562, %563 : vector<8x128xf32>
    %565 = arith.negf %564 : vector<8x128xf32>
    %566 = math.exp %565 : vector<8x128xf32>
    %cst_142 = arith.constant 1.000000e+00 : f32
    %567 = vector.broadcast %cst_142 : f32 to vector<8x128xf32>
    %568 = arith.addf %567, %566 : vector<8x128xf32>
    %569 = arith.divf %567, %568 : vector<8x128xf32>
    %570 = vector.extract_strided_slice %522 {offsets = [0, 128], sizes = [8, 128], strides = [1, 1]} : vector<8x384xf32> to vector<8x128xf32>
    %571 = vector.extract_strided_slice %526 {offsets = [0, 128], sizes = [8, 128], strides = [1, 1]} : vector<8x384xf32> to vector<8x128xf32>
    %572 = arith.addf %570, %571 : vector<8x128xf32>
    %573 = arith.negf %572 : vector<8x128xf32>
    %574 = math.exp %573 : vector<8x128xf32>
    %cst_143 = arith.constant 1.000000e+00 : f32
    %575 = vector.broadcast %cst_143 : f32 to vector<8x128xf32>
    %576 = arith.addf %575, %574 : vector<8x128xf32>
    %577 = arith.divf %575, %576 : vector<8x128xf32>
    %578 = vector.extract_strided_slice %522 {offsets = [0, 256], sizes = [8, 128], strides = [1, 1]} : vector<8x384xf32> to vector<8x128xf32>
    %579 = vector.extract_strided_slice %526 {offsets = [0, 256], sizes = [8, 128], strides = [1, 1]} : vector<8x384xf32> to vector<8x128xf32>
    %580 = arith.mulf %569, %579 : vector<8x128xf32>
    %581 = arith.addf %578, %580 : vector<8x128xf32>
    %582 = math.tanh %581 : vector<8x128xf32>
    %cst_144 = arith.constant 1.000000e+00 : f32
    %583 = vector.broadcast %cst_144 : f32 to vector<8x128xf32>
    %584 = arith.subf %583, %577 : vector<8x128xf32>
    %585 = arith.mulf %584, %582 : vector<8x128xf32>
    %586 = arith.mulf %577, %512 : vector<8x128xf32>
    %587 = arith.addf %585, %586 : vector<8x128xf32>
    %588 = vector.extract_strided_slice %527 {offsets = [0, 0], sizes = [8, 128], strides = [1, 1]} : vector<8x384xf32> to vector<8x128xf32>
    %589 = vector.extract_strided_slice %530 {offsets = [0, 0], sizes = [8, 128], strides = [1, 1]} : vector<8x384xf32> to vector<8x128xf32>
    %590 = arith.addf %588, %589 : vector<8x128xf32>
    %591 = arith.negf %590 : vector<8x128xf32>
    %592 = math.exp %591 : vector<8x128xf32>
    %cst_145 = arith.constant 1.000000e+00 : f32
    %593 = vector.broadcast %cst_145 : f32 to vector<8x128xf32>
    %594 = arith.addf %593, %592 : vector<8x128xf32>
    %595 = arith.divf %593, %594 : vector<8x128xf32>
    %596 = vector.extract_strided_slice %527 {offsets = [0, 128], sizes = [8, 128], strides = [1, 1]} : vector<8x384xf32> to vector<8x128xf32>
    %597 = vector.extract_strided_slice %530 {offsets = [0, 128], sizes = [8, 128], strides = [1, 1]} : vector<8x384xf32> to vector<8x128xf32>
    %598 = arith.addf %596, %597 : vector<8x128xf32>
    %599 = arith.negf %598 : vector<8x128xf32>
    %600 = math.exp %599 : vector<8x128xf32>
    %cst_146 = arith.constant 1.000000e+00 : f32
    %601 = vector.broadcast %cst_146 : f32 to vector<8x128xf32>
    %602 = arith.addf %601, %600 : vector<8x128xf32>
    %603 = arith.divf %601, %602 : vector<8x128xf32>
    %604 = vector.extract_strided_slice %527 {offsets = [0, 256], sizes = [8, 128], strides = [1, 1]} : vector<8x384xf32> to vector<8x128xf32>
    %605 = vector.extract_strided_slice %530 {offsets = [0, 256], sizes = [8, 128], strides = [1, 1]} : vector<8x384xf32> to vector<8x128xf32>
    %606 = arith.mulf %595, %605 : vector<8x128xf32>
    %607 = arith.addf %604, %606 : vector<8x128xf32>
    %608 = math.tanh %607 : vector<8x128xf32>
    %cst_147 = arith.constant 1.000000e+00 : f32
    %609 = vector.broadcast %cst_147 : f32 to vector<8x128xf32>
    %610 = arith.subf %609, %603 : vector<8x128xf32>
    %611 = arith.mulf %610, %608 : vector<8x128xf32>
    %612 = arith.mulf %603, %514 : vector<8x128xf32>
    %613 = arith.addf %611, %612 : vector<8x128xf32>
    %c2_i32_148 = arith.constant 2 : i32
    %614 = arith.cmpi sge, %c4_i32, %c2_i32_148 : i32
    %615 = arith.extui %614 : i1 to i32
    %c0_i32_149 = arith.constant 0 : i32
    %616 = arith.cmpi ne, %615, %c0_i32_149 : i32
    scf.if %616 {
      %c2_i32_269 = arith.constant 2 : i32
      %1184 = arith.subi %c4_i32, %c2_i32_269 : i32
      %c0_i32_270 = arith.constant 0 : i32
      %1185 = arith.maxsi %1184, %c0_i32_270 : i32
      %c8_i32_271 = arith.constant 8 : i32
      %1186 = arith.muli %1185, %c8_i32_271 : i32
      %1187 = tpu.assume_multiple %1186, 8 : i32
      %c0_272 = arith.constant 0 : index
      %1188 = arith.index_cast %1187 : i32 to index
      %c0_273 = arith.constant 0 : index
      %1189 = vector.load %arg16[%c0_272, %1188, %c0_273] : memref<1x64x128xf32, #tpu.memory_space<vmem>>, vector<1x8x128xf32>
      %1190 = vector.shape_cast %1189 : vector<1x8x128xf32> to vector<8x128xf32>
      %1191 = vector.shape_cast %613 : vector<8x128xf32> to vector<1x8x128xf32>
      tpu.vector_store %arg16[%c0_272, %1188, %c0_273], %1191 {strides = array<i32>} : memref<1x64x128xf32, #tpu.memory_space<vmem>>, vector<1x8x128xf32>,
    } else {
    }
    %c8_i32_150 = arith.constant 8 : i32
    %617 = arith.cmpi slt, %c4_i32, %c8_i32_150 : i32
    %618 = arith.select %617, %561, %508 : vector<8x128xf32>
    %c1_i32_151 = arith.constant 1 : i32
    %619 = arith.cmpi sge, %c4_i32, %c1_i32_151 : i32
    %c8_i32_152 = arith.constant 8 : i32
    %620 = arith.cmpi sle, %c4_i32, %c8_i32_152 : i32
    %621 = arith.andi %619, %620 : i1
    %622 = arith.select %621, %587, %512 : vector<8x128xf32>
    %c2_i32_153 = arith.constant 2 : i32
    %623 = arith.cmpi sge, %c4_i32, %c2_i32_153 : i32
    %624 = arith.select %623, %613, %514 : vector<8x128xf32>
    %c5_i32 = arith.constant 5 : i32
    %625 = arith.truncf %618 : vector<8x128xf32> to vector<8x128xbf16>
    %626 = arith.truncf %622 : vector<8x128xf32> to vector<8x128xbf16>
    %627 = arith.truncf %624 : vector<8x128xf32> to vector<8x128xbf16>
    %cst_154 = arith.constant dense<0.000000e+00> : vector<8x768xf32>
    %628 = tpu.matmul %625, %66, %cst_154 {dimension_numbers = #tpu.dot_dimension_numbers<[1], [0], [0], [1], [0, 0, 1, 1], [], []>} : vector<8x128xbf16>, vector<128x768xbf16>, vector<8x768xf32> -> vector<8x768xf32>
    %629 = vector.broadcast %67 : vector<1x768xf32> to vector<8x768xf32>
    %630 = arith.addf %628, %629 : vector<8x768xf32>
    %631 = vector.extract_strided_slice %630 {offsets = [0, 0], sizes = [8, 384], strides = [1, 1]} : vector<8x768xf32> to vector<8x384xf32>
    %632 = vector.extract_strided_slice %630 {offsets = [0, 384], sizes = [8, 384], strides = [1, 1]} : vector<8x768xf32> to vector<8x384xf32>
    %cst_155 = arith.constant dense<0.000000e+00> : vector<8x768xf32>
    %633 = tpu.matmul %626, %68, %cst_155 {dimension_numbers = #tpu.dot_dimension_numbers<[1], [0], [0], [1], [0, 0, 1, 1], [], []>} : vector<8x128xbf16>, vector<128x768xbf16>, vector<8x768xf32> -> vector<8x768xf32>
    %634 = vector.broadcast %69 : vector<1x768xf32> to vector<8x768xf32>
    %635 = arith.addf %633, %634 : vector<8x768xf32>
    %636 = vector.extract_strided_slice %635 {offsets = [0, 0], sizes = [8, 384], strides = [1, 1]} : vector<8x768xf32> to vector<8x384xf32>
    %637 = vector.extract_strided_slice %635 {offsets = [0, 384], sizes = [8, 384], strides = [1, 1]} : vector<8x768xf32> to vector<8x384xf32>
    %cst_156 = arith.constant dense<0.000000e+00> : vector<8x384xf32>
    %638 = tpu.matmul %627, %70, %cst_156 {dimension_numbers = #tpu.dot_dimension_numbers<[1], [0], [0], [1], [0, 0, 1, 1], [], []>} : vector<8x128xbf16>, vector<128x384xbf16>, vector<8x384xf32> -> vector<8x384xf32>
    %639 = vector.broadcast %71 : vector<1x384xf32> to vector<8x384xf32>
    %640 = arith.addf %638, %639 : vector<8x384xf32>
    %c7_i32_157 = arith.constant 7 : i32
    %641 = arith.minsi %c5_i32, %c7_i32_157 : i32
    %c8_i32_158 = arith.constant 8 : i32
    %642 = arith.muli %641, %c8_i32_158 : i32
    %643 = tpu.assume_multiple %642, 8 : i32
    %644 = arith.index_cast %643 : i32 to index
    %c0_159 = arith.constant 0 : index
    %645 = vector.load %arg18[%644, %c0_159] : memref<64x384xf32, #tpu.memory_space<vmem>>, vector<8x384xf32>
    %646 = vector.extract_strided_slice %645 {offsets = [0, 0], sizes = [8, 128], strides = [1, 1]} : vector<8x384xf32> to vector<8x128xf32>
    %647 = vector.extract_strided_slice %631 {offsets = [0, 0], sizes = [8, 128], strides = [1, 1]} : vector<8x384xf32> to vector<8x128xf32>
    %648 = arith.addf %646, %647 : vector<8x128xf32>
    %649 = arith.negf %648 : vector<8x128xf32>
    %650 = math.exp %649 : vector<8x128xf32>
    %cst_160 = arith.constant 1.000000e+00 : f32
    %651 = vector.broadcast %cst_160 : f32 to vector<8x128xf32>
    %652 = arith.addf %651, %650 : vector<8x128xf32>
    %653 = arith.divf %651, %652 : vector<8x128xf32>
    %654 = vector.extract_strided_slice %645 {offsets = [0, 128], sizes = [8, 128], strides = [1, 1]} : vector<8x384xf32> to vector<8x128xf32>
    %655 = vector.extract_strided_slice %631 {offsets = [0, 128], sizes = [8, 128], strides = [1, 1]} : vector<8x384xf32> to vector<8x128xf32>
    %656 = arith.addf %654, %655 : vector<8x128xf32>
    %657 = arith.negf %656 : vector<8x128xf32>
    %658 = math.exp %657 : vector<8x128xf32>
    %cst_161 = arith.constant 1.000000e+00 : f32
    %659 = vector.broadcast %cst_161 : f32 to vector<8x128xf32>
    %660 = arith.addf %659, %658 : vector<8x128xf32>
    %661 = arith.divf %659, %660 : vector<8x128xf32>
    %662 = vector.extract_strided_slice %645 {offsets = [0, 256], sizes = [8, 128], strides = [1, 1]} : vector<8x384xf32> to vector<8x128xf32>
    %663 = vector.extract_strided_slice %631 {offsets = [0, 256], sizes = [8, 128], strides = [1, 1]} : vector<8x384xf32> to vector<8x128xf32>
    %664 = arith.mulf %653, %663 : vector<8x128xf32>
    %665 = arith.addf %662, %664 : vector<8x128xf32>
    %666 = math.tanh %665 : vector<8x128xf32>
    %cst_162 = arith.constant 1.000000e+00 : f32
    %667 = vector.broadcast %cst_162 : f32 to vector<8x128xf32>
    %668 = arith.subf %667, %661 : vector<8x128xf32>
    %669 = arith.mulf %668, %666 : vector<8x128xf32>
    %670 = arith.mulf %661, %618 : vector<8x128xf32>
    %671 = arith.addf %669, %670 : vector<8x128xf32>
    %672 = vector.extract_strided_slice %632 {offsets = [0, 0], sizes = [8, 128], strides = [1, 1]} : vector<8x384xf32> to vector<8x128xf32>
    %673 = vector.extract_strided_slice %636 {offsets = [0, 0], sizes = [8, 128], strides = [1, 1]} : vector<8x384xf32> to vector<8x128xf32>
    %674 = arith.addf %672, %673 : vector<8x128xf32>
    %675 = arith.negf %674 : vector<8x128xf32>
    %676 = math.exp %675 : vector<8x128xf32>
    %cst_163 = arith.constant 1.000000e+00 : f32
    %677 = vector.broadcast %cst_163 : f32 to vector<8x128xf32>
    %678 = arith.addf %677, %676 : vector<8x128xf32>
    %679 = arith.divf %677, %678 : vector<8x128xf32>
    %680 = vector.extract_strided_slice %632 {offsets = [0, 128], sizes = [8, 128], strides = [1, 1]} : vector<8x384xf32> to vector<8x128xf32>
    %681 = vector.extract_strided_slice %636 {offsets = [0, 128], sizes = [8, 128], strides = [1, 1]} : vector<8x384xf32> to vector<8x128xf32>
    %682 = arith.addf %680, %681 : vector<8x128xf32>
    %683 = arith.negf %682 : vector<8x128xf32>
    %684 = math.exp %683 : vector<8x128xf32>
    %cst_164 = arith.constant 1.000000e+00 : f32
    %685 = vector.broadcast %cst_164 : f32 to vector<8x128xf32>
    %686 = arith.addf %685, %684 : vector<8x128xf32>
    %687 = arith.divf %685, %686 : vector<8x128xf32>
    %688 = vector.extract_strided_slice %632 {offsets = [0, 256], sizes = [8, 128], strides = [1, 1]} : vector<8x384xf32> to vector<8x128xf32>
    %689 = vector.extract_strided_slice %636 {offsets = [0, 256], sizes = [8, 128], strides = [1, 1]} : vector<8x384xf32> to vector<8x128xf32>
    %690 = arith.mulf %679, %689 : vector<8x128xf32>
    %691 = arith.addf %688, %690 : vector<8x128xf32>
    %692 = math.tanh %691 : vector<8x128xf32>
    %cst_165 = arith.constant 1.000000e+00 : f32
    %693 = vector.broadcast %cst_165 : f32 to vector<8x128xf32>
    %694 = arith.subf %693, %687 : vector<8x128xf32>
    %695 = arith.mulf %694, %692 : vector<8x128xf32>
    %696 = arith.mulf %687, %622 : vector<8x128xf32>
    %697 = arith.addf %695, %696 : vector<8x128xf32>
    %698 = vector.extract_strided_slice %637 {offsets = [0, 0], sizes = [8, 128], strides = [1, 1]} : vector<8x384xf32> to vector<8x128xf32>
    %699 = vector.extract_strided_slice %640 {offsets = [0, 0], sizes = [8, 128], strides = [1, 1]} : vector<8x384xf32> to vector<8x128xf32>
    %700 = arith.addf %698, %699 : vector<8x128xf32>
    %701 = arith.negf %700 : vector<8x128xf32>
    %702 = math.exp %701 : vector<8x128xf32>
    %cst_166 = arith.constant 1.000000e+00 : f32
    %703 = vector.broadcast %cst_166 : f32 to vector<8x128xf32>
    %704 = arith.addf %703, %702 : vector<8x128xf32>
    %705 = arith.divf %703, %704 : vector<8x128xf32>
    %706 = vector.extract_strided_slice %637 {offsets = [0, 128], sizes = [8, 128], strides = [1, 1]} : vector<8x384xf32> to vector<8x128xf32>
    %707 = vector.extract_strided_slice %640 {offsets = [0, 128], sizes = [8, 128], strides = [1, 1]} : vector<8x384xf32> to vector<8x128xf32>
    %708 = arith.addf %706, %707 : vector<8x128xf32>
    %709 = arith.negf %708 : vector<8x128xf32>
    %710 = math.exp %709 : vector<8x128xf32>
    %cst_167 = arith.constant 1.000000e+00 : f32
    %711 = vector.broadcast %cst_167 : f32 to vector<8x128xf32>
    %712 = arith.addf %711, %710 : vector<8x128xf32>
    %713 = arith.divf %711, %712 : vector<8x128xf32>
    %714 = vector.extract_strided_slice %637 {offsets = [0, 256], sizes = [8, 128], strides = [1, 1]} : vector<8x384xf32> to vector<8x128xf32>
    %715 = vector.extract_strided_slice %640 {offsets = [0, 256], sizes = [8, 128], strides = [1, 1]} : vector<8x384xf32> to vector<8x128xf32>
    %716 = arith.mulf %705, %715 : vector<8x128xf32>
    %717 = arith.addf %714, %716 : vector<8x128xf32>
    %718 = math.tanh %717 : vector<8x128xf32>
    %cst_168 = arith.constant 1.000000e+00 : f32
    %719 = vector.broadcast %cst_168 : f32 to vector<8x128xf32>
    %720 = arith.subf %719, %713 : vector<8x128xf32>
    %721 = arith.mulf %720, %718 : vector<8x128xf32>
    %722 = arith.mulf %713, %624 : vector<8x128xf32>
    %723 = arith.addf %721, %722 : vector<8x128xf32>
    %c2_i32_169 = arith.constant 2 : i32
    %724 = arith.cmpi sge, %c5_i32, %c2_i32_169 : i32
    %725 = arith.extui %724 : i1 to i32
    %c0_i32_170 = arith.constant 0 : i32
    %726 = arith.cmpi ne, %725, %c0_i32_170 : i32
    scf.if %726 {
      %c2_i32_269 = arith.constant 2 : i32
      %1184 = arith.subi %c5_i32, %c2_i32_269 : i32
      %c0_i32_270 = arith.constant 0 : i32
      %1185 = arith.maxsi %1184, %c0_i32_270 : i32
      %c8_i32_271 = arith.constant 8 : i32
      %1186 = arith.muli %1185, %c8_i32_271 : i32
      %1187 = tpu.assume_multiple %1186, 8 : i32
      %c0_272 = arith.constant 0 : index
      %1188 = arith.index_cast %1187 : i32 to index
      %c0_273 = arith.constant 0 : index
      %1189 = vector.load %arg16[%c0_272, %1188, %c0_273] : memref<1x64x128xf32, #tpu.memory_space<vmem>>, vector<1x8x128xf32>
      %1190 = vector.shape_cast %1189 : vector<1x8x128xf32> to vector<8x128xf32>
      %1191 = vector.shape_cast %723 : vector<8x128xf32> to vector<1x8x128xf32>
      tpu.vector_store %arg16[%c0_272, %1188, %c0_273], %1191 {strides = array<i32>} : memref<1x64x128xf32, #tpu.memory_space<vmem>>, vector<1x8x128xf32>,
    } else {
    }
    %c8_i32_171 = arith.constant 8 : i32
    %727 = arith.cmpi slt, %c5_i32, %c8_i32_171 : i32
    %728 = arith.select %727, %671, %618 : vector<8x128xf32>
    %c1_i32_172 = arith.constant 1 : i32
    %729 = arith.cmpi sge, %c5_i32, %c1_i32_172 : i32
    %c8_i32_173 = arith.constant 8 : i32
    %730 = arith.cmpi sle, %c5_i32, %c8_i32_173 : i32
    %731 = arith.andi %729, %730 : i1
    %732 = arith.select %731, %697, %622 : vector<8x128xf32>
    %c2_i32_174 = arith.constant 2 : i32
    %733 = arith.cmpi sge, %c5_i32, %c2_i32_174 : i32
    %734 = arith.select %733, %723, %624 : vector<8x128xf32>
    %c6_i32 = arith.constant 6 : i32
    %735 = arith.truncf %728 : vector<8x128xf32> to vector<8x128xbf16>
    %736 = arith.truncf %732 : vector<8x128xf32> to vector<8x128xbf16>
    %737 = arith.truncf %734 : vector<8x128xf32> to vector<8x128xbf16>
    %cst_175 = arith.constant dense<0.000000e+00> : vector<8x768xf32>
    %738 = tpu.matmul %735, %66, %cst_175 {dimension_numbers = #tpu.dot_dimension_numbers<[1], [0], [0], [1], [0, 0, 1, 1], [], []>} : vector<8x128xbf16>, vector<128x768xbf16>, vector<8x768xf32> -> vector<8x768xf32>
    %739 = vector.broadcast %67 : vector<1x768xf32> to vector<8x768xf32>
    %740 = arith.addf %738, %739 : vector<8x768xf32>
    %741 = vector.extract_strided_slice %740 {offsets = [0, 0], sizes = [8, 384], strides = [1, 1]} : vector<8x768xf32> to vector<8x384xf32>
    %742 = vector.extract_strided_slice %740 {offsets = [0, 384], sizes = [8, 384], strides = [1, 1]} : vector<8x768xf32> to vector<8x384xf32>
    %cst_176 = arith.constant dense<0.000000e+00> : vector<8x768xf32>
    %743 = tpu.matmul %736, %68, %cst_176 {dimension_numbers = #tpu.dot_dimension_numbers<[1], [0], [0], [1], [0, 0, 1, 1], [], []>} : vector<8x128xbf16>, vector<128x768xbf16>, vector<8x768xf32> -> vector<8x768xf32>
    %744 = vector.broadcast %69 : vector<1x768xf32> to vector<8x768xf32>
    %745 = arith.addf %743, %744 : vector<8x768xf32>
    %746 = vector.extract_strided_slice %745 {offsets = [0, 0], sizes = [8, 384], strides = [1, 1]} : vector<8x768xf32> to vector<8x384xf32>
    %747 = vector.extract_strided_slice %745 {offsets = [0, 384], sizes = [8, 384], strides = [1, 1]} : vector<8x768xf32> to vector<8x384xf32>
    %cst_177 = arith.constant dense<0.000000e+00> : vector<8x384xf32>
    %748 = tpu.matmul %737, %70, %cst_177 {dimension_numbers = #tpu.dot_dimension_numbers<[1], [0], [0], [1], [0, 0, 1, 1], [], []>} : vector<8x128xbf16>, vector<128x384xbf16>, vector<8x384xf32> -> vector<8x384xf32>
    %749 = vector.broadcast %71 : vector<1x384xf32> to vector<8x384xf32>
    %750 = arith.addf %748, %749 : vector<8x384xf32>
    %c7_i32_178 = arith.constant 7 : i32
    %751 = arith.minsi %c6_i32, %c7_i32_178 : i32
    %c8_i32_179 = arith.constant 8 : i32
    %752 = arith.muli %751, %c8_i32_179 : i32
    %753 = tpu.assume_multiple %752, 8 : i32
    %754 = arith.index_cast %753 : i32 to index
    %c0_180 = arith.constant 0 : index
    %755 = vector.load %arg18[%754, %c0_180] : memref<64x384xf32, #tpu.memory_space<vmem>>, vector<8x384xf32>
    %756 = vector.extract_strided_slice %755 {offsets = [0, 0], sizes = [8, 128], strides = [1, 1]} : vector<8x384xf32> to vector<8x128xf32>
    %757 = vector.extract_strided_slice %741 {offsets = [0, 0], sizes = [8, 128], strides = [1, 1]} : vector<8x384xf32> to vector<8x128xf32>
    %758 = arith.addf %756, %757 : vector<8x128xf32>
    %759 = arith.negf %758 : vector<8x128xf32>
    %760 = math.exp %759 : vector<8x128xf32>
    %cst_181 = arith.constant 1.000000e+00 : f32
    %761 = vector.broadcast %cst_181 : f32 to vector<8x128xf32>
    %762 = arith.addf %761, %760 : vector<8x128xf32>
    %763 = arith.divf %761, %762 : vector<8x128xf32>
    %764 = vector.extract_strided_slice %755 {offsets = [0, 128], sizes = [8, 128], strides = [1, 1]} : vector<8x384xf32> to vector<8x128xf32>
    %765 = vector.extract_strided_slice %741 {offsets = [0, 128], sizes = [8, 128], strides = [1, 1]} : vector<8x384xf32> to vector<8x128xf32>
    %766 = arith.addf %764, %765 : vector<8x128xf32>
    %767 = arith.negf %766 : vector<8x128xf32>
    %768 = math.exp %767 : vector<8x128xf32>
    %cst_182 = arith.constant 1.000000e+00 : f32
    %769 = vector.broadcast %cst_182 : f32 to vector<8x128xf32>
    %770 = arith.addf %769, %768 : vector<8x128xf32>
    %771 = arith.divf %769, %770 : vector<8x128xf32>
    %772 = vector.extract_strided_slice %755 {offsets = [0, 256], sizes = [8, 128], strides = [1, 1]} : vector<8x384xf32> to vector<8x128xf32>
    %773 = vector.extract_strided_slice %741 {offsets = [0, 256], sizes = [8, 128], strides = [1, 1]} : vector<8x384xf32> to vector<8x128xf32>
    %774 = arith.mulf %763, %773 : vector<8x128xf32>
    %775 = arith.addf %772, %774 : vector<8x128xf32>
    %776 = math.tanh %775 : vector<8x128xf32>
    %cst_183 = arith.constant 1.000000e+00 : f32
    %777 = vector.broadcast %cst_183 : f32 to vector<8x128xf32>
    %778 = arith.subf %777, %771 : vector<8x128xf32>
    %779 = arith.mulf %778, %776 : vector<8x128xf32>
    %780 = arith.mulf %771, %728 : vector<8x128xf32>
    %781 = arith.addf %779, %780 : vector<8x128xf32>
    %782 = vector.extract_strided_slice %742 {offsets = [0, 0], sizes = [8, 128], strides = [1, 1]} : vector<8x384xf32> to vector<8x128xf32>
    %783 = vector.extract_strided_slice %746 {offsets = [0, 0], sizes = [8, 128], strides = [1, 1]} : vector<8x384xf32> to vector<8x128xf32>
    %784 = arith.addf %782, %783 : vector<8x128xf32>
    %785 = arith.negf %784 : vector<8x128xf32>
    %786 = math.exp %785 : vector<8x128xf32>
    %cst_184 = arith.constant 1.000000e+00 : f32
    %787 = vector.broadcast %cst_184 : f32 to vector<8x128xf32>
    %788 = arith.addf %787, %786 : vector<8x128xf32>
    %789 = arith.divf %787, %788 : vector<8x128xf32>
    %790 = vector.extract_strided_slice %742 {offsets = [0, 128], sizes = [8, 128], strides = [1, 1]} : vector<8x384xf32> to vector<8x128xf32>
    %791 = vector.extract_strided_slice %746 {offsets = [0, 128], sizes = [8, 128], strides = [1, 1]} : vector<8x384xf32> to vector<8x128xf32>
    %792 = arith.addf %790, %791 : vector<8x128xf32>
    %793 = arith.negf %792 : vector<8x128xf32>
    %794 = math.exp %793 : vector<8x128xf32>
    %cst_185 = arith.constant 1.000000e+00 : f32
    %795 = vector.broadcast %cst_185 : f32 to vector<8x128xf32>
    %796 = arith.addf %795, %794 : vector<8x128xf32>
    %797 = arith.divf %795, %796 : vector<8x128xf32>
    %798 = vector.extract_strided_slice %742 {offsets = [0, 256], sizes = [8, 128], strides = [1, 1]} : vector<8x384xf32> to vector<8x128xf32>
    %799 = vector.extract_strided_slice %746 {offsets = [0, 256], sizes = [8, 128], strides = [1, 1]} : vector<8x384xf32> to vector<8x128xf32>
    %800 = arith.mulf %789, %799 : vector<8x128xf32>
    %801 = arith.addf %798, %800 : vector<8x128xf32>
    %802 = math.tanh %801 : vector<8x128xf32>
    %cst_186 = arith.constant 1.000000e+00 : f32
    %803 = vector.broadcast %cst_186 : f32 to vector<8x128xf32>
    %804 = arith.subf %803, %797 : vector<8x128xf32>
    %805 = arith.mulf %804, %802 : vector<8x128xf32>
    %806 = arith.mulf %797, %732 : vector<8x128xf32>
    %807 = arith.addf %805, %806 : vector<8x128xf32>
    %808 = vector.extract_strided_slice %747 {offsets = [0, 0], sizes = [8, 128], strides = [1, 1]} : vector<8x384xf32> to vector<8x128xf32>
    %809 = vector.extract_strided_slice %750 {offsets = [0, 0], sizes = [8, 128], strides = [1, 1]} : vector<8x384xf32> to vector<8x128xf32>
    %810 = arith.addf %808, %809 : vector<8x128xf32>
    %811 = arith.negf %810 : vector<8x128xf32>
    %812 = math.exp %811 : vector<8x128xf32>
    %cst_187 = arith.constant 1.000000e+00 : f32
    %813 = vector.broadcast %cst_187 : f32 to vector<8x128xf32>
    %814 = arith.addf %813, %812 : vector<8x128xf32>
    %815 = arith.divf %813, %814 : vector<8x128xf32>
    %816 = vector.extract_strided_slice %747 {offsets = [0, 128], sizes = [8, 128], strides = [1, 1]} : vector<8x384xf32> to vector<8x128xf32>
    %817 = vector.extract_strided_slice %750 {offsets = [0, 128], sizes = [8, 128], strides = [1, 1]} : vector<8x384xf32> to vector<8x128xf32>
    %818 = arith.addf %816, %817 : vector<8x128xf32>
    %819 = arith.negf %818 : vector<8x128xf32>
    %820 = math.exp %819 : vector<8x128xf32>
    %cst_188 = arith.constant 1.000000e+00 : f32
    %821 = vector.broadcast %cst_188 : f32 to vector<8x128xf32>
    %822 = arith.addf %821, %820 : vector<8x128xf32>
    %823 = arith.divf %821, %822 : vector<8x128xf32>
    %824 = vector.extract_strided_slice %747 {offsets = [0, 256], sizes = [8, 128], strides = [1, 1]} : vector<8x384xf32> to vector<8x128xf32>
    %825 = vector.extract_strided_slice %750 {offsets = [0, 256], sizes = [8, 128], strides = [1, 1]} : vector<8x384xf32> to vector<8x128xf32>
    %826 = arith.mulf %815, %825 : vector<8x128xf32>
    %827 = arith.addf %824, %826 : vector<8x128xf32>
    %828 = math.tanh %827 : vector<8x128xf32>
    %cst_189 = arith.constant 1.000000e+00 : f32
    %829 = vector.broadcast %cst_189 : f32 to vector<8x128xf32>
    %830 = arith.subf %829, %823 : vector<8x128xf32>
    %831 = arith.mulf %830, %828 : vector<8x128xf32>
    %832 = arith.mulf %823, %734 : vector<8x128xf32>
    %833 = arith.addf %831, %832 : vector<8x128xf32>
    %c2_i32_190 = arith.constant 2 : i32
    %834 = arith.cmpi sge, %c6_i32, %c2_i32_190 : i32
    %835 = arith.extui %834 : i1 to i32
    %c0_i32_191 = arith.constant 0 : i32
    %836 = arith.cmpi ne, %835, %c0_i32_191 : i32
    scf.if %836 {
      %c2_i32_269 = arith.constant 2 : i32
      %1184 = arith.subi %c6_i32, %c2_i32_269 : i32
      %c0_i32_270 = arith.constant 0 : i32
      %1185 = arith.maxsi %1184, %c0_i32_270 : i32
      %c8_i32_271 = arith.constant 8 : i32
      %1186 = arith.muli %1185, %c8_i32_271 : i32
      %1187 = tpu.assume_multiple %1186, 8 : i32
      %c0_272 = arith.constant 0 : index
      %1188 = arith.index_cast %1187 : i32 to index
      %c0_273 = arith.constant 0 : index
      %1189 = vector.load %arg16[%c0_272, %1188, %c0_273] : memref<1x64x128xf32, #tpu.memory_space<vmem>>, vector<1x8x128xf32>
      %1190 = vector.shape_cast %1189 : vector<1x8x128xf32> to vector<8x128xf32>
      %1191 = vector.shape_cast %833 : vector<8x128xf32> to vector<1x8x128xf32>
      tpu.vector_store %arg16[%c0_272, %1188, %c0_273], %1191 {strides = array<i32>} : memref<1x64x128xf32, #tpu.memory_space<vmem>>, vector<1x8x128xf32>,
    } else {
    }
    %c8_i32_192 = arith.constant 8 : i32
    %837 = arith.cmpi slt, %c6_i32, %c8_i32_192 : i32
    %838 = arith.select %837, %781, %728 : vector<8x128xf32>
    %c1_i32_193 = arith.constant 1 : i32
    %839 = arith.cmpi sge, %c6_i32, %c1_i32_193 : i32
    %c8_i32_194 = arith.constant 8 : i32
    %840 = arith.cmpi sle, %c6_i32, %c8_i32_194 : i32
    %841 = arith.andi %839, %840 : i1
    %842 = arith.select %841, %807, %732 : vector<8x128xf32>
    %c2_i32_195 = arith.constant 2 : i32
    %843 = arith.cmpi sge, %c6_i32, %c2_i32_195 : i32
    %844 = arith.select %843, %833, %734 : vector<8x128xf32>
    %c7_i32_196 = arith.constant 7 : i32
    %845 = arith.truncf %838 : vector<8x128xf32> to vector<8x128xbf16>
    %846 = arith.truncf %842 : vector<8x128xf32> to vector<8x128xbf16>
    %847 = arith.truncf %844 : vector<8x128xf32> to vector<8x128xbf16>
    %cst_197 = arith.constant dense<0.000000e+00> : vector<8x768xf32>
    %848 = tpu.matmul %845, %66, %cst_197 {dimension_numbers = #tpu.dot_dimension_numbers<[1], [0], [0], [1], [0, 0, 1, 1], [], []>} : vector<8x128xbf16>, vector<128x768xbf16>, vector<8x768xf32> -> vector<8x768xf32>
    %849 = vector.broadcast %67 : vector<1x768xf32> to vector<8x768xf32>
    %850 = arith.addf %848, %849 : vector<8x768xf32>
    %851 = vector.extract_strided_slice %850 {offsets = [0, 0], sizes = [8, 384], strides = [1, 1]} : vector<8x768xf32> to vector<8x384xf32>
    %852 = vector.extract_strided_slice %850 {offsets = [0, 384], sizes = [8, 384], strides = [1, 1]} : vector<8x768xf32> to vector<8x384xf32>
    %cst_198 = arith.constant dense<0.000000e+00> : vector<8x768xf32>
    %853 = tpu.matmul %846, %68, %cst_198 {dimension_numbers = #tpu.dot_dimension_numbers<[1], [0], [0], [1], [0, 0, 1, 1], [], []>} : vector<8x128xbf16>, vector<128x768xbf16>, vector<8x768xf32> -> vector<8x768xf32>
    %854 = vector.broadcast %69 : vector<1x768xf32> to vector<8x768xf32>
    %855 = arith.addf %853, %854 : vector<8x768xf32>
    %856 = vector.extract_strided_slice %855 {offsets = [0, 0], sizes = [8, 384], strides = [1, 1]} : vector<8x768xf32> to vector<8x384xf32>
    %857 = vector.extract_strided_slice %855 {offsets = [0, 384], sizes = [8, 384], strides = [1, 1]} : vector<8x768xf32> to vector<8x384xf32>
    %cst_199 = arith.constant dense<0.000000e+00> : vector<8x384xf32>
    %858 = tpu.matmul %847, %70, %cst_199 {dimension_numbers = #tpu.dot_dimension_numbers<[1], [0], [0], [1], [0, 0, 1, 1], [], []>} : vector<8x128xbf16>, vector<128x384xbf16>, vector<8x384xf32> -> vector<8x384xf32>
    %859 = vector.broadcast %71 : vector<1x384xf32> to vector<8x384xf32>
    %860 = arith.addf %858, %859 : vector<8x384xf32>
    %c7_i32_200 = arith.constant 7 : i32
    %861 = arith.minsi %c7_i32_196, %c7_i32_200 : i32
    %c8_i32_201 = arith.constant 8 : i32
    %862 = arith.muli %861, %c8_i32_201 : i32
    %863 = tpu.assume_multiple %862, 8 : i32
    %864 = arith.index_cast %863 : i32 to index
    %c0_202 = arith.constant 0 : index
    %865 = vector.load %arg18[%864, %c0_202] : memref<64x384xf32, #tpu.memory_space<vmem>>, vector<8x384xf32>
    %866 = vector.extract_strided_slice %865 {offsets = [0, 0], sizes = [8, 128], strides = [1, 1]} : vector<8x384xf32> to vector<8x128xf32>
    %867 = vector.extract_strided_slice %851 {offsets = [0, 0], sizes = [8, 128], strides = [1, 1]} : vector<8x384xf32> to vector<8x128xf32>
    %868 = arith.addf %866, %867 : vector<8x128xf32>
    %869 = arith.negf %868 : vector<8x128xf32>
    %870 = math.exp %869 : vector<8x128xf32>
    %cst_203 = arith.constant 1.000000e+00 : f32
    %871 = vector.broadcast %cst_203 : f32 to vector<8x128xf32>
    %872 = arith.addf %871, %870 : vector<8x128xf32>
    %873 = arith.divf %871, %872 : vector<8x128xf32>
    %874 = vector.extract_strided_slice %865 {offsets = [0, 128], sizes = [8, 128], strides = [1, 1]} : vector<8x384xf32> to vector<8x128xf32>
    %875 = vector.extract_strided_slice %851 {offsets = [0, 128], sizes = [8, 128], strides = [1, 1]} : vector<8x384xf32> to vector<8x128xf32>
    %876 = arith.addf %874, %875 : vector<8x128xf32>
    %877 = arith.negf %876 : vector<8x128xf32>
    %878 = math.exp %877 : vector<8x128xf32>
    %cst_204 = arith.constant 1.000000e+00 : f32
    %879 = vector.broadcast %cst_204 : f32 to vector<8x128xf32>
    %880 = arith.addf %879, %878 : vector<8x128xf32>
    %881 = arith.divf %879, %880 : vector<8x128xf32>
    %882 = vector.extract_strided_slice %865 {offsets = [0, 256], sizes = [8, 128], strides = [1, 1]} : vector<8x384xf32> to vector<8x128xf32>
    %883 = vector.extract_strided_slice %851 {offsets = [0, 256], sizes = [8, 128], strides = [1, 1]} : vector<8x384xf32> to vector<8x128xf32>
    %884 = arith.mulf %873, %883 : vector<8x128xf32>
    %885 = arith.addf %882, %884 : vector<8x128xf32>
    %886 = math.tanh %885 : vector<8x128xf32>
    %cst_205 = arith.constant 1.000000e+00 : f32
    %887 = vector.broadcast %cst_205 : f32 to vector<8x128xf32>
    %888 = arith.subf %887, %881 : vector<8x128xf32>
    %889 = arith.mulf %888, %886 : vector<8x128xf32>
    %890 = arith.mulf %881, %838 : vector<8x128xf32>
    %891 = arith.addf %889, %890 : vector<8x128xf32>
    %892 = vector.extract_strided_slice %852 {offsets = [0, 0], sizes = [8, 128], strides = [1, 1]} : vector<8x384xf32> to vector<8x128xf32>
    %893 = vector.extract_strided_slice %856 {offsets = [0, 0], sizes = [8, 128], strides = [1, 1]} : vector<8x384xf32> to vector<8x128xf32>
    %894 = arith.addf %892, %893 : vector<8x128xf32>
    %895 = arith.negf %894 : vector<8x128xf32>
    %896 = math.exp %895 : vector<8x128xf32>
    %cst_206 = arith.constant 1.000000e+00 : f32
    %897 = vector.broadcast %cst_206 : f32 to vector<8x128xf32>
    %898 = arith.addf %897, %896 : vector<8x128xf32>
    %899 = arith.divf %897, %898 : vector<8x128xf32>
    %900 = vector.extract_strided_slice %852 {offsets = [0, 128], sizes = [8, 128], strides = [1, 1]} : vector<8x384xf32> to vector<8x128xf32>
    %901 = vector.extract_strided_slice %856 {offsets = [0, 128], sizes = [8, 128], strides = [1, 1]} : vector<8x384xf32> to vector<8x128xf32>
    %902 = arith.addf %900, %901 : vector<8x128xf32>
    %903 = arith.negf %902 : vector<8x128xf32>
    %904 = math.exp %903 : vector<8x128xf32>
    %cst_207 = arith.constant 1.000000e+00 : f32
    %905 = vector.broadcast %cst_207 : f32 to vector<8x128xf32>
    %906 = arith.addf %905, %904 : vector<8x128xf32>
    %907 = arith.divf %905, %906 : vector<8x128xf32>
    %908 = vector.extract_strided_slice %852 {offsets = [0, 256], sizes = [8, 128], strides = [1, 1]} : vector<8x384xf32> to vector<8x128xf32>
    %909 = vector.extract_strided_slice %856 {offsets = [0, 256], sizes = [8, 128], strides = [1, 1]} : vector<8x384xf32> to vector<8x128xf32>
    %910 = arith.mulf %899, %909 : vector<8x128xf32>
    %911 = arith.addf %908, %910 : vector<8x128xf32>
    %912 = math.tanh %911 : vector<8x128xf32>
    %cst_208 = arith.constant 1.000000e+00 : f32
    %913 = vector.broadcast %cst_208 : f32 to vector<8x128xf32>
    %914 = arith.subf %913, %907 : vector<8x128xf32>
    %915 = arith.mulf %914, %912 : vector<8x128xf32>
    %916 = arith.mulf %907, %842 : vector<8x128xf32>
    %917 = arith.addf %915, %916 : vector<8x128xf32>
    %918 = vector.extract_strided_slice %857 {offsets = [0, 0], sizes = [8, 128], strides = [1, 1]} : vector<8x384xf32> to vector<8x128xf32>
    %919 = vector.extract_strided_slice %860 {offsets = [0, 0], sizes = [8, 128], strides = [1, 1]} : vector<8x384xf32> to vector<8x128xf32>
    %920 = arith.addf %918, %919 : vector<8x128xf32>
    %921 = arith.negf %920 : vector<8x128xf32>
    %922 = math.exp %921 : vector<8x128xf32>
    %cst_209 = arith.constant 1.000000e+00 : f32
    %923 = vector.broadcast %cst_209 : f32 to vector<8x128xf32>
    %924 = arith.addf %923, %922 : vector<8x128xf32>
    %925 = arith.divf %923, %924 : vector<8x128xf32>
    %926 = vector.extract_strided_slice %857 {offsets = [0, 128], sizes = [8, 128], strides = [1, 1]} : vector<8x384xf32> to vector<8x128xf32>
    %927 = vector.extract_strided_slice %860 {offsets = [0, 128], sizes = [8, 128], strides = [1, 1]} : vector<8x384xf32> to vector<8x128xf32>
    %928 = arith.addf %926, %927 : vector<8x128xf32>
    %929 = arith.negf %928 : vector<8x128xf32>
    %930 = math.exp %929 : vector<8x128xf32>
    %cst_210 = arith.constant 1.000000e+00 : f32
    %931 = vector.broadcast %cst_210 : f32 to vector<8x128xf32>
    %932 = arith.addf %931, %930 : vector<8x128xf32>
    %933 = arith.divf %931, %932 : vector<8x128xf32>
    %934 = vector.extract_strided_slice %857 {offsets = [0, 256], sizes = [8, 128], strides = [1, 1]} : vector<8x384xf32> to vector<8x128xf32>
    %935 = vector.extract_strided_slice %860 {offsets = [0, 256], sizes = [8, 128], strides = [1, 1]} : vector<8x384xf32> to vector<8x128xf32>
    %936 = arith.mulf %925, %935 : vector<8x128xf32>
    %937 = arith.addf %934, %936 : vector<8x128xf32>
    %938 = math.tanh %937 : vector<8x128xf32>
    %cst_211 = arith.constant 1.000000e+00 : f32
    %939 = vector.broadcast %cst_211 : f32 to vector<8x128xf32>
    %940 = arith.subf %939, %933 : vector<8x128xf32>
    %941 = arith.mulf %940, %938 : vector<8x128xf32>
    %942 = arith.mulf %933, %844 : vector<8x128xf32>
    %943 = arith.addf %941, %942 : vector<8x128xf32>
    %c2_i32_212 = arith.constant 2 : i32
    %944 = arith.cmpi sge, %c7_i32_196, %c2_i32_212 : i32
    %945 = arith.extui %944 : i1 to i32
    %c0_i32_213 = arith.constant 0 : i32
    %946 = arith.cmpi ne, %945, %c0_i32_213 : i32
    scf.if %946 {
      %c2_i32_269 = arith.constant 2 : i32
      %1184 = arith.subi %c7_i32_196, %c2_i32_269 : i32
      %c0_i32_270 = arith.constant 0 : i32
      %1185 = arith.maxsi %1184, %c0_i32_270 : i32
      %c8_i32_271 = arith.constant 8 : i32
      %1186 = arith.muli %1185, %c8_i32_271 : i32
      %1187 = tpu.assume_multiple %1186, 8 : i32
      %c0_272 = arith.constant 0 : index
      %1188 = arith.index_cast %1187 : i32 to index
      %c0_273 = arith.constant 0 : index
      %1189 = vector.load %arg16[%c0_272, %1188, %c0_273] : memref<1x64x128xf32, #tpu.memory_space<vmem>>, vector<1x8x128xf32>
      %1190 = vector.shape_cast %1189 : vector<1x8x128xf32> to vector<8x128xf32>
      %1191 = vector.shape_cast %943 : vector<8x128xf32> to vector<1x8x128xf32>
      tpu.vector_store %arg16[%c0_272, %1188, %c0_273], %1191 {strides = array<i32>} : memref<1x64x128xf32, #tpu.memory_space<vmem>>, vector<1x8x128xf32>,
    } else {
    }
    %c8_i32_214 = arith.constant 8 : i32
    %947 = arith.cmpi slt, %c7_i32_196, %c8_i32_214 : i32
    %948 = arith.select %947, %891, %838 : vector<8x128xf32>
    %c1_i32_215 = arith.constant 1 : i32
    %949 = arith.cmpi sge, %c7_i32_196, %c1_i32_215 : i32
    %c8_i32_216 = arith.constant 8 : i32
    %950 = arith.cmpi sle, %c7_i32_196, %c8_i32_216 : i32
    %951 = arith.andi %949, %950 : i1
    %952 = arith.select %951, %917, %842 : vector<8x128xf32>
    %c2_i32_217 = arith.constant 2 : i32
    %953 = arith.cmpi sge, %c7_i32_196, %c2_i32_217 : i32
    %954 = arith.select %953, %943, %844 : vector<8x128xf32>
    %c8_i32_218 = arith.constant 8 : i32
    %955 = arith.truncf %948 : vector<8x128xf32> to vector<8x128xbf16>
    %956 = arith.truncf %952 : vector<8x128xf32> to vector<8x128xbf16>
    %957 = arith.truncf %954 : vector<8x128xf32> to vector<8x128xbf16>
    %cst_219 = arith.constant dense<0.000000e+00> : vector<8x768xf32>
    %958 = tpu.matmul %955, %66, %cst_219 {dimension_numbers = #tpu.dot_dimension_numbers<[1], [0], [0], [1], [0, 0, 1, 1], [], []>} : vector<8x128xbf16>, vector<128x768xbf16>, vector<8x768xf32> -> vector<8x768xf32>
    %959 = vector.broadcast %67 : vector<1x768xf32> to vector<8x768xf32>
    %960 = arith.addf %958, %959 : vector<8x768xf32>
    %961 = vector.extract_strided_slice %960 {offsets = [0, 0], sizes = [8, 384], strides = [1, 1]} : vector<8x768xf32> to vector<8x384xf32>
    %962 = vector.extract_strided_slice %960 {offsets = [0, 384], sizes = [8, 384], strides = [1, 1]} : vector<8x768xf32> to vector<8x384xf32>
    %cst_220 = arith.constant dense<0.000000e+00> : vector<8x768xf32>
    %963 = tpu.matmul %956, %68, %cst_220 {dimension_numbers = #tpu.dot_dimension_numbers<[1], [0], [0], [1], [0, 0, 1, 1], [], []>} : vector<8x128xbf16>, vector<128x768xbf16>, vector<8x768xf32> -> vector<8x768xf32>
    %964 = vector.broadcast %69 : vector<1x768xf32> to vector<8x768xf32>
    %965 = arith.addf %963, %964 : vector<8x768xf32>
    %966 = vector.extract_strided_slice %965 {offsets = [0, 0], sizes = [8, 384], strides = [1, 1]} : vector<8x768xf32> to vector<8x384xf32>
    %967 = vector.extract_strided_slice %965 {offsets = [0, 384], sizes = [8, 384], strides = [1, 1]} : vector<8x768xf32> to vector<8x384xf32>
    %cst_221 = arith.constant dense<0.000000e+00> : vector<8x384xf32>
    %968 = tpu.matmul %957, %70, %cst_221 {dimension_numbers = #tpu.dot_dimension_numbers<[1], [0], [0], [1], [0, 0, 1, 1], [], []>} : vector<8x128xbf16>, vector<128x384xbf16>, vector<8x384xf32> -> vector<8x384xf32>
    %969 = vector.broadcast %71 : vector<1x384xf32> to vector<8x384xf32>
    %970 = arith.addf %968, %969 : vector<8x384xf32>
    %c7_i32_222 = arith.constant 7 : i32
    %971 = arith.minsi %c8_i32_218, %c7_i32_222 : i32
    %c8_i32_223 = arith.constant 8 : i32
    %972 = arith.muli %971, %c8_i32_223 : i32
    %973 = tpu.assume_multiple %972, 8 : i32
    %974 = arith.index_cast %973 : i32 to index
    %c0_224 = arith.constant 0 : index
    %975 = vector.load %arg18[%974, %c0_224] : memref<64x384xf32, #tpu.memory_space<vmem>>, vector<8x384xf32>
    %976 = vector.extract_strided_slice %975 {offsets = [0, 0], sizes = [8, 128], strides = [1, 1]} : vector<8x384xf32> to vector<8x128xf32>
    %977 = vector.extract_strided_slice %961 {offsets = [0, 0], sizes = [8, 128], strides = [1, 1]} : vector<8x384xf32> to vector<8x128xf32>
    %978 = arith.addf %976, %977 : vector<8x128xf32>
    %979 = arith.negf %978 : vector<8x128xf32>
    %980 = math.exp %979 : vector<8x128xf32>
    %cst_225 = arith.constant 1.000000e+00 : f32
    %981 = vector.broadcast %cst_225 : f32 to vector<8x128xf32>
    %982 = arith.addf %981, %980 : vector<8x128xf32>
    %983 = arith.divf %981, %982 : vector<8x128xf32>
    %984 = vector.extract_strided_slice %975 {offsets = [0, 128], sizes = [8, 128], strides = [1, 1]} : vector<8x384xf32> to vector<8x128xf32>
    %985 = vector.extract_strided_slice %961 {offsets = [0, 128], sizes = [8, 128], strides = [1, 1]} : vector<8x384xf32> to vector<8x128xf32>
    %986 = arith.addf %984, %985 : vector<8x128xf32>
    %987 = arith.negf %986 : vector<8x128xf32>
    %988 = math.exp %987 : vector<8x128xf32>
    %cst_226 = arith.constant 1.000000e+00 : f32
    %989 = vector.broadcast %cst_226 : f32 to vector<8x128xf32>
    %990 = arith.addf %989, %988 : vector<8x128xf32>
    %991 = arith.divf %989, %990 : vector<8x128xf32>
    %992 = vector.extract_strided_slice %975 {offsets = [0, 256], sizes = [8, 128], strides = [1, 1]} : vector<8x384xf32> to vector<8x128xf32>
    %993 = vector.extract_strided_slice %961 {offsets = [0, 256], sizes = [8, 128], strides = [1, 1]} : vector<8x384xf32> to vector<8x128xf32>
    %994 = arith.mulf %983, %993 : vector<8x128xf32>
    %995 = arith.addf %992, %994 : vector<8x128xf32>
    %996 = math.tanh %995 : vector<8x128xf32>
    %cst_227 = arith.constant 1.000000e+00 : f32
    %997 = vector.broadcast %cst_227 : f32 to vector<8x128xf32>
    %998 = arith.subf %997, %991 : vector<8x128xf32>
    %999 = arith.mulf %998, %996 : vector<8x128xf32>
    %1000 = arith.mulf %991, %948 : vector<8x128xf32>
    %1001 = arith.addf %999, %1000 : vector<8x128xf32>
    %1002 = vector.extract_strided_slice %962 {offsets = [0, 0], sizes = [8, 128], strides = [1, 1]} : vector<8x384xf32> to vector<8x128xf32>
    %1003 = vector.extract_strided_slice %966 {offsets = [0, 0], sizes = [8, 128], strides = [1, 1]} : vector<8x384xf32> to vector<8x128xf32>
    %1004 = arith.addf %1002, %1003 : vector<8x128xf32>
    %1005 = arith.negf %1004 : vector<8x128xf32>
    %1006 = math.exp %1005 : vector<8x128xf32>
    %cst_228 = arith.constant 1.000000e+00 : f32
    %1007 = vector.broadcast %cst_228 : f32 to vector<8x128xf32>
    %1008 = arith.addf %1007, %1006 : vector<8x128xf32>
    %1009 = arith.divf %1007, %1008 : vector<8x128xf32>
    %1010 = vector.extract_strided_slice %962 {offsets = [0, 128], sizes = [8, 128], strides = [1, 1]} : vector<8x384xf32> to vector<8x128xf32>
    %1011 = vector.extract_strided_slice %966 {offsets = [0, 128], sizes = [8, 128], strides = [1, 1]} : vector<8x384xf32> to vector<8x128xf32>
    %1012 = arith.addf %1010, %1011 : vector<8x128xf32>
    %1013 = arith.negf %1012 : vector<8x128xf32>
    %1014 = math.exp %1013 : vector<8x128xf32>
    %cst_229 = arith.constant 1.000000e+00 : f32
    %1015 = vector.broadcast %cst_229 : f32 to vector<8x128xf32>
    %1016 = arith.addf %1015, %1014 : vector<8x128xf32>
    %1017 = arith.divf %1015, %1016 : vector<8x128xf32>
    %1018 = vector.extract_strided_slice %962 {offsets = [0, 256], sizes = [8, 128], strides = [1, 1]} : vector<8x384xf32> to vector<8x128xf32>
    %1019 = vector.extract_strided_slice %966 {offsets = [0, 256], sizes = [8, 128], strides = [1, 1]} : vector<8x384xf32> to vector<8x128xf32>
    %1020 = arith.mulf %1009, %1019 : vector<8x128xf32>
    %1021 = arith.addf %1018, %1020 : vector<8x128xf32>
    %1022 = math.tanh %1021 : vector<8x128xf32>
    %cst_230 = arith.constant 1.000000e+00 : f32
    %1023 = vector.broadcast %cst_230 : f32 to vector<8x128xf32>
    %1024 = arith.subf %1023, %1017 : vector<8x128xf32>
    %1025 = arith.mulf %1024, %1022 : vector<8x128xf32>
    %1026 = arith.mulf %1017, %952 : vector<8x128xf32>
    %1027 = arith.addf %1025, %1026 : vector<8x128xf32>
    %1028 = vector.extract_strided_slice %967 {offsets = [0, 0], sizes = [8, 128], strides = [1, 1]} : vector<8x384xf32> to vector<8x128xf32>
    %1029 = vector.extract_strided_slice %970 {offsets = [0, 0], sizes = [8, 128], strides = [1, 1]} : vector<8x384xf32> to vector<8x128xf32>
    %1030 = arith.addf %1028, %1029 : vector<8x128xf32>
    %1031 = arith.negf %1030 : vector<8x128xf32>
    %1032 = math.exp %1031 : vector<8x128xf32>
    %cst_231 = arith.constant 1.000000e+00 : f32
    %1033 = vector.broadcast %cst_231 : f32 to vector<8x128xf32>
    %1034 = arith.addf %1033, %1032 : vector<8x128xf32>
    %1035 = arith.divf %1033, %1034 : vector<8x128xf32>
    %1036 = vector.extract_strided_slice %967 {offsets = [0, 128], sizes = [8, 128], strides = [1, 1]} : vector<8x384xf32> to vector<8x128xf32>
    %1037 = vector.extract_strided_slice %970 {offsets = [0, 128], sizes = [8, 128], strides = [1, 1]} : vector<8x384xf32> to vector<8x128xf32>
    %1038 = arith.addf %1036, %1037 : vector<8x128xf32>
    %1039 = arith.negf %1038 : vector<8x128xf32>
    %1040 = math.exp %1039 : vector<8x128xf32>
    %cst_232 = arith.constant 1.000000e+00 : f32
    %1041 = vector.broadcast %cst_232 : f32 to vector<8x128xf32>
    %1042 = arith.addf %1041, %1040 : vector<8x128xf32>
    %1043 = arith.divf %1041, %1042 : vector<8x128xf32>
    %1044 = vector.extract_strided_slice %967 {offsets = [0, 256], sizes = [8, 128], strides = [1, 1]} : vector<8x384xf32> to vector<8x128xf32>
    %1045 = vector.extract_strided_slice %970 {offsets = [0, 256], sizes = [8, 128], strides = [1, 1]} : vector<8x384xf32> to vector<8x128xf32>
    %1046 = arith.mulf %1035, %1045 : vector<8x128xf32>
    %1047 = arith.addf %1044, %1046 : vector<8x128xf32>
    %1048 = math.tanh %1047 : vector<8x128xf32>
    %cst_233 = arith.constant 1.000000e+00 : f32
    %1049 = vector.broadcast %cst_233 : f32 to vector<8x128xf32>
    %1050 = arith.subf %1049, %1043 : vector<8x128xf32>
    %1051 = arith.mulf %1050, %1048 : vector<8x128xf32>
    %1052 = arith.mulf %1043, %954 : vector<8x128xf32>
    %1053 = arith.addf %1051, %1052 : vector<8x128xf32>
    %c2_i32_234 = arith.constant 2 : i32
    %1054 = arith.cmpi sge, %c8_i32_218, %c2_i32_234 : i32
    %1055 = arith.extui %1054 : i1 to i32
    %c0_i32_235 = arith.constant 0 : i32
    %1056 = arith.cmpi ne, %1055, %c0_i32_235 : i32
    scf.if %1056 {
      %c2_i32_269 = arith.constant 2 : i32
      %1184 = arith.subi %c8_i32_218, %c2_i32_269 : i32
      %c0_i32_270 = arith.constant 0 : i32
      %1185 = arith.maxsi %1184, %c0_i32_270 : i32
      %c8_i32_271 = arith.constant 8 : i32
      %1186 = arith.muli %1185, %c8_i32_271 : i32
      %1187 = tpu.assume_multiple %1186, 8 : i32
      %c0_272 = arith.constant 0 : index
      %1188 = arith.index_cast %1187 : i32 to index
      %c0_273 = arith.constant 0 : index
      %1189 = vector.load %arg16[%c0_272, %1188, %c0_273] : memref<1x64x128xf32, #tpu.memory_space<vmem>>, vector<1x8x128xf32>
      %1190 = vector.shape_cast %1189 : vector<1x8x128xf32> to vector<8x128xf32>
      %1191 = vector.shape_cast %1053 : vector<8x128xf32> to vector<1x8x128xf32>
      tpu.vector_store %arg16[%c0_272, %1188, %c0_273], %1191 {strides = array<i32>} : memref<1x64x128xf32, #tpu.memory_space<vmem>>, vector<1x8x128xf32>,
    } else {
    }
    %c8_i32_236 = arith.constant 8 : i32
    %1057 = arith.cmpi slt, %c8_i32_218, %c8_i32_236 : i32
    %1058 = arith.select %1057, %1001, %948 : vector<8x128xf32>
    %c1_i32_237 = arith.constant 1 : i32
    %1059 = arith.cmpi sge, %c8_i32_218, %c1_i32_237 : i32
    %c8_i32_238 = arith.constant 8 : i32
    %1060 = arith.cmpi sle, %c8_i32_218, %c8_i32_238 : i32
    %1061 = arith.andi %1059, %1060 : i1
    %1062 = arith.select %1061, %1027, %952 : vector<8x128xf32>
    %c2_i32_239 = arith.constant 2 : i32
    %1063 = arith.cmpi sge, %c8_i32_218, %c2_i32_239 : i32
    %1064 = arith.select %1063, %1053, %954 : vector<8x128xf32>
    %c9_i32 = arith.constant 9 : i32
    %1065 = arith.truncf %1058 : vector<8x128xf32> to vector<8x128xbf16>
    %1066 = arith.truncf %1062 : vector<8x128xf32> to vector<8x128xbf16>
    %1067 = arith.truncf %1064 : vector<8x128xf32> to vector<8x128xbf16>
    %cst_240 = arith.constant dense<0.000000e+00> : vector<8x768xf32>
    %1068 = tpu.matmul %1065, %66, %cst_240 {dimension_numbers = #tpu.dot_dimension_numbers<[1], [0], [0], [1], [0, 0, 1, 1], [], []>} : vector<8x128xbf16>, vector<128x768xbf16>, vector<8x768xf32> -> vector<8x768xf32>
    %1069 = vector.broadcast %67 : vector<1x768xf32> to vector<8x768xf32>
    %1070 = arith.addf %1068, %1069 : vector<8x768xf32>
    %1071 = vector.extract_strided_slice %1070 {offsets = [0, 0], sizes = [8, 384], strides = [1, 1]} : vector<8x768xf32> to vector<8x384xf32>
    %1072 = vector.extract_strided_slice %1070 {offsets = [0, 384], sizes = [8, 384], strides = [1, 1]} : vector<8x768xf32> to vector<8x384xf32>
    %cst_241 = arith.constant dense<0.000000e+00> : vector<8x768xf32>
    %1073 = tpu.matmul %1066, %68, %cst_241 {dimension_numbers = #tpu.dot_dimension_numbers<[1], [0], [0], [1], [0, 0, 1, 1], [], []>} : vector<8x128xbf16>, vector<128x768xbf16>, vector<8x768xf32> -> vector<8x768xf32>
    %1074 = vector.broadcast %69 : vector<1x768xf32> to vector<8x768xf32>
    %1075 = arith.addf %1073, %1074 : vector<8x768xf32>
    %1076 = vector.extract_strided_slice %1075 {offsets = [0, 0], sizes = [8, 384], strides = [1, 1]} : vector<8x768xf32> to vector<8x384xf32>
    %1077 = vector.extract_strided_slice %1075 {offsets = [0, 384], sizes = [8, 384], strides = [1, 1]} : vector<8x768xf32> to vector<8x384xf32>
    %cst_242 = arith.constant dense<0.000000e+00> : vector<8x384xf32>
    %1078 = tpu.matmul %1067, %70, %cst_242 {dimension_numbers = #tpu.dot_dimension_numbers<[1], [0], [0], [1], [0, 0, 1, 1], [], []>} : vector<8x128xbf16>, vector<128x384xbf16>, vector<8x384xf32> -> vector<8x384xf32>
    %1079 = vector.broadcast %71 : vector<1x384xf32> to vector<8x384xf32>
    %1080 = arith.addf %1078, %1079 : vector<8x384xf32>
    %c7_i32_243 = arith.constant 7 : i32
    %1081 = arith.minsi %c9_i32, %c7_i32_243 : i32
    %c8_i32_244 = arith.constant 8 : i32
    %1082 = arith.muli %1081, %c8_i32_244 : i32
    %1083 = tpu.assume_multiple %1082, 8 : i32
    %1084 = arith.index_cast %1083 : i32 to index
    %c0_245 = arith.constant 0 : index
    %1085 = vector.load %arg18[%1084, %c0_245] : memref<64x384xf32, #tpu.memory_space<vmem>>, vector<8x384xf32>
    %1086 = vector.extract_strided_slice %1085 {offsets = [0, 0], sizes = [8, 128], strides = [1, 1]} : vector<8x384xf32> to vector<8x128xf32>
    %1087 = vector.extract_strided_slice %1071 {offsets = [0, 0], sizes = [8, 128], strides = [1, 1]} : vector<8x384xf32> to vector<8x128xf32>
    %1088 = arith.addf %1086, %1087 : vector<8x128xf32>
    %1089 = arith.negf %1088 : vector<8x128xf32>
    %1090 = math.exp %1089 : vector<8x128xf32>
    %cst_246 = arith.constant 1.000000e+00 : f32
    %1091 = vector.broadcast %cst_246 : f32 to vector<8x128xf32>
    %1092 = arith.addf %1091, %1090 : vector<8x128xf32>
    %1093 = arith.divf %1091, %1092 : vector<8x128xf32>
    %1094 = vector.extract_strided_slice %1085 {offsets = [0, 128], sizes = [8, 128], strides = [1, 1]} : vector<8x384xf32> to vector<8x128xf32>
    %1095 = vector.extract_strided_slice %1071 {offsets = [0, 128], sizes = [8, 128], strides = [1, 1]} : vector<8x384xf32> to vector<8x128xf32>
    %1096 = arith.addf %1094, %1095 : vector<8x128xf32>
    %1097 = arith.negf %1096 : vector<8x128xf32>
    %1098 = math.exp %1097 : vector<8x128xf32>
    %cst_247 = arith.constant 1.000000e+00 : f32
    %1099 = vector.broadcast %cst_247 : f32 to vector<8x128xf32>
    %1100 = arith.addf %1099, %1098 : vector<8x128xf32>
    %1101 = arith.divf %1099, %1100 : vector<8x128xf32>
    %1102 = vector.extract_strided_slice %1085 {offsets = [0, 256], sizes = [8, 128], strides = [1, 1]} : vector<8x384xf32> to vector<8x128xf32>
    %1103 = vector.extract_strided_slice %1071 {offsets = [0, 256], sizes = [8, 128], strides = [1, 1]} : vector<8x384xf32> to vector<8x128xf32>
    %1104 = arith.mulf %1093, %1103 : vector<8x128xf32>
    %1105 = arith.addf %1102, %1104 : vector<8x128xf32>
    %1106 = math.tanh %1105 : vector<8x128xf32>
    %cst_248 = arith.constant 1.000000e+00 : f32
    %1107 = vector.broadcast %cst_248 : f32 to vector<8x128xf32>
    %1108 = arith.subf %1107, %1101 : vector<8x128xf32>
    %1109 = arith.mulf %1108, %1106 : vector<8x128xf32>
    %1110 = arith.mulf %1101, %1058 : vector<8x128xf32>
    %1111 = arith.addf %1109, %1110 : vector<8x128xf32>
    %1112 = vector.extract_strided_slice %1072 {offsets = [0, 0], sizes = [8, 128], strides = [1, 1]} : vector<8x384xf32> to vector<8x128xf32>
    %1113 = vector.extract_strided_slice %1076 {offsets = [0, 0], sizes = [8, 128], strides = [1, 1]} : vector<8x384xf32> to vector<8x128xf32>
    %1114 = arith.addf %1112, %1113 : vector<8x128xf32>
    %1115 = arith.negf %1114 : vector<8x128xf32>
    %1116 = math.exp %1115 : vector<8x128xf32>
    %cst_249 = arith.constant 1.000000e+00 : f32
    %1117 = vector.broadcast %cst_249 : f32 to vector<8x128xf32>
    %1118 = arith.addf %1117, %1116 : vector<8x128xf32>
    %1119 = arith.divf %1117, %1118 : vector<8x128xf32>
    %1120 = vector.extract_strided_slice %1072 {offsets = [0, 128], sizes = [8, 128], strides = [1, 1]} : vector<8x384xf32> to vector<8x128xf32>
    %1121 = vector.extract_strided_slice %1076 {offsets = [0, 128], sizes = [8, 128], strides = [1, 1]} : vector<8x384xf32> to vector<8x128xf32>
    %1122 = arith.addf %1120, %1121 : vector<8x128xf32>
    %1123 = arith.negf %1122 : vector<8x128xf32>
    %1124 = math.exp %1123 : vector<8x128xf32>
    %cst_250 = arith.constant 1.000000e+00 : f32
    %1125 = vector.broadcast %cst_250 : f32 to vector<8x128xf32>
    %1126 = arith.addf %1125, %1124 : vector<8x128xf32>
    %1127 = arith.divf %1125, %1126 : vector<8x128xf32>
    %1128 = vector.extract_strided_slice %1072 {offsets = [0, 256], sizes = [8, 128], strides = [1, 1]} : vector<8x384xf32> to vector<8x128xf32>
    %1129 = vector.extract_strided_slice %1076 {offsets = [0, 256], sizes = [8, 128], strides = [1, 1]} : vector<8x384xf32> to vector<8x128xf32>
    %1130 = arith.mulf %1119, %1129 : vector<8x128xf32>
    %1131 = arith.addf %1128, %1130 : vector<8x128xf32>
    %1132 = math.tanh %1131 : vector<8x128xf32>
    %cst_251 = arith.constant 1.000000e+00 : f32
    %1133 = vector.broadcast %cst_251 : f32 to vector<8x128xf32>
    %1134 = arith.subf %1133, %1127 : vector<8x128xf32>
    %1135 = arith.mulf %1134, %1132 : vector<8x128xf32>
    %1136 = arith.mulf %1127, %1062 : vector<8x128xf32>
    %1137 = arith.addf %1135, %1136 : vector<8x128xf32>
    %1138 = vector.extract_strided_slice %1077 {offsets = [0, 0], sizes = [8, 128], strides = [1, 1]} : vector<8x384xf32> to vector<8x128xf32>
    %1139 = vector.extract_strided_slice %1080 {offsets = [0, 0], sizes = [8, 128], strides = [1, 1]} : vector<8x384xf32> to vector<8x128xf32>
    %1140 = arith.addf %1138, %1139 : vector<8x128xf32>
    %1141 = arith.negf %1140 : vector<8x128xf32>
    %1142 = math.exp %1141 : vector<8x128xf32>
    %cst_252 = arith.constant 1.000000e+00 : f32
    %1143 = vector.broadcast %cst_252 : f32 to vector<8x128xf32>
    %1144 = arith.addf %1143, %1142 : vector<8x128xf32>
    %1145 = arith.divf %1143, %1144 : vector<8x128xf32>
    %1146 = vector.extract_strided_slice %1077 {offsets = [0, 128], sizes = [8, 128], strides = [1, 1]} : vector<8x384xf32> to vector<8x128xf32>
    %1147 = vector.extract_strided_slice %1080 {offsets = [0, 128], sizes = [8, 128], strides = [1, 1]} : vector<8x384xf32> to vector<8x128xf32>
    %1148 = arith.addf %1146, %1147 : vector<8x128xf32>
    %1149 = arith.negf %1148 : vector<8x128xf32>
    %1150 = math.exp %1149 : vector<8x128xf32>
    %cst_253 = arith.constant 1.000000e+00 : f32
    %1151 = vector.broadcast %cst_253 : f32 to vector<8x128xf32>
    %1152 = arith.addf %1151, %1150 : vector<8x128xf32>
    %1153 = arith.divf %1151, %1152 : vector<8x128xf32>
    %1154 = vector.extract_strided_slice %1077 {offsets = [0, 256], sizes = [8, 128], strides = [1, 1]} : vector<8x384xf32> to vector<8x128xf32>
    %1155 = vector.extract_strided_slice %1080 {offsets = [0, 256], sizes = [8, 128], strides = [1, 1]} : vector<8x384xf32> to vector<8x128xf32>
    %1156 = arith.mulf %1145, %1155 : vector<8x128xf32>
    %1157 = arith.addf %1154, %1156 : vector<8x128xf32>
    %1158 = math.tanh %1157 : vector<8x128xf32>
    %cst_254 = arith.constant 1.000000e+00 : f32
    %1159 = vector.broadcast %cst_254 : f32 to vector<8x128xf32>
    %1160 = arith.subf %1159, %1153 : vector<8x128xf32>
    %1161 = arith.mulf %1160, %1158 : vector<8x128xf32>
    %1162 = arith.mulf %1153, %1064 : vector<8x128xf32>
    %1163 = arith.addf %1161, %1162 : vector<8x128xf32>
    %c2_i32_255 = arith.constant 2 : i32
    %1164 = arith.cmpi sge, %c9_i32, %c2_i32_255 : i32
    %1165 = arith.extui %1164 : i1 to i32
    %c0_i32_256 = arith.constant 0 : i32
    %1166 = arith.cmpi ne, %1165, %c0_i32_256 : i32
    scf.if %1166 {
      %c2_i32_269 = arith.constant 2 : i32
      %1184 = arith.subi %c9_i32, %c2_i32_269 : i32
      %c0_i32_270 = arith.constant 0 : i32
      %1185 = arith.maxsi %1184, %c0_i32_270 : i32
      %c8_i32_271 = arith.constant 8 : i32
      %1186 = arith.muli %1185, %c8_i32_271 : i32
      %1187 = tpu.assume_multiple %1186, 8 : i32
      %c0_272 = arith.constant 0 : index
      %1188 = arith.index_cast %1187 : i32 to index
      %c0_273 = arith.constant 0 : index
      %1189 = vector.load %arg16[%c0_272, %1188, %c0_273] : memref<1x64x128xf32, #tpu.memory_space<vmem>>, vector<1x8x128xf32>
      %1190 = vector.shape_cast %1189 : vector<1x8x128xf32> to vector<8x128xf32>
      %1191 = vector.shape_cast %1163 : vector<8x128xf32> to vector<1x8x128xf32>
      tpu.vector_store %arg16[%c0_272, %1188, %c0_273], %1191 {strides = array<i32>} : memref<1x64x128xf32, #tpu.memory_space<vmem>>, vector<1x8x128xf32>,
    } else {
    }
    %c8_i32_257 = arith.constant 8 : i32
    %1167 = arith.cmpi slt, %c9_i32, %c8_i32_257 : i32
    %1168 = arith.select %1167, %1111, %1058 : vector<8x128xf32>
    %c1_i32_258 = arith.constant 1 : i32
    %1169 = arith.cmpi sge, %c9_i32, %c1_i32_258 : i32
    %c8_i32_259 = arith.constant 8 : i32
    %1170 = arith.cmpi sle, %c9_i32, %c8_i32_259 : i32
    %1171 = arith.andi %1169, %1170 : i1
    %1172 = arith.select %1171, %1137, %1062 : vector<8x128xf32>
    %c2_i32_260 = arith.constant 2 : i32
    %1173 = arith.cmpi sge, %c9_i32, %c2_i32_260 : i32
    %1174 = arith.select %1173, %1163, %1064 : vector<8x128xf32>
    %c10_i32 = arith.constant 10 : i32
    %1175 = arith.truncf %1174 : vector<8x128xf32> to vector<8x128xbf16>
    %c0_261 = arith.constant 0 : index
    %c0_262 = arith.constant 0 : index
    %1176 = vector.load %arg14[%c0_261, %c0_262] : memref<128x128xbf16, #tpu.memory_space<vmem>>, vector<128x128xbf16>
    %cst_263 = arith.constant dense<0.000000e+00> : vector<8x128xf32>
    %1177 = tpu.matmul %1175, %1176, %cst_263 {dimension_numbers = #tpu.dot_dimension_numbers<[1], [0], [0], [1], [0, 0, 1, 1], [], []>} : vector<8x128xbf16>, vector<128x128xbf16>, vector<8x128xf32> -> vector<8x128xf32>
    %c0_264 = arith.constant 0 : index
    %c0_265 = arith.constant 0 : index
    %1178 = vector.load %arg15[%c0_264, %c0_265] : memref<1x128xf32, #tpu.memory_space<vmem>>, vector<1x128xf32>
    %1179 = vector.broadcast %1178 : vector<1x128xf32> to vector<8x128xf32>
    %1180 = arith.addf %1177, %1179 : vector<8x128xf32>
    %c0_266 = arith.constant 0 : index
    %c0_267 = arith.constant 0 : index
    %c0_268 = arith.constant 0 : index
    %1181 = vector.load %arg17[%c0_266, %c0_267, %c0_268] : memref<1x8x128xf32, #tpu.memory_space<vmem>>, vector<1x8x128xf32>
    %1182 = vector.shape_cast %1181 : vector<1x8x128xf32> to vector<8x128xf32>
    %1183 = vector.shape_cast %1180 : vector<8x128xf32> to vector<1x8x128xf32>
    tpu.vector_store %arg17[%c0_266, %c0_267, %c0_268], %1183 {strides = array<i32>} : memref<1x8x128xf32, #tpu.memory_space<vmem>>, vector<1x8x128xf32>,
    return
  }
  func.func @transform_0(%arg0: i32) -> (i32, i32, i32) {
    %c0_i32 = arith.constant 0 : i32
    %c0_i32_0 = arith.constant 0 : i32
    %c0_i32_1 = arith.constant 0 : i32
    return %arg0, %c0_i32, %c0_i32_0 : i32, i32, i32
  }
  func.func @transform_1(%arg0: i32) -> (i32, i32) {
    %c0_i32 = arith.constant 0 : i32
    %c0_i32_0 = arith.constant 0 : i32
    %c0_i32_1 = arith.constant 0 : i32
    return %c0_i32, %c0_i32_0 : i32, i32
  }
  func.func @transform_2(%arg0: i32) -> (i32, i32) {
    %c0_i32 = arith.constant 0 : i32
    %c0_i32_0 = arith.constant 0 : i32
    %c0_i32_1 = arith.constant 0 : i32
    return %c0_i32, %c0_i32_0 : i32, i32
  }
  func.func @transform_3(%arg0: i32) -> (i32, i32) {
    %c0_i32 = arith.constant 0 : i32
    %c0_i32_0 = arith.constant 0 : i32
    %c0_i32_1 = arith.constant 0 : i32
    return %c0_i32, %c0_i32_0 : i32, i32
  }
  func.func @transform_4(%arg0: i32) -> (i32, i32) {
    %c0_i32 = arith.constant 0 : i32
    %c0_i32_0 = arith.constant 0 : i32
    %c0_i32_1 = arith.constant 0 : i32
    return %c0_i32, %c0_i32_0 : i32, i32
  }
  func.func @transform_5(%arg0: i32) -> (i32, i32) {
    %c0_i32 = arith.constant 0 : i32
    %c0_i32_0 = arith.constant 0 : i32
    %c0_i32_1 = arith.constant 0 : i32
    return %c0_i32, %c0_i32_0 : i32, i32
  }
  func.func @transform_6(%arg0: i32) -> (i32, i32) {
    %c0_i32 = arith.constant 0 : i32
    %c0_i32_0 = arith.constant 0 : i32
    %c0_i32_1 = arith.constant 0 : i32
    return %c0_i32, %c0_i32_0 : i32, i32
  }
  func.func @transform_7(%arg0: i32) -> (i32, i32) {
    %c0_i32 = arith.constant 0 : i32
    %c0_i32_0 = arith.constant 0 : i32
    %c0_i32_1 = arith.constant 0 : i32
    return %c0_i32, %c0_i32_0 : i32, i32
  }
  func.func @transform_8(%arg0: i32) -> (i32, i32) {
    %c0_i32 = arith.constant 0 : i32
    %c0_i32_0 = arith.constant 0 : i32
    %c0_i32_1 = arith.constant 0 : i32
    return %c0_i32, %c0_i32_0 : i32, i32
  }
  func.func @transform_9(%arg0: i32) -> (i32, i32) {
    %c0_i32 = arith.constant 0 : i32
    %c0_i32_0 = arith.constant 0 : i32
    %c0_i32_1 = arith.constant 0 : i32
    return %c0_i32, %c0_i32_0 : i32, i32
  }
  func.func @transform_10(%arg0: i32) -> (i32, i32) {
    %c0_i32 = arith.constant 0 : i32
    %c0_i32_0 = arith.constant 0 : i32
    %c0_i32_1 = arith.constant 0 : i32
    return %c0_i32, %c0_i32_0 : i32, i32
  }
  func.func @transform_11(%arg0: i32) -> (i32, i32) {
    %c0_i32 = arith.constant 0 : i32
    %c0_i32_0 = arith.constant 0 : i32
    %c0_i32_1 = arith.constant 0 : i32
    return %c0_i32, %c0_i32_0 : i32, i32
  }
  func.func @transform_12(%arg0: i32) -> (i32, i32) {
    %c0_i32 = arith.constant 0 : i32
    %c0_i32_0 = arith.constant 0 : i32
    %c0_i32_1 = arith.constant 0 : i32
    return %c0_i32, %c0_i32_0 : i32, i32
  }
  func.func @transform_13(%arg0: i32) -> (i32, i32) {
    %c0_i32 = arith.constant 0 : i32
    %c0_i32_0 = arith.constant 0 : i32
    %c0_i32_1 = arith.constant 0 : i32
    return %c0_i32, %c0_i32_0 : i32, i32
  }
  func.func @transform_14(%arg0: i32) -> (i32, i32) {
    %c0_i32 = arith.constant 0 : i32
    %c0_i32_0 = arith.constant 0 : i32
    %c0_i32_1 = arith.constant 0 : i32
    return %c0_i32, %c0_i32_0 : i32, i32
  }
  func.func @transform_15(%arg0: i32) -> (i32, i32, i32) {
    %c0_i32 = arith.constant 0 : i32
    %c0_i32_0 = arith.constant 0 : i32
    %c0_i32_1 = arith.constant 0 : i32
    return %arg0, %c0_i32, %c0_i32_0 : i32, i32, i32
  }
  func.func @transform_16(%arg0: i32) -> (i32, i32, i32) {
    %c0_i32 = arith.constant 0 : i32
    %c0_i32_0 = arith.constant 0 : i32
    %c0_i32_1 = arith.constant 0 : i32
    return %arg0, %c0_i32, %c0_i32_0 : i32, i32, i32
  }
}

</mosaic_0001>

<llo_original>
// kernel: tpu_custom_call.1
$region0: #{tpu_custom_call.1}
  #allocation0 [shape = 'u32[]', space=smem, size = 0x4, offset = 0x4, fixed_abs, tag = 'smem constant byte address 0x4 - core index']
  #allocation1 [shape = 'u32[144,128]{1,0:T(1,128)}', space=vmem, size = 0x12000, scoped, tag = 'internal scratch']
  #allocation2 [shape = 'f32[64,384]{1,0:T(8,128)}', space=vmem, size = 0x18000, scoped, tag = 'scratch operand']
  %s0 = inlined_call_operand.vmem [shape: bf16[1,64,16], index: 0, kind: input, shape index: {}]
  %s1 = inlined_call_operand.vmem [shape: bf16[16,128], index: 1, kind: input, shape index: {}]
  %s2 = inlined_call_operand.hbm [shape: f32[1,128], index: 2, kind: input, shape index: {}]
  %s3 = inlined_call_operand.hbm [shape: bf16[128,256], index: 3, kind: input, shape index: {}]
  %s4 = inlined_call_operand.vmem [shape: f32[1,256], index: 4, kind: input, shape index: {}]
  %s5 = inlined_call_operand.hbm [shape: bf16[256,384], index: 5, kind: input, shape index: {}]
  %s6 = inlined_call_operand.vmem [shape: f32[1,384], index: 6, kind: input, shape index: {}]
  %s7 = inlined_call_operand.hbm [shape: bf16[128,768], index: 7, kind: input, shape index: {}]
  %s8 = inlined_call_operand.vmem [shape: f32[1,768], index: 8, kind: input, shape index: {}]
  %s9 = inlined_call_operand.hbm [shape: bf16[128,768], index: 9, kind: input, shape index: {}]
  %s10 = inlined_call_operand.vmem [shape: f32[1,768], index: 10, kind: input, shape index: {}]
  %s11 = inlined_call_operand.hbm [shape: bf16[128,384], index: 11, kind: input, shape index: {}]
  %s12 = inlined_call_operand.hbm [shape: f32[1,384], index: 12, kind: input, shape index: {}]
  %s13 = inlined_call_operand.vmem [shape: bf16[128,128], index: 13, kind: input, shape index: {}]
  %s14 = inlined_call_operand.vmem [shape: f32[1,128], index: 14, kind: input, shape index: {}]
  %s15 = inlined_call_operand.hbm [shape: f32[1,64,128], index: 15, kind: output, shape index: {0}]
  %s16 = inlined_call_operand.hbm [shape: f32[1,8,128], index: 16, kind: output, shape index: {1}]
  %17 = xla_tuple %s15, %s16
  %s18 = sld [smem:[#allocation0]]
  $region106: #{tpu_custom_call.1} parent=0
    _
  %s20 = ssub.s32 1, %s18
  %s21 = scalar_select 0, %s20, %s18
  $region1: #{tpu_custom_call.1} parent=0
    #allocation3 [shape = 'u8[512]{0}', space=vmem, size = 0x400, scoped, tag = 'input window, operand 2, single buffered']
    #allocation4 [shape = 's32[1]{0}', space=sflag, size = 0x4, scoped, tag = 'scoped memory for tpu_custom_call.1']
    #allocation5 [shape = 's32[1]{0}', space=sflag, size = 0x4, scoped, tag = 'scoped memory for tpu_custom_call.1']
    #allocation6 [shape = 'u8[65536]{0}', space=vmem, size = 0x10000, scoped, tag = 'input window, operand 3, single buffered']
    #allocation7 [shape = 's32[1]{0}', space=sflag, size = 0x4, scoped, tag = 'scoped memory for tpu_custom_call.1']
    #allocation8 [shape = 'u8[196608]{0}', space=vmem, size = 0x30000, scoped, tag = 'input window, operand 5, single buffered']
    #allocation9 [shape = 'u8[196608]{0}', space=vmem, size = 0x30000, scoped, tag = 'input window, operand 7, single buffered']
    #allocation10 [shape = 's32[1]{0}', space=sflag, size = 0x4, scoped, tag = 'scoped memory for tpu_custom_call.1']
    #allocation11 [shape = 'u8[196608]{0}', space=vmem, size = 0x30000, scoped, tag = 'input window, operand 9, single buffered']
    #allocation12 [shape = 'u8[98304]{0}', space=vmem, size = 0x18000, scoped, tag = 'input window, operand 11, single buffered']
    #allocation13 [shape = 's32[1]{0}', space=sflag, size = 0x4, scoped, tag = 'scoped memory for tpu_custom_call.1']
    #allocation14 [shape = 'u8[1536]{0}', space=vmem, size = 0x800, scoped, tag = 'input window, operand 12, single buffered']
    #allocation15 [shape = 'u8[32768]{0}', space=vmem, size = 0x8000, scoped, tag = 'output window, operand 0, single buffered']
    #allocation16 [shape = 'u8[4096]{0}', space=vmem, size = 0x1000, scoped, tag = 'output window, operand 1, single buffered']
    #allocation17 [shape = 's32[1]{0}', space=sflag, size = 0x4, scoped, tag = 'scoped memory for tpu_custom_call.1']
    %22 = vsyncpa [#allocation4], 0
    %23 = vsyncpa [#allocation7], 0
    %24 = vsyncpa [#allocation10], 0
    %25 = vsyncpa [#allocation13], 0
    %26 = vsyncpa [#allocation5], 0
    %27 = vsyncpa [#allocation17], 0
    // Predicated region
    $region2: #{tpu_custom_call.1} parent=1 // pred_check
      _
    $region3: #{tpu_custom_call.1} parent=1 // pred_check_branch
      %29 = sbr.rel (0) target = $region5
    $region4: #{tpu_custom_call.1} parent=1 // pred_region
      _
    $region5: #{tpu_custom_call.1} parent=1 // pred_fallthru
      _
    // Predicated region
    $region6: #{tpu_custom_call.1} parent=1 // pred_check
      _
    $region7: #{tpu_custom_call.1} parent=1 // pred_check_branch
      %31 = sbr.rel (0) target = $region9
    $region8: #{tpu_custom_call.1} parent=1 // pred_region
      _
    $region9: #{tpu_custom_call.1} parent=1 // pred_fallthru
      _
    // Predicated region
    $region10: #{tpu_custom_call.1} parent=1 // pred_check
      _
    $region11: #{tpu_custom_call.1} parent=1 // pred_check_branch
      %33 = sbr.rel (0) target = $region13
    $region12: #{tpu_custom_call.1} parent=1 // pred_region
      %s35 = ssub.s32 16, 16
      %36 = vsyncadd [#allocation4], %s35
      %s38 = sshll.u32 [#allocation3], 4
      %s39 = int_to_ptr.vmem [resolvable:$true] %s38
      %41 = dma.hbm_to_vmem [thread:$0]  %s2, 16, %s39, [#allocation4]
    $region13: #{tpu_custom_call.1} parent=1 // pred_fallthru
      _
    // Predicated region
    $region14: #{tpu_custom_call.1} parent=1 // pred_check
      _
    $region15: #{tpu_custom_call.1} parent=1 // pred_check_branch
      %43 = sbr.rel (0) target = $region17
    $region16: #{tpu_custom_call.1} parent=1 // pred_region
      %s45 = ssub.s32 2048, 2048
      %46 = vsyncadd [#allocation7], %s45
      %s47 = sshll.u32 [#allocation6], 4
      %s48 = int_to_ptr.vmem [resolvable:$true] %s47
      %53 = dma.hbm_to_vmem [thread:$0]  %s3, 2048, %s48, [#allocation7], 128, 128, 8
    $region17: #{tpu_custom_call.1} parent=1 // pred_fallthru
      _
    // Predicated region
    $region18: #{tpu_custom_call.1} parent=1 // pred_check
      _
    $region19: #{tpu_custom_call.1} parent=1 // pred_check_branch
      %55 = sbr.rel (0) target = $region21
    $region20: #{tpu_custom_call.1} parent=1 // pred_region
      _
    $region21: #{tpu_custom_call.1} parent=1 // pred_fallthru
      _
    // Predicated region
    $region22: #{tpu_custom_call.1} parent=1 // pred_check
      _
    $region23: #{tpu_custom_call.1} parent=1 // pred_check_branch
      %57 = sbr.rel (0) target = $region25
    $region24: #{tpu_custom_call.1} parent=1 // pred_region
      %s59 = ssub.s32 6144, 6144
      %60 = vsyncadd [#allocation7], %s59
      %s61 = sshll.u32 [#allocation8], 4
      %s62 = int_to_ptr.vmem [resolvable:$true] %s61
      %67 = dma.hbm_to_vmem [thread:$0]  %s5, 6144, %s62, [#allocation7], 192, 192, 12
    $region25: #{tpu_custom_call.1} parent=1 // pred_fallthru
      _
    // Predicated region
    $region26: #{tpu_custom_call.1} parent=1 // pred_check
      _
    $region27: #{tpu_custom_call.1} parent=1 // pred_check_branch
      %69 = sbr.rel (0) target = $region29
    $region28: #{tpu_custom_call.1} parent=1 // pred_region
      _
    $region29: #{tpu_custom_call.1} parent=1 // pred_fallthru
      _
    // Predicated region
    $region30: #{tpu_custom_call.1} parent=1 // pred_check
      _
    $region31: #{tpu_custom_call.1} parent=1 // pred_check_branch
      %71 = sbr.rel (0) target = $region33
    $region32: #{tpu_custom_call.1} parent=1 // pred_region
      %s73 = ssub.s32 6144, 6144
      %74 = vsyncadd [#allocation10], %s73
      %s75 = sshll.u32 [#allocation9], 4
      %s76 = int_to_ptr.vmem [resolvable:$true] %s75
      %81 = dma.hbm_to_vmem [thread:$0]  %s7, 6144, %s76, [#allocation10], 384, 384, 24
    $region33: #{tpu_custom_call.1} parent=1 // pred_fallthru
      _
    // Predicated region
    $region34: #{tpu_custom_call.1} parent=1 // pred_check
      _
    $region35: #{tpu_custom_call.1} parent=1 // pred_check_branch
      %83 = sbr.rel (0) target = $region37
    $region36: #{tpu_custom_call.1} parent=1 // pred_region
      _
    $region37: #{tpu_custom_call.1} parent=1 // pred_fallthru
      _
    // Predicated region
    $region38: #{tpu_custom_call.1} parent=1 // pred_check
      _
    $region39: #{tpu_custom_call.1} parent=1 // pred_check_branch
      %85 = sbr.rel (0) target = $region41
    $region40: #{tpu_custom_call.1} parent=1 // pred_region
      %s87 = ssub.s32 6144, 6144
      %88 = vsyncadd [#allocation10], %s87
      %s89 = sshll.u32 [#allocation11], 4
      %s90 = int_to_ptr.vmem [resolvable:$true] %s89
      %95 = dma.hbm_to_vmem [thread:$0]  %s9, 6144, %s90, [#allocation10], 384, 384, 24
    $region41: #{tpu_custom_call.1} parent=1 // pred_fallthru
      _
    // Predicated region
    $region42: #{tpu_custom_call.1} parent=1 // pred_check
      _
    $region43: #{tpu_custom_call.1} parent=1 // pred_check_branch
      %97 = sbr.rel (0) target = $region45
    $region44: #{tpu_custom_call.1} parent=1 // pred_region
      _
    $region45: #{tpu_custom_call.1} parent=1 // pred_fallthru
      _
    // Predicated region
    $region46: #{tpu_custom_call.1} parent=1 // pred_check
      _
    $region47: #{tpu_custom_call.1} parent=1 // pred_check_branch
      %99 = sbr.rel (0) target = $region49
    $region48: #{tpu_custom_call.1} parent=1 // pred_region
      %s101 = ssub.s32 3072, 3072
      %102 = vsyncadd [#allocation13], %s101
      %s103 = sshll.u32 [#allocation12], 4
      %s104 = int_to_ptr.vmem [resolvable:$true] %s103
      %109 = dma.hbm_to_vmem [thread:$0]  %s11, 3072, %s104, [#allocation13], 192, 192, 12
    $region49: #{tpu_custom_call.1} parent=1 // pred_fallthru
      _
    // Predicated region
    $region50: #{tpu_custom_call.1} parent=1 // pred_check
      _
    $region51: #{tpu_custom_call.1} parent=1 // pred_check_branch
      %111 = sbr.rel (0) target = $region53
    $region52: #{tpu_custom_call.1} parent=1 // pred_region
      %s113 = ssub.s32 48, 48
      %114 = vsyncadd [#allocation13], %s113
      %s116 = sshll.u32 [#allocation14], 4
      %s117 = int_to_ptr.vmem [resolvable:$true] %s116
      %119 = dma.hbm_to_vmem [thread:$0]  %s12, 48, %s117, [#allocation13]
    $region53: #{tpu_custom_call.1} parent=1 // pred_fallthru
      _
    // Predicated region
    $region54: #{tpu_custom_call.1} parent=1 // pred_check
      _
    $region55: #{tpu_custom_call.1} parent=1 // pred_check_branch
      %121 = sbr.rel (0) target = $region57
    $region56: #{tpu_custom_call.1} parent=1 // pred_region
      _
    $region57: #{tpu_custom_call.1} parent=1 // pred_fallthru
      _
    // Predicated region
    $region58: #{tpu_custom_call.1} parent=1 // pred_check
      _
    $region59: #{tpu_custom_call.1} parent=1 // pred_check_branch
      %123 = sbr.rel (0) target = $region61
    $region60: #{tpu_custom_call.1} parent=1 // pred_region
      _
    $region61: #{tpu_custom_call.1} parent=1 // pred_fallthru
      _
    // Predicated region
    $region62: #{tpu_custom_call.1} parent=1 // pred_check
      _
    $region63: #{tpu_custom_call.1} parent=1 // pred_check_branch
      %125 = sbr.rel (0) target = $region65
    $region64: #{tpu_custom_call.1} parent=1 // pred_region
      %126 = dma.done [#allocation4], 16
    $region65: #{tpu_custom_call.1} parent=1 // pred_fallthru
      _
    // Predicated region
    $region66: #{tpu_custom_call.1} parent=1 // pred_check
      _
    $region67: #{tpu_custom_call.1} parent=1 // pred_check_branch
      %128 = sbr.rel (0) target = $region69
    $region68: #{tpu_custom_call.1} parent=1 // pred_region
      %129 = dma.done [#allocation7], 2048
    $region69: #{tpu_custom_call.1} parent=1 // pred_fallthru
      _
    // Predicated region
    $region70: #{tpu_custom_call.1} parent=1 // pred_check
      _
    $region71: #{tpu_custom_call.1} parent=1 // pred_check_branch
      %131 = sbr.rel (0) target = $region73
    $region72: #{tpu_custom_call.1} parent=1 // pred_region
      %132 = dma.done [#allocation7], 6144
    $region73: #{tpu_custom_call.1} parent=1 // pred_fallthru
      _
    // Predicated region
    $region74: #{tpu_custom_call.1} parent=1 // pred_check
      _
    $region75: #{tpu_custom_call.1} parent=1 // pred_check_branch
      %134 = sbr.rel (0) target = $region77
    $region76: #{tpu_custom_call.1} parent=1 // pred_region
      %135 = dma.done [#allocation10], 6144
    $region77: #{tpu_custom_call.1} parent=1 // pred_fallthru
      _
    // Predicated region
    $region78: #{tpu_custom_call.1} parent=1 // pred_check
      _
    $region79: #{tpu_custom_call.1} parent=1 // pred_check_branch
      %137 = sbr.rel (0) target = $region81
    $region80: #{tpu_custom_call.1} parent=1 // pred_region
      %138 = dma.done [#allocation10], 6144
    $region81: #{tpu_custom_call.1} parent=1 // pred_fallthru
      _
    // Predicated region
    $region82: #{tpu_custom_call.1} parent=1 // pred_check
      _
    $region83: #{tpu_custom_call.1} parent=1 // pred_check_branch
      %140 = sbr.rel (0) target = $region85
    $region84: #{tpu_custom_call.1} parent=1 // pred_region
      %141 = dma.done [#allocation13], 3072
    $region85: #{tpu_custom_call.1} parent=1 // pred_fallthru
      _
    // Predicated region
    $region86: #{tpu_custom_call.1} parent=1 // pred_check
      _
    $region87: #{tpu_custom_call.1} parent=1 // pred_check_branch
      %143 = sbr.rel (0) target = $region89
    $region88: #{tpu_custom_call.1} parent=1 // pred_region
      %144 = dma.done [#allocation13], 48
    $region89: #{tpu_custom_call.1} parent=1 // pred_fallthru
      _
    %v146 = vlaneseq
    %v147 = vand.u32 %v146, 127
    %v148 = vlaneseq
    %v149 = vshrl.u32 %v148, 7
    %v150 = vand.u32 %v147, 7
    %vm151 = vcmp.eq.s32.totalorder %v150, %v149
    %v152 = vsel %vm151, 1, 0
    %v153 = vcvt.s32.f32 %v152
    %v154 = vadd.s32 %v149, 8
    %v155 = vadd.s32 %v149, 16
    %v156 = vadd.s32 %v149, 24
    %v157 = vadd.s32 %v149, 32
    %v158 = vadd.s32 %v149, 40
    %v159 = vadd.s32 %v149, 48
    %v160 = vadd.s32 %v149, 56
    %v161 = vand.u32 %v149, 7
    %v162 = vand.u32 %v154, 7
    %v163 = vand.u32 %v155, 7
    %v164 = vand.u32 %v156, 7
    %v165 = vand.u32 %v157, 7
    %v166 = vand.u32 %v158, 7
    %v167 = vand.u32 %v159, 7
    %v168 = vand.u32 %v160, 7
    %vm169 = vcmp.eq.s32.totalorder %v161, %v147
    %vm170 = vcmp.eq.s32.totalorder %v162, %v147
    %vm171 = vcmp.eq.s32.totalorder %v163, %v147
    %vm172 = vcmp.eq.s32.totalorder %v164, %v147
    %vm173 = vcmp.eq.s32.totalorder %v165, %v147
    %vm174 = vcmp.eq.s32.totalorder %v166, %v147
    %vm175 = vcmp.eq.s32.totalorder %v167, %v147
    %vm176 = vcmp.eq.s32.totalorder %v168, %v147
    %v177 = vsel %vm169, 1, 0
    %v178 = vsel %vm170, 1, 0
    %v179 = vsel %vm171, 1, 0
    %v180 = vsel %vm172, 1, 0
    %v181 = vsel %vm173, 1, 0
    %v182 = vsel %vm174, 1, 0
    %v183 = vsel %vm175, 1, 0
    %v184 = vsel %vm176, 1, 0
    %v185 = vcvt.s32.f32 %v177
    %v186 = vcvt.s32.f32 %v178
    %v187 = vcvt.s32.f32 %v179
    %v188 = vcvt.s32.f32 %v180
    %v189 = vcvt.s32.f32 %v181
    %v190 = vcvt.s32.f32 %v182
    %v191 = vcvt.s32.f32 %v183
    %v192 = vcvt.s32.f32 %v184
    %v193 = vld [vmem:[%s0] sm:$0xf]
    %v194 = vld [vmem:[%s0 + $0x4] sm:$0xf]
    %v195 = vld [vmem:[%s0 + $0x8] sm:$0xf]
    %v196 = vld [vmem:[%s0 + $0xc] sm:$0xf]
    %v197 = vld [vmem:[%s0 + $0x10] sm:$0xf]
    %v198 = vld [vmem:[%s0 + $0x14] sm:$0xf]
    %v199 = vld [vmem:[%s0 + $0x18] sm:$0xf]
    %v200 = vld [vmem:[%s0 + $0x1c] sm:$0xf]
    %v201 = vld [vmem:[%s1] sm:$0xf]
    %v202 = vld [vmem:[%s1 + $0x4] sm:$0xf]
    %v203 = vld [vmem:[#allocation3] sm:$0x1]
    %v205 = vlaneseq
    %v206 = vshrl.u32 %v205, 7
    %v207 = vsub.s32 0, %v206
    %v208 = vrot.slane %v203, %v207
    %v218 = vunpack.c.l.b16 %v193
    %v219 = vunpack.c.l.b16 %v194
    %v220 = vunpack.c.l.b16 %v195
    %v221 = vunpack.c.l.b16 %v196
    %v222 = vunpack.c.l.b16 %v197
    %v223 = vunpack.c.l.b16 %v198
    %v224 = vunpack.c.l.b16 %v199
    %v225 = vunpack.c.l.b16 %v200
    %v226 = vpack.c.b16 %v219, %v218
    %v227 = vpack.c.b16 %v221, %v220
    %v228 = vpack.c.b16 %v223, %v222
    %v229 = vpack.c.b16 %v225, %v224
    %v232 = vunpack.c.l.b16 %v201
    %v233 = vunpack.c.l.b16 %v202
    %v234 = vpack.c.b16 %v233, %v232
    %vm236 = vcmask 130048
    %v238 = vsel %vm236, %v226, 0
    %v241 = vsel %vm236, %v227, 0
    %v244 = vsel %vm236, %v228, 0
    %v247 = vsel %vm236, %v229, 0
    %249 = vmatprep.subr.bf16.mxu0 0
    %250 = vmatpush1.bf16.msra.mxu0 %v234
    %251 = vmatprep.subr.bf16.mxu0 0
    %252 = vmatpush1.bf16.msra.mxu0 0
    %253 = vmatprep.subr.bf16.mxu0 0
    %254 = vmatpush1.bf16.msra.mxu0 0
    %255 = vmatprep.subr.bf16.mxu0 0
    %256 = vmatpush1.bf16.msra.mxu0 0
    %257 = vmatprep.subr.bf16.mxu0 0
    %258 = vmatpush1.bf16.msra.mxu0 0
    %259 = vmatprep.subr.bf16.mxu0 0
    %260 = vmatpush1.bf16.msra.mxu0 0
    %261 = vmatprep.subr.bf16.mxu0 0
    %262 = vmatpush1.bf16.msra.mxu0 0
    %263 = vmatprep.subr.bf16.mxu0 0
    %264 = vmatpush1.bf16.msra.mxu0 0
    %265 = vmatprep.subr.bf16.mxu0 0
    %266 = vmatpush1.bf16.msra.mxu0 0
    %267 = vmatprep.subr.bf16.mxu0 0
    %268 = vmatpush1.bf16.msra.mxu0 0
    %269 = vmatprep.subr.bf16.mxu0 0
    %270 = vmatpush1.bf16.msra.mxu0 0
    %271 = vmatprep.subr.bf16.mxu0 0
    %272 = vmatpush1.bf16.msra.mxu0 0
    %273 = vmatprep.subr.bf16.mxu0 0
    %274 = vmatpush1.bf16.msra.mxu0 0
    %275 = vmatprep.subr.bf16.mxu0 0
    %276 = vmatpush1.bf16.msra.mxu0 0
    %277 = vmatprep.subr.bf16.mxu0 0
    %278 = vmatpush1.bf16.msra.mxu0 0
    %279 = vmatprep.subr.bf16.mxu0 0
    %280 = vmatpush1.bf16.msra.mxu0 0
    %281 = vmatprep.mubr.bf16.mxu0 0
    %282 = vmatmul.mubr.bf16.gmra.mrb[0].mxu0 %v238
    %v283 = vpop.f32.mrb[0].mxu0
    %v284 = vadd.f32 %v208, %v283
    %v285 = vpop.f32.mrb[0].mxu0
    %v286 = vpop.f32.mrb[0].mxu0
    %v287 = vadd.f32 %v208, %v286
    %v288 = vpop.f32.mrb[0].mxu0
    %289 = vmatprep.mubr.bf16.mxu0 0
    %290 = vmatmul.mubr.bf16.gmra.mrb[0].mxu0 %v241
    %v291 = vpop.f32.mrb[0].mxu0
    %v292 = vadd.f32 %v208, %v291
    %v293 = vpop.f32.mrb[0].mxu0
    %v294 = vpop.f32.mrb[0].mxu0
    %v295 = vadd.f32 %v208, %v294
    %v296 = vpop.f32.mrb[0].mxu0
    %297 = vmatprep.mubr.bf16.mxu0 0
    %298 = vmatmul.mubr.bf16.gmra.mrb[0].mxu0 %v244
    %v299 = vpop.f32.mrb[0].mxu0
    %v300 = vadd.f32 %v208, %v299
    %v301 = vpop.f32.mrb[0].mxu0
    %v302 = vpop.f32.mrb[0].mxu0
    %v303 = vadd.f32 %v208, %v302
    %v304 = vpop.f32.mrb[0].mxu0
    %305 = vmatprep.mubr.bf16.mxu0 0
    %306 = vmatmul.mubr.bf16.gmra.mrb[0].mxu0 %v247
    %v307 = vpop.f32.mrb[0].mxu0
    %v308 = vadd.f32 %v208, %v307
    %v309 = vpop.f32.mrb[0].mxu0
    %v310 = vpop.f32.mrb[0].mxu0
    %v311 = vadd.f32 %v208, %v310
    %v312 = vpop.f32.mrb[0].mxu0
    %313 = vdwg.mxu0
    %vm314 = vcmask 523264
    %v316 = vsel %vm314, %v153, 0
    %318 = vmatprep.subr.mxu0 0.0
    %319 = vmatpush1.msra.mxu0 %v284
    %320 = vmatprep.subr.mxu0 0.0
    %321 = vmatpush1.msra.mxu0 %v287
    %322 = vmatprep.subr.mxu0 0.0
    %323 = vmatpush1.msra.mxu0 %v292
    %324 = vmatprep.subr.mxu0 0.0
    %325 = vmatpush1.msra.mxu0 %v295
    %326 = vmatprep.subr.mxu0 0.0
    %327 = vmatpush1.msra.mxu0 %v300
    %328 = vmatprep.subr.mxu0 0.0
    %329 = vmatpush1.msra.mxu0 %v303
    %330 = vmatprep.subr.mxu0 0.0
    %331 = vmatpush1.msra.mxu0 %v308
    %332 = vmatprep.subr.mxu0 0.0
    %333 = vmatpush1.msra.mxu0 %v311
    %334 = vmatprep.subr.mxu0 0.0
    %335 = vmatpush1.msra.mxu0 0.0
    %336 = vmatprep.subr.mxu0 0.0
    %337 = vmatpush1.msra.mxu0 0.0
    %338 = vmatprep.subr.mxu0 0.0
    %339 = vmatpush1.msra.mxu0 0.0
    %340 = vmatprep.subr.mxu0 0.0
    %341 = vmatpush1.msra.mxu0 0.0
    %342 = vmatprep.subr.mxu0 0.0
    %343 = vmatpush1.msra.mxu0 0.0
    %344 = vmatprep.subr.mxu0 0.0
    %345 = vmatpush1.msra.mxu0 0.0
    %346 = vmatprep.subr.mxu0 0.0
    %347 = vmatpush1.msra.mxu0 0.0
    %348 = vmatprep.subr.mxu0 0.0
    %349 = vmatpush1.msra.mxu0 0.0
    %350 = vmatprep.subr.mxu0 0.0
    %351 = vmatpush1.msra.mxu0 0.0
    %352 = vmatprep.subr.mxu0 0.0
    %353 = vmatpush1.msra.mxu0 0.0
    %354 = vmatprep.subr.mxu0 0.0
    %355 = vmatpush1.msra.mxu0 0.0
    %356 = vmatprep.subr.mxu0 0.0
    %357 = vmatpush1.msra.mxu0 0.0
    %358 = vmatprep.subr.mxu0 0.0
    %359 = vmatpush1.msra.mxu0 0.0
    %360 = vmatprep.subr.mxu0 0.0
    %361 = vmatpush1.msra.mxu0 0.0
    %362 = vmatprep.subr.mxu0 0.0
    %363 = vmatpush1.msra.mxu0 0.0
    %364 = vmatprep.subr.mxu0 0.0
    %365 = vmatpush1.msra.mxu0 0.0
    %366 = vmatprep.subr.mxu0 0.0
    %367 = vmatpush1.msra.mxu0 0.0
    %368 = vmatprep.subr.mxu0 0.0
    %369 = vmatpush1.msra.mxu0 0.0
    %370 = vmatprep.subr.mxu0 0.0
    %371 = vmatpush1.msra.mxu0 0.0
    %372 = vmatprep.subr.mxu0 0.0
    %373 = vmatpush1.msra.mxu0 0.0
    %374 = vmatprep.subr.mxu0 0.0
    %375 = vmatpush1.msra.mxu0 0.0
    %376 = vmatprep.subr.mxu0 0.0
    %377 = vmatpush1.msra.mxu0 0.0
    %378 = vmatprep.subr.mxu0 0.0
    %379 = vmatpush1.msra.mxu0 0.0
    %380 = vmatprep.subr.mxu0 0.0
    %381 = vmatpush1.msra.mxu0 0.0
    %382 = vmatprep.mubr.f32.mxu0 0.0
    %383 = vmatmul.mubr.f32.gmra.mrb[0].mxu0 %v316
    %v384 = vpop.f32.mrb[0].mxu0
    %v385 = vadd.f32 0.0, %v384
    %v386 = vpop.f32.mrb[0].mxu0
    %387 = vdwg.mxu0
    %v388 = vmul.f32 %v385, 0.125
    %vm389 = vcmask 64512
    %v391 = vsel %vm389, %v185, 0
    %v394 = vsel %vm389, %v186, 0
    %v397 = vsel %vm389, %v187, 0
    %v400 = vsel %vm389, %v188, 0
    %v403 = vsel %vm389, %v189, 0
    %v406 = vsel %vm389, %v190, 0
    %v409 = vsel %vm389, %v191, 0
    %v412 = vsel %vm389, %v192, 0
    %414 = vmatprep.subr.mxu0 0.0
    %415 = vmatpush1.msra.mxu0 %v388
    %416 = vmatprep.subr.mxu0 0.0
    %417 = vmatpush1.msra.mxu0 0.0
    %418 = vmatprep.subr.mxu0 0.0
    %419 = vmatpush1.msra.mxu0 0.0
    %420 = vmatprep.subr.mxu0 0.0
    %421 = vmatpush1.msra.mxu0 0.0
    %422 = vmatprep.subr.mxu0 0.0
    %423 = vmatpush1.msra.mxu0 0.0
    %424 = vmatprep.subr.mxu0 0.0
    %425 = vmatpush1.msra.mxu0 0.0
    %426 = vmatprep.subr.mxu0 0.0
    %427 = vmatpush1.msra.mxu0 0.0
    %428 = vmatprep.subr.mxu0 0.0
    %429 = vmatpush1.msra.mxu0 0.0
    %430 = vmatprep.subr.mxu0 0.0
    %431 = vmatpush1.msra.mxu0 0.0
    %432 = vmatprep.subr.mxu0 0.0
    %433 = vmatpush1.msra.mxu0 0.0
    %434 = vmatprep.subr.mxu0 0.0
    %435 = vmatpush1.msra.mxu0 0.0
    %436 = vmatprep.subr.mxu0 0.0
    %437 = vmatpush1.msra.mxu0 0.0
    %438 = vmatprep.subr.mxu0 0.0
    %439 = vmatpush1.msra.mxu0 0.0
    %440 = vmatprep.subr.mxu0 0.0
    %441 = vmatpush1.msra.mxu0 0.0
    %442 = vmatprep.subr.mxu0 0.0
    %443 = vmatpush1.msra.mxu0 0.0
    %444 = vmatprep.subr.mxu0 0.0
    %445 = vmatpush1.msra.mxu0 0.0
    %446 = vmatprep.subr.mxu0 0.0
    %447 = vmatpush1.msra.mxu0 0.0
    %448 = vmatprep.subr.mxu0 0.0
    %449 = vmatpush1.msra.mxu0 0.0
    %450 = vmatprep.subr.mxu0 0.0
    %451 = vmatpush1.msra.mxu0 0.0
    %452 = vmatprep.subr.mxu0 0.0
    %453 = vmatpush1.msra.mxu0 0.0
    %454 = vmatprep.subr.mxu0 0.0
    %455 = vmatpush1.msra.mxu0 0.0
    %456 = vmatprep.subr.mxu0 0.0
    %457 = vmatpush1.msra.mxu0 0.0
    %458 = vmatprep.subr.mxu0 0.0
    %459 = vmatpush1.msra.mxu0 0.0
    %460 = vmatprep.subr.mxu0 0.0
    %461 = vmatpush1.msra.mxu0 0.0
    %462 = vmatprep.subr.mxu0 0.0
    %463 = vmatpush1.msra.mxu0 0.0
    %464 = vmatprep.subr.mxu0 0.0
    %465 = vmatpush1.msra.mxu0 0.0
    %466 = vmatprep.subr.mxu0 0.0
    %467 = vmatpush1.msra.mxu0 0.0
    %468 = vmatprep.subr.mxu0 0.0
    %469 = vmatpush1.msra.mxu0 0.0
    %470 = vmatprep.subr.mxu0 0.0
    %471 = vmatpush1.msra.mxu0 0.0
    %472 = vmatprep.subr.mxu0 0.0
    %473 = vmatpush1.msra.mxu0 0.0
    %474 = vmatprep.subr.mxu0 0.0
    %475 = vmatpush1.msra.mxu0 0.0
    %476 = vmatprep.subr.mxu0 0.0
    %477 = vmatpush1.msra.mxu0 0.0
    %478 = vmatprep.mubr.f32.mxu0 0.0
    %479 = vmatmul.mubr.f32.gmra.mrb[0].mxu0 %v391
    %v480 = vpop.f32.mrb[0].mxu0
    %v481 = vadd.f32 0.0, %v480
    %v482 = vpop.f32.mrb[0].mxu0
    %483 = vmatprep.mubr.f32.mxu0 0.0
    %484 = vmatmul.mubr.f32.gmra.mrb[0].mxu0 %v394
    %v485 = vpop.f32.mrb[0].mxu0
    %v486 = vadd.f32 0.0, %v485
    %v487 = vpop.f32.mrb[0].mxu0
    %488 = vmatprep.mubr.f32.mxu0 0.0
    %489 = vmatmul.mubr.f32.gmra.mrb[0].mxu0 %v397
    %v490 = vpop.f32.mrb[0].mxu0
    %v491 = vadd.f32 0.0, %v490
    %v492 = vpop.f32.mrb[0].mxu0
    %493 = vmatprep.mubr.f32.mxu0 0.0
    %494 = vmatmul.mubr.f32.gmra.mrb[0].mxu0 %v400
    %v495 = vpop.f32.mrb[0].mxu0
    %v496 = vadd.f32 0.0, %v495
    %v497 = vpop.f32.mrb[0].mxu0
    %498 = vmatprep.mubr.f32.mxu0 0.0
    %499 = vmatmul.mubr.f32.gmra.mrb[0].mxu0 %v403
    %v500 = vpop.f32.mrb[0].mxu0
    %v501 = vadd.f32 0.0, %v500
    %v502 = vpop.f32.mrb[0].mxu0
    %503 = vmatprep.mubr.f32.mxu0 0.0
    %504 = vmatmul.mubr.f32.gmra.mrb[0].mxu0 %v406
    %v505 = vpop.f32.mrb[0].mxu0
    %v506 = vadd.f32 0.0, %v505
    %v507 = vpop.f32.mrb[0].mxu0
    %508 = vmatprep.mubr.f32.mxu0 0.0
    %509 = vmatmul.mubr.f32.gmra.mrb[0].mxu0 %v409
    %v510 = vpop.f32.mrb[0].mxu0
    %v511 = vadd.f32 0.0, %v510
    %v512 = vpop.f32.mrb[0].mxu0
    %513 = vmatprep.mubr.f32.mxu0 0.0
    %514 = vmatmul.mubr.f32.gmra.mrb[0].mxu0 %v412
    %v515 = vpop.f32.mrb[0].mxu0
    %v516 = vadd.f32 0.0, %v515
    %v517 = vpop.f32.mrb[0].mxu0
    %518 = vdwg.mxu0
    %v519 = vsub.f32 %v284, %v481
    %v520 = vsub.f32 %v287, %v486
    %v521 = vsub.f32 %v292, %v491
    %v522 = vsub.f32 %v295, %v496
    %v523 = vsub.f32 %v300, %v501
    %v524 = vsub.f32 %v303, %v506
    %v525 = vsub.f32 %v308, %v511
    %v526 = vsub.f32 %v311, %v516
    %v527 = vmul.f32 %v519, %v519
    %v528 = vmul.f32 %v520, %v520
    %v529 = vmul.f32 %v521, %v521
    %v530 = vmul.f32 %v522, %v522
    %v531 = vmul.f32 %v523, %v523
    %v532 = vmul.f32 %v524, %v524
    %v533 = vmul.f32 %v525, %v525
    %v534 = vmul.f32 %v526, %v526
    %535 = vmatprep.subr.mxu0 0.0
    %536 = vmatpush1.msra.mxu0 %v527
    %537 = vmatprep.subr.mxu0 0.0
    %538 = vmatpush1.msra.mxu0 %v528
    %539 = vmatprep.subr.mxu0 0.0
    %540 = vmatpush1.msra.mxu0 %v529
    %541 = vmatprep.subr.mxu0 0.0
    %542 = vmatpush1.msra.mxu0 %v530
    %543 = vmatprep.subr.mxu0 0.0
    %544 = vmatpush1.msra.mxu0 %v531
    %545 = vmatprep.subr.mxu0 0.0
    %546 = vmatpush1.msra.mxu0 %v532
    %547 = vmatprep.subr.mxu0 0.0
    %548 = vmatpush1.msra.mxu0 %v533
    %549 = vmatprep.subr.mxu0 0.0
    %550 = vmatpush1.msra.mxu0 %v534
    %551 = vmatprep.subr.mxu0 0.0
    %552 = vmatpush1.msra.mxu0 0.0
    %553 = vmatprep.subr.mxu0 0.0
    %554 = vmatpush1.msra.mxu0 0.0
    %555 = vmatprep.subr.mxu0 0.0
    %556 = vmatpush1.msra.mxu0 0.0
    %557 = vmatprep.subr.mxu0 0.0
    %558 = vmatpush1.msra.mxu0 0.0
    %559 = vmatprep.subr.mxu0 0.0
    %560 = vmatpush1.msra.mxu0 0.0
    %561 = vmatprep.subr.mxu0 0.0
    %562 = vmatpush1.msra.mxu0 0.0
    %563 = vmatprep.subr.mxu0 0.0
    %564 = vmatpush1.msra.mxu0 0.0
    %565 = vmatprep.subr.mxu0 0.0
    %566 = vmatpush1.msra.mxu0 0.0
    %567 = vmatprep.subr.mxu0 0.0
    %568 = vmatpush1.msra.mxu0 0.0
    %569 = vmatprep.subr.mxu0 0.0
    %570 = vmatpush1.msra.mxu0 0.0
    %571 = vmatprep.subr.mxu0 0.0
    %572 = vmatpush1.msra.mxu0 0.0
    %573 = vmatprep.subr.mxu0 0.0
    %574 = vmatpush1.msra.mxu0 0.0
    %575 = vmatprep.subr.mxu0 0.0
    %576 = vmatpush1.msra.mxu0 0.0
    %577 = vmatprep.subr.mxu0 0.0
    %578 = vmatpush1.msra.mxu0 0.0
    %579 = vmatprep.subr.mxu0 0.0
    %580 = vmatpush1.msra.mxu0 0.0
    %581 = vmatprep.subr.mxu0 0.0
    %582 = vmatpush1.msra.mxu0 0.0
    %583 = vmatprep.subr.mxu0 0.0
    %584 = vmatpush1.msra.mxu0 0.0
    %585 = vmatprep.subr.mxu0 0.0
    %586 = vmatpush1.msra.mxu0 0.0
    %587 = vmatprep.subr.mxu0 0.0
    %588 = vmatpush1.msra.mxu0 0.0
    %589 = vmatprep.subr.mxu0 0.0
    %590 = vmatpush1.msra.mxu0 0.0
    %591 = vmatprep.subr.mxu0 0.0
    %592 = vmatpush1.msra.mxu0 0.0
    %593 = vmatprep.subr.mxu0 0.0
    %594 = vmatpush1.msra.mxu0 0.0
    %595 = vmatprep.subr.mxu0 0.0
    %596 = vmatpush1.msra.mxu0 0.0
    %597 = vmatprep.subr.mxu0 0.0
    %598 = vmatpush1.msra.mxu0 0.0
    %599 = vmatprep.mubr.f32.mxu0 0.0
    %600 = vmatmul.mubr.f32.gmra.mrb[0].mxu0 %v316
    %v601 = vpop.f32.mrb[0].mxu0
    %v602 = vadd.f32 0.0, %v601
    %v603 = vpop.f32.mrb[0].mxu0
    %604 = vdwg.mxu0
    %v605 = vmul.f32 %v602, 0.125
    %606 = vmatprep.subr.mxu0 0.0
    %607 = vmatpush1.msra.mxu0 %v605
    %608 = vmatprep.subr.mxu0 0.0
    %609 = vmatpush1.msra.mxu0 0.0
    %610 = vmatprep.subr.mxu0 0.0
    %611 = vmatpush1.msra.mxu0 0.0
    %612 = vmatprep.subr.mxu0 0.0
    %613 = vmatpush1.msra.mxu0 0.0
    %614 = vmatprep.subr.mxu0 0.0
    %615 = vmatpush1.msra.mxu0 0.0
    %616 = vmatprep.subr.mxu0 0.0
    %617 = vmatpush1.msra.mxu0 0.0
    %618 = vmatprep.subr.mxu0 0.0
    %619 = vmatpush1.msra.mxu0 0.0
    %620 = vmatprep.subr.mxu0 0.0
    %621 = vmatpush1.msra.mxu0 0.0
    %622 = vmatprep.subr.mxu0 0.0
    %623 = vmatpush1.msra.mxu0 0.0
    %624 = vmatprep.subr.mxu0 0.0
    %625 = vmatpush1.msra.mxu0 0.0
    %626 = vmatprep.subr.mxu0 0.0
    %627 = vmatpush1.msra.mxu0 0.0
    %628 = vmatprep.subr.mxu0 0.0
    %629 = vmatpush1.msra.mxu0 0.0
    %630 = vmatprep.subr.mxu0 0.0
    %631 = vmatpush1.msra.mxu0 0.0
    %632 = vmatprep.subr.mxu0 0.0
    %633 = vmatpush1.msra.mxu0 0.0
    %634 = vmatprep.subr.mxu0 0.0
    %635 = vmatpush1.msra.mxu0 0.0
    %636 = vmatprep.subr.mxu0 0.0
    %637 = vmatpush1.msra.mxu0 0.0
    %638 = vmatprep.subr.mxu0 0.0
    %639 = vmatpush1.msra.mxu0 0.0
    %640 = vmatprep.subr.mxu0 0.0
    %641 = vmatpush1.msra.mxu0 0.0
    %642 = vmatprep.subr.mxu0 0.0
    %643 = vmatpush1.msra.mxu0 0.0
    %644 = vmatprep.subr.mxu0 0.0
    %645 = vmatpush1.msra.mxu0 0.0
    %646 = vmatprep.subr.mxu0 0.0
    %647 = vmatpush1.msra.mxu0 0.0
    %648 = vmatprep.subr.mxu0 0.0
    %649 = vmatpush1.msra.mxu0 0.0
    %650 = vmatprep.subr.mxu0 0.0
    %651 = vmatpush1.msra.mxu0 0.0
    %652 = vmatprep.subr.mxu0 0.0
    %653 = vmatpush1.msra.mxu0 0.0
    %654 = vmatprep.subr.mxu0 0.0
    %655 = vmatpush1.msra.mxu0 0.0
    %656 = vmatprep.subr.mxu0 0.0
    %657 = vmatpush1.msra.mxu0 0.0
    %658 = vmatprep.subr.mxu0 0.0
    %659 = vmatpush1.msra.mxu0 0.0
    %660 = vmatprep.subr.mxu0 0.0
    %661 = vmatpush1.msra.mxu0 0.0
    %662 = vmatprep.subr.mxu0 0.0
    %663 = vmatpush1.msra.mxu0 0.0
    %664 = vmatprep.subr.mxu0 0.0
    %665 = vmatpush1.msra.mxu0 0.0
    %666 = vmatprep.subr.mxu0 0.0
    %667 = vmatpush1.msra.mxu0 0.0
    %668 = vmatprep.subr.mxu0 0.0
    %669 = vmatpush1.msra.mxu0 0.0
    %670 = vmatprep.mubr.f32.mxu0 0.0
    %671 = vmatmul.mubr.f32.gmra.mrb[0].mxu0 %v391
    %v672 = vpop.f32.mrb[0].mxu0
    %v673 = vadd.f32 1e-05, %v672
    %v674 = vpop.f32.mrb[0].mxu0
    %675 = vmatprep.mubr.f32.mxu0 0.0
    %676 = vmatmul.mubr.f32.gmra.mrb[0].mxu0 %v394
    %v677 = vpop.f32.mrb[0].mxu0
    %v678 = vadd.f32 1e-05, %v677
    %v679 = vpop.f32.mrb[0].mxu0
    %680 = vmatprep.mubr.f32.mxu0 0.0
    %681 = vmatmul.mubr.f32.gmra.mrb[0].mxu0 %v397
    %v682 = vpop.f32.mrb[0].mxu0
    %v683 = vadd.f32 1e-05, %v682
    %v684 = vpop.f32.mrb[0].mxu0
    %685 = vmatprep.mubr.f32.mxu0 0.0
    %686 = vmatmul.mubr.f32.gmra.mrb[0].mxu0 %v400
    %v687 = vpop.f32.mrb[0].mxu0
    %v688 = vadd.f32 1e-05, %v687
    %v689 = vpop.f32.mrb[0].mxu0
    %690 = vmatprep.mubr.f32.mxu0 0.0
    %691 = vmatmul.mubr.f32.gmra.mrb[0].mxu0 %v403
    %v692 = vpop.f32.mrb[0].mxu0
    %v693 = vadd.f32 1e-05, %v692
    %v694 = vpop.f32.mrb[0].mxu0
    %695 = vmatprep.mubr.f32.mxu0 0.0
    %696 = vmatmul.mubr.f32.gmra.mrb[0].mxu0 %v406
    %v697 = vpop.f32.mrb[0].mxu0
    %v698 = vadd.f32 1e-05, %v697
    %v699 = vpop.f32.mrb[0].mxu0
    %700 = vmatprep.mubr.f32.mxu0 0.0
    %701 = vmatmul.mubr.f32.gmra.mrb[0].mxu0 %v409
    %v702 = vpop.f32.mrb[0].mxu0
    %v703 = vadd.f32 1e-05, %v702
    %v704 = vpop.f32.mrb[0].mxu0
    %705 = vmatprep.mubr.f32.mxu0 0.0
    %706 = vmatmul.mubr.f32.gmra.mrb[0].mxu0 %v412
    %v707 = vpop.f32.mrb[0].mxu0
    %v708 = vadd.f32 1e-05, %v707
    %v709 = vpop.f32.mrb[0].mxu0
    %710 = vdwg.mxu0
    %v711 = vrsqrt.pop %v673
    %v712 = vrsqrt.pop %v678
    %v713 = vrsqrt.pop %v683
    %v714 = vrsqrt.pop %v688
    %v715 = vrsqrt.pop %v693
    %v716 = vrsqrt.pop %v698
    %v717 = vrsqrt.pop %v703
    %v718 = vrsqrt.pop %v708
    %v719 = vmul.f32 %v519, %v711
    %v720 = vmul.f32 %v520, %v712
    %v721 = vmul.f32 %v521, %v713
    %v722 = vmul.f32 %v522, %v714
    %v723 = vmul.f32 %v523, %v715
    %v724 = vmul.f32 %v524, %v716
    %v725 = vmul.f32 %v525, %v717
    %v726 = vmul.f32 %v526, %v718
    %v727 = vmax.f32 %v719, 0.0
    %v728 = vmax.f32 %v720, 0.0
    %v729 = vmax.f32 %v721, 0.0
    %v730 = vmax.f32 %v722, 0.0
    %v731 = vmax.f32 %v723, 0.0
    %v732 = vmax.f32 %v724, 0.0
    %v733 = vmax.f32 %v725, 0.0
    %v734 = vmax.f32 %v726, 0.0
    %v735 = vpack.c.bf16 %v728, %v727
    %v736 = vpack.c.bf16 %v730, %v729
    %v737 = vpack.c.bf16 %v732, %v731
    %v738 = vpack.c.bf16 %v734, %v733
    %v739 = vld [vmem:[#allocation6] sm:$0xff]
    %v740 = vld [vmem:[#allocation6 + $0x8] sm:$0xff]
    %v741 = vld [vmem:[#allocation6 + $0x10] sm:$0xff]
    %v742 = vld [vmem:[#allocation6 + $0x18] sm:$0xff]
    %v743 = vld [vmem:[#allocation6 + $0x20] sm:$0xff]
    %v744 = vld [vmem:[#allocation6 + $0x28] sm:$0xff]
    %v745 = vld [vmem:[#allocation6 + $0x30] sm:$0xff]
    %v746 = vld [vmem:[#allocation6 + $0x38] sm:$0xff]
    %v747 = vld [vmem:[#allocation6 + $0x40] sm:$0xff]
    %v748 = vld [vmem:[#allocation6 + $0x48] sm:$0xff]
    %v749 = vld [vmem:[#allocation6 + $0x50] sm:$0xff]
    %v750 = vld [vmem:[#allocation6 + $0x58] sm:$0xff]
    %v751 = vld [vmem:[#allocation6 + $0x60] sm:$0xff]
    %v752 = vld [vmem:[#allocation6 + $0x68] sm:$0xff]
    %v753 = vld [vmem:[#allocation6 + $0x70] sm:$0xff]
    %v754 = vld [vmem:[#allocation6 + $0x78] sm:$0xff]
    %v755 = vld [vmem:[%s4] sm:$0x3]
    %v757 = vlaneseq
    %v758 = vshrl.u32 %v757, 7
    %v759 = vsub.s32 0, %v758
    %v760 = vrot.slane %v755, %v759
    %v761 = vlaneseq
    %v762 = vshrl.u32 %v761, 7
    %v763 = vsub.s32 1, %v762
    %v764 = vrot.slane %v755, %v763
    %v783 = vunpack.c.l.b16 %v739
    %v784 = vunpack.c.h.b16 %v739
    %v785 = vunpack.c.l.b16 %v740
    %v786 = vunpack.c.h.b16 %v740
    %v787 = vunpack.c.l.b16 %v741
    %v788 = vunpack.c.h.b16 %v741
    %v789 = vunpack.c.l.b16 %v742
    %v790 = vunpack.c.h.b16 %v742
    %v791 = vunpack.c.l.b16 %v743
    %v792 = vunpack.c.h.b16 %v743
    %v793 = vunpack.c.l.b16 %v744
    %v794 = vunpack.c.h.b16 %v744
    %v795 = vunpack.c.l.b16 %v745
    %v796 = vunpack.c.h.b16 %v745
    %v797 = vunpack.c.l.b16 %v746
    %v798 = vunpack.c.h.b16 %v746
    %v799 = vunpack.c.l.b16 %v747
    %v800 = vunpack.c.h.b16 %v747
    %v801 = vunpack.c.l.b16 %v748
    %v802 = vunpack.c.h.b16 %v748
    %v803 = vunpack.c.l.b16 %v749
    %v804 = vunpack.c.h.b16 %v749
    %v805 = vunpack.c.l.b16 %v750
    %v806 = vunpack.c.h.b16 %v750
    %v807 = vunpack.c.l.b16 %v751
    %v808 = vunpack.c.h.b16 %v751
    %v809 = vunpack.c.l.b16 %v752
    %v810 = vunpack.c.h.b16 %v752
    %v811 = vunpack.c.l.b16 %v753
    %v812 = vunpack.c.h.b16 %v753
    %v813 = vunpack.c.l.b16 %v754
    %v814 = vunpack.c.h.b16 %v754
    %v815 = vpack.c.b16 %v785, %v783
    %v816 = vpack.c.b16 %v786, %v784
    %v817 = vpack.c.b16 %v789, %v787
    %v818 = vpack.c.b16 %v790, %v788
    %v819 = vpack.c.b16 %v793, %v791
    %v820 = vpack.c.b16 %v794, %v792
    %v821 = vpack.c.b16 %v797, %v795
    %v822 = vpack.c.b16 %v798, %v796
    %v823 = vpack.c.b16 %v801, %v799
    %v824 = vpack.c.b16 %v802, %v800
    %v825 = vpack.c.b16 %v805, %v803
    %v826 = vpack.c.b16 %v806, %v804
    %v827 = vpack.c.b16 %v809, %v807
    %v828 = vpack.c.b16 %v810, %v808
    %v829 = vpack.c.b16 %v813, %v811
    %v830 = vpack.c.b16 %v814, %v812
    %847 = vmatprep.subr.bf16.mxu0 %v816
    %848 = vmatpush1.bf16.msra.mxu0 %v815
    %849 = vmatprep.subr.bf16.mxu0 %v818
    %850 = vmatpush1.bf16.msra.mxu0 %v817
    %851 = vmatprep.subr.bf16.mxu0 %v820
    %852 = vmatpush1.bf16.msra.mxu0 %v819
    %853 = vmatprep.subr.bf16.mxu0 %v822
    %854 = vmatpush1.bf16.msra.mxu0 %v821
    %855 = vmatprep.subr.bf16.mxu0 %v824
    %856 = vmatpush1.bf16.msra.mxu0 %v823
    %857 = vmatprep.subr.bf16.mxu0 %v826
    %858 = vmatpush1.bf16.msra.mxu0 %v825
    %859 = vmatprep.subr.bf16.mxu0 %v828
    %860 = vmatpush1.bf16.msra.mxu0 %v827
    %861 = vmatprep.subr.bf16.mxu0 %v830
    %862 = vmatpush1.bf16.msra.mxu0 %v829
    %863 = vmatprep.subr.bf16.mxu0 0
    %864 = vmatpush1.bf16.msra.mxu0 0
    %865 = vmatprep.subr.bf16.mxu0 0
    %866 = vmatpush1.bf16.msra.mxu0 0
    %867 = vmatprep.subr.bf16.mxu0 0
    %868 = vmatpush1.bf16.msra.mxu0 0
    %869 = vmatprep.subr.bf16.mxu0 0
    %870 = vmatpush1.bf16.msra.mxu0 0
    %871 = vmatprep.subr.bf16.mxu0 0
    %872 = vmatpush1.bf16.msra.mxu0 0
    %873 = vmatprep.subr.bf16.mxu0 0
    %874 = vmatpush1.bf16.msra.mxu0 0
    %875 = vmatprep.subr.bf16.mxu0 0
    %876 = vmatpush1.bf16.msra.mxu0 0
    %877 = vmatprep.subr.bf16.mxu0 0
    %878 = vmatpush1.bf16.msra.mxu0 0
    %879 = vmatprep.mubr.bf16.mxu0 0
    %880 = vmatmul.mubr.bf16.gmra.mrb[0].mxu0 %v735
    %v881 = vpop.f32.mrb[0].mxu0
    %v882 = vadd.f32 %v760, %v881
    %v883 = vpop.f32.mrb[0].mxu0
    %v884 = vadd.f32 %v764, %v883
    %v885 = vpop.f32.mrb[0].mxu0
    %v886 = vadd.f32 %v760, %v885
    %v887 = vpop.f32.mrb[0].mxu0
    %v888 = vadd.f32 %v764, %v887
    %889 = vmatprep.mubr.bf16.mxu0 0
    %890 = vmatmul.mubr.bf16.gmra.mrb[0].mxu0 %v736
    %v891 = vpop.f32.mrb[0].mxu0
    %v892 = vadd.f32 %v760, %v891
    %v893 = vpop.f32.mrb[0].mxu0
    %v894 = vadd.f32 %v764, %v893
    %v895 = vpop.f32.mrb[0].mxu0
    %v896 = vadd.f32 %v760, %v895
    %v897 = vpop.f32.mrb[0].mxu0
    %v898 = vadd.f32 %v764, %v897
    %899 = vmatprep.mubr.bf16.mxu0 0
    %900 = vmatmul.mubr.bf16.gmra.mrb[0].mxu0 %v737
    %v901 = vpop.f32.mrb[0].mxu0
    %v902 = vadd.f32 %v760, %v901
    %v903 = vpop.f32.mrb[0].mxu0
    %v904 = vadd.f32 %v764, %v903
    %v905 = vpop.f32.mrb[0].mxu0
    %v906 = vadd.f32 %v760, %v905
    %v907 = vpop.f32.mrb[0].mxu0
    %v908 = vadd.f32 %v764, %v907
    %909 = vmatprep.mubr.bf16.mxu0 0
    %910 = vmatmul.mubr.bf16.gmra.mrb[0].mxu0 %v738
    %v911 = vpop.f32.mrb[0].mxu0
    %v912 = vadd.f32 %v760, %v911
    %v913 = vpop.f32.mrb[0].mxu0
    %v914 = vadd.f32 %v764, %v913
    %v915 = vpop.f32.mrb[0].mxu0
    %v916 = vadd.f32 %v760, %v915
    %v917 = vpop.f32.mrb[0].mxu0
    %v918 = vadd.f32 %v764, %v917
    %919 = vdwg.mxu0
    %920 = vmatprep.subr.mxu0 %v884
    %921 = vmatpush1.msra.mxu0 %v882
    %922 = vmatprep.subr.mxu0 %v888
    %923 = vmatpush1.msra.mxu0 %v886
    %924 = vmatprep.subr.mxu0 %v894
    %925 = vmatpush1.msra.mxu0 %v892
    %926 = vmatprep.subr.mxu0 %v898
    %927 = vmatpush1.msra.mxu0 %v896
    %928 = vmatprep.subr.mxu0 %v904
    %929 = vmatpush1.msra.mxu0 %v902
    %930 = vmatprep.subr.mxu0 %v908
    %931 = vmatpush1.msra.mxu0 %v906
    %932 = vmatprep.subr.mxu0 %v914
    %933 = vmatpush1.msra.mxu0 %v912
    %934 = vmatprep.subr.mxu0 %v918
    %935 = vmatpush1.msra.mxu0 %v916
    %936 = vmatprep.subr.mxu0 0.0
    %937 = vmatpush1.msra.mxu0 0.0
    %938 = vmatprep.subr.mxu0 0.0
    %939 = vmatpush1.msra.mxu0 0.0
    %940 = vmatprep.subr.mxu0 0.0
    %941 = vmatpush1.msra.mxu0 0.0
    %942 = vmatprep.subr.mxu0 0.0
    %943 = vmatpush1.msra.mxu0 0.0
    %944 = vmatprep.subr.mxu0 0.0
    %945 = vmatpush1.msra.mxu0 0.0
    %946 = vmatprep.subr.mxu0 0.0
    %947 = vmatpush1.msra.mxu0 0.0
    %948 = vmatprep.subr.mxu0 0.0
    %949 = vmatpush1.msra.mxu0 0.0
    %950 = vmatprep.subr.mxu0 0.0
    %951 = vmatpush1.msra.mxu0 0.0
    %952 = vmatprep.subr.mxu0 0.0
    %953 = vmatpush1.msra.mxu0 0.0
    %954 = vmatprep.subr.mxu0 0.0
    %955 = vmatpush1.msra.mxu0 0.0
    %956 = vmatprep.subr.mxu0 0.0
    %957 = vmatpush1.msra.mxu0 0.0
    %958 = vmatprep.subr.mxu0 0.0
    %959 = vmatpush1.msra.mxu0 0.0
    %960 = vmatprep.subr.mxu0 0.0
    %961 = vmatpush1.msra.mxu0 0.0
    %962 = vmatprep.subr.mxu0 0.0
    %963 = vmatpush1.msra.mxu0 0.0
    %964 = vmatprep.subr.mxu0 0.0
    %965 = vmatpush1.msra.mxu0 0.0
    %966 = vmatprep.subr.mxu0 0.0
    %967 = vmatpush1.msra.mxu0 0.0
    %968 = vmatprep.subr.mxu0 0.0
    %969 = vmatpush1.msra.mxu0 0.0
    %970 = vmatprep.subr.mxu0 0.0
    %971 = vmatpush1.msra.mxu0 0.0
    %972 = vmatprep.subr.mxu0 0.0
    %973 = vmatpush1.msra.mxu0 0.0
    %974 = vmatprep.subr.mxu0 0.0
    %975 = vmatpush1.msra.mxu0 0.0
    %976 = vmatprep.subr.mxu0 0.0
    %977 = vmatpush1.msra.mxu0 0.0
    %978 = vmatprep.subr.mxu0 0.0
    %979 = vmatpush1.msra.mxu0 0.0
    %980 = vmatprep.subr.mxu0 0.0
    %981 = vmatpush1.msra.mxu0 0.0
    %982 = vmatprep.subr.mxu0 0.0
    %983 = vmatpush1.msra.mxu0 0.0
    %984 = vmatprep.mubr.f32.mxu0 0.0
    %985 = vmatmul.mubr.f32.gmra.mrb[0].mxu0 %v316
    %v986 = vpop.f32.mrb[0].mxu0
    %v987 = vadd.f32 0.0, %v986
    %v988 = vpop.f32.mrb[0].mxu0
    %v989 = vadd.f32 0.0, %v988
    %990 = vdwg.mxu0
    %v991 = vmul.f32 %v987, 0.125
    %v992 = vmul.f32 %v989, 0.125
    %993 = vmatprep.subr.mxu0 %v992
    %994 = vmatpush1.msra.mxu0 %v991
    %995 = vmatprep.subr.mxu0 0.0
    %996 = vmatpush1.msra.mxu0 0.0
    %997 = vmatprep.subr.mxu0 0.0
    %998 = vmatpush1.msra.mxu0 0.0
    %999 = vmatprep.subr.mxu0 0.0
    %1000 = vmatpush1.msra.mxu0 0.0
    %1001 = vmatprep.subr.mxu0 0.0
    %1002 = vmatpush1.msra.mxu0 0.0
    %1003 = vmatprep.subr.mxu0 0.0
    %1004 = vmatpush1.msra.mxu0 0.0
    %1005 = vmatprep.subr.mxu0 0.0
    %1006 = vmatpush1.msra.mxu0 0.0
    %1007 = vmatprep.subr.mxu0 0.0
    %1008 = vmatpush1.msra.mxu0 0.0
    %1009 = vmatprep.subr.mxu0 0.0
    %1010 = vmatpush1.msra.mxu0 0.0
    %1011 = vmatprep.subr.mxu0 0.0
    %1012 = vmatpush1.msra.mxu0 0.0
    %1013 = vmatprep.subr.mxu0 0.0
    %1014 = vmatpush1.msra.mxu0 0.0
    %1015 = vmatprep.subr.mxu0 0.0
    %1016 = vmatpush1.msra.mxu0 0.0
    %1017 = vmatprep.subr.mxu0 0.0
    %1018 = vmatpush1.msra.mxu0 0.0
    %1019 = vmatprep.subr.mxu0 0.0
    %1020 = vmatpush1.msra.mxu0 0.0
    %1021 = vmatprep.subr.mxu0 0.0
    %1022 = vmatpush1.msra.mxu0 0.0
    %1023 = vmatprep.subr.mxu0 0.0
    %1024 = vmatpush1.msra.mxu0 0.0
    %1025 = vmatprep.subr.mxu0 0.0
    %1026 = vmatpush1.msra.mxu0 0.0
    %1027 = vmatprep.subr.mxu0 0.0
    %1028 = vmatpush1.msra.mxu0 0.0
    %1029 = vmatprep.subr.mxu0 0.0
    %1030 = vmatpush1.msra.mxu0 0.0
    %1031 = vmatprep.subr.mxu0 0.0
    %1032 = vmatpush1.msra.mxu0 0.0
    %1033 = vmatprep.subr.mxu0 0.0
    %1034 = vmatpush1.msra.mxu0 0.0
    %1035 = vmatprep.subr.mxu0 0.0
    %1036 = vmatpush1.msra.mxu0 0.0
    %1037 = vmatprep.subr.mxu0 0.0
    %1038 = vmatpush1.msra.mxu0 0.0
    %1039 = vmatprep.subr.mxu0 0.0
    %1040 = vmatpush1.msra.mxu0 0.0
    %1041 = vmatprep.subr.mxu0 0.0
    %1042 = vmatpush1.msra.mxu0 0.0
    %1043 = vmatprep.subr.mxu0 0.0
    %1044 = vmatpush1.msra.mxu0 0.0
    %1045 = vmatprep.subr.mxu0 0.0
    %1046 = vmatpush1.msra.mxu0 0.0
    %1047 = vmatprep.subr.mxu0 0.0
    %1048 = vmatpush1.msra.mxu0 0.0
    %1049 = vmatprep.subr.mxu0 0.0
    %1050 = vmatpush1.msra.mxu0 0.0
    %1051 = vmatprep.subr.mxu0 0.0
    %1052 = vmatpush1.msra.mxu0 0.0
    %1053 = vmatprep.subr.mxu0 0.0
    %1054 = vmatpush1.msra.mxu0 0.0
    %1055 = vmatprep.subr.mxu0 0.0
    %1056 = vmatpush1.msra.mxu0 0.0
    %1057 = vmatprep.mubr.f32.mxu0 0.0
    %1058 = vmatmul.mubr.f32.gmra.mrb[0].mxu0 %v391
    %v1059 = vpop.f32.mrb[0].mxu0
    %v1060 = vadd.f32 0.0, %v1059
    %v1061 = vpop.f32.mrb[0].mxu0
    %v1062 = vadd.f32 0.0, %v1061
    %1063 = vmatprep.mubr.f32.mxu0 0.0
    %1064 = vmatmul.mubr.f32.gmra.mrb[0].mxu0 %v394
    %v1065 = vpop.f32.mrb[0].mxu0
    %v1066 = vadd.f32 0.0, %v1065
    %v1067 = vpop.f32.mrb[0].mxu0
    %v1068 = vadd.f32 0.0, %v1067
    %1069 = vmatprep.mubr.f32.mxu0 0.0
    %1070 = vmatmul.mubr.f32.gmra.mrb[0].mxu0 %v397
    %v1071 = vpop.f32.mrb[0].mxu0
    %v1072 = vadd.f32 0.0, %v1071
    %v1073 = vpop.f32.mrb[0].mxu0
    %v1074 = vadd.f32 0.0, %v1073
    %1075 = vmatprep.mubr.f32.mxu0 0.0
    %1076 = vmatmul.mubr.f32.gmra.mrb[0].mxu0 %v400
    %v1077 = vpop.f32.mrb[0].mxu0
    %v1078 = vadd.f32 0.0, %v1077
    %v1079 = vpop.f32.mrb[0].mxu0
    %v1080 = vadd.f32 0.0, %v1079
    %1081 = vmatprep.mubr.f32.mxu0 0.0
    %1082 = vmatmul.mubr.f32.gmra.mrb[0].mxu0 %v403
    %v1083 = vpop.f32.mrb[0].mxu0
    %v1084 = vadd.f32 0.0, %v1083
    %v1085 = vpop.f32.mrb[0].mxu0
    %v1086 = vadd.f32 0.0, %v1085
    %1087 = vmatprep.mubr.f32.mxu0 0.0
    %1088 = vmatmul.mubr.f32.gmra.mrb[0].mxu0 %v406
    %v1089 = vpop.f32.mrb[0].mxu0
    %v1090 = vadd.f32 0.0, %v1089
    %v1091 = vpop.f32.mrb[0].mxu0
    %v1092 = vadd.f32 0.0, %v1091
    %1093 = vmatprep.mubr.f32.mxu0 0.0
    %1094 = vmatmul.mubr.f32.gmra.mrb[0].mxu0 %v409
    %v1095 = vpop.f32.mrb[0].mxu0
    %v1096 = vadd.f32 0.0, %v1095
    %v1097 = vpop.f32.mrb[0].mxu0
    %v1098 = vadd.f32 0.0, %v1097
    %1099 = vmatprep.mubr.f32.mxu0 0.0
    %1100 = vmatmul.mubr.f32.gmra.mrb[0].mxu0 %v412
    %v1101 = vpop.f32.mrb[0].mxu0
    %v1102 = vadd.f32 0.0, %v1101
    %v1103 = vpop.f32.mrb[0].mxu0
    %v1104 = vadd.f32 0.0, %v1103
    %1105 = vdwg.mxu0
    %v1106 = vsub.f32 %v882, %v1060
    %v1107 = vsub.f32 %v884, %v1062
    %v1108 = vsub.f32 %v886, %v1066
    %v1109 = vsub.f32 %v888, %v1068
    %v1110 = vsub.f32 %v892, %v1072
    %v1111 = vsub.f32 %v894, %v1074
    %v1112 = vsub.f32 %v896, %v1078
    %v1113 = vsub.f32 %v898, %v1080
    %v1114 = vsub.f32 %v902, %v1084
    %v1115 = vsub.f32 %v904, %v1086
    %v1116 = vsub.f32 %v906, %v1090
    %v1117 = vsub.f32 %v908, %v1092
    %v1118 = vsub.f32 %v912, %v1096
    %v1119 = vsub.f32 %v914, %v1098
    %v1120 = vsub.f32 %v916, %v1102
    %v1121 = vsub.f32 %v918, %v1104
    %v1122 = vmul.f32 %v1106, %v1106
    %v1123 = vmul.f32 %v1107, %v1107
    %v1124 = vmul.f32 %v1108, %v1108
    %v1125 = vmul.f32 %v1109, %v1109
    %v1126 = vmul.f32 %v1110, %v1110
    %v1127 = vmul.f32 %v1111, %v1111
    %v1128 = vmul.f32 %v1112, %v1112
    %v1129 = vmul.f32 %v1113, %v1113
    %v1130 = vmul.f32 %v1114, %v1114
    %v1131 = vmul.f32 %v1115, %v1115
    %v1132 = vmul.f32 %v1116, %v1116
    %v1133 = vmul.f32 %v1117, %v1117
    %v1134 = vmul.f32 %v1118, %v1118
    %v1135 = vmul.f32 %v1119, %v1119
    %v1136 = vmul.f32 %v1120, %v1120
    %v1137 = vmul.f32 %v1121, %v1121
    %1138 = vmatprep.subr.mxu0 %v1123
    %1139 = vmatpush1.msra.mxu0 %v1122
    %1140 = vmatprep.subr.mxu0 %v1125
    %1141 = vmatpush1.msra.mxu0 %v1124
    %1142 = vmatprep.subr.mxu0 %v1127
    %1143 = vmatpush1.msra.mxu0 %v1126
    %1144 = vmatprep.subr.mxu0 %v1129
    %1145 = vmatpush1.msra.mxu0 %v1128
    %1146 = vmatprep.subr.mxu0 %v1131
    %1147 = vmatpush1.msra.mxu0 %v1130
    %1148 = vmatprep.subr.mxu0 %v1133
    %1149 = vmatpush1.msra.mxu0 %v1132
    %1150 = vmatprep.subr.mxu0 %v1135
    %1151 = vmatpush1.msra.mxu0 %v1134
    %1152 = vmatprep.subr.mxu0 %v1137
    %1153 = vmatpush1.msra.mxu0 %v1136
    %1154 = vmatprep.subr.mxu0 0.0
    %1155 = vmatpush1.msra.mxu0 0.0
    %1156 = vmatprep.subr.mxu0 0.0
    %1157 = vmatpush1.msra.mxu0 0.0
    %1158 = vmatprep.subr.mxu0 0.0
    %1159 = vmatpush1.msra.mxu0 0.0
    %1160 = vmatprep.subr.mxu0 0.0
    %1161 = vmatpush1.msra.mxu0 0.0
    %1162 = vmatprep.subr.mxu0 0.0
    %1163 = vmatpush1.msra.mxu0 0.0
    %1164 = vmatprep.subr.mxu0 0.0
    %1165 = vmatpush1.msra.mxu0 0.0
    %1166 = vmatprep.subr.mxu0 0.0
    %1167 = vmatpush1.msra.mxu0 0.0
    %1168 = vmatprep.subr.mxu0 0.0
    %1169 = vmatpush1.msra.mxu0 0.0
    %1170 = vmatprep.subr.mxu0 0.0
    %1171 = vmatpush1.msra.mxu0 0.0
    %1172 = vmatprep.subr.mxu0 0.0
    %1173 = vmatpush1.msra.mxu0 0.0
    %1174 = vmatprep.subr.mxu0 0.0
    %1175 = vmatpush1.msra.mxu0 0.0
    %1176 = vmatprep.subr.mxu0 0.0
    %1177 = vmatpush1.msra.mxu0 0.0
    %1178 = vmatprep.subr.mxu0 0.0
    %1179 = vmatpush1.msra.mxu0 0.0
    %1180 = vmatprep.subr.mxu0 0.0
    %1181 = vmatpush1.msra.mxu0 0.0
    %1182 = vmatprep.subr.mxu0 0.0
    %1183 = vmatpush1.msra.mxu0 0.0
    %1184 = vmatprep.subr.mxu0 0.0
    %1185 = vmatpush1.msra.mxu0 0.0
    %1186 = vmatprep.subr.mxu0 0.0
    %1187 = vmatpush1.msra.mxu0 0.0
    %1188 = vmatprep.subr.mxu0 0.0
    %1189 = vmatpush1.msra.mxu0 0.0
    %1190 = vmatprep.subr.mxu0 0.0
    %1191 = vmatpush1.msra.mxu0 0.0
    %1192 = vmatprep.subr.mxu0 0.0
    %1193 = vmatpush1.msra.mxu0 0.0
    %1194 = vmatprep.subr.mxu0 0.0
    %1195 = vmatpush1.msra.mxu0 0.0
    %1196 = vmatprep.subr.mxu0 0.0
    %1197 = vmatpush1.msra.mxu0 0.0
    %1198 = vmatprep.subr.mxu0 0.0
    %1199 = vmatpush1.msra.mxu0 0.0
    %1200 = vmatprep.subr.mxu0 0.0
    %1201 = vmatpush1.msra.mxu0 0.0
    %1202 = vmatprep.mubr.f32.mxu0 0.0
    %1203 = vmatmul.mubr.f32.gmra.mrb[0].mxu0 %v316
    %v1204 = vpop.f32.mrb[0].mxu0
    %v1205 = vadd.f32 0.0, %v1204
    %v1206 = vpop.f32.mrb[0].mxu0
    %v1207 = vadd.f32 0.0, %v1206
    %1208 = vdwg.mxu0
    %v1209 = vmul.f32 %v1205, 0.125
    %v1210 = vmul.f32 %v1207, 0.125
    %1211 = vmatprep.subr.mxu0 %v1210
    %1212 = vmatpush1.msra.mxu0 %v1209
    %1213 = vmatprep.subr.mxu0 0.0
    %1214 = vmatpush1.msra.mxu0 0.0
    %1215 = vmatprep.subr.mxu0 0.0
    %1216 = vmatpush1.msra.mxu0 0.0
    %1217 = vmatprep.subr.mxu0 0.0
    %1218 = vmatpush1.msra.mxu0 0.0
    %1219 = vmatprep.subr.mxu0 0.0
    %1220 = vmatpush1.msra.mxu0 0.0
    %1221 = vmatprep.subr.mxu0 0.0
    %1222 = vmatpush1.msra.mxu0 0.0
    %1223 = vmatprep.subr.mxu0 0.0
    %1224 = vmatpush1.msra.mxu0 0.0
    %1225 = vmatprep.subr.mxu0 0.0
    %1226 = vmatpush1.msra.mxu0 0.0
    %1227 = vmatprep.subr.mxu0 0.0
    %1228 = vmatpush1.msra.mxu0 0.0
    %1229 = vmatprep.subr.mxu0 0.0
    %1230 = vmatpush1.msra.mxu0 0.0
    %1231 = vmatprep.subr.mxu0 0.0
    %1232 = vmatpush1.msra.mxu0 0.0
    %1233 = vmatprep.subr.mxu0 0.0
    %1234 = vmatpush1.msra.mxu0 0.0
    %1235 = vmatprep.subr.mxu0 0.0
    %1236 = vmatpush1.msra.mxu0 0.0
    %1237 = vmatprep.subr.mxu0 0.0
    %1238 = vmatpush1.msra.mxu0 0.0
    %1239 = vmatprep.subr.mxu0 0.0
    %1240 = vmatpush1.msra.mxu0 0.0
    %1241 = vmatprep.subr.mxu0 0.0
    %1242 = vmatpush1.msra.mxu0 0.0
    %1243 = vmatprep.subr.mxu0 0.0
    %1244 = vmatpush1.msra.mxu0 0.0
    %1245 = vmatprep.subr.mxu0 0.0
    %1246 = vmatpush1.msra.mxu0 0.0
    %1247 = vmatprep.subr.mxu0 0.0
    %1248 = vmatpush1.msra.mxu0 0.0
    %1249 = vmatprep.subr.mxu0 0.0
    %1250 = vmatpush1.msra.mxu0 0.0
    %1251 = vmatprep.subr.mxu0 0.0
    %1252 = vmatpush1.msra.mxu0 0.0
    %1253 = vmatprep.subr.mxu0 0.0
    %1254 = vmatpush1.msra.mxu0 0.0
    %1255 = vmatprep.subr.mxu0 0.0
    %1256 = vmatpush1.msra.mxu0 0.0
    %1257 = vmatprep.subr.mxu0 0.0
    %1258 = vmatpush1.msra.mxu0 0.0
    %1259 = vmatprep.subr.mxu0 0.0
    %1260 = vmatpush1.msra.mxu0 0.0
    %1261 = vmatprep.subr.mxu0 0.0
    %1262 = vmatpush1.msra.mxu0 0.0
    %1263 = vmatprep.subr.mxu0 0.0
    %1264 = vmatpush1.msra.mxu0 0.0
    %1265 = vmatprep.subr.mxu0 0.0
    %1266 = vmatpush1.msra.mxu0 0.0
    %1267 = vmatprep.subr.mxu0 0.0
    %1268 = vmatpush1.msra.mxu0 0.0
    %1269 = vmatprep.subr.mxu0 0.0
    %1270 = vmatpush1.msra.mxu0 0.0
    %1271 = vmatprep.subr.mxu0 0.0
    %1272 = vmatpush1.msra.mxu0 0.0
    %1273 = vmatprep.subr.mxu0 0.0
    %1274 = vmatpush1.msra.mxu0 0.0
    %1275 = vmatprep.mubr.f32.mxu0 0.0
    %1276 = vmatmul.mubr.f32.gmra.mrb[0].mxu0 %v391
    %v1277 = vpop.f32.mrb[0].mxu0
    %v1278 = vadd.f32 1e-05, %v1277
    %v1279 = vpop.f32.mrb[0].mxu0
    %v1280 = vadd.f32 1e-05, %v1279
    %1281 = vmatprep.mubr.f32.mxu0 0.0
    %1282 = vmatmul.mubr.f32.gmra.mrb[0].mxu0 %v394
    %v1283 = vpop.f32.mrb[0].mxu0
    %v1284 = vadd.f32 1e-05, %v1283
    %v1285 = vpop.f32.mrb[0].mxu0
    %v1286 = vadd.f32 1e-05, %v1285
    %1287 = vmatprep.mubr.f32.mxu0 0.0
    %1288 = vmatmul.mubr.f32.gmra.mrb[0].mxu0 %v397
    %v1289 = vpop.f32.mrb[0].mxu0
    %v1290 = vadd.f32 1e-05, %v1289
    %v1291 = vpop.f32.mrb[0].mxu0
    %v1292 = vadd.f32 1e-05, %v1291
    %1293 = vmatprep.mubr.f32.mxu0 0.0
    %1294 = vmatmul.mubr.f32.gmra.mrb[0].mxu0 %v400
    %v1295 = vpop.f32.mrb[0].mxu0
    %v1296 = vadd.f32 1e-05, %v1295
    %v1297 = vpop.f32.mrb[0].mxu0
    %v1298 = vadd.f32 1e-05, %v1297
    %1299 = vmatprep.mubr.f32.mxu0 0.0
    %1300 = vmatmul.mubr.f32.gmra.mrb[0].mxu0 %v403
    %v1301 = vpop.f32.mrb[0].mxu0
    %v1302 = vadd.f32 1e-05, %v1301
    %v1303 = vpop.f32.mrb[0].mxu0
    %v1304 = vadd.f32 1e-05, %v1303
    %1305 = vmatprep.mubr.f32.mxu0 0.0
    %1306 = vmatmul.mubr.f32.gmra.mrb[0].mxu0 %v406
    %v1307 = vpop.f32.mrb[0].mxu0
    %v1308 = vadd.f32 1e-05, %v1307
    %v1309 = vpop.f32.mrb[0].mxu0
    %v1310 = vadd.f32 1e-05, %v1309
    %1311 = vmatprep.mubr.f32.mxu0 0.0
    %1312 = vmatmul.mubr.f32.gmra.mrb[0].mxu0 %v409
    %v1313 = vpop.f32.mrb[0].mxu0
    %v1314 = vadd.f32 1e-05, %v1313
    %v1315 = vpop.f32.mrb[0].mxu0
    %v1316 = vadd.f32 1e-05, %v1315
    %1317 = vmatprep.mubr.f32.mxu0 0.0
    %1318 = vmatmul.mubr.f32.gmra.mrb[0].mxu0 %v412
    %v1319 = vpop.f32.mrb[0].mxu0
    %v1320 = vadd.f32 1e-05, %v1319
    %v1321 = vpop.f32.mrb[0].mxu0
    %v1322 = vadd.f32 1e-05, %v1321
    %1323 = vdwg.mxu0
    %v1324 = vrsqrt.pop %v1278
    %v1325 = vrsqrt.pop %v1280
    %v1326 = vrsqrt.pop %v1284
    %v1327 = vrsqrt.pop %v1286
    %v1328 = vrsqrt.pop %v1290
    %v1329 = vrsqrt.pop %v1292
    %v1330 = vrsqrt.pop %v1296
    %v1331 = vrsqrt.pop %v1298
    %v1332 = vrsqrt.pop %v1302
    %v1333 = vrsqrt.pop %v1304
    %v1334 = vrsqrt.pop %v1308
    %v1335 = vrsqrt.pop %v1310
    %v1336 = vrsqrt.pop %v1314
    %v1337 = vrsqrt.pop %v1316
    %v1338 = vrsqrt.pop %v1320
    %v1339 = vrsqrt.pop %v1322
    %v1340 = vmul.f32 %v1106, %v1324
    %v1341 = vmul.f32 %v1107, %v1325
    %v1342 = vmul.f32 %v1108, %v1326
    %v1343 = vmul.f32 %v1109, %v1327
    %v1344 = vmul.f32 %v1110, %v1328
    %v1345 = vmul.f32 %v1111, %v1329
    %v1346 = vmul.f32 %v1112, %v1330
    %v1347 = vmul.f32 %v1113, %v1331
    %v1348 = vmul.f32 %v1114, %v1332
    %v1349 = vmul.f32 %v1115, %v1333
    %v1350 = vmul.f32 %v1116, %v1334
    %v1351 = vmul.f32 %v1117, %v1335
    %v1352 = vmul.f32 %v1118, %v1336
    %v1353 = vmul.f32 %v1119, %v1337
    %v1354 = vmul.f32 %v1120, %v1338
    %v1355 = vmul.f32 %v1121, %v1339
    %v1356 = vmax.f32 %v1340, 0.0
    %v1357 = vmax.f32 %v1341, 0.0
    %v1358 = vmax.f32 %v1342, 0.0
    %v1359 = vmax.f32 %v1343, 0.0
    %v1360 = vmax.f32 %v1344, 0.0
    %v1361 = vmax.f32 %v1345, 0.0
    %v1362 = vmax.f32 %v1346, 0.0
    %v1363 = vmax.f32 %v1347, 0.0
    %v1364 = vmax.f32 %v1348, 0.0
    %v1365 = vmax.f32 %v1349, 0.0
    %v1366 = vmax.f32 %v1350, 0.0
    %v1367 = vmax.f32 %v1351, 0.0
    %v1368 = vmax.f32 %v1352, 0.0
    %v1369 = vmax.f32 %v1353, 0.0
    %v1370 = vmax.f32 %v1354, 0.0
    %v1371 = vmax.f32 %v1355, 0.0
    %v1372 = vpack.c.bf16 %v1358, %v1356
    %v1373 = vpack.c.bf16 %v1359, %v1357
    %v1374 = vpack.c.bf16 %v1362, %v1360
    %v1375 = vpack.c.bf16 %v1363, %v1361
    %v1376 = vpack.c.bf16 %v1366, %v1364
    %v1377 = vpack.c.bf16 %v1367, %v1365
    %v1378 = vpack.c.bf16 %v1370, %v1368
    %v1379 = vpack.c.bf16 %v1371, %v1369
    %v1380 = vld [vmem:[#allocation8] sm:$0xff]
    %v1381 = vld [vmem:[#allocation8 + $0x8] sm:$0xf]
    %v1382 = vld [vmem:[#allocation8 + $0xc] sm:$0xff]
    %v1383 = vld [vmem:[#allocation8 + $0x14] sm:$0xf]
    %v1384 = vld [vmem:[#allocation8 + $0x18] sm:$0xff]
    %v1385 = vld [vmem:[#allocation8 + $0x20] sm:$0xf]
    %v1386 = vld [vmem:[#allocation8 + $0x24] sm:$0xff]
    %v1387 = vld [vmem:[#allocation8 + $0x2c] sm:$0xf]
    %v1388 = vld [vmem:[#allocation8 + $0x30] sm:$0xff]
    %v1389 = vld [vmem:[#allocation8 + $0x38] sm:$0xf]
    %v1390 = vld [vmem:[#allocation8 + $0x3c] sm:$0xff]
    %v1391 = vld [vmem:[#allocation8 + $0x44] sm:$0xf]
    %v1392 = vld [vmem:[#allocation8 + $0x48] sm:$0xff]
    %v1393 = vld [vmem:[#allocation8 + $0x50] sm:$0xf]
    %v1394 = vld [vmem:[#allocation8 + $0x54] sm:$0xff]
    %v1395 = vld [vmem:[#allocation8 + $0x5c] sm:$0xf]
    %v1396 = vld [vmem:[#allocation8 + $0x60] sm:$0xff]
    %v1397 = vld [vmem:[#allocation8 + $0x68] sm:$0xf]
    %v1398 = vld [vmem:[#allocation8 + $0x6c] sm:$0xff]
    %v1399 = vld [vmem:[#allocation8 + $0x74] sm:$0xf]
    %v1400 = vld [vmem:[#allocation8 + $0x78] sm:$0xff]
    %v1401 = vld [vmem:[#allocation8 + $0x80] sm:$0xf]
    %v1402 = vld [vmem:[#allocation8 + $0x84] sm:$0xff]
    %v1403 = vld [vmem:[#allocation8 + $0x8c] sm:$0xf]
    %v1404 = vld [vmem:[#allocation8 + $0x90] sm:$0xff]
    %v1405 = vld [vmem:[#allocation8 + $0x98] sm:$0xf]
    %v1406 = vld [vmem:[#allocation8 + $0x9c] sm:$0xff]
    %v1407 = vld [vmem:[#allocation8 + $0xa4] sm:$0xf]
    %v1408 = vld [vmem:[#allocation8 + $0xa8] sm:$0xff]
    %v1409 = vld [vmem:[#allocation8 + $0xb0] sm:$0xf]
    %v1410 = vld [vmem:[#allocation8 + $0xb4] sm:$0xff]
    %v1411 = vld [vmem:[#allocation8 + $0xbc] sm:$0xf]
    %v1412 = vld [vmem:[#allocation8 + $0xc0] sm:$0xff]
    %v1413 = vld [vmem:[#allocation8 + $0xc8] sm:$0xf]
    %v1414 = vld [vmem:[#allocation8 + $0xcc] sm:$0xff]
    %v1415 = vld [vmem:[#allocation8 + $0xd4] sm:$0xf]
    %v1416 = vld [vmem:[#allocation8 + $0xd8] sm:$0xff]
    %v1417 = vld [vmem:[#allocation8 + $0xe0] sm:$0xf]
    %v1418 = vld [vmem:[#allocation8 + $0xe4] sm:$0xff]
    %v1419 = vld [vmem:[#allocation8 + $0xec] sm:$0xf]
    %v1420 = vld [vmem:[#allocation8 + $0xf0] sm:$0xff]
    %v1421 = vld [vmem:[#allocation8 + $0xf8] sm:$0xf]
    %v1422 = vld [vmem:[#allocation8 + $0xfc] sm:$0xff]
    %v1423 = vld [vmem:[#allocation8 + $0x104] sm:$0xf]
    %v1424 = vld [vmem:[#allocation8 + $0x108] sm:$0xff]
    %v1425 = vld [vmem:[#allocation8 + $0x110] sm:$0xf]
    %v1426 = vld [vmem:[#allocation8 + $0x114] sm:$0xff]
    %v1427 = vld [vmem:[#allocation8 + $0x11c] sm:$0xf]
    %v1428 = vld [vmem:[#allocation8 + $0x120] sm:$0xff]
    %v1429 = vld [vmem:[#allocation8 + $0x128] sm:$0xf]
    %v1430 = vld [vmem:[#allocation8 + $0x12c] sm:$0xff]
    %v1431 = vld [vmem:[#allocation8 + $0x134] sm:$0xf]
    %v1432 = vld [vmem:[#allocation8 + $0x138] sm:$0xff]
    %v1433 = vld [vmem:[#allocation8 + $0x140] sm:$0xf]
    %v1434 = vld [vmem:[#allocation8 + $0x144] sm:$0xff]
    %v1435 = vld [vmem:[#allocation8 + $0x14c] sm:$0xf]
    %v1436 = vld [vmem:[#allocation8 + $0x150] sm:$0xff]
    %v1437 = vld [vmem:[#allocation8 + $0x158] sm:$0xf]
    %v1438 = vld [vmem:[#allocation8 + $0x15c] sm:$0xff]
    %v1439 = vld [vmem:[#allocation8 + $0x164] sm:$0xf]
    %v1440 = vld [vmem:[#allocation8 + $0x168] sm:$0xff]
    %v1441 = vld [vmem:[#allocation8 + $0x170] sm:$0xf]
    %v1442 = vld [vmem:[#allocation8 + $0x174] sm:$0xff]
    %v1443 = vld [vmem:[#allocation8 + $0x17c] sm:$0xf]
    %v1444 = vld [vmem:[%s6] sm:$0x7]
    %v1446 = vlaneseq
    %v1447 = vshrl.u32 %v1446, 7
    %v1448 = vsub.s32 0, %v1447
    %v1449 = vrot.slane %v1444, %v1448
    %v1450 = vlaneseq
    %v1451 = vshrl.u32 %v1450, 7
    %v1452 = vsub.s32 1, %v1451
    %v1453 = vrot.slane %v1444, %v1452
    %v1454 = vlaneseq
    %v1455 = vshrl.u32 %v1454, 7
    %v1456 = vsub.s32 2, %v1455
    %v1457 = vrot.slane %v1444, %v1456
    %v1525 = vunpack.c.l.b16 %v1380
    %v1526 = vunpack.c.h.b16 %v1380
    %v1527 = vunpack.c.l.b16 %v1381
    %v1528 = vunpack.c.l.b16 %v1382
    %v1529 = vunpack.c.h.b16 %v1382
    %v1530 = vunpack.c.l.b16 %v1383
    %v1531 = vunpack.c.l.b16 %v1384
    %v1532 = vunpack.c.h.b16 %v1384
    %v1533 = vunpack.c.l.b16 %v1385
    %v1534 = vunpack.c.l.b16 %v1386
    %v1535 = vunpack.c.h.b16 %v1386
    %v1536 = vunpack.c.l.b16 %v1387
    %v1537 = vunpack.c.l.b16 %v1388
    %v1538 = vunpack.c.h.b16 %v1388
    %v1539 = vunpack.c.l.b16 %v1389
    %v1540 = vunpack.c.l.b16 %v1390
    %v1541 = vunpack.c.h.b16 %v1390
    %v1542 = vunpack.c.l.b16 %v1391
    %v1543 = vunpack.c.l.b16 %v1392
    %v1544 = vunpack.c.h.b16 %v1392
    %v1545 = vunpack.c.l.b16 %v1393
    %v1546 = vunpack.c.l.b16 %v1394
    %v1547 = vunpack.c.h.b16 %v1394
    %v1548 = vunpack.c.l.b16 %v1395
    %v1549 = vunpack.c.l.b16 %v1396
    %v1550 = vunpack.c.h.b16 %v1396
    %v1551 = vunpack.c.l.b16 %v1397
    %v1552 = vunpack.c.l.b16 %v1398
    %v1553 = vunpack.c.h.b16 %v1398
    %v1554 = vunpack.c.l.b16 %v1399
    %v1555 = vunpack.c.l.b16 %v1400
    %v1556 = vunpack.c.h.b16 %v1400
    %v1557 = vunpack.c.l.b16 %v1401
    %v1558 = vunpack.c.l.b16 %v1402
    %v1559 = vunpack.c.h.b16 %v1402
    %v1560 = vunpack.c.l.b16 %v1403
    %v1561 = vunpack.c.l.b16 %v1404
    %v1562 = vunpack.c.h.b16 %v1404
    %v1563 = vunpack.c.l.b16 %v1405
    %v1564 = vunpack.c.l.b16 %v1406
    %v1565 = vunpack.c.h.b16 %v1406
    %v1566 = vunpack.c.l.b16 %v1407
    %v1567 = vunpack.c.l.b16 %v1408
    %v1568 = vunpack.c.h.b16 %v1408
    %v1569 = vunpack.c.l.b16 %v1409
    %v1570 = vunpack.c.l.b16 %v1410
    %v1571 = vunpack.c.h.b16 %v1410
    %v1572 = vunpack.c.l.b16 %v1411
    %v1573 = vunpack.c.l.b16 %v1412
    %v1574 = vunpack.c.h.b16 %v1412
    %v1575 = vunpack.c.l.b16 %v1413
    %v1576 = vunpack.c.l.b16 %v1414
    %v1577 = vunpack.c.h.b16 %v1414
    %v1578 = vunpack.c.l.b16 %v1415
    %v1579 = vunpack.c.l.b16 %v1416
    %v1580 = vunpack.c.h.b16 %v1416
    %v1581 = vunpack.c.l.b16 %v1417
    %v1582 = vunpack.c.l.b16 %v1418
    %v1583 = vunpack.c.h.b16 %v1418
    %v1584 = vunpack.c.l.b16 %v1419
    %v1585 = vunpack.c.l.b16 %v1420
    %v1586 = vunpack.c.h.b16 %v1420
    %v1587 = vunpack.c.l.b16 %v1421
    %v1588 = vunpack.c.l.b16 %v1422
    %v1589 = vunpack.c.h.b16 %v1422
    %v1590 = vunpack.c.l.b16 %v1423
    %v1591 = vunpack.c.l.b16 %v1424
    %v1592 = vunpack.c.h.b16 %v1424
    %v1593 = vunpack.c.l.b16 %v1425
    %v1594 = vunpack.c.l.b16 %v1426
    %v1595 = vunpack.c.h.b16 %v1426
    %v1596 = vunpack.c.l.b16 %v1427
    %v1597 = vunpack.c.l.b16 %v1428
    %v1598 = vunpack.c.h.b16 %v1428
    %v1599 = vunpack.c.l.b16 %v1429
    %v1600 = vunpack.c.l.b16 %v1430
    %v1601 = vunpack.c.h.b16 %v1430
    %v1602 = vunpack.c.l.b16 %v1431
    %v1603 = vunpack.c.l.b16 %v1432
    %v1604 = vunpack.c.h.b16 %v1432
    %v1605 = vunpack.c.l.b16 %v1433
    %v1606 = vunpack.c.l.b16 %v1434
    %v1607 = vunpack.c.h.b16 %v1434
    %v1608 = vunpack.c.l.b16 %v1435
    %v1609 = vunpack.c.l.b16 %v1436
    %v1610 = vunpack.c.h.b16 %v1436
    %v1611 = vunpack.c.l.b16 %v1437
    %v1612 = vunpack.c.l.b16 %v1438
    %v1613 = vunpack.c.h.b16 %v1438
    %v1614 = vunpack.c.l.b16 %v1439
    %v1615 = vunpack.c.l.b16 %v1440
    %v1616 = vunpack.c.h.b16 %v1440
    %v1617 = vunpack.c.l.b16 %v1441
    %v1618 = vunpack.c.l.b16 %v1442
    %v1619 = vunpack.c.h.b16 %v1442
    %v1620 = vunpack.c.l.b16 %v1443
    %v1621 = vpack.c.b16 %v1528, %v1525
    %v1622 = vpack.c.b16 %v1529, %v1526
    %v1623 = vpack.c.b16 %v1530, %v1527
    %v1624 = vpack.c.b16 %v1534, %v1531
    %v1625 = vpack.c.b16 %v1535, %v1532
    %v1626 = vpack.c.b16 %v1536, %v1533
    %v1627 = vpack.c.b16 %v1540, %v1537
    %v1628 = vpack.c.b16 %v1541, %v1538
    %v1629 = vpack.c.b16 %v1542, %v1539
    %v1630 = vpack.c.b16 %v1546, %v1543
    %v1631 = vpack.c.b16 %v1547, %v1544
    %v1632 = vpack.c.b16 %v1548, %v1545
    %v1633 = vpack.c.b16 %v1552, %v1549
    %v1634 = vpack.c.b16 %v1553, %v1550
    %v1635 = vpack.c.b16 %v1554, %v1551
    %v1636 = vpack.c.b16 %v1558, %v1555
    %v1637 = vpack.c.b16 %v1559, %v1556
    %v1638 = vpack.c.b16 %v1560, %v1557
    %v1639 = vpack.c.b16 %v1564, %v1561
    %v1640 = vpack.c.b16 %v1565, %v1562
    %v1641 = vpack.c.b16 %v1566, %v1563
    %v1642 = vpack.c.b16 %v1570, %v1567
    %v1643 = vpack.c.b16 %v1571, %v1568
    %v1644 = vpack.c.b16 %v1572, %v1569
    %v1645 = vpack.c.b16 %v1576, %v1573
    %v1646 = vpack.c.b16 %v1577, %v1574
    %v1647 = vpack.c.b16 %v1578, %v1575
    %v1648 = vpack.c.b16 %v1582, %v1579
    %v1649 = vpack.c.b16 %v1583, %v1580
    %v1650 = vpack.c.b16 %v1584, %v1581
    %v1651 = vpack.c.b16 %v1588, %v1585
    %v1652 = vpack.c.b16 %v1589, %v1586
    %v1653 = vpack.c.b16 %v1590, %v1587
    %v1654 = vpack.c.b16 %v1594, %v1591
    %v1655 = vpack.c.b16 %v1595, %v1592
    %v1656 = vpack.c.b16 %v1596, %v1593
    %v1657 = vpack.c.b16 %v1600, %v1597
    %v1658 = vpack.c.b16 %v1601, %v1598
    %v1659 = vpack.c.b16 %v1602, %v1599
    %v1660 = vpack.c.b16 %v1606, %v1603
    %v1661 = vpack.c.b16 %v1607, %v1604
    %v1662 = vpack.c.b16 %v1608, %v1605
    %v1663 = vpack.c.b16 %v1612, %v1609
    %v1664 = vpack.c.b16 %v1613, %v1610
    %v1665 = vpack.c.b16 %v1614, %v1611
    %v1666 = vpack.c.b16 %v1618, %v1615
    %v1667 = vpack.c.b16 %v1619, %v1616
    %v1668 = vpack.c.b16 %v1620, %v1617
    %1717 = vmatprep.subr.bf16.mxu0 %v1622
    %1718 = vmatpush1.bf16.msra.mxu0 %v1621
    %1719 = vmatprep.subr.bf16.mxu0 %v1625
    %1720 = vmatpush1.bf16.msra.mxu0 %v1624
    %1721 = vmatprep.subr.bf16.mxu0 %v1628
    %1722 = vmatpush1.bf16.msra.mxu0 %v1627
    %1723 = vmatprep.subr.bf16.mxu0 %v1631
    %1724 = vmatpush1.bf16.msra.mxu0 %v1630
    %1725 = vmatprep.subr.bf16.mxu0 %v1634
    %1726 = vmatpush1.bf16.msra.mxu0 %v1633
    %1727 = vmatprep.subr.bf16.mxu0 %v1637
    %1728 = vmatpush1.bf16.msra.mxu0 %v1636
    %1729 = vmatprep.subr.bf16.mxu0 %v1640
    %1730 = vmatpush1.bf16.msra.mxu0 %v1639
    %1731 = vmatprep.subr.bf16.mxu0 %v1643
    %1732 = vmatpush1.bf16.msra.mxu0 %v1642
    %1733 = vmatprep.subr.bf16.mxu0 %v1646
    %1734 = vmatpush1.bf16.msra.mxu0 %v1645
    %1735 = vmatprep.subr.bf16.mxu0 %v1649
    %1736 = vmatpush1.bf16.msra.mxu0 %v1648
    %1737 = vmatprep.subr.bf16.mxu0 %v1652
    %1738 = vmatpush1.bf16.msra.mxu0 %v1651
    %1739 = vmatprep.subr.bf16.mxu0 %v1655
    %1740 = vmatpush1.bf16.msra.mxu0 %v1654
    %1741 = vmatprep.subr.bf16.mxu0 %v1658
    %1742 = vmatpush1.bf16.msra.mxu0 %v1657
    %1743 = vmatprep.subr.bf16.mxu0 %v1661
    %1744 = vmatpush1.bf16.msra.mxu0 %v1660
    %1745 = vmatprep.subr.bf16.mxu0 %v1664
    %1746 = vmatpush1.bf16.msra.mxu0 %v1663
    %1747 = vmatprep.subr.bf16.mxu0 %v1667
    %1748 = vmatpush1.bf16.msra.mxu0 %v1666
    %1749 = vmatprep.mubr.bf16.mxu0 %v1373
    %1750 = vmatmul.mubr.bf16.gmra.mrb[0].mxu0 %v1372
    %v1751 = vpop.f32.mrb[0].mxu0
    %v1752 = vadd.f32 %v1449, %v1751
    %v1753 = vpop.f32.mrb[0].mxu0
    %v1754 = vadd.f32 %v1453, %v1753
    %v1755 = vpop.f32.mrb[0].mxu0
    %v1756 = vadd.f32 %v1449, %v1755
    %v1757 = vpop.f32.mrb[0].mxu0
    %v1758 = vadd.f32 %v1453, %v1757
    %1759 = vmatprep.mubr.bf16.mxu0 %v1375
    %1760 = vmatmul.mubr.bf16.gmra.mrb[0].mxu0 %v1374
    %v1761 = vpop.f32.mrb[0].mxu0
    %v1762 = vadd.f32 %v1449, %v1761
    %v1763 = vpop.f32.mrb[0].mxu0
    %v1764 = vadd.f32 %v1453, %v1763
    %v1765 = vpop.f32.mrb[0].mxu0
    %v1766 = vadd.f32 %v1449, %v1765
    %v1767 = vpop.f32.mrb[0].mxu0
    %v1768 = vadd.f32 %v1453, %v1767
    %1769 = vmatprep.mubr.bf16.mxu0 %v1377
    %1770 = vmatmul.mubr.bf16.gmra.mrb[0].mxu0 %v1376
    %v1771 = vpop.f32.mrb[0].mxu0
    %v1772 = vadd.f32 %v1449, %v1771
    %v1773 = vpop.f32.mrb[0].mxu0
    %v1774 = vadd.f32 %v1453, %v1773
    %v1775 = vpop.f32.mrb[0].mxu0
    %v1776 = vadd.f32 %v1449, %v1775
    %v1777 = vpop.f32.mrb[0].mxu0
    %v1778 = vadd.f32 %v1453, %v1777
    %1779 = vmatprep.mubr.bf16.mxu0 %v1379
    %1780 = vmatmul.mubr.bf16.gmra.mrb[0].mxu0 %v1378
    %v1781 = vpop.f32.mrb[0].mxu0
    %v1782 = vadd.f32 %v1449, %v1781
    %v1783 = vpop.f32.mrb[0].mxu0
    %v1784 = vadd.f32 %v1453, %v1783
    %v1785 = vpop.f32.mrb[0].mxu0
    %v1786 = vadd.f32 %v1449, %v1785
    %v1787 = vpop.f32.mrb[0].mxu0
    %v1788 = vadd.f32 %v1453, %v1787
    %1789 = vdwg.mxu0
    %1790 = vmatprep.subr.bf16.mxu0 0
    %1791 = vmatpush1.bf16.msra.mxu0 %v1623
    %1792 = vmatprep.subr.bf16.mxu0 0
    %1793 = vmatpush1.bf16.msra.mxu0 %v1626
    %1794 = vmatprep.subr.bf16.mxu0 0
    %1795 = vmatpush1.bf16.msra.mxu0 %v1629
    %1796 = vmatprep.subr.bf16.mxu0 0
    %1797 = vmatpush1.bf16.msra.mxu0 %v1632
    %1798 = vmatprep.subr.bf16.mxu0 0
    %1799 = vmatpush1.bf16.msra.mxu0 %v1635
    %1800 = vmatprep.subr.bf16.mxu0 0
    %1801 = vmatpush1.bf16.msra.mxu0 %v1638
    %1802 = vmatprep.subr.bf16.mxu0 0
    %1803 = vmatpush1.bf16.msra.mxu0 %v1641
    %1804 = vmatprep.subr.bf16.mxu0 0
    %1805 = vmatpush1.bf16.msra.mxu0 %v1644
    %1806 = vmatprep.subr.bf16.mxu0 0
    %1807 = vmatpush1.bf16.msra.mxu0 %v1647
    %1808 = vmatprep.subr.bf16.mxu0 0
    %1809 = vmatpush1.bf16.msra.mxu0 %v1650
    %1810 = vmatprep.subr.bf16.mxu0 0
    %1811 = vmatpush1.bf16.msra.mxu0 %v1653
    %1812 = vmatprep.subr.bf16.mxu0 0
    %1813 = vmatpush1.bf16.msra.mxu0 %v1656
    %1814 = vmatprep.subr.bf16.mxu0 0
    %1815 = vmatpush1.bf16.msra.mxu0 %v1659
    %1816 = vmatprep.subr.bf16.mxu0 0
    %1817 = vmatpush1.bf16.msra.mxu0 %v1662
    %1818 = vmatprep.subr.bf16.mxu0 0
    %1819 = vmatpush1.bf16.msra.mxu0 %v1665
    %1820 = vmatprep.subr.bf16.mxu0 0
    %1821 = vmatpush1.bf16.msra.mxu0 %v1668
    %1822 = vmatprep.mubr.bf16.mxu0 %v1373
    %1823 = vmatmul.mubr.bf16.gmra.mrb[0].mxu0 %v1372
    %v1824 = vpop.f32.mrb[0].mxu0
    %v1825 = vadd.f32 %v1457, %v1824
    %v1826 = vpop.f32.mrb[0].mxu0
    %v1827 = vpop.f32.mrb[0].mxu0
    %v1828 = vadd.f32 %v1457, %v1827
    %v1829 = vpop.f32.mrb[0].mxu0
    %1830 = vmatprep.mubr.bf16.mxu0 %v1375
    %1831 = vmatmul.mubr.bf16.gmra.mrb[0].mxu0 %v1374
    %v1832 = vpop.f32.mrb[0].mxu0
    %v1833 = vadd.f32 %v1457, %v1832
    %v1834 = vpop.f32.mrb[0].mxu0
    %v1835 = vpop.f32.mrb[0].mxu0
    %v1836 = vadd.f32 %v1457, %v1835
    %v1837 = vpop.f32.mrb[0].mxu0
    %1838 = vmatprep.mubr.bf16.mxu0 %v1377
    %1839 = vmatmul.mubr.bf16.gmra.mrb[0].mxu0 %v1376
    %v1840 = vpop.f32.mrb[0].mxu0
    %v1841 = vadd.f32 %v1457, %v1840
    %v1842 = vpop.f32.mrb[0].mxu0
    %v1843 = vpop.f32.mrb[0].mxu0
    %v1844 = vadd.f32 %v1457, %v1843
    %v1845 = vpop.f32.mrb[0].mxu0
    %1846 = vmatprep.mubr.bf16.mxu0 %v1379
    %1847 = vmatmul.mubr.bf16.gmra.mrb[0].mxu0 %v1378
    %v1848 = vpop.f32.mrb[0].mxu0
    %v1849 = vadd.f32 %v1457, %v1848
    %v1850 = vpop.f32.mrb[0].mxu0
    %v1851 = vpop.f32.mrb[0].mxu0
    %v1852 = vadd.f32 %v1457, %v1851
    %v1853 = vpop.f32.mrb[0].mxu0
    %1854 = vdwg.mxu0
    %1855 = vst [vmem:[#allocation2] sm:$0xff] %v1752
    %1856 = vst [vmem:[#allocation2 + $0x8] sm:$0xff] %v1754
    %1857 = vst [vmem:[#allocation2 + $0x10] sm:$0xff] %v1825
    %1858 = vst [vmem:[#allocation2 + $0x18] sm:$0xff] %v1756
    %1859 = vst [vmem:[#allocation2 + $0x20] sm:$0xff] %v1758
    %1860 = vst [vmem:[#allocation2 + $0x28] sm:$0xff] %v1828
    %1861 = vst [vmem:[#allocation2 + $0x30] sm:$0xff] %v1762
    %1862 = vst [vmem:[#allocation2 + $0x38] sm:$0xff] %v1764
    %1863 = vst [vmem:[#allocation2 + $0x40] sm:$0xff] %v1833
    %1864 = vst [vmem:[#allocation2 + $0x48] sm:$0xff] %v1766
    %1865 = vst [vmem:[#allocation2 + $0x50] sm:$0xff] %v1768
    %1866 = vst [vmem:[#allocation2 + $0x58] sm:$0xff] %v1836
    %1867 = vst [vmem:[#allocation2 + $0x60] sm:$0xff] %v1772
    %1868 = vst [vmem:[#allocation2 + $0x68] sm:$0xff] %v1774
    %1869 = vst [vmem:[#allocation2 + $0x70] sm:$0xff] %v1841
    %1870 = vst [vmem:[#allocation2 + $0x78] sm:$0xff] %v1776
    %1871 = vst [vmem:[#allocation2 + $0x80] sm:$0xff] %v1778
    %1872 = vst [vmem:[#allocation2 + $0x88] sm:$0xff] %v1844
    %1873 = vst [vmem:[#allocation2 + $0x90] sm:$0xff] %v1782
    %1874 = vst [vmem:[#allocation2 + $0x98] sm:$0xff] %v1784
    %1875 = vst [vmem:[#allocation2 + $0xa0] sm:$0xff] %v1849
    %1876 = vst [vmem:[#allocation2 + $0xa8] sm:$0xff] %v1786
    %1877 = vst [vmem:[#allocation2 + $0xb0] sm:$0xff] %v1788
    %1878 = vst [vmem:[#allocation2 + $0xb8] sm:$0xff] %v1852
    %v1879 = vld [vmem:[#allocation9] sm:$0xff]
    %v1880 = vld [vmem:[#allocation9 + $0x8] sm:$0xff]
    %v1881 = vld [vmem:[#allocation9 + $0x10] sm:$0xff]
    %v1882 = vld [vmem:[#allocation9 + $0x18] sm:$0xff]
    %v1883 = vld [vmem:[#allocation9 + $0x20] sm:$0xff]
    %v1884 = vld [vmem:[#allocation9 + $0x28] sm:$0xff]
    %v1885 = vld [vmem:[#allocation9 + $0x30] sm:$0xff]
    %v1886 = vld [vmem:[#allocation9 + $0x38] sm:$0xff]
    %v1887 = vld [vmem:[#allocation9 + $0x40] sm:$0xff]
    %v1888 = vld [vmem:[#allocation9 + $0x48] sm:$0xff]
    %v1889 = vld [vmem:[#allocation9 + $0x50] sm:$0xff]
    %v1890 = vld [vmem:[#allocation9 + $0x58] sm:$0xff]
    %v1891 = vld [vmem:[#allocation9 + $0x60] sm:$0xff]
    %v1892 = vld [vmem:[#allocation9 + $0x68] sm:$0xff]
    %v1893 = vld [vmem:[#allocation9 + $0x70] sm:$0xff]
    %v1894 = vld [vmem:[#allocation9 + $0x78] sm:$0xff]
    %v1895 = vld [vmem:[#allocation9 + $0x80] sm:$0xff]
    %v1896 = vld [vmem:[#allocation9 + $0x88] sm:$0xff]
    %v1897 = vld [vmem:[#allocation9 + $0x90] sm:$0xff]
    %v1898 = vld [vmem:[#allocation9 + $0x98] sm:$0xff]
    %v1899 = vld [vmem:[#allocation9 + $0xa0] sm:$0xff]
    %v1900 = vld [vmem:[#allocation9 + $0xa8] sm:$0xff]
    %v1901 = vld [vmem:[#allocation9 + $0xb0] sm:$0xff]
    %v1902 = vld [vmem:[#allocation9 + $0xb8] sm:$0xff]
    %v1903 = vld [vmem:[#allocation9 + $0xc0] sm:$0xff]
    %v1904 = vld [vmem:[#allocation9 + $0xc8] sm:$0xff]
    %v1905 = vld [vmem:[#allocation9 + $0xd0] sm:$0xff]
    %v1906 = vld [vmem:[#allocation9 + $0xd8] sm:$0xff]
    %v1907 = vld [vmem:[#allocation9 + $0xe0] sm:$0xff]
    %v1908 = vld [vmem:[#allocation9 + $0xe8] sm:$0xff]
    %v1909 = vld [vmem:[#allocation9 + $0xf0] sm:$0xff]
    %v1910 = vld [vmem:[#allocation9 + $0xf8] sm:$0xff]
    %v1911 = vld [vmem:[#allocation9 + $0x100] sm:$0xff]
    %v1912 = vld [vmem:[#allocation9 + $0x108] sm:$0xff]
    %v1913 = vld [vmem:[#allocation9 + $0x110] sm:$0xff]
    %v1914 = vld [vmem:[#allocation9 + $0x118] sm:$0xff]
    %v1915 = vld [vmem:[#allocation9 + $0x120] sm:$0xff]
    %v1916 = vld [vmem:[#allocation9 + $0x128] sm:$0xff]
    %v1917 = vld [vmem:[#allocation9 + $0x130] sm:$0xff]
    %v1918 = vld [vmem:[#allocation9 + $0x138] sm:$0xff]
    %v1919 = vld [vmem:[#allocation9 + $0x140] sm:$0xff]
    %v1920 = vld [vmem:[#allocation9 + $0x148] sm:$0xff]
    %v1921 = vld [vmem:[#allocation9 + $0x150] sm:$0xff]
    %v1922 = vld [vmem:[#allocation9 + $0x158] sm:$0xff]
    %v1923 = vld [vmem:[#allocation9 + $0x160] sm:$0xff]
    %v1924 = vld [vmem:[#allocation9 + $0x168] sm:$0xff]
    %v1925 = vld [vmem:[#allocation9 + $0x170] sm:$0xff]
    %v1926 = vld [vmem:[#allocation9 + $0x178] sm:$0xff]
    %v1927 = vld [vmem:[%s8] sm:$0x3f]
    %v1928 = vld [vmem:[#allocation11] sm:$0xff]
    %v1929 = vld [vmem:[#allocation11 + $0x8] sm:$0xff]
    %v1930 = vld [vmem:[#allocation11 + $0x10] sm:$0xff]
    %v1931 = vld [vmem:[#allocation11 + $0x18] sm:$0xff]
    %v1932 = vld [vmem:[#allocation11 + $0x20] sm:$0xff]
    %v1933 = vld [vmem:[#allocation11 + $0x28] sm:$0xff]
    %v1934 = vld [vmem:[#allocation11 + $0x30] sm:$0xff]
    %v1935 = vld [vmem:[#allocation11 + $0x38] sm:$0xff]
    %v1936 = vld [vmem:[#allocation11 + $0x40] sm:$0xff]
    %v1937 = vld [vmem:[#allocation11 + $0x48] sm:$0xff]
    %v1938 = vld [vmem:[#allocation11 + $0x50] sm:$0xff]
    %v1939 = vld [vmem:[#allocation11 + $0x58] sm:$0xff]
    %v1940 = vld [vmem:[#allocation11 + $0x60] sm:$0xff]
    %v1941 = vld [vmem:[#allocation11 + $0x68] sm:$0xff]
    %v1942 = vld [vmem:[#allocation11 + $0x70] sm:$0xff]
    %v1943 = vld [vmem:[#allocation11 + $0x78] sm:$0xff]
    %v1944 = vld [vmem:[#allocation11 + $0x80] sm:$0xff]
    %v1945 = vld [vmem:[#allocation11 + $0x88] sm:$0xff]
    %v1946 = vld [vmem:[#allocation11 + $0x90] sm:$0xff]
    %v1947 = vld [vmem:[#allocation11 + $0x98] sm:$0xff]
    %v1948 = vld [vmem:[#allocation11 + $0xa0] sm:$0xff]
    %v1949 = vld [vmem:[#allocation11 + $0xa8] sm:$0xff]
    %v1950 = vld [vmem:[#allocation11 + $0xb0] sm:$0xff]
    %v1951 = vld [vmem:[#allocation11 + $0xb8] sm:$0xff]
    %v1952 = vld [vmem:[#allocation11 + $0xc0] sm:$0xff]
    %v1953 = vld [vmem:[#allocation11 + $0xc8] sm:$0xff]
    %v1954 = vld [vmem:[#allocation11 + $0xd0] sm:$0xff]
    %v1955 = vld [vmem:[#allocation11 + $0xd8] sm:$0xff]
    %v1956 = vld [vmem:[#allocation11 + $0xe0] sm:$0xff]
    %v1957 = vld [vmem:[#allocation11 + $0xe8] sm:$0xff]
    %v1958 = vld [vmem:[#allocation11 + $0xf0] sm:$0xff]
    %v1959 = vld [vmem:[#allocation11 + $0xf8] sm:$0xff]
    %v1960 = vld [vmem:[#allocation11 + $0x100] sm:$0xff]
    %v1961 = vld [vmem:[#allocation11 + $0x108] sm:$0xff]
    %v1962 = vld [vmem:[#allocation11 + $0x110] sm:$0xff]
    %v1963 = vld [vmem:[#allocation11 + $0x118] sm:$0xff]
    %v1964 = vld [vmem:[#allocation11 + $0x120] sm:$0xff]
    %v1965 = vld [vmem:[#allocation11 + $0x128] sm:$0xff]
    %v1966 = vld [vmem:[#allocation11 + $0x130] sm:$0xff]
    %v1967 = vld [vmem:[#allocation11 + $0x138] sm:$0xff]
    %v1968 = vld [vmem:[#allocation11 + $0x140] sm:$0xff]
    %v1969 = vld [vmem:[#allocation11 + $0x148] sm:$0xff]
    %v1970 = vld [vmem:[#allocation11 + $0x150] sm:$0xff]
    %v1971 = vld [vmem:[#allocation11 + $0x158] sm:$0xff]
    %v1972 = vld [vmem:[#allocation11 + $0x160] sm:$0xff]
    %v1973 = vld [vmem:[#allocation11 + $0x168] sm:$0xff]
    %v1974 = vld [vmem:[#allocation11 + $0x170] sm:$0xff]
    %v1975 = vld [vmem:[#allocation11 + $0x178] sm:$0xff]
    %v1976 = vld [vmem:[%s10] sm:$0x3f]
    %v1977 = vld [vmem:[#allocation12] sm:$0xff]
    %v1978 = vld [vmem:[#allocation12 + $0x8] sm:$0xf]
    %v1979 = vld [vmem:[#allocation12 + $0xc] sm:$0xff]
    %v1980 = vld [vmem:[#allocation12 + $0x14] sm:$0xf]
    %v1981 = vld [vmem:[#allocation12 + $0x18] sm:$0xff]
    %v1982 = vld [vmem:[#allocation12 + $0x20] sm:$0xf]
    %v1983 = vld [vmem:[#allocation12 + $0x24] sm:$0xff]
    %v1984 = vld [vmem:[#allocation12 + $0x2c] sm:$0xf]
    %v1985 = vld [vmem:[#allocation12 + $0x30] sm:$0xff]
    %v1986 = vld [vmem:[#allocation12 + $0x38] sm:$0xf]
    %v1987 = vld [vmem:[#allocation12 + $0x3c] sm:$0xff]
    %v1988 = vld [vmem:[#allocation12 + $0x44] sm:$0xf]
    %v1989 = vld [vmem:[#allocation12 + $0x48] sm:$0xff]
    %v1990 = vld [vmem:[#allocation12 + $0x50] sm:$0xf]
    %v1991 = vld [vmem:[#allocation12 + $0x54] sm:$0xff]
    %v1992 = vld [vmem:[#allocation12 + $0x5c] sm:$0xf]
    %v1993 = vld [vmem:[#allocation12 + $0x60] sm:$0xff]
    %v1994 = vld [vmem:[#allocation12 + $0x68] sm:$0xf]
    %v1995 = vld [vmem:[#allocation12 + $0x6c] sm:$0xff]
    %v1996 = vld [vmem:[#allocation12 + $0x74] sm:$0xf]
    %v1997 = vld [vmem:[#allocation12 + $0x78] sm:$0xff]
    %v1998 = vld [vmem:[#allocation12 + $0x80] sm:$0xf]
    %v1999 = vld [vmem:[#allocation12 + $0x84] sm:$0xff]
    %v2000 = vld [vmem:[#allocation12 + $0x8c] sm:$0xf]
    %v2001 = vld [vmem:[#allocation12 + $0x90] sm:$0xff]
    %v2002 = vld [vmem:[#allocation12 + $0x98] sm:$0xf]
    %v2003 = vld [vmem:[#allocation12 + $0x9c] sm:$0xff]
    %v2004 = vld [vmem:[#allocation12 + $0xa4] sm:$0xf]
    %v2005 = vld [vmem:[#allocation12 + $0xa8] sm:$0xff]
    %v2006 = vld [vmem:[#allocation12 + $0xb0] sm:$0xf]
    %v2007 = vld [vmem:[#allocation12 + $0xb4] sm:$0xff]
    %v2008 = vld [vmem:[#allocation12 + $0xbc] sm:$0xf]
    %v2009 = vld [vmem:[#allocation14] sm:$0x7]
    %v2011 = vlaneseq
    %v2012 = vshrl.u32 %v2011, 7
    %v2013 = vsub.s32 0, %v2012
    %v2014 = vrot.slane %v1927, %v2013
    %v2015 = vlaneseq
    %v2016 = vshrl.u32 %v2015, 7
    %v2017 = vsub.s32 1, %v2016
    %v2018 = vrot.slane %v1927, %v2017
    %v2019 = vlaneseq
    %v2020 = vshrl.u32 %v2019, 7
    %v2021 = vsub.s32 2, %v2020
    %v2022 = vrot.slane %v1927, %v2021
    %v2023 = vlaneseq
    %v2024 = vshrl.u32 %v2023, 7
    %v2025 = vsub.s32 3, %v2024
    %v2026 = vrot.slane %v1927, %v2025
    %v2027 = vlaneseq
    %v2028 = vshrl.u32 %v2027, 7
    %v2029 = vsub.s32 4, %v2028
    %v2030 = vrot.slane %v1927, %v2029
    %v2031 = vlaneseq
    %v2032 = vshrl.u32 %v2031, 7
    %v2033 = vsub.s32 5, %v2032
    %v2034 = vrot.slane %v1927, %v2033
    %v2073 = vunpack.c.l.b16 %v1879
    %v2074 = vunpack.c.h.b16 %v1879
    %v2075 = vunpack.c.l.b16 %v1880
    %v2076 = vunpack.c.h.b16 %v1880
    %v2077 = vunpack.c.l.b16 %v1882
    %v2078 = vunpack.c.h.b16 %v1882
    %v2079 = vunpack.c.l.b16 %v1883
    %v2080 = vunpack.c.h.b16 %v1883
    %v2081 = vunpack.c.l.b16 %v1885
    %v2082 = vunpack.c.h.b16 %v1885
    %v2083 = vunpack.c.l.b16 %v1886
    %v2084 = vunpack.c.h.b16 %v1886
    %v2085 = vunpack.c.l.b16 %v1888
    %v2086 = vunpack.c.h.b16 %v1888
    %v2087 = vunpack.c.l.b16 %v1889
    %v2088 = vunpack.c.h.b16 %v1889
    %v2089 = vunpack.c.l.b16 %v1891
    %v2090 = vunpack.c.h.b16 %v1891
    %v2091 = vunpack.c.l.b16 %v1892
    %v2092 = vunpack.c.h.b16 %v1892
    %v2093 = vunpack.c.l.b16 %v1894
    %v2094 = vunpack.c.h.b16 %v1894
    %v2095 = vunpack.c.l.b16 %v1895
    %v2096 = vunpack.c.h.b16 %v1895
    %v2097 = vunpack.c.l.b16 %v1897
    %v2098 = vunpack.c.h.b16 %v1897
    %v2099 = vunpack.c.l.b16 %v1898
    %v2100 = vunpack.c.h.b16 %v1898
    %v2101 = vunpack.c.l.b16 %v1900
    %v2102 = vunpack.c.h.b16 %v1900
    %v2103 = vunpack.c.l.b16 %v1901
    %v2104 = vunpack.c.h.b16 %v1901
    %v2105 = vunpack.c.l.b16 %v1903
    %v2106 = vunpack.c.h.b16 %v1903
    %v2107 = vunpack.c.l.b16 %v1904
    %v2108 = vunpack.c.h.b16 %v1904
    %v2109 = vunpack.c.l.b16 %v1906
    %v2110 = vunpack.c.h.b16 %v1906
    %v2111 = vunpack.c.l.b16 %v1907
    %v2112 = vunpack.c.h.b16 %v1907
    %v2113 = vunpack.c.l.b16 %v1909
    %v2114 = vunpack.c.h.b16 %v1909
    %v2115 = vunpack.c.l.b16 %v1910
    %v2116 = vunpack.c.h.b16 %v1910
    %v2117 = vunpack.c.l.b16 %v1912
    %v2118 = vunpack.c.h.b16 %v1912
    %v2119 = vunpack.c.l.b16 %v1913
    %v2120 = vunpack.c.h.b16 %v1913
    %v2121 = vunpack.c.l.b16 %v1915
    %v2122 = vunpack.c.h.b16 %v1915
    %v2123 = vunpack.c.l.b16 %v1916
    %v2124 = vunpack.c.h.b16 %v1916
    %v2125 = vunpack.c.l.b16 %v1918
    %v2126 = vunpack.c.h.b16 %v1918
    %v2127 = vunpack.c.l.b16 %v1919
    %v2128 = vunpack.c.h.b16 %v1919
    %v2129 = vunpack.c.l.b16 %v1921
    %v2130 = vunpack.c.h.b16 %v1921
    %v2131 = vunpack.c.l.b16 %v1922
    %v2132 = vunpack.c.h.b16 %v1922
    %v2133 = vunpack.c.l.b16 %v1924
    %v2134 = vunpack.c.h.b16 %v1924
    %v2135 = vunpack.c.l.b16 %v1925
    %v2136 = vunpack.c.h.b16 %v1925
    %v2137 = vpack.c.b16 %v2077, %v2073
    %v2138 = vpack.c.b16 %v2078, %v2074
    %v2139 = vpack.c.b16 %v2079, %v2075
    %v2140 = vpack.c.b16 %v2080, %v2076
    %v2141 = vpack.c.b16 %v2085, %v2081
    %v2142 = vpack.c.b16 %v2086, %v2082
    %v2143 = vpack.c.b16 %v2087, %v2083
    %v2144 = vpack.c.b16 %v2088, %v2084
    %v2145 = vpack.c.b16 %v2093, %v2089
    %v2146 = vpack.c.b16 %v2094, %v2090
    %v2147 = vpack.c.b16 %v2095, %v2091
    %v2148 = vpack.c.b16 %v2096, %v2092
    %v2149 = vpack.c.b16 %v2101, %v2097
    %v2150 = vpack.c.b16 %v2102, %v2098
    %v2151 = vpack.c.b16 %v2103, %v2099
    %v2152 = vpack.c.b16 %v2104, %v2100
    %v2153 = vpack.c.b16 %v2109, %v2105
    %v2154 = vpack.c.b16 %v2110, %v2106
    %v2155 = vpack.c.b16 %v2111, %v2107
    %v2156 = vpack.c.b16 %v2112, %v2108
    %v2157 = vpack.c.b16 %v2117, %v2113
    %v2158 = vpack.c.b16 %v2118, %v2114
    %v2159 = vpack.c.b16 %v2119, %v2115
    %v2160 = vpack.c.b16 %v2120, %v2116
    %v2161 = vpack.c.b16 %v2125, %v2121
    %v2162 = vpack.c.b16 %v2126, %v2122
    %v2163 = vpack.c.b16 %v2127, %v2123
    %v2164 = vpack.c.b16 %v2128, %v2124
    %v2165 = vpack.c.b16 %v2133, %v2129
    %v2166 = vpack.c.b16 %v2134, %v2130
    %v2167 = vpack.c.b16 %v2135, %v2131
    %v2168 = vpack.c.b16 %v2136, %v2132
    %2201 = vmatprep.subr.bf16.mxu0 %v2138
    %2202 = vmatpush1.bf16.msra.mxu0 %v2137
    %2203 = vmatprep.subr.bf16.mxu0 %v2142
    %2204 = vmatpush1.bf16.msra.mxu0 %v2141
    %2205 = vmatprep.subr.bf16.mxu0 %v2146
    %2206 = vmatpush1.bf16.msra.mxu0 %v2145
    %2207 = vmatprep.subr.bf16.mxu0 %v2150
    %2208 = vmatpush1.bf16.msra.mxu0 %v2149
    %2209 = vmatprep.subr.bf16.mxu0 %v2154
    %2210 = vmatpush1.bf16.msra.mxu0 %v2153
    %2211 = vmatprep.subr.bf16.mxu0 %v2158
    %2212 = vmatpush1.bf16.msra.mxu0 %v2157
    %2213 = vmatprep.subr.bf16.mxu0 %v2162
    %2214 = vmatpush1.bf16.msra.mxu0 %v2161
    %2215 = vmatprep.subr.bf16.mxu0 %v2166
    %2216 = vmatpush1.bf16.msra.mxu0 %v2165
    %2217 = vmatprep.subr.bf16.mxu0 0
    %2218 = vmatpush1.bf16.msra.mxu0 0
    %2219 = vmatprep.subr.bf16.mxu0 0
    %2220 = vmatpush1.bf16.msra.mxu0 0
    %2221 = vmatprep.subr.bf16.mxu0 0
    %2222 = vmatpush1.bf16.msra.mxu0 0
    %2223 = vmatprep.subr.bf16.mxu0 0
    %2224 = vmatpush1.bf16.msra.mxu0 0
    %2225 = vmatprep.subr.bf16.mxu0 0
    %2226 = vmatpush1.bf16.msra.mxu0 0
    %2227 = vmatprep.subr.bf16.mxu0 0
    %2228 = vmatpush1.bf16.msra.mxu0 0
    %2229 = vmatprep.subr.bf16.mxu0 0
    %2230 = vmatpush1.bf16.msra.mxu0 0
    %2231 = vmatprep.subr.bf16.mxu0 0
    %2232 = vmatpush1.bf16.msra.mxu0 0
    %2233 = vmatprep.mubr.bf16.mxu0 0
    %2234 = vmatmul.mubr.bf16.gmra.mrb[0].mxu0 0
    %v2235 = vpop.f32.mrb[0].mxu0
    %v2236 = vadd.f32 %v2014, %v2235
    %v2237 = vpop.f32.mrb[0].mxu0
    %v2238 = vadd.f32 %v2018, %v2237
    %v2239 = vpop.f32.mrb[0].mxu0
    %v2240 = vpop.f32.mrb[0].mxu0
    %2241 = vdwg.mxu0
    %2242 = vmatprep.subr.bf16.mxu0 %v2140
    %2243 = vmatpush1.bf16.msra.mxu0 %v2139
    %2244 = vmatprep.subr.bf16.mxu0 %v2144
    %2245 = vmatpush1.bf16.msra.mxu0 %v2143
    %2246 = vmatprep.subr.bf16.mxu0 %v2148
    %2247 = vmatpush1.bf16.msra.mxu0 %v2147
    %2248 = vmatprep.subr.bf16.mxu0 %v2152
    %2249 = vmatpush1.bf16.msra.mxu0 %v2151
    %2250 = vmatprep.subr.bf16.mxu0 %v2156
    %2251 = vmatpush1.bf16.msra.mxu0 %v2155
    %2252 = vmatprep.subr.bf16.mxu0 %v2160
    %2253 = vmatpush1.bf16.msra.mxu0 %v2159
    %2254 = vmatprep.subr.bf16.mxu0 %v2164
    %2255 = vmatpush1.bf16.msra.mxu0 %v2163
    %2256 = vmatprep.subr.bf16.mxu0 %v2168
    %2257 = vmatpush1.bf16.msra.mxu0 %v2167
    %2258 = vmatprep.subr.bf16.mxu0 0
    %2259 = vmatpush1.bf16.msra.mxu0 0
    %2260 = vmatprep.subr.bf16.mxu0 0
    %2261 = vmatpush1.bf16.msra.mxu0 0
    %2262 = vmatprep.subr.bf16.mxu0 0
    %2263 = vmatpush1.bf16.msra.mxu0 0
    %2264 = vmatprep.subr.bf16.mxu0 0
    %2265 = vmatpush1.bf16.msra.mxu0 0
    %2266 = vmatprep.subr.bf16.mxu0 0
    %2267 = vmatpush1.bf16.msra.mxu0 0
    %2268 = vmatprep.subr.bf16.mxu0 0
    %2269 = vmatpush1.bf16.msra.mxu0 0
    %2270 = vmatprep.subr.bf16.mxu0 0
    %2271 = vmatpush1.bf16.msra.mxu0 0
    %2272 = vmatprep.subr.bf16.mxu0 0
    %2273 = vmatpush1.bf16.msra.mxu0 0
    %2274 = vmatprep.mubr.bf16.mxu0 0
    %2275 = vmatmul.mubr.bf16.gmra.mrb[0].mxu0 0
    %v2276 = vpop.f32.mrb[0].mxu0
    %v2277 = vadd.f32 %v2022, %v2276
    %v2278 = vpop.f32.mrb[0].mxu0
    %v2279 = vpop.f32.mrb[0].mxu0
    %v2280 = vpop.f32.mrb[0].mxu0
    %2281 = vdwg.mxu0
    %s2282 = smul.u32 0, 3
    %s2283 = smul.addr %s2282, 8
    %s2284 = scalar_lea.vmem [#allocation2], %s2283
    %v2285 = vld [vmem:[%s2284] sm:$0xff]
    %v2286 = vld [vmem:[%s2284 + $0x8] sm:$0xff]
    %v2287 = vld [vmem:[%s2284 + $0x10] sm:$0xff]
    %v2288 = vadd.f32 %v2285, %v2236
    %v2289 = vxor.u32 %v2288, 2147483648
    %v2290 = vmul.f32 %v2289, 1.442695
    %v2291 = vpow.pop %v2290
    %v2292 = vadd.f32 %v2291, 1.0
    %v2293 = vrcp.pop %v2292
    %v2294 = vmul.f32 1.0, %v2293
    %v2295 = vadd.f32 %v2286, %v2238
    %v2296 = vxor.u32 %v2295, 2147483648
    %v2297 = vmul.f32 %v2296, 1.442695
    %v2298 = vpow.pop %v2297
    %v2299 = vadd.f32 %v2298, 1.0
    %v2300 = vrcp.pop %v2299
    %v2301 = vmul.f32 1.0, %v2300
    %v2302 = vmul.f32 %v2294, %v2277
    %v2303 = vadd.f32 %v2287, %v2302
    %v2304 = vtanh.pop %v2303
    %v2305 = vsub.f32 1.0, %v2301
    %v2306 = vmul.f32 %v2305, %v2304
    %v2307 = vmul.f32 %v2301, 0.0
    %v2308 = vadd.f32 %v2306, %v2307
    %v2309 = vpack.c.bf16 %v2308, %v2308
    %v2326 = vunpack.c.l.b16 %v1881
    %v2327 = vunpack.c.h.b16 %v1881
    %v2328 = vunpack.c.l.b16 %v1884
    %v2329 = vunpack.c.h.b16 %v1884
    %v2330 = vunpack.c.l.b16 %v1887
    %v2331 = vunpack.c.h.b16 %v1887
    %v2332 = vunpack.c.l.b16 %v1890
    %v2333 = vunpack.c.h.b16 %v1890
    %v2334 = vunpack.c.l.b16 %v1893
    %v2335 = vunpack.c.h.b16 %v1893
    %v2336 = vunpack.c.l.b16 %v1896
    %v2337 = vunpack.c.h.b16 %v1896
    %v2338 = vunpack.c.l.b16 %v1899
    %v2339 = vunpack.c.h.b16 %v1899
    %v2340 = vunpack.c.l.b16 %v1902
    %v2341 = vunpack.c.h.b16 %v1902
    %v2342 = vunpack.c.l.b16 %v1905
    %v2343 = vunpack.c.h.b16 %v1905
    %v2344 = vunpack.c.l.b16 %v1908
    %v2345 = vunpack.c.h.b16 %v1908
    %v2346 = vunpack.c.l.b16 %v1911
    %v2347 = vunpack.c.h.b16 %v1911
    %v2348 = vunpack.c.l.b16 %v1914
    %v2349 = vunpack.c.h.b16 %v1914
    %v2350 = vunpack.c.l.b16 %v1917
    %v2351 = vunpack.c.h.b16 %v1917
    %v2352 = vunpack.c.l.b16 %v1920
    %v2353 = vunpack.c.h.b16 %v1920
    %v2354 = vunpack.c.l.b16 %v1923
    %v2355 = vunpack.c.h.b16 %v1923
    %v2356 = vunpack.c.l.b16 %v1926
    %v2357 = vunpack.c.h.b16 %v1926
    %v2358 = vpack.c.b16 %v2328, %v2326
    %v2359 = vpack.c.b16 %v2329, %v2327
    %v2360 = vpack.c.b16 %v2332, %v2330
    %v2361 = vpack.c.b16 %v2333, %v2331
    %v2362 = vpack.c.b16 %v2336, %v2334
    %v2363 = vpack.c.b16 %v2337, %v2335
    %v2364 = vpack.c.b16 %v2340, %v2338
    %v2365 = vpack.c.b16 %v2341, %v2339
    %v2366 = vpack.c.b16 %v2344, %v2342
    %v2367 = vpack.c.b16 %v2345, %v2343
    %v2368 = vpack.c.b16 %v2348, %v2346
    %v2369 = vpack.c.b16 %v2349, %v2347
    %v2370 = vpack.c.b16 %v2352, %v2350
    %v2371 = vpack.c.b16 %v2353, %v2351
    %v2372 = vpack.c.b16 %v2356, %v2354
    %v2373 = vpack.c.b16 %v2357, %v2355
    %2390 = vmatprep.subr.bf16.mxu0 %v2138
    %2391 = vmatpush1.bf16.msra.mxu0 %v2137
    %2392 = vmatprep.subr.bf16.mxu0 %v2142
    %2393 = vmatpush1.bf16.msra.mxu0 %v2141
    %2394 = vmatprep.subr.bf16.mxu0 %v2146
    %2395 = vmatpush1.bf16.msra.mxu0 %v2145
    %2396 = vmatprep.subr.bf16.mxu0 %v2150
    %2397 = vmatpush1.bf16.msra.mxu0 %v2149
    %2398 = vmatprep.subr.bf16.mxu0 %v2154
    %2399 = vmatpush1.bf16.msra.mxu0 %v2153
    %2400 = vmatprep.subr.bf16.mxu0 %v2158
    %2401 = vmatpush1.bf16.msra.mxu0 %v2157
    %2402 = vmatprep.subr.bf16.mxu0 %v2162
    %2403 = vmatpush1.bf16.msra.mxu0 %v2161
    %2404 = vmatprep.subr.bf16.mxu0 %v2166
    %2405 = vmatpush1.bf16.msra.mxu0 %v2165
    %2406 = vmatprep.subr.bf16.mxu0 0
    %2407 = vmatpush1.bf16.msra.mxu0 0
    %2408 = vmatprep.subr.bf16.mxu0 0
    %2409 = vmatpush1.bf16.msra.mxu0 0
    %2410 = vmatprep.subr.bf16.mxu0 0
    %2411 = vmatpush1.bf16.msra.mxu0 0
    %2412 = vmatprep.subr.bf16.mxu0 0
    %2413 = vmatpush1.bf16.msra.mxu0 0
    %2414 = vmatprep.subr.bf16.mxu0 0
    %2415 = vmatpush1.bf16.msra.mxu0 0
    %2416 = vmatprep.subr.bf16.mxu0 0
    %2417 = vmatpush1.bf16.msra.mxu0 0
    %2418 = vmatprep.subr.bf16.mxu0 0
    %2419 = vmatpush1.bf16.msra.mxu0 0
    %2420 = vmatprep.subr.bf16.mxu0 0
    %2421 = vmatpush1.bf16.msra.mxu0 0
    %2422 = vmatprep.mubr.bf16.mxu0 0
    %2423 = vmatmul.mubr.bf16.gmra.mrb[0].mxu0 %v2309
    %v2424 = vpop.f32.mrb[0].mxu0
    %v2425 = vadd.f32 %v2014, %v2424
    %v2426 = vpop.f32.mrb[0].mxu0
    %v2427 = vadd.f32 %v2018, %v2426
    %v2428 = vpop.f32.mrb[0].mxu0
    %v2429 = vpop.f32.mrb[0].mxu0
    %2430 = vdwg.mxu0
    %2431 = vmatprep.subr.bf16.mxu0 %v2140
    %2432 = vmatpush1.bf16.msra.mxu0 %v2139
    %2433 = vmatprep.subr.bf16.mxu0 %v2144
    %2434 = vmatpush1.bf16.msra.mxu0 %v2143
    %2435 = vmatprep.subr.bf16.mxu0 %v2148
    %2436 = vmatpush1.bf16.msra.mxu0 %v2147
    %2437 = vmatprep.subr.bf16.mxu0 %v2152
    %2438 = vmatpush1.bf16.msra.mxu0 %v2151
    %2439 = vmatprep.subr.bf16.mxu0 %v2156
    %2440 = vmatpush1.bf16.msra.mxu0 %v2155
    %2441 = vmatprep.subr.bf16.mxu0 %v2160
    %2442 = vmatpush1.bf16.msra.mxu0 %v2159
    %2443 = vmatprep.subr.bf16.mxu0 %v2164
    %2444 = vmatpush1.bf16.msra.mxu0 %v2163
    %2445 = vmatprep.subr.bf16.mxu0 %v2168
    %2446 = vmatpush1.bf16.msra.mxu0 %v2167
    %2447 = vmatprep.subr.bf16.mxu0 0
    %2448 = vmatpush1.bf16.msra.mxu0 0
    %2449 = vmatprep.subr.bf16.mxu0 0
    %2450 = vmatpush1.bf16.msra.mxu0 0
    %2451 = vmatprep.subr.bf16.mxu0 0
    %2452 = vmatpush1.bf16.msra.mxu0 0
    %2453 = vmatprep.subr.bf16.mxu0 0
    %2454 = vmatpush1.bf16.msra.mxu0 0
    %2455 = vmatprep.subr.bf16.mxu0 0
    %2456 = vmatpush1.bf16.msra.mxu0 0
    %2457 = vmatprep.subr.bf16.mxu0 0
    %2458 = vmatpush1.bf16.msra.mxu0 0
    %2459 = vmatprep.subr.bf16.mxu0 0
    %2460 = vmatpush1.bf16.msra.mxu0 0
    %2461 = vmatprep.subr.bf16.mxu0 0
    %2462 = vmatpush1.bf16.msra.mxu0 0
    %2463 = vmatprep.mubr.bf16.mxu0 0
    %2464 = vmatmul.mubr.bf16.gmra.mrb[0].mxu0 %v2309
    %v2465 = vpop.f32.mrb[0].mxu0
    %v2466 = vadd.f32 %v2022, %v2465
    %v2467 = vpop.f32.mrb[0].mxu0
    %v2468 = vadd.f32 %v2026, %v2467
    %v2469 = vpop.f32.mrb[0].mxu0
    %v2470 = vpop.f32.mrb[0].mxu0
    %2471 = vdwg.mxu0
    %2472 = vmatprep.subr.bf16.mxu0 %v2359
    %2473 = vmatpush1.bf16.msra.mxu0 %v2358
    %2474 = vmatprep.subr.bf16.mxu0 %v2361
    %2475 = vmatpush1.bf16.msra.mxu0 %v2360
    %2476 = vmatprep.subr.bf16.mxu0 %v2363
    %2477 = vmatpush1.bf16.msra.mxu0 %v2362
    %2478 = vmatprep.subr.bf16.mxu0 %v2365
    %2479 = vmatpush1.bf16.msra.mxu0 %v2364
    %2480 = vmatprep.subr.bf16.mxu0 %v2367
    %2481 = vmatpush1.bf16.msra.mxu0 %v2366
    %2482 = vmatprep.subr.bf16.mxu0 %v2369
    %2483 = vmatpush1.bf16.msra.mxu0 %v2368
    %2484 = vmatprep.subr.bf16.mxu0 %v2371
    %2485 = vmatpush1.bf16.msra.mxu0 %v2370
    %2486 = vmatprep.subr.bf16.mxu0 %v2373
    %2487 = vmatpush1.bf16.msra.mxu0 %v2372
    %2488 = vmatprep.subr.bf16.mxu0 0
    %2489 = vmatpush1.bf16.msra.mxu0 0
    %2490 = vmatprep.subr.bf16.mxu0 0
    %2491 = vmatpush1.bf16.msra.mxu0 0
    %2492 = vmatprep.subr.bf16.mxu0 0
    %2493 = vmatpush1.bf16.msra.mxu0 0
    %2494 = vmatprep.subr.bf16.mxu0 0
    %2495 = vmatpush1.bf16.msra.mxu0 0
    %2496 = vmatprep.subr.bf16.mxu0 0
    %2497 = vmatpush1.bf16.msra.mxu0 0
    %2498 = vmatprep.subr.bf16.mxu0 0
    %2499 = vmatpush1.bf16.msra.mxu0 0
    %2500 = vmatprep.subr.bf16.mxu0 0
    %2501 = vmatpush1.bf16.msra.mxu0 0
    %2502 = vmatprep.subr.bf16.mxu0 0
    %2503 = vmatpush1.bf16.msra.mxu0 0
    %2504 = vmatprep.mubr.bf16.mxu0 0
    %2505 = vmatmul.mubr.bf16.gmra.mrb[0].mxu0 %v2309
    %v2506 = vpop.f32.mrb[0].mxu0
    %v2507 = vadd.f32 %v2030, %v2506
    %v2508 = vpop.f32.mrb[0].mxu0
    %v2509 = vadd.f32 %v2034, %v2508
    %v2510 = vpop.f32.mrb[0].mxu0
    %v2511 = vpop.f32.mrb[0].mxu0
    %2512 = vdwg.mxu0
    %v2514 = vlaneseq
    %v2515 = vshrl.u32 %v2514, 7
    %v2516 = vsub.s32 0, %v2515
    %v2517 = vrot.slane %v1976, %v2516
    %v2518 = vlaneseq
    %v2519 = vshrl.u32 %v2518, 7
    %v2520 = vsub.s32 1, %v2519
    %v2521 = vrot.slane %v1976, %v2520
    %v2522 = vlaneseq
    %v2523 = vshrl.u32 %v2522, 7
    %v2524 = vsub.s32 2, %v2523
    %v2525 = vrot.slane %v1976, %v2524
    %v2526 = vlaneseq
    %v2527 = vshrl.u32 %v2526, 7
    %v2528 = vsub.s32 3, %v2527
    %v2529 = vrot.slane %v1976, %v2528
    %v2530 = vlaneseq
    %v2531 = vshrl.u32 %v2530, 7
    %v2532 = vsub.s32 4, %v2531
    %v2533 = vrot.slane %v1976, %v2532
    %v2534 = vlaneseq
    %v2535 = vshrl.u32 %v2534, 7
    %v2536 = vsub.s32 5, %v2535
    %v2537 = vrot.slane %v1976, %v2536
    %v2576 = vunpack.c.l.b16 %v1928
    %v2577 = vunpack.c.h.b16 %v1928
    %v2578 = vunpack.c.l.b16 %v1929
    %v2579 = vunpack.c.h.b16 %v1929
    %v2580 = vunpack.c.l.b16 %v1931
    %v2581 = vunpack.c.h.b16 %v1931
    %v2582 = vunpack.c.l.b16 %v1932
    %v2583 = vunpack.c.h.b16 %v1932
    %v2584 = vunpack.c.l.b16 %v1934
    %v2585 = vunpack.c.h.b16 %v1934
    %v2586 = vunpack.c.l.b16 %v1935
    %v2587 = vunpack.c.h.b16 %v1935
    %v2588 = vunpack.c.l.b16 %v1937
    %v2589 = vunpack.c.h.b16 %v1937
    %v2590 = vunpack.c.l.b16 %v1938
    %v2591 = vunpack.c.h.b16 %v1938
    %v2592 = vunpack.c.l.b16 %v1940
    %v2593 = vunpack.c.h.b16 %v1940
    %v2594 = vunpack.c.l.b16 %v1941
    %v2595 = vunpack.c.h.b16 %v1941
    %v2596 = vunpack.c.l.b16 %v1943
    %v2597 = vunpack.c.h.b16 %v1943
    %v2598 = vunpack.c.l.b16 %v1944
    %v2599 = vunpack.c.h.b16 %v1944
    %v2600 = vunpack.c.l.b16 %v1946
    %v2601 = vunpack.c.h.b16 %v1946
    %v2602 = vunpack.c.l.b16 %v1947
    %v2603 = vunpack.c.h.b16 %v1947
    %v2604 = vunpack.c.l.b16 %v1949
    %v2605 = vunpack.c.h.b16 %v1949
    %v2606 = vunpack.c.l.b16 %v1950
    %v2607 = vunpack.c.h.b16 %v1950
    %v2608 = vunpack.c.l.b16 %v1952
    %v2609 = vunpack.c.h.b16 %v1952
    %v2610 = vunpack.c.l.b16 %v1953
    %v2611 = vunpack.c.h.b16 %v1953
    %v2612 = vunpack.c.l.b16 %v1955
    %v2613 = vunpack.c.h.b16 %v1955
    %v2614 = vunpack.c.l.b16 %v1956
    %v2615 = vunpack.c.h.b16 %v1956
    %v2616 = vunpack.c.l.b16 %v1958
    %v2617 = vunpack.c.h.b16 %v1958
    %v2618 = vunpack.c.l.b16 %v1959
    %v2619 = vunpack.c.h.b16 %v1959
    %v2620 = vunpack.c.l.b16 %v1961
    %v2621 = vunpack.c.h.b16 %v1961
    %v2622 = vunpack.c.l.b16 %v1962
    %v2623 = vunpack.c.h.b16 %v1962
    %v2624 = vunpack.c.l.b16 %v1964
    %v2625 = vunpack.c.h.b16 %v1964
    %v2626 = vunpack.c.l.b16 %v1965
    %v2627 = vunpack.c.h.b16 %v1965
    %v2628 = vunpack.c.l.b16 %v1967
    %v2629 = vunpack.c.h.b16 %v1967
    %v2630 = vunpack.c.l.b16 %v1968
    %v2631 = vunpack.c.h.b16 %v1968
    %v2632 = vunpack.c.l.b16 %v1970
    %v2633 = vunpack.c.h.b16 %v1970
    %v2634 = vunpack.c.l.b16 %v1971
    %v2635 = vunpack.c.h.b16 %v1971
    %v2636 = vunpack.c.l.b16 %v1973
    %v2637 = vunpack.c.h.b16 %v1973
    %v2638 = vunpack.c.l.b16 %v1974
    %v2639 = vunpack.c.h.b16 %v1974
    %v2640 = vpack.c.b16 %v2580, %v2576
    %v2641 = vpack.c.b16 %v2581, %v2577
    %v2642 = vpack.c.b16 %v2582, %v2578
    %v2643 = vpack.c.b16 %v2583, %v2579
    %v2644 = vpack.c.b16 %v2588, %v2584
    %v2645 = vpack.c.b16 %v2589, %v2585
    %v2646 = vpack.c.b16 %v2590, %v2586
    %v2647 = vpack.c.b16 %v2591, %v2587
    %v2648 = vpack.c.b16 %v2596, %v2592
    %v2649 = vpack.c.b16 %v2597, %v2593
    %v2650 = vpack.c.b16 %v2598, %v2594
    %v2651 = vpack.c.b16 %v2599, %v2595
    %v2652 = vpack.c.b16 %v2604, %v2600
    %v2653 = vpack.c.b16 %v2605, %v2601
    %v2654 = vpack.c.b16 %v2606, %v2602
    %v2655 = vpack.c.b16 %v2607, %v2603
    %v2656 = vpack.c.b16 %v2612, %v2608
    %v2657 = vpack.c.b16 %v2613, %v2609
    %v2658 = vpack.c.b16 %v2614, %v2610
    %v2659 = vpack.c.b16 %v2615, %v2611
    %v2660 = vpack.c.b16 %v2620, %v2616
    %v2661 = vpack.c.b16 %v2621, %v2617
    %v2662 = vpack.c.b16 %v2622, %v2618
    %v2663 = vpack.c.b16 %v2623, %v2619
    %v2664 = vpack.c.b16 %v2628, %v2624
    %v2665 = vpack.c.b16 %v2629, %v2625
    %v2666 = vpack.c.b16 %v2630, %v2626
    %v2667 = vpack.c.b16 %v2631, %v2627
    %v2668 = vpack.c.b16 %v2636, %v2632
    %v2669 = vpack.c.b16 %v2637, %v2633
    %v2670 = vpack.c.b16 %v2638, %v2634
    %v2671 = vpack.c.b16 %v2639, %v2635
    %2704 = vmatprep.subr.bf16.mxu0 %v2641
    %2705 = vmatpush1.bf16.msra.mxu0 %v2640
    %2706 = vmatprep.subr.bf16.mxu0 %v2645
    %2707 = vmatpush1.bf16.msra.mxu0 %v2644
    %2708 = vmatprep.subr.bf16.mxu0 %v2649
    %2709 = vmatpush1.bf16.msra.mxu0 %v2648
    %2710 = vmatprep.subr.bf16.mxu0 %v2653
    %2711 = vmatpush1.bf16.msra.mxu0 %v2652
    %2712 = vmatprep.subr.bf16.mxu0 %v2657
    %2713 = vmatpush1.bf16.msra.mxu0 %v2656
    %2714 = vmatprep.subr.bf16.mxu0 %v2661
    %2715 = vmatpush1.bf16.msra.mxu0 %v2660
    %2716 = vmatprep.subr.bf16.mxu0 %v2665
    %2717 = vmatpush1.bf16.msra.mxu0 %v2664
    %2718 = vmatprep.subr.bf16.mxu0 %v2669
    %2719 = vmatpush1.bf16.msra.mxu0 %v2668
    %2720 = vmatprep.subr.bf16.mxu0 0
    %2721 = vmatpush1.bf16.msra.mxu0 0
    %2722 = vmatprep.subr.bf16.mxu0 0
    %2723 = vmatpush1.bf16.msra.mxu0 0
    %2724 = vmatprep.subr.bf16.mxu0 0
    %2725 = vmatpush1.bf16.msra.mxu0 0
    %2726 = vmatprep.subr.bf16.mxu0 0
    %2727 = vmatpush1.bf16.msra.mxu0 0
    %2728 = vmatprep.subr.bf16.mxu0 0
    %2729 = vmatpush1.bf16.msra.mxu0 0
    %2730 = vmatprep.subr.bf16.mxu0 0
    %2731 = vmatpush1.bf16.msra.mxu0 0
    %2732 = vmatprep.subr.bf16.mxu0 0
    %2733 = vmatpush1.bf16.msra.mxu0 0
    %2734 = vmatprep.subr.bf16.mxu0 0
    %2735 = vmatpush1.bf16.msra.mxu0 0
    %2736 = vmatprep.mubr.bf16.mxu0 0
    %2737 = vmatmul.mubr.bf16.gmra.mrb[0].mxu0 0
    %v2738 = vpop.f32.mrb[0].mxu0
    %v2739 = vadd.f32 %v2517, %v2738
    %v2740 = vpop.f32.mrb[0].mxu0
    %v2741 = vadd.f32 %v2521, %v2740
    %v2742 = vpop.f32.mrb[0].mxu0
    %v2743 = vpop.f32.mrb[0].mxu0
    %2744 = vdwg.mxu0
    %2745 = vmatprep.subr.bf16.mxu0 %v2643
    %2746 = vmatpush1.bf16.msra.mxu0 %v2642
    %2747 = vmatprep.subr.bf16.mxu0 %v2647
    %2748 = vmatpush1.bf16.msra.mxu0 %v2646
    %2749 = vmatprep.subr.bf16.mxu0 %v2651
    %2750 = vmatpush1.bf16.msra.mxu0 %v2650
    %2751 = vmatprep.subr.bf16.mxu0 %v2655
    %2752 = vmatpush1.bf16.msra.mxu0 %v2654
    %2753 = vmatprep.subr.bf16.mxu0 %v2659
    %2754 = vmatpush1.bf16.msra.mxu0 %v2658
    %2755 = vmatprep.subr.bf16.mxu0 %v2663
    %2756 = vmatpush1.bf16.msra.mxu0 %v2662
    %2757 = vmatprep.subr.bf16.mxu0 %v2667
    %2758 = vmatpush1.bf16.msra.mxu0 %v2666
    %2759 = vmatprep.subr.bf16.mxu0 %v2671
    %2760 = vmatpush1.bf16.msra.mxu0 %v2670
    %2761 = vmatprep.subr.bf16.mxu0 0
    %2762 = vmatpush1.bf16.msra.mxu0 0
    %2763 = vmatprep.subr.bf16.mxu0 0
    %2764 = vmatpush1.bf16.msra.mxu0 0
    %2765 = vmatprep.subr.bf16.mxu0 0
    %2766 = vmatpush1.bf16.msra.mxu0 0
    %2767 = vmatprep.subr.bf16.mxu0 0
    %2768 = vmatpush1.bf16.msra.mxu0 0
    %2769 = vmatprep.subr.bf16.mxu0 0
    %2770 = vmatpush1.bf16.msra.mxu0 0
    %2771 = vmatprep.subr.bf16.mxu0 0
    %2772 = vmatpush1.bf16.msra.mxu0 0
    %2773 = vmatprep.subr.bf16.mxu0 0
    %2774 = vmatpush1.bf16.msra.mxu0 0
    %2775 = vmatprep.subr.bf16.mxu0 0
    %2776 = vmatpush1.bf16.msra.mxu0 0
    %2777 = vmatprep.mubr.bf16.mxu0 0
    %2778 = vmatmul.mubr.bf16.gmra.mrb[0].mxu0 0
    %v2779 = vpop.f32.mrb[0].mxu0
    %v2780 = vadd.f32 %v2525, %v2779
    %v2781 = vpop.f32.mrb[0].mxu0
    %v2782 = vpop.f32.mrb[0].mxu0
    %v2783 = vpop.f32.mrb[0].mxu0
    %2784 = vdwg.mxu0
    %s2785 = smul.u32 1, 3
    %s2786 = smul.addr %s2785, 8
    %s2787 = scalar_lea.vmem [#allocation2], %s2786
    %v2788 = vld [vmem:[%s2787] sm:$0xff]
    %v2789 = vld [vmem:[%s2787 + $0x8] sm:$0xff]
    %v2790 = vld [vmem:[%s2787 + $0x10] sm:$0xff]
    %v2791 = vadd.f32 %v2788, %v2425
    %v2792 = vxor.u32 %v2791, 2147483648
    %v2793 = vmul.f32 %v2792, 1.442695
    %v2794 = vpow.pop %v2793
    %v2795 = vadd.f32 %v2794, 1.0
    %v2796 = vrcp.pop %v2795
    %v2797 = vmul.f32 1.0, %v2796
    %v2798 = vadd.f32 %v2789, %v2427
    %v2799 = vxor.u32 %v2798, 2147483648
    %v2800 = vmul.f32 %v2799, 1.442695
    %v2801 = vpow.pop %v2800
    %v2802 = vadd.f32 %v2801, 1.0
    %v2803 = vrcp.pop %v2802
    %v2804 = vmul.f32 1.0, %v2803
    %v2805 = vmul.f32 %v2797, %v2466
    %v2806 = vadd.f32 %v2790, %v2805
    %v2807 = vtanh.pop %v2806
    %v2808 = vsub.f32 1.0, %v2804
    %v2809 = vmul.f32 %v2808, %v2807
    %v2810 = vmul.f32 %v2804, %v2308
    %v2811 = vadd.f32 %v2809, %v2810
    %v2812 = vadd.f32 %v2468, %v2739
    %v2813 = vxor.u32 %v2812, 2147483648
    %v2814 = vmul.f32 %v2813, 1.442695
    %v2815 = vpow.pop %v2814
    %v2816 = vadd.f32 %v2815, 1.0
    %v2817 = vrcp.pop %v2816
    %v2818 = vmul.f32 1.0, %v2817
    %v2819 = vadd.f32 %v2507, %v2741
    %v2820 = vxor.u32 %v2819, 2147483648
    %v2821 = vmul.f32 %v2820, 1.442695
    %v2822 = vpow.pop %v2821
    %v2823 = vadd.f32 %v2822, 1.0
    %v2824 = vrcp.pop %v2823
    %v2825 = vmul.f32 1.0, %v2824
    %v2826 = vmul.f32 %v2818, %v2780
    %v2827 = vadd.f32 %v2509, %v2826
    %v2828 = vtanh.pop %v2827
    %v2829 = vsub.f32 1.0, %v2825
    %v2830 = vmul.f32 %v2829, %v2828
    %v2831 = vmul.f32 %v2825, 0.0
    %v2832 = vadd.f32 %v2830, %v2831
    %v2833 = vpack.c.bf16 %v2811, %v2811
    %v2834 = vpack.c.bf16 %v2832, %v2832
    %2835 = vmatprep.subr.bf16.mxu0 %v2138
    %2836 = vmatpush1.bf16.msra.mxu0 %v2137
    %2837 = vmatprep.subr.bf16.mxu0 %v2142
    %2838 = vmatpush1.bf16.msra.mxu0 %v2141
    %2839 = vmatprep.subr.bf16.mxu0 %v2146
    %2840 = vmatpush1.bf16.msra.mxu0 %v2145
    %2841 = vmatprep.subr.bf16.mxu0 %v2150
    %2842 = vmatpush1.bf16.msra.mxu0 %v2149
    %2843 = vmatprep.subr.bf16.mxu0 %v2154
    %2844 = vmatpush1.bf16.msra.mxu0 %v2153
    %2845 = vmatprep.subr.bf16.mxu0 %v2158
    %2846 = vmatpush1.bf16.msra.mxu0 %v2157
    %2847 = vmatprep.subr.bf16.mxu0 %v2162
    %2848 = vmatpush1.bf16.msra.mxu0 %v2161
    %2849 = vmatprep.subr.bf16.mxu0 %v2166
    %2850 = vmatpush1.bf16.msra.mxu0 %v2165
    %2851 = vmatprep.subr.bf16.mxu0 0
    %2852 = vmatpush1.bf16.msra.mxu0 0
    %2853 = vmatprep.subr.bf16.mxu0 0
    %2854 = vmatpush1.bf16.msra.mxu0 0
    %2855 = vmatprep.subr.bf16.mxu0 0
    %2856 = vmatpush1.bf16.msra.mxu0 0
    %2857 = vmatprep.subr.bf16.mxu0 0
    %2858 = vmatpush1.bf16.msra.mxu0 0
    %2859 = vmatprep.subr.bf16.mxu0 0
    %2860 = vmatpush1.bf16.msra.mxu0 0
    %2861 = vmatprep.subr.bf16.mxu0 0
    %2862 = vmatpush1.bf16.msra.mxu0 0
    %2863 = vmatprep.subr.bf16.mxu0 0
    %2864 = vmatpush1.bf16.msra.mxu0 0
    %2865 = vmatprep.subr.bf16.mxu0 0
    %2866 = vmatpush1.bf16.msra.mxu0 0
    %2867 = vmatprep.mubr.bf16.mxu0 0
    %2868 = vmatmul.mubr.bf16.gmra.mrb[0].mxu0 %v2833
    %v2869 = vpop.f32.mrb[0].mxu0
    %v2870 = vadd.f32 %v2014, %v2869
    %v2871 = vpop.f32.mrb[0].mxu0
    %v2872 = vadd.f32 %v2018, %v2871
    %v2873 = vpop.f32.mrb[0].mxu0
    %v2874 = vpop.f32.mrb[0].mxu0
    %2875 = vdwg.mxu0
    %2876 = vmatprep.subr.bf16.mxu0 %v2140
    %2877 = vmatpush1.bf16.msra.mxu0 %v2139
    %2878 = vmatprep.subr.bf16.mxu0 %v2144
    %2879 = vmatpush1.bf16.msra.mxu0 %v2143
    %2880 = vmatprep.subr.bf16.mxu0 %v2148
    %2881 = vmatpush1.bf16.msra.mxu0 %v2147
    %2882 = vmatprep.subr.bf16.mxu0 %v2152
    %2883 = vmatpush1.bf16.msra.mxu0 %v2151
    %2884 = vmatprep.subr.bf16.mxu0 %v2156
    %2885 = vmatpush1.bf16.msra.mxu0 %v2155
    %2886 = vmatprep.subr.bf16.mxu0 %v2160
    %2887 = vmatpush1.bf16.msra.mxu0 %v2159
    %2888 = vmatprep.subr.bf16.mxu0 %v2164
    %2889 = vmatpush1.bf16.msra.mxu0 %v2163
    %2890 = vmatprep.subr.bf16.mxu0 %v2168
    %2891 = vmatpush1.bf16.msra.mxu0 %v2167
    %2892 = vmatprep.subr.bf16.mxu0 0
    %2893 = vmatpush1.bf16.msra.mxu0 0
    %2894 = vmatprep.subr.bf16.mxu0 0
    %2895 = vmatpush1.bf16.msra.mxu0 0
    %2896 = vmatprep.subr.bf16.mxu0 0
    %2897 = vmatpush1.bf16.msra.mxu0 0
    %2898 = vmatprep.subr.bf16.mxu0 0
    %2899 = vmatpush1.bf16.msra.mxu0 0
    %2900 = vmatprep.subr.bf16.mxu0 0
    %2901 = vmatpush1.bf16.msra.mxu0 0
    %2902 = vmatprep.subr.bf16.mxu0 0
    %2903 = vmatpush1.bf16.msra.mxu0 0
    %2904 = vmatprep.subr.bf16.mxu0 0
    %2905 = vmatpush1.bf16.msra.mxu0 0
    %2906 = vmatprep.subr.bf16.mxu0 0
    %2907 = vmatpush1.bf16.msra.mxu0 0
    %2908 = vmatprep.mubr.bf16.mxu0 0
    %2909 = vmatmul.mubr.bf16.gmra.mrb[0].mxu0 %v2833
    %v2910 = vpop.f32.mrb[0].mxu0
    %v2911 = vadd.f32 %v2022, %v2910
    %v2912 = vpop.f32.mrb[0].mxu0
    %v2913 = vadd.f32 %v2026, %v2912
    %v2914 = vpop.f32.mrb[0].mxu0
    %v2915 = vpop.f32.mrb[0].mxu0
    %2916 = vdwg.mxu0
    %2917 = vmatprep.subr.bf16.mxu0 %v2359
    %2918 = vmatpush1.bf16.msra.mxu0 %v2358
    %2919 = vmatprep.subr.bf16.mxu0 %v2361
    %2920 = vmatpush1.bf16.msra.mxu0 %v2360
    %2921 = vmatprep.subr.bf16.mxu0 %v2363
    %2922 = vmatpush1.bf16.msra.mxu0 %v2362
    %2923 = vmatprep.subr.bf16.mxu0 %v2365
    %2924 = vmatpush1.bf16.msra.mxu0 %v2364
    %2925 = vmatprep.subr.bf16.mxu0 %v2367
    %2926 = vmatpush1.bf16.msra.mxu0 %v2366
    %2927 = vmatprep.subr.bf16.mxu0 %v2369
    %2928 = vmatpush1.bf16.msra.mxu0 %v2368
    %2929 = vmatprep.subr.bf16.mxu0 %v2371
    %2930 = vmatpush1.bf16.msra.mxu0 %v2370
    %2931 = vmatprep.subr.bf16.mxu0 %v2373
    %2932 = vmatpush1.bf16.msra.mxu0 %v2372
    %2933 = vmatprep.subr.bf16.mxu0 0
    %2934 = vmatpush1.bf16.msra.mxu0 0
    %2935 = vmatprep.subr.bf16.mxu0 0
    %2936 = vmatpush1.bf16.msra.mxu0 0
    %2937 = vmatprep.subr.bf16.mxu0 0
    %2938 = vmatpush1.bf16.msra.mxu0 0
    %2939 = vmatprep.subr.bf16.mxu0 0
    %2940 = vmatpush1.bf16.msra.mxu0 0
    %2941 = vmatprep.subr.bf16.mxu0 0
    %2942 = vmatpush1.bf16.msra.mxu0 0
    %2943 = vmatprep.subr.bf16.mxu0 0
    %2944 = vmatpush1.bf16.msra.mxu0 0
    %2945 = vmatprep.subr.bf16.mxu0 0
    %2946 = vmatpush1.bf16.msra.mxu0 0
    %2947 = vmatprep.subr.bf16.mxu0 0
    %2948 = vmatpush1.bf16.msra.mxu0 0
    %2949 = vmatprep.mubr.bf16.mxu0 0
    %2950 = vmatmul.mubr.bf16.gmra.mrb[0].mxu0 %v2833
    %v2951 = vpop.f32.mrb[0].mxu0
    %v2952 = vadd.f32 %v2030, %v2951
    %v2953 = vpop.f32.mrb[0].mxu0
    %v2954 = vadd.f32 %v2034, %v2953
    %v2955 = vpop.f32.mrb[0].mxu0
    %v2956 = vpop.f32.mrb[0].mxu0
    %2957 = vdwg.mxu0
    %v2974 = vunpack.c.l.b16 %v1930
    %v2975 = vunpack.c.h.b16 %v1930
    %v2976 = vunpack.c.l.b16 %v1933
    %v2977 = vunpack.c.h.b16 %v1933
    %v2978 = vunpack.c.l.b16 %v1936
    %v2979 = vunpack.c.h.b16 %v1936
    %v2980 = vunpack.c.l.b16 %v1939
    %v2981 = vunpack.c.h.b16 %v1939
    %v2982 = vunpack.c.l.b16 %v1942
    %v2983 = vunpack.c.h.b16 %v1942
    %v2984 = vunpack.c.l.b16 %v1945
    %v2985 = vunpack.c.h.b16 %v1945
    %v2986 = vunpack.c.l.b16 %v1948
    %v2987 = vunpack.c.h.b16 %v1948
    %v2988 = vunpack.c.l.b16 %v1951
    %v2989 = vunpack.c.h.b16 %v1951
    %v2990 = vunpack.c.l.b16 %v1954
    %v2991 = vunpack.c.h.b16 %v1954
    %v2992 = vunpack.c.l.b16 %v1957
    %v2993 = vunpack.c.h.b16 %v1957
    %v2994 = vunpack.c.l.b16 %v1960
    %v2995 = vunpack.c.h.b16 %v1960
    %v2996 = vunpack.c.l.b16 %v1963
    %v2997 = vunpack.c.h.b16 %v1963
    %v2998 = vunpack.c.l.b16 %v1966
    %v2999 = vunpack.c.h.b16 %v1966
    %v3000 = vunpack.c.l.b16 %v1969
    %v3001 = vunpack.c.h.b16 %v1969
    %v3002 = vunpack.c.l.b16 %v1972
    %v3003 = vunpack.c.h.b16 %v1972
    %v3004 = vunpack.c.l.b16 %v1975
    %v3005 = vunpack.c.h.b16 %v1975
    %v3006 = vpack.c.b16 %v2976, %v2974
    %v3007 = vpack.c.b16 %v2977, %v2975
    %v3008 = vpack.c.b16 %v2980, %v2978
    %v3009 = vpack.c.b16 %v2981, %v2979
    %v3010 = vpack.c.b16 %v2984, %v2982
    %v3011 = vpack.c.b16 %v2985, %v2983
    %v3012 = vpack.c.b16 %v2988, %v2986
    %v3013 = vpack.c.b16 %v2989, %v2987
    %v3014 = vpack.c.b16 %v2992, %v2990
    %v3015 = vpack.c.b16 %v2993, %v2991
    %v3016 = vpack.c.b16 %v2996, %v2994
    %v3017 = vpack.c.b16 %v2997, %v2995
    %v3018 = vpack.c.b16 %v3000, %v2998
    %v3019 = vpack.c.b16 %v3001, %v2999
    %v3020 = vpack.c.b16 %v3004, %v3002
    %v3021 = vpack.c.b16 %v3005, %v3003
    %3038 = vmatprep.subr.bf16.mxu0 %v2641
    %3039 = vmatpush1.bf16.msra.mxu0 %v2640
    %3040 = vmatprep.subr.bf16.mxu0 %v2645
    %3041 = vmatpush1.bf16.msra.mxu0 %v2644
    %3042 = vmatprep.subr.bf16.mxu0 %v2649
    %3043 = vmatpush1.bf16.msra.mxu0 %v2648
    %3044 = vmatprep.subr.bf16.mxu0 %v2653
    %3045 = vmatpush1.bf16.msra.mxu0 %v2652
    %3046 = vmatprep.subr.bf16.mxu0 %v2657
    %3047 = vmatpush1.bf16.msra.mxu0 %v2656
    %3048 = vmatprep.subr.bf16.mxu0 %v2661
    %3049 = vmatpush1.bf16.msra.mxu0 %v2660
    %3050 = vmatprep.subr.bf16.mxu0 %v2665
    %3051 = vmatpush1.bf16.msra.mxu0 %v2664
    %3052 = vmatprep.subr.bf16.mxu0 %v2669
    %3053 = vmatpush1.bf16.msra.mxu0 %v2668
    %3054 = vmatprep.subr.bf16.mxu0 0
    %3055 = vmatpush1.bf16.msra.mxu0 0
    %3056 = vmatprep.subr.bf16.mxu0 0
    %3057 = vmatpush1.bf16.msra.mxu0 0
    %3058 = vmatprep.subr.bf16.mxu0 0
    %3059 = vmatpush1.bf16.msra.mxu0 0
    %3060 = vmatprep.subr.bf16.mxu0 0
    %3061 = vmatpush1.bf16.msra.mxu0 0
    %3062 = vmatprep.subr.bf16.mxu0 0
    %3063 = vmatpush1.bf16.msra.mxu0 0
    %3064 = vmatprep.subr.bf16.mxu0 0
    %3065 = vmatpush1.bf16.msra.mxu0 0
    %3066 = vmatprep.subr.bf16.mxu0 0
    %3067 = vmatpush1.bf16.msra.mxu0 0
    %3068 = vmatprep.subr.bf16.mxu0 0
    %3069 = vmatpush1.bf16.msra.mxu0 0
    %3070 = vmatprep.mubr.bf16.mxu0 0
    %3071 = vmatmul.mubr.bf16.gmra.mrb[0].mxu0 %v2834
    %v3072 = vpop.f32.mrb[0].mxu0
    %v3073 = vadd.f32 %v2517, %v3072
    %v3074 = vpop.f32.mrb[0].mxu0
    %v3075 = vadd.f32 %v2521, %v3074
    %v3076 = vpop.f32.mrb[0].mxu0
    %v3077 = vpop.f32.mrb[0].mxu0
    %3078 = vdwg.mxu0
    %3079 = vmatprep.subr.bf16.mxu0 %v2643
    %3080 = vmatpush1.bf16.msra.mxu0 %v2642
    %3081 = vmatprep.subr.bf16.mxu0 %v2647
    %3082 = vmatpush1.bf16.msra.mxu0 %v2646
    %3083 = vmatprep.subr.bf16.mxu0 %v2651
    %3084 = vmatpush1.bf16.msra.mxu0 %v2650
    %3085 = vmatprep.subr.bf16.mxu0 %v2655
    %3086 = vmatpush1.bf16.msra.mxu0 %v2654
    %3087 = vmatprep.subr.bf16.mxu0 %v2659
    %3088 = vmatpush1.bf16.msra.mxu0 %v2658
    %3089 = vmatprep.subr.bf16.mxu0 %v2663
    %3090 = vmatpush1.bf16.msra.mxu0 %v2662
    %3091 = vmatprep.subr.bf16.mxu0 %v2667
    %3092 = vmatpush1.bf16.msra.mxu0 %v2666
    %3093 = vmatprep.subr.bf16.mxu0 %v2671
    %3094 = vmatpush1.bf16.msra.mxu0 %v2670
    %3095 = vmatprep.subr.bf16.mxu0 0
    %3096 = vmatpush1.bf16.msra.mxu0 0
    %3097 = vmatprep.subr.bf16.mxu0 0
    %3098 = vmatpush1.bf16.msra.mxu0 0
    %3099 = vmatprep.subr.bf16.mxu0 0
    %3100 = vmatpush1.bf16.msra.mxu0 0
    %3101 = vmatprep.subr.bf16.mxu0 0
    %3102 = vmatpush1.bf16.msra.mxu0 0
    %3103 = vmatprep.subr.bf16.mxu0 0
    %3104 = vmatpush1.bf16.msra.mxu0 0
    %3105 = vmatprep.subr.bf16.mxu0 0
    %3106 = vmatpush1.bf16.msra.mxu0 0
    %3107 = vmatprep.subr.bf16.mxu0 0
    %3108 = vmatpush1.bf16.msra.mxu0 0
    %3109 = vmatprep.subr.bf16.mxu0 0
    %3110 = vmatpush1.bf16.msra.mxu0 0
    %3111 = vmatprep.mubr.bf16.mxu0 0
    %3112 = vmatmul.mubr.bf16.gmra.mrb[0].mxu0 %v2834
    %v3113 = vpop.f32.mrb[0].mxu0
    %v3114 = vadd.f32 %v2525, %v3113
    %v3115 = vpop.f32.mrb[0].mxu0
    %v3116 = vadd.f32 %v2529, %v3115
    %v3117 = vpop.f32.mrb[0].mxu0
    %v3118 = vpop.f32.mrb[0].mxu0
    %3119 = vdwg.mxu0
    %3120 = vmatprep.subr.bf16.mxu0 %v3007
    %3121 = vmatpush1.bf16.msra.mxu0 %v3006
    %3122 = vmatprep.subr.bf16.mxu0 %v3009
    %3123 = vmatpush1.bf16.msra.mxu0 %v3008
    %3124 = vmatprep.subr.bf16.mxu0 %v3011
    %3125 = vmatpush1.bf16.msra.mxu0 %v3010
    %3126 = vmatprep.subr.bf16.mxu0 %v3013
    %3127 = vmatpush1.bf16.msra.mxu0 %v3012
    %3128 = vmatprep.subr.bf16.mxu0 %v3015
    %3129 = vmatpush1.bf16.msra.mxu0 %v3014
    %3130 = vmatprep.subr.bf16.mxu0 %v3017
    %3131 = vmatpush1.bf16.msra.mxu0 %v3016
    %3132 = vmatprep.subr.bf16.mxu0 %v3019
    %3133 = vmatpush1.bf16.msra.mxu0 %v3018
    %3134 = vmatprep.subr.bf16.mxu0 %v3021
    %3135 = vmatpush1.bf16.msra.mxu0 %v3020
    %3136 = vmatprep.subr.bf16.mxu0 0
    %3137 = vmatpush1.bf16.msra.mxu0 0
    %3138 = vmatprep.subr.bf16.mxu0 0
    %3139 = vmatpush1.bf16.msra.mxu0 0
    %3140 = vmatprep.subr.bf16.mxu0 0
    %3141 = vmatpush1.bf16.msra.mxu0 0
    %3142 = vmatprep.subr.bf16.mxu0 0
    %3143 = vmatpush1.bf16.msra.mxu0 0
    %3144 = vmatprep.subr.bf16.mxu0 0
    %3145 = vmatpush1.bf16.msra.mxu0 0
    %3146 = vmatprep.subr.bf16.mxu0 0
    %3147 = vmatpush1.bf16.msra.mxu0 0
    %3148 = vmatprep.subr.bf16.mxu0 0
    %3149 = vmatpush1.bf16.msra.mxu0 0
    %3150 = vmatprep.subr.bf16.mxu0 0
    %3151 = vmatpush1.bf16.msra.mxu0 0
    %3152 = vmatprep.mubr.bf16.mxu0 0
    %3153 = vmatmul.mubr.bf16.gmra.mrb[0].mxu0 %v2834
    %v3154 = vpop.f32.mrb[0].mxu0
    %v3155 = vadd.f32 %v2533, %v3154
    %v3156 = vpop.f32.mrb[0].mxu0
    %v3157 = vadd.f32 %v2537, %v3156
    %v3158 = vpop.f32.mrb[0].mxu0
    %v3159 = vpop.f32.mrb[0].mxu0
    %3160 = vdwg.mxu0
    %v3162 = vlaneseq
    %v3163 = vshrl.u32 %v3162, 7
    %v3164 = vsub.s32 0, %v3163
    %v3165 = vrot.slane %v2009, %v3164
    %v3166 = vlaneseq
    %v3167 = vshrl.u32 %v3166, 7
    %v3168 = vsub.s32 1, %v3167
    %v3169 = vrot.slane %v2009, %v3168
    %v3170 = vlaneseq
    %v3171 = vshrl.u32 %v3170, 7
    %v3172 = vsub.s32 2, %v3171
    %v3173 = vrot.slane %v2009, %v3172
    %v3209 = vunpack.c.l.b16 %v1977
    %v3210 = vunpack.c.h.b16 %v1977
    %v3211 = vunpack.c.l.b16 %v1978
    %v3212 = vunpack.c.l.b16 %v1979
    %v3213 = vunpack.c.h.b16 %v1979
    %v3214 = vunpack.c.l.b16 %v1980
    %v3215 = vunpack.c.l.b16 %v1981
    %v3216 = vunpack.c.h.b16 %v1981
    %v3217 = vunpack.c.l.b16 %v1982
    %v3218 = vunpack.c.l.b16 %v1983
    %v3219 = vunpack.c.h.b16 %v1983
    %v3220 = vunpack.c.l.b16 %v1984
    %v3221 = vunpack.c.l.b16 %v1985
    %v3222 = vunpack.c.h.b16 %v1985
    %v3223 = vunpack.c.l.b16 %v1986
    %v3224 = vunpack.c.l.b16 %v1987
    %v3225 = vunpack.c.h.b16 %v1987
    %v3226 = vunpack.c.l.b16 %v1988
    %v3227 = vunpack.c.l.b16 %v1989
    %v3228 = vunpack.c.h.b16 %v1989
    %v3229 = vunpack.c.l.b16 %v1990
    %v3230 = vunpack.c.l.b16 %v1991
    %v3231 = vunpack.c.h.b16 %v1991
    %v3232 = vunpack.c.l.b16 %v1992
    %v3233 = vunpack.c.l.b16 %v1993
    %v3234 = vunpack.c.h.b16 %v1993
    %v3235 = vunpack.c.l.b16 %v1994
    %v3236 = vunpack.c.l.b16 %v1995
    %v3237 = vunpack.c.h.b16 %v1995
    %v3238 = vunpack.c.l.b16 %v1996
    %v3239 = vunpack.c.l.b16 %v1997
    %v3240 = vunpack.c.h.b16 %v1997
    %v3241 = vunpack.c.l.b16 %v1998
    %v3242 = vunpack.c.l.b16 %v1999
    %v3243 = vunpack.c.h.b16 %v1999
    %v3244 = vunpack.c.l.b16 %v2000
    %v3245 = vunpack.c.l.b16 %v2001
    %v3246 = vunpack.c.h.b16 %v2001
    %v3247 = vunpack.c.l.b16 %v2002
    %v3248 = vunpack.c.l.b16 %v2003
    %v3249 = vunpack.c.h.b16 %v2003
    %v3250 = vunpack.c.l.b16 %v2004
    %v3251 = vunpack.c.l.b16 %v2005
    %v3252 = vunpack.c.h.b16 %v2005
    %v3253 = vunpack.c.l.b16 %v2006
    %v3254 = vunpack.c.l.b16 %v2007
    %v3255 = vunpack.c.h.b16 %v2007
    %v3256 = vunpack.c.l.b16 %v2008
    %v3257 = vpack.c.b16 %v3212, %v3209
    %v3258 = vpack.c.b16 %v3213, %v3210
    %v3259 = vpack.c.b16 %v3214, %v3211
    %v3260 = vpack.c.b16 %v3218, %v3215
    %v3261 = vpack.c.b16 %v3219, %v3216
    %v3262 = vpack.c.b16 %v3220, %v3217
    %v3263 = vpack.c.b16 %v3224, %v3221
    %v3264 = vpack.c.b16 %v3225, %v3222
    %v3265 = vpack.c.b16 %v3226, %v3223
    %v3266 = vpack.c.b16 %v3230, %v3227
    %v3267 = vpack.c.b16 %v3231, %v3228
    %v3268 = vpack.c.b16 %v3232, %v3229
    %v3269 = vpack.c.b16 %v3236, %v3233
    %v3270 = vpack.c.b16 %v3237, %v3234
    %v3271 = vpack.c.b16 %v3238, %v3235
    %v3272 = vpack.c.b16 %v3242, %v3239
    %v3273 = vpack.c.b16 %v3243, %v3240
    %v3274 = vpack.c.b16 %v3244, %v3241
    %v3275 = vpack.c.b16 %v3248, %v3245
    %v3276 = vpack.c.b16 %v3249, %v3246
    %v3277 = vpack.c.b16 %v3250, %v3247
    %v3278 = vpack.c.b16 %v3254, %v3251
    %v3279 = vpack.c.b16 %v3255, %v3252
    %v3280 = vpack.c.b16 %v3256, %v3253
    %3305 = vmatprep.subr.bf16.mxu0 %v3258
    %3306 = vmatpush1.bf16.msra.mxu0 %v3257
    %3307 = vmatprep.subr.bf16.mxu0 %v3261
    %3308 = vmatpush1.bf16.msra.mxu0 %v3260
    %3309 = vmatprep.subr.bf16.mxu0 %v3264
    %3310 = vmatpush1.bf16.msra.mxu0 %v3263
    %3311 = vmatprep.subr.bf16.mxu0 %v3267
    %3312 = vmatpush1.bf16.msra.mxu0 %v3266
    %3313 = vmatprep.subr.bf16.mxu0 %v3270
    %3314 = vmatpush1.bf16.msra.mxu0 %v3269
    %3315 = vmatprep.subr.bf16.mxu0 %v3273
    %3316 = vmatpush1.bf16.msra.mxu0 %v3272
    %3317 = vmatprep.subr.bf16.mxu0 %v3276
    %3318 = vmatpush1.bf16.msra.mxu0 %v3275
    %3319 = vmatprep.subr.bf16.mxu0 %v3279
    %3320 = vmatpush1.bf16.msra.mxu0 %v3278
    %3321 = vmatprep.subr.bf16.mxu0 0
    %3322 = vmatpush1.bf16.msra.mxu0 0
    %3323 = vmatprep.subr.bf16.mxu0 0
    %3324 = vmatpush1.bf16.msra.mxu0 0
    %3325 = vmatprep.subr.bf16.mxu0 0
    %3326 = vmatpush1.bf16.msra.mxu0 0
    %3327 = vmatprep.subr.bf16.mxu0 0
    %3328 = vmatpush1.bf16.msra.mxu0 0
    %3329 = vmatprep.subr.bf16.mxu0 0
    %3330 = vmatpush1.bf16.msra.mxu0 0
    %3331 = vmatprep.subr.bf16.mxu0 0
    %3332 = vmatpush1.bf16.msra.mxu0 0
    %3333 = vmatprep.subr.bf16.mxu0 0
    %3334 = vmatpush1.bf16.msra.mxu0 0
    %3335 = vmatprep.subr.bf16.mxu0 0
    %3336 = vmatpush1.bf16.msra.mxu0 0
    %3337 = vmatprep.mubr.bf16.mxu0 0
    %3338 = vmatmul.mubr.bf16.gmra.mrb[0].mxu0 0
    %v3339 = vpop.f32.mrb[0].mxu0
    %v3340 = vadd.f32 %v3165, %v3339
    %v3341 = vpop.f32.mrb[0].mxu0
    %v3342 = vadd.f32 %v3169, %v3341
    %v3343 = vpop.f32.mrb[0].mxu0
    %v3344 = vpop.f32.mrb[0].mxu0
    %3345 = vdwg.mxu0
    %3346 = vmatprep.subr.bf16.mxu0 0
    %3347 = vmatpush1.bf16.msra.mxu0 %v3259
    %3348 = vmatprep.subr.bf16.mxu0 0
    %3349 = vmatpush1.bf16.msra.mxu0 %v3262
    %3350 = vmatprep.subr.bf16.mxu0 0
    %3351 = vmatpush1.bf16.msra.mxu0 %v3265
    %3352 = vmatprep.subr.bf16.mxu0 0
    %3353 = vmatpush1.bf16.msra.mxu0 %v3268
    %3354 = vmatprep.subr.bf16.mxu0 0
    %3355 = vmatpush1.bf16.msra.mxu0 %v3271
    %3356 = vmatprep.subr.bf16.mxu0 0
    %3357 = vmatpush1.bf16.msra.mxu0 %v3274
    %3358 = vmatprep.subr.bf16.mxu0 0
    %3359 = vmatpush1.bf16.msra.mxu0 %v3277
    %3360 = vmatprep.subr.bf16.mxu0 0
    %3361 = vmatpush1.bf16.msra.mxu0 %v3280
    %3362 = vmatprep.subr.bf16.mxu0 0
    %3363 = vmatpush1.bf16.msra.mxu0 0
    %3364 = vmatprep.subr.bf16.mxu0 0
    %3365 = vmatpush1.bf16.msra.mxu0 0
    %3366 = vmatprep.subr.bf16.mxu0 0
    %3367 = vmatpush1.bf16.msra.mxu0 0
    %3368 = vmatprep.subr.bf16.mxu0 0
    %3369 = vmatpush1.bf16.msra.mxu0 0
    %3370 = vmatprep.subr.bf16.mxu0 0
    %3371 = vmatpush1.bf16.msra.mxu0 0
    %3372 = vmatprep.subr.bf16.mxu0 0
    %3373 = vmatpush1.bf16.msra.mxu0 0
    %3374 = vmatprep.subr.bf16.mxu0 0
    %3375 = vmatpush1.bf16.msra.mxu0 0
    %3376 = vmatprep.subr.bf16.mxu0 0
    %3377 = vmatpush1.bf16.msra.mxu0 0
    %3378 = vmatprep.mubr.bf16.mxu0 0
    %3379 = vmatmul.mubr.bf16.gmra.mrb[0].mxu0 0
    %v3380 = vpop.f32.mrb[0].mxu0
    %v3381 = vadd.f32 %v3173, %v3380
    %v3382 = vpop.f32.mrb[0].mxu0
    %v3383 = vpop.f32.mrb[0].mxu0
    %v3384 = vpop.f32.mrb[0].mxu0
    %3385 = vdwg.mxu0
    %s3386 = smul.u32 2, 3
    %s3387 = smul.addr %s3386, 8
    %s3388 = scalar_lea.vmem [#allocation2], %s3387
    %v3389 = vld [vmem:[%s3388] sm:$0xff]
    %v3390 = vld [vmem:[%s3388 + $0x8] sm:$0xff]
    %v3391 = vld [vmem:[%s3388 + $0x10] sm:$0xff]
    %v3392 = vadd.f32 %v3389, %v2870
    %v3393 = vxor.u32 %v3392, 2147483648
    %v3394 = vmul.f32 %v3393, 1.442695
    %v3395 = vpow.pop %v3394
    %v3396 = vadd.f32 %v3395, 1.0
    %v3397 = vrcp.pop %v3396
    %v3398 = vmul.f32 1.0, %v3397
    %v3399 = vadd.f32 %v3390, %v2872
    %v3400 = vxor.u32 %v3399, 2147483648
    %v3401 = vmul.f32 %v3400, 1.442695
    %v3402 = vpow.pop %v3401
    %v3403 = vadd.f32 %v3402, 1.0
    %v3404 = vrcp.pop %v3403
    %v3405 = vmul.f32 1.0, %v3404
    %v3406 = vmul.f32 %v3398, %v2911
    %v3407 = vadd.f32 %v3391, %v3406
    %v3408 = vtanh.pop %v3407
    %v3409 = vsub.f32 1.0, %v3405
    %v3410 = vmul.f32 %v3409, %v3408
    %v3411 = vmul.f32 %v3405, %v2811
    %v3412 = vadd.f32 %v3410, %v3411
    %v3413 = vadd.f32 %v2913, %v3073
    %v3414 = vxor.u32 %v3413, 2147483648
    %v3415 = vmul.f32 %v3414, 1.442695
    %v3416 = vpow.pop %v3415
    %v3417 = vadd.f32 %v3416, 1.0
    %v3418 = vrcp.pop %v3417
    %v3419 = vmul.f32 1.0, %v3418
    %v3420 = vadd.f32 %v2952, %v3075
    %v3421 = vxor.u32 %v3420, 2147483648
    %v3422 = vmul.f32 %v3421, 1.442695
    %v3423 = vpow.pop %v3422
    %v3424 = vadd.f32 %v3423, 1.0
    %v3425 = vrcp.pop %v3424
    %v3426 = vmul.f32 1.0, %v3425
    %v3427 = vmul.f32 %v3419, %v3114
    %v3428 = vadd.f32 %v2954, %v3427
    %v3429 = vtanh.pop %v3428
    %v3430 = vsub.f32 1.0, %v3426
    %v3431 = vmul.f32 %v3430, %v3429
    %v3432 = vmul.f32 %v3426, %v2832
    %v3433 = vadd.f32 %v3431, %v3432
    %v3434 = vadd.f32 %v3116, %v3340
    %v3435 = vxor.u32 %v3434, 2147483648
    %v3436 = vmul.f32 %v3435, 1.442695
    %v3437 = vpow.pop %v3436
    %v3438 = vadd.f32 %v3437, 1.0
    %v3439 = vrcp.pop %v3438
    %v3440 = vmul.f32 1.0, %v3439
    %v3441 = vadd.f32 %v3155, %v3342
    %v3442 = vxor.u32 %v3441, 2147483648
    %v3443 = vmul.f32 %v3442, 1.442695
    %v3444 = vpow.pop %v3443
    %v3445 = vadd.f32 %v3444, 1.0
    %v3446 = vrcp.pop %v3445
    %v3447 = vmul.f32 1.0, %v3446
    %v3448 = vmul.f32 %v3440, %v3381
    %v3449 = vadd.f32 %v3157, %v3448
    %v3450 = vtanh.pop %v3449
    %v3451 = vsub.f32 1.0, %v3447
    %v3452 = vmul.f32 %v3451, %v3450
    %v3453 = vmul.f32 %v3447, 0.0
    %v3454 = vadd.f32 %v3452, %v3453
    %3455 = vst [vmem:[#allocation15] sm:$0xff] %v3454
    %v3456 = vpack.c.bf16 %v3412, %v3412
    %v3457 = vpack.c.bf16 %v3433, %v3433
    %v3458 = vpack.c.bf16 %v3454, %v3454
    %3459 = vmatprep.subr.bf16.mxu0 %v2138
    %3460 = vmatpush1.bf16.msra.mxu0 %v2137
    %3461 = vmatprep.subr.bf16.mxu0 %v2142
    %3462 = vmatpush1.bf16.msra.mxu0 %v2141
    %3463 = vmatprep.subr.bf16.mxu0 %v2146
    %3464 = vmatpush1.bf16.msra.mxu0 %v2145
    %3465 = vmatprep.subr.bf16.mxu0 %v2150
    %3466 = vmatpush1.bf16.msra.mxu0 %v2149
    %3467 = vmatprep.subr.bf16.mxu0 %v2154
    %3468 = vmatpush1.bf16.msra.mxu0 %v2153
    %3469 = vmatprep.subr.bf16.mxu0 %v2158
    %3470 = vmatpush1.bf16.msra.mxu0 %v2157
    %3471 = vmatprep.subr.bf16.mxu0 %v2162
    %3472 = vmatpush1.bf16.msra.mxu0 %v2161
    %3473 = vmatprep.subr.bf16.mxu0 %v2166
    %3474 = vmatpush1.bf16.msra.mxu0 %v2165
    %3475 = vmatprep.subr.bf16.mxu0 0
    %3476 = vmatpush1.bf16.msra.mxu0 0
    %3477 = vmatprep.subr.bf16.mxu0 0
    %3478 = vmatpush1.bf16.msra.mxu0 0
    %3479 = vmatprep.subr.bf16.mxu0 0
    %3480 = vmatpush1.bf16.msra.mxu0 0
    %3481 = vmatprep.subr.bf16.mxu0 0
    %3482 = vmatpush1.bf16.msra.mxu0 0
    %3483 = vmatprep.subr.bf16.mxu0 0
    %3484 = vmatpush1.bf16.msra.mxu0 0
    %3485 = vmatprep.subr.bf16.mxu0 0
    %3486 = vmatpush1.bf16.msra.mxu0 0
    %3487 = vmatprep.subr.bf16.mxu0 0
    %3488 = vmatpush1.bf16.msra.mxu0 0
    %3489 = vmatprep.subr.bf16.mxu0 0
    %3490 = vmatpush1.bf16.msra.mxu0 0
    %3491 = vmatprep.mubr.bf16.mxu0 0
    %3492 = vmatmul.mubr.bf16.gmra.mrb[0].mxu0 %v3456
    %v3493 = vpop.f32.mrb[0].mxu0
    %v3494 = vadd.f32 %v2014, %v3493
    %v3495 = vpop.f32.mrb[0].mxu0
    %v3496 = vadd.f32 %v2018, %v3495
    %v3497 = vpop.f32.mrb[0].mxu0
    %v3498 = vpop.f32.mrb[0].mxu0
    %3499 = vdwg.mxu0
    %3500 = vmatprep.subr.bf16.mxu0 %v2140
    %3501 = vmatpush1.bf16.msra.mxu0 %v2139
    %3502 = vmatprep.subr.bf16.mxu0 %v2144
    %3503 = vmatpush1.bf16.msra.mxu0 %v2143
    %3504 = vmatprep.subr.bf16.mxu0 %v2148
    %3505 = vmatpush1.bf16.msra.mxu0 %v2147
    %3506 = vmatprep.subr.bf16.mxu0 %v2152
    %3507 = vmatpush1.bf16.msra.mxu0 %v2151
    %3508 = vmatprep.subr.bf16.mxu0 %v2156
    %3509 = vmatpush1.bf16.msra.mxu0 %v2155
    %3510 = vmatprep.subr.bf16.mxu0 %v2160
    %3511 = vmatpush1.bf16.msra.mxu0 %v2159
    %3512 = vmatprep.subr.bf16.mxu0 %v2164
    %3513 = vmatpush1.bf16.msra.mxu0 %v2163
    %3514 = vmatprep.subr.bf16.mxu0 %v2168
    %3515 = vmatpush1.bf16.msra.mxu0 %v2167
    %3516 = vmatprep.subr.bf16.mxu0 0
    %3517 = vmatpush1.bf16.msra.mxu0 0
    %3518 = vmatprep.subr.bf16.mxu0 0
    %3519 = vmatpush1.bf16.msra.mxu0 0
    %3520 = vmatprep.subr.bf16.mxu0 0
    %3521 = vmatpush1.bf16.msra.mxu0 0
    %3522 = vmatprep.subr.bf16.mxu0 0
    %3523 = vmatpush1.bf16.msra.mxu0 0
    %3524 = vmatprep.subr.bf16.mxu0 0
    %3525 = vmatpush1.bf16.msra.mxu0 0
    %3526 = vmatprep.subr.bf16.mxu0 0
    %3527 = vmatpush1.bf16.msra.mxu0 0
    %3528 = vmatprep.subr.bf16.mxu0 0
    %3529 = vmatpush1.bf16.msra.mxu0 0
    %3530 = vmatprep.subr.bf16.mxu0 0
    %3531 = vmatpush1.bf16.msra.mxu0 0
    %3532 = vmatprep.mubr.bf16.mxu0 0
    %3533 = vmatmul.mubr.bf16.gmra.mrb[0].mxu0 %v3456
    %v3534 = vpop.f32.mrb[0].mxu0
    %v3535 = vadd.f32 %v2022, %v3534
    %v3536 = vpop.f32.mrb[0].mxu0
    %v3537 = vadd.f32 %v2026, %v3536
    %v3538 = vpop.f32.mrb[0].mxu0
    %v3539 = vpop.f32.mrb[0].mxu0
    %3540 = vdwg.mxu0
    %3541 = vmatprep.subr.bf16.mxu0 %v2359
    %3542 = vmatpush1.bf16.msra.mxu0 %v2358
    %3543 = vmatprep.subr.bf16.mxu0 %v2361
    %3544 = vmatpush1.bf16.msra.mxu0 %v2360
    %3545 = vmatprep.subr.bf16.mxu0 %v2363
    %3546 = vmatpush1.bf16.msra.mxu0 %v2362
    %3547 = vmatprep.subr.bf16.mxu0 %v2365
    %3548 = vmatpush1.bf16.msra.mxu0 %v2364
    %3549 = vmatprep.subr.bf16.mxu0 %v2367
    %3550 = vmatpush1.bf16.msra.mxu0 %v2366
    %3551 = vmatprep.subr.bf16.mxu0 %v2369
    %3552 = vmatpush1.bf16.msra.mxu0 %v2368
    %3553 = vmatprep.subr.bf16.mxu0 %v2371
    %3554 = vmatpush1.bf16.msra.mxu0 %v2370
    %3555 = vmatprep.subr.bf16.mxu0 %v2373
    %3556 = vmatpush1.bf16.msra.mxu0 %v2372
    %3557 = vmatprep.subr.bf16.mxu0 0
    %3558 = vmatpush1.bf16.msra.mxu0 0
    %3559 = vmatprep.subr.bf16.mxu0 0
    %3560 = vmatpush1.bf16.msra.mxu0 0
    %3561 = vmatprep.subr.bf16.mxu0 0
    %3562 = vmatpush1.bf16.msra.mxu0 0
    %3563 = vmatprep.subr.bf16.mxu0 0
    %3564 = vmatpush1.bf16.msra.mxu0 0
    %3565 = vmatprep.subr.bf16.mxu0 0
    %3566 = vmatpush1.bf16.msra.mxu0 0
    %3567 = vmatprep.subr.bf16.mxu0 0
    %3568 = vmatpush1.bf16.msra.mxu0 0
    %3569 = vmatprep.subr.bf16.mxu0 0
    %3570 = vmatpush1.bf16.msra.mxu0 0
    %3571 = vmatprep.subr.bf16.mxu0 0
    %3572 = vmatpush1.bf16.msra.mxu0 0
    %3573 = vmatprep.mubr.bf16.mxu0 0
    %3574 = vmatmul.mubr.bf16.gmra.mrb[0].mxu0 %v3456
    %v3575 = vpop.f32.mrb[0].mxu0
    %v3576 = vadd.f32 %v2030, %v3575
    %v3577 = vpop.f32.mrb[0].mxu0
    %v3578 = vadd.f32 %v2034, %v3577
    %v3579 = vpop.f32.mrb[0].mxu0
    %v3580 = vpop.f32.mrb[0].mxu0
    %3581 = vdwg.mxu0
    %3582 = vmatprep.subr.bf16.mxu0 %v2641
    %3583 = vmatpush1.bf16.msra.mxu0 %v2640
    %3584 = vmatprep.subr.bf16.mxu0 %v2645
    %3585 = vmatpush1.bf16.msra.mxu0 %v2644
    %3586 = vmatprep.subr.bf16.mxu0 %v2649
    %3587 = vmatpush1.bf16.msra.mxu0 %v2648
    %3588 = vmatprep.subr.bf16.mxu0 %v2653
    %3589 = vmatpush1.bf16.msra.mxu0 %v2652
    %3590 = vmatprep.subr.bf16.mxu0 %v2657
    %3591 = vmatpush1.bf16.msra.mxu0 %v2656
    %3592 = vmatprep.subr.bf16.mxu0 %v2661
    %3593 = vmatpush1.bf16.msra.mxu0 %v2660
    %3594 = vmatprep.subr.bf16.mxu0 %v2665
    %3595 = vmatpush1.bf16.msra.mxu0 %v2664
    %3596 = vmatprep.subr.bf16.mxu0 %v2669
    %3597 = vmatpush1.bf16.msra.mxu0 %v2668
    %3598 = vmatprep.subr.bf16.mxu0 0
    %3599 = vmatpush1.bf16.msra.mxu0 0
    %3600 = vmatprep.subr.bf16.mxu0 0
    %3601 = vmatpush1.bf16.msra.mxu0 0
    %3602 = vmatprep.subr.bf16.mxu0 0
    %3603 = vmatpush1.bf16.msra.mxu0 0
    %3604 = vmatprep.subr.bf16.mxu0 0
    %3605 = vmatpush1.bf16.msra.mxu0 0
    %3606 = vmatprep.subr.bf16.mxu0 0
    %3607 = vmatpush1.bf16.msra.mxu0 0
    %3608 = vmatprep.subr.bf16.mxu0 0
    %3609 = vmatpush1.bf16.msra.mxu0 0
    %3610 = vmatprep.subr.bf16.mxu0 0
    %3611 = vmatpush1.bf16.msra.mxu0 0
    %3612 = vmatprep.subr.bf16.mxu0 0
    %3613 = vmatpush1.bf16.msra.mxu0 0
    %3614 = vmatprep.mubr.bf16.mxu0 0
    %3615 = vmatmul.mubr.bf16.gmra.mrb[0].mxu0 %v3457
    %v3616 = vpop.f32.mrb[0].mxu0
    %v3617 = vadd.f32 %v2517, %v3616
    %v3618 = vpop.f32.mrb[0].mxu0
    %v3619 = vadd.f32 %v2521, %v3618
    %v3620 = vpop.f32.mrb[0].mxu0
    %v3621 = vpop.f32.mrb[0].mxu0
    %3622 = vdwg.mxu0
    %3623 = vmatprep.subr.bf16.mxu0 %v2643
    %3624 = vmatpush1.bf16.msra.mxu0 %v2642
    %3625 = vmatprep.subr.bf16.mxu0 %v2647
    %3626 = vmatpush1.bf16.msra.mxu0 %v2646
    %3627 = vmatprep.subr.bf16.mxu0 %v2651
    %3628 = vmatpush1.bf16.msra.mxu0 %v2650
    %3629 = vmatprep.subr.bf16.mxu0 %v2655
    %3630 = vmatpush1.bf16.msra.mxu0 %v2654
    %3631 = vmatprep.subr.bf16.mxu0 %v2659
    %3632 = vmatpush1.bf16.msra.mxu0 %v2658
    %3633 = vmatprep.subr.bf16.mxu0 %v2663
    %3634 = vmatpush1.bf16.msra.mxu0 %v2662
    %3635 = vmatprep.subr.bf16.mxu0 %v2667
    %3636 = vmatpush1.bf16.msra.mxu0 %v2666
    %3637 = vmatprep.subr.bf16.mxu0 %v2671
    %3638 = vmatpush1.bf16.msra.mxu0 %v2670
    %3639 = vmatprep.subr.bf16.mxu0 0
    %3640 = vmatpush1.bf16.msra.mxu0 0
    %3641 = vmatprep.subr.bf16.mxu0 0
    %3642 = vmatpush1.bf16.msra.mxu0 0
    %3643 = vmatprep.subr.bf16.mxu0 0
    %3644 = vmatpush1.bf16.msra.mxu0 0
    %3645 = vmatprep.subr.bf16.mxu0 0
    %3646 = vmatpush1.bf16.msra.mxu0 0
    %3647 = vmatprep.subr.bf16.mxu0 0
    %3648 = vmatpush1.bf16.msra.mxu0 0
    %3649 = vmatprep.subr.bf16.mxu0 0
    %3650 = vmatpush1.bf16.msra.mxu0 0
    %3651 = vmatprep.subr.bf16.mxu0 0
    %3652 = vmatpush1.bf16.msra.mxu0 0
    %3653 = vmatprep.subr.bf16.mxu0 0
    %3654 = vmatpush1.bf16.msra.mxu0 0
    %3655 = vmatprep.mubr.bf16.mxu0 0
    %3656 = vmatmul.mubr.bf16.gmra.mrb[0].mxu0 %v3457
    %v3657 = vpop.f32.mrb[0].mxu0
    %v3658 = vadd.f32 %v2525, %v3657
    %v3659 = vpop.f32.mrb[0].mxu0
    %v3660 = vadd.f32 %v2529, %v3659
    %v3661 = vpop.f32.mrb[0].mxu0
    %v3662 = vpop.f32.mrb[0].mxu0
    %3663 = vdwg.mxu0
    %3664 = vmatprep.subr.bf16.mxu0 %v3007
    %3665 = vmatpush1.bf16.msra.mxu0 %v3006
    %3666 = vmatprep.subr.bf16.mxu0 %v3009
    %3667 = vmatpush1.bf16.msra.mxu0 %v3008
    %3668 = vmatprep.subr.bf16.mxu0 %v3011
    %3669 = vmatpush1.bf16.msra.mxu0 %v3010
    %3670 = vmatprep.subr.bf16.mxu0 %v3013
    %3671 = vmatpush1.bf16.msra.mxu0 %v3012
    %3672 = vmatprep.subr.bf16.mxu0 %v3015
    %3673 = vmatpush1.bf16.msra.mxu0 %v3014
    %3674 = vmatprep.subr.bf16.mxu0 %v3017
    %3675 = vmatpush1.bf16.msra.mxu0 %v3016
    %3676 = vmatprep.subr.bf16.mxu0 %v3019
    %3677 = vmatpush1.bf16.msra.mxu0 %v3018
    %3678 = vmatprep.subr.bf16.mxu0 %v3021
    %3679 = vmatpush1.bf16.msra.mxu0 %v3020
    %3680 = vmatprep.subr.bf16.mxu0 0
    %3681 = vmatpush1.bf16.msra.mxu0 0
    %3682 = vmatprep.subr.bf16.mxu0 0
    %3683 = vmatpush1.bf16.msra.mxu0 0
    %3684 = vmatprep.subr.bf16.mxu0 0
    %3685 = vmatpush1.bf16.msra.mxu0 0
    %3686 = vmatprep.subr.bf16.mxu0 0
    %3687 = vmatpush1.bf16.msra.mxu0 0
    %3688 = vmatprep.subr.bf16.mxu0 0
    %3689 = vmatpush1.bf16.msra.mxu0 0
    %3690 = vmatprep.subr.bf16.mxu0 0
    %3691 = vmatpush1.bf16.msra.mxu0 0
    %3692 = vmatprep.subr.bf16.mxu0 0
    %3693 = vmatpush1.bf16.msra.mxu0 0
    %3694 = vmatprep.subr.bf16.mxu0 0
    %3695 = vmatpush1.bf16.msra.mxu0 0
    %3696 = vmatprep.mubr.bf16.mxu0 0
    %3697 = vmatmul.mubr.bf16.gmra.mrb[0].mxu0 %v3457
    %v3698 = vpop.f32.mrb[0].mxu0
    %v3699 = vadd.f32 %v2533, %v3698
    %v3700 = vpop.f32.mrb[0].mxu0
    %v3701 = vadd.f32 %v2537, %v3700
    %v3702 = vpop.f32.mrb[0].mxu0
    %v3703 = vpop.f32.mrb[0].mxu0
    %3704 = vdwg.mxu0
    %3705 = vmatprep.subr.bf16.mxu0 %v3258
    %3706 = vmatpush1.bf16.msra.mxu0 %v3257
    %3707 = vmatprep.subr.bf16.mxu0 %v3261
    %3708 = vmatpush1.bf16.msra.mxu0 %v3260
    %3709 = vmatprep.subr.bf16.mxu0 %v3264
    %3710 = vmatpush1.bf16.msra.mxu0 %v3263
    %3711 = vmatprep.subr.bf16.mxu0 %v3267
    %3712 = vmatpush1.bf16.msra.mxu0 %v3266
    %3713 = vmatprep.subr.bf16.mxu0 %v3270
    %3714 = vmatpush1.bf16.msra.mxu0 %v3269
    %3715 = vmatprep.subr.bf16.mxu0 %v3273
    %3716 = vmatpush1.bf16.msra.mxu0 %v3272
    %3717 = vmatprep.subr.bf16.mxu0 %v3276
    %3718 = vmatpush1.bf16.msra.mxu0 %v3275
    %3719 = vmatprep.subr.bf16.mxu0 %v3279
    %3720 = vmatpush1.bf16.msra.mxu0 %v3278
    %3721 = vmatprep.subr.bf16.mxu0 0
    %3722 = vmatpush1.bf16.msra.mxu0 0
    %3723 = vmatprep.subr.bf16.mxu0 0
    %3724 = vmatpush1.bf16.msra.mxu0 0
    %3725 = vmatprep.subr.bf16.mxu0 0
    %3726 = vmatpush1.bf16.msra.mxu0 0
    %3727 = vmatprep.subr.bf16.mxu0 0
    %3728 = vmatpush1.bf16.msra.mxu0 0
    %3729 = vmatprep.subr.bf16.mxu0 0
    %3730 = vmatpush1.bf16.msra.mxu0 0
    %3731 = vmatprep.subr.bf16.mxu0 0
    %3732 = vmatpush1.bf16.msra.mxu0 0
    %3733 = vmatprep.subr.bf16.mxu0 0
    %3734 = vmatpush1.bf16.msra.mxu0 0
    %3735 = vmatprep.subr.bf16.mxu0 0
    %3736 = vmatpush1.bf16.msra.mxu0 0
    %3737 = vmatprep.mubr.bf16.mxu0 0
    %3738 = vmatmul.mubr.bf16.gmra.mrb[0].mxu0 %v3458
    %v3739 = vpop.f32.mrb[0].mxu0
    %v3740 = vadd.f32 %v3165, %v3739
    %v3741 = vpop.f32.mrb[0].mxu0
    %v3742 = vadd.f32 %v3169, %v3741
    %v3743 = vpop.f32.mrb[0].mxu0
    %v3744 = vpop.f32.mrb[0].mxu0
    %3745 = vdwg.mxu0
    %3746 = vmatprep.subr.bf16.mxu0 0
    %3747 = vmatpush1.bf16.msra.mxu0 %v3259
    %3748 = vmatprep.subr.bf16.mxu0 0
    %3749 = vmatpush1.bf16.msra.mxu0 %v3262
    %3750 = vmatprep.subr.bf16.mxu0 0
    %3751 = vmatpush1.bf16.msra.mxu0 %v3265
    %3752 = vmatprep.subr.bf16.mxu0 0
    %3753 = vmatpush1.bf16.msra.mxu0 %v3268
    %3754 = vmatprep.subr.bf16.mxu0 0
    %3755 = vmatpush1.bf16.msra.mxu0 %v3271
    %3756 = vmatprep.subr.bf16.mxu0 0
    %3757 = vmatpush1.bf16.msra.mxu0 %v3274
    %3758 = vmatprep.subr.bf16.mxu0 0
    %3759 = vmatpush1.bf16.msra.mxu0 %v3277
    %3760 = vmatprep.subr.bf16.mxu0 0
    %3761 = vmatpush1.bf16.msra.mxu0 %v3280
    %3762 = vmatprep.subr.bf16.mxu0 0
    %3763 = vmatpush1.bf16.msra.mxu0 0
    %3764 = vmatprep.subr.bf16.mxu0 0
    %3765 = vmatpush1.bf16.msra.mxu0 0
    %3766 = vmatprep.subr.bf16.mxu0 0
    %3767 = vmatpush1.bf16.msra.mxu0 0
    %3768 = vmatprep.subr.bf16.mxu0 0
    %3769 = vmatpush1.bf16.msra.mxu0 0
    %3770 = vmatprep.subr.bf16.mxu0 0
    %3771 = vmatpush1.bf16.msra.mxu0 0
    %3772 = vmatprep.subr.bf16.mxu0 0
    %3773 = vmatpush1.bf16.msra.mxu0 0
    %3774 = vmatprep.subr.bf16.mxu0 0
    %3775 = vmatpush1.bf16.msra.mxu0 0
    %3776 = vmatprep.subr.bf16.mxu0 0
    %3777 = vmatpush1.bf16.msra.mxu0 0
    %3778 = vmatprep.mubr.bf16.mxu0 0
    %3779 = vmatmul.mubr.bf16.gmra.mrb[0].mxu0 %v3458
    %v3780 = vpop.f32.mrb[0].mxu0
    %v3781 = vadd.f32 %v3173, %v3780
    %v3782 = vpop.f32.mrb[0].mxu0
    %v3783 = vpop.f32.mrb[0].mxu0
    %v3784 = vpop.f32.mrb[0].mxu0
    %3785 = vdwg.mxu0
    %s3786 = smul.u32 3, 3
    %s3787 = smul.addr %s3786, 8
    %s3788 = scalar_lea.vmem [#allocation2], %s3787
    %v3789 = vld [vmem:[%s3788] sm:$0xff]
    %v3790 = vld [vmem:[%s3788 + $0x8] sm:$0xff]
    %v3791 = vld [vmem:[%s3788 + $0x10] sm:$0xff]
    %v3792 = vadd.f32 %v3789, %v3494
    %v3793 = vxor.u32 %v3792, 2147483648
    %v3794 = vmul.f32 %v3793, 1.442695
    %v3795 = vpow.pop %v3794
    %v3796 = vadd.f32 %v3795, 1.0
    %v3797 = vrcp.pop %v3796
    %v3798 = vmul.f32 1.0, %v3797
    %v3799 = vadd.f32 %v3790, %v3496
    %v3800 = vxor.u32 %v3799, 2147483648
    %v3801 = vmul.f32 %v3800, 1.442695
    %v3802 = vpow.pop %v3801
    %v3803 = vadd.f32 %v3802, 1.0
    %v3804 = vrcp.pop %v3803
    %v3805 = vmul.f32 1.0, %v3804
    %v3806 = vmul.f32 %v3798, %v3535
    %v3807 = vadd.f32 %v3791, %v3806
    %v3808 = vtanh.pop %v3807
    %v3809 = vsub.f32 1.0, %v3805
    %v3810 = vmul.f32 %v3809, %v3808
    %v3811 = vmul.f32 %v3805, %v3412
    %v3812 = vadd.f32 %v3810, %v3811
    %v3813 = vadd.f32 %v3537, %v3617
    %v3814 = vxor.u32 %v3813, 2147483648
    %v3815 = vmul.f32 %v3814, 1.442695
    %v3816 = vpow.pop %v3815
    %v3817 = vadd.f32 %v3816, 1.0
    %v3818 = vrcp.pop %v3817
    %v3819 = vmul.f32 1.0, %v3818
    %v3820 = vadd.f32 %v3576, %v3619
    %v3821 = vxor.u32 %v3820, 2147483648
    %v3822 = vmul.f32 %v3821, 1.442695
    %v3823 = vpow.pop %v3822
    %v3824 = vadd.f32 %v3823, 1.0
    %v3825 = vrcp.pop %v3824
    %v3826 = vmul.f32 1.0, %v3825
    %v3827 = vmul.f32 %v3819, %v3658
    %v3828 = vadd.f32 %v3578, %v3827
    %v3829 = vtanh.pop %v3828
    %v3830 = vsub.f32 1.0, %v3826
    %v3831 = vmul.f32 %v3830, %v3829
    %v3832 = vmul.f32 %v3826, %v3433
    %v3833 = vadd.f32 %v3831, %v3832
    %v3834 = vadd.f32 %v3660, %v3740
    %v3835 = vxor.u32 %v3834, 2147483648
    %v3836 = vmul.f32 %v3835, 1.442695
    %v3837 = vpow.pop %v3836
    %v3838 = vadd.f32 %v3837, 1.0
    %v3839 = vrcp.pop %v3838
    %v3840 = vmul.f32 1.0, %v3839
    %v3841 = vadd.f32 %v3699, %v3742
    %v3842 = vxor.u32 %v3841, 2147483648
    %v3843 = vmul.f32 %v3842, 1.442695
    %v3844 = vpow.pop %v3843
    %v3845 = vadd.f32 %v3844, 1.0
    %v3846 = vrcp.pop %v3845
    %v3847 = vmul.f32 1.0, %v3846
    %v3848 = vmul.f32 %v3840, %v3781
    %v3849 = vadd.f32 %v3701, %v3848
    %v3850 = vtanh.pop %v3849
    %v3851 = vsub.f32 1.0, %v3847
    %v3852 = vmul.f32 %v3851, %v3850
    %v3853 = vmul.f32 %v3847, %v3454
    %v3854 = vadd.f32 %v3852, %v3853
    %s3855 = scalar_lea.vmem [#allocation15], 8
    %3856 = vst [vmem:[%s3855] sm:$0xff] %v3854
    %v3857 = vpack.c.bf16 %v3812, %v3812
    %v3858 = vpack.c.bf16 %v3833, %v3833
    %v3859 = vpack.c.bf16 %v3854, %v3854
    %3860 = vmatprep.subr.bf16.mxu0 %v2138
    %3861 = vmatpush1.bf16.msra.mxu0 %v2137
    %3862 = vmatprep.subr.bf16.mxu0 %v2142
    %3863 = vmatpush1.bf16.msra.mxu0 %v2141
    %3864 = vmatprep.subr.bf16.mxu0 %v2146
    %3865 = vmatpush1.bf16.msra.mxu0 %v2145
    %3866 = vmatprep.subr.bf16.mxu0 %v2150
    %3867 = vmatpush1.bf16.msra.mxu0 %v2149
    %3868 = vmatprep.subr.bf16.mxu0 %v2154
    %3869 = vmatpush1.bf16.msra.mxu0 %v2153
    %3870 = vmatprep.subr.bf16.mxu0 %v2158
    %3871 = vmatpush1.bf16.msra.mxu0 %v2157
    %3872 = vmatprep.subr.bf16.mxu0 %v2162
    %3873 = vmatpush1.bf16.msra.mxu0 %v2161
    %3874 = vmatprep.subr.bf16.mxu0 %v2166
    %3875 = vmatpush1.bf16.msra.mxu0 %v2165
    %3876 = vmatprep.subr.bf16.mxu0 0
    %3877 = vmatpush1.bf16.msra.mxu0 0
    %3878 = vmatprep.subr.bf16.mxu0 0
    %3879 = vmatpush1.bf16.msra.mxu0 0
    %3880 = vmatprep.subr.bf16.mxu0 0
    %3881 = vmatpush1.bf16.msra.mxu0 0
    %3882 = vmatprep.subr.bf16.mxu0 0
    %3883 = vmatpush1.bf16.msra.mxu0 0
    %3884 = vmatprep.subr.bf16.mxu0 0
    %3885 = vmatpush1.bf16.msra.mxu0 0
    %3886 = vmatprep.subr.bf16.mxu0 0
    %3887 = vmatpush1.bf16.msra.mxu0 0
    %3888 = vmatprep.subr.bf16.mxu0 0
    %3889 = vmatpush1.bf16.msra.mxu0 0
    %3890 = vmatprep.subr.bf16.mxu0 0
    %3891 = vmatpush1.bf16.msra.mxu0 0
    %3892 = vmatprep.mubr.bf16.mxu0 0
    %3893 = vmatmul.mubr.bf16.gmra.mrb[0].mxu0 %v3857
    %v3894 = vpop.f32.mrb[0].mxu0
    %v3895 = vadd.f32 %v2014, %v3894
    %v3896 = vpop.f32.mrb[0].mxu0
    %v3897 = vadd.f32 %v2018, %v3896
    %v3898 = vpop.f32.mrb[0].mxu0
    %v3899 = vpop.f32.mrb[0].mxu0
    %3900 = vdwg.mxu0
    %3901 = vmatprep.subr.bf16.mxu0 %v2140
    %3902 = vmatpush1.bf16.msra.mxu0 %v2139
    %3903 = vmatprep.subr.bf16.mxu0 %v2144
    %3904 = vmatpush1.bf16.msra.mxu0 %v2143
    %3905 = vmatprep.subr.bf16.mxu0 %v2148
    %3906 = vmatpush1.bf16.msra.mxu0 %v2147
    %3907 = vmatprep.subr.bf16.mxu0 %v2152
    %3908 = vmatpush1.bf16.msra.mxu0 %v2151
    %3909 = vmatprep.subr.bf16.mxu0 %v2156
    %3910 = vmatpush1.bf16.msra.mxu0 %v2155
    %3911 = vmatprep.subr.bf16.mxu0 %v2160
    %3912 = vmatpush1.bf16.msra.mxu0 %v2159
    %3913 = vmatprep.subr.bf16.mxu0 %v2164
    %3914 = vmatpush1.bf16.msra.mxu0 %v2163
    %3915 = vmatprep.subr.bf16.mxu0 %v2168
    %3916 = vmatpush1.bf16.msra.mxu0 %v2167
    %3917 = vmatprep.subr.bf16.mxu0 0
    %3918 = vmatpush1.bf16.msra.mxu0 0
    %3919 = vmatprep.subr.bf16.mxu0 0
    %3920 = vmatpush1.bf16.msra.mxu0 0
    %3921 = vmatprep.subr.bf16.mxu0 0
    %3922 = vmatpush1.bf16.msra.mxu0 0
    %3923 = vmatprep.subr.bf16.mxu0 0
    %3924 = vmatpush1.bf16.msra.mxu0 0
    %3925 = vmatprep.subr.bf16.mxu0 0
    %3926 = vmatpush1.bf16.msra.mxu0 0
    %3927 = vmatprep.subr.bf16.mxu0 0
    %3928 = vmatpush1.bf16.msra.mxu0 0
    %3929 = vmatprep.subr.bf16.mxu0 0
    %3930 = vmatpush1.bf16.msra.mxu0 0
    %3931 = vmatprep.subr.bf16.mxu0 0
    %3932 = vmatpush1.bf16.msra.mxu0 0
    %3933 = vmatprep.mubr.bf16.mxu0 0
    %3934 = vmatmul.mubr.bf16.gmra.mrb[0].mxu0 %v3857
    %v3935 = vpop.f32.mrb[0].mxu0
    %v3936 = vadd.f32 %v2022, %v3935
    %v3937 = vpop.f32.mrb[0].mxu0
    %v3938 = vadd.f32 %v2026, %v3937
    %v3939 = vpop.f32.mrb[0].mxu0
    %v3940 = vpop.f32.mrb[0].mxu0
    %3941 = vdwg.mxu0
    %3942 = vmatprep.subr.bf16.mxu0 %v2359
    %3943 = vmatpush1.bf16.msra.mxu0 %v2358
    %3944 = vmatprep.subr.bf16.mxu0 %v2361
    %3945 = vmatpush1.bf16.msra.mxu0 %v2360
    %3946 = vmatprep.subr.bf16.mxu0 %v2363
    %3947 = vmatpush1.bf16.msra.mxu0 %v2362
    %3948 = vmatprep.subr.bf16.mxu0 %v2365
    %3949 = vmatpush1.bf16.msra.mxu0 %v2364
    %3950 = vmatprep.subr.bf16.mxu0 %v2367
    %3951 = vmatpush1.bf16.msra.mxu0 %v2366
    %3952 = vmatprep.subr.bf16.mxu0 %v2369
    %3953 = vmatpush1.bf16.msra.mxu0 %v2368
    %3954 = vmatprep.subr.bf16.mxu0 %v2371
    %3955 = vmatpush1.bf16.msra.mxu0 %v2370
    %3956 = vmatprep.subr.bf16.mxu0 %v2373
    %3957 = vmatpush1.bf16.msra.mxu0 %v2372
    %3958 = vmatprep.subr.bf16.mxu0 0
    %3959 = vmatpush1.bf16.msra.mxu0 0
    %3960 = vmatprep.subr.bf16.mxu0 0
    %3961 = vmatpush1.bf16.msra.mxu0 0
    %3962 = vmatprep.subr.bf16.mxu0 0
    %3963 = vmatpush1.bf16.msra.mxu0 0
    %3964 = vmatprep.subr.bf16.mxu0 0
    %3965 = vmatpush1.bf16.msra.mxu0 0
    %3966 = vmatprep.subr.bf16.mxu0 0
    %3967 = vmatpush1.bf16.msra.mxu0 0
    %3968 = vmatprep.subr.bf16.mxu0 0
    %3969 = vmatpush1.bf16.msra.mxu0 0
    %3970 = vmatprep.subr.bf16.mxu0 0
    %3971 = vmatpush1.bf16.msra.mxu0 0
    %3972 = vmatprep.subr.bf16.mxu0 0
    %3973 = vmatpush1.bf16.msra.mxu0 0
    %3974 = vmatprep.mubr.bf16.mxu0 0
    %3975 = vmatmul.mubr.bf16.gmra.mrb[0].mxu0 %v3857
    %v3976 = vpop.f32.mrb[0].mxu0
    %v3977 = vadd.f32 %v2030, %v3976
    %v3978 = vpop.f32.mrb[0].mxu0
    %v3979 = vadd.f32 %v2034, %v3978
    %v3980 = vpop.f32.mrb[0].mxu0
    %v3981 = vpop.f32.mrb[0].mxu0
    %3982 = vdwg.mxu0
    %3983 = vmatprep.subr.bf16.mxu0 %v2641
    %3984 = vmatpush1.bf16.msra.mxu0 %v2640
    %3985 = vmatprep.subr.bf16.mxu0 %v2645
    %3986 = vmatpush1.bf16.msra.mxu0 %v2644
    %3987 = vmatprep.subr.bf16.mxu0 %v2649
    %3988 = vmatpush1.bf16.msra.mxu0 %v2648
    %3989 = vmatprep.subr.bf16.mxu0 %v2653
    %3990 = vmatpush1.bf16.msra.mxu0 %v2652
    %3991 = vmatprep.subr.bf16.mxu0 %v2657
    %3992 = vmatpush1.bf16.msra.mxu0 %v2656
    %3993 = vmatprep.subr.bf16.mxu0 %v2661
    %3994 = vmatpush1.bf16.msra.mxu0 %v2660
    %3995 = vmatprep.subr.bf16.mxu0 %v2665
    %3996 = vmatpush1.bf16.msra.mxu0 %v2664
    %3997 = vmatprep.subr.bf16.mxu0 %v2669
    %3998 = vmatpush1.bf16.msra.mxu0 %v2668
    %3999 = vmatprep.subr.bf16.mxu0 0
    %4000 = vmatpush1.bf16.msra.mxu0 0
    %4001 = vmatprep.subr.bf16.mxu0 0
    %4002 = vmatpush1.bf16.msra.mxu0 0
    %4003 = vmatprep.subr.bf16.mxu0 0
    %4004 = vmatpush1.bf16.msra.mxu0 0
    %4005 = vmatprep.subr.bf16.mxu0 0
    %4006 = vmatpush1.bf16.msra.mxu0 0
    %4007 = vmatprep.subr.bf16.mxu0 0
    %4008 = vmatpush1.bf16.msra.mxu0 0
    %4009 = vmatprep.subr.bf16.mxu0 0
    %4010 = vmatpush1.bf16.msra.mxu0 0
    %4011 = vmatprep.subr.bf16.mxu0 0
    %4012 = vmatpush1.bf16.msra.mxu0 0
    %4013 = vmatprep.subr.bf16.mxu0 0
    %4014 = vmatpush1.bf16.msra.mxu0 0
    %4015 = vmatprep.mubr.bf16.mxu0 0
    %4016 = vmatmul.mubr.bf16.gmra.mrb[0].mxu0 %v3858
    %v4017 = vpop.f32.mrb[0].mxu0
    %v4018 = vadd.f32 %v2517, %v4017
    %v4019 = vpop.f32.mrb[0].mxu0
    %v4020 = vadd.f32 %v2521, %v4019
    %v4021 = vpop.f32.mrb[0].mxu0
    %v4022 = vpop.f32.mrb[0].mxu0
    %4023 = vdwg.mxu0
    %4024 = vmatprep.subr.bf16.mxu0 %v2643
    %4025 = vmatpush1.bf16.msra.mxu0 %v2642
    %4026 = vmatprep.subr.bf16.mxu0 %v2647
    %4027 = vmatpush1.bf16.msra.mxu0 %v2646
    %4028 = vmatprep.subr.bf16.mxu0 %v2651
    %4029 = vmatpush1.bf16.msra.mxu0 %v2650
    %4030 = vmatprep.subr.bf16.mxu0 %v2655
    %4031 = vmatpush1.bf16.msra.mxu0 %v2654
    %4032 = vmatprep.subr.bf16.mxu0 %v2659
    %4033 = vmatpush1.bf16.msra.mxu0 %v2658
    %4034 = vmatprep.subr.bf16.mxu0 %v2663
    %4035 = vmatpush1.bf16.msra.mxu0 %v2662
    %4036 = vmatprep.subr.bf16.mxu0 %v2667
    %4037 = vmatpush1.bf16.msra.mxu0 %v2666
    %4038 = vmatprep.subr.bf16.mxu0 %v2671
    %4039 = vmatpush1.bf16.msra.mxu0 %v2670
    %4040 = vmatprep.subr.bf16.mxu0 0
    %4041 = vmatpush1.bf16.msra.mxu0 0
    %4042 = vmatprep.subr.bf16.mxu0 0
    %4043 = vmatpush1.bf16.msra.mxu0 0
    %4044 = vmatprep.subr.bf16.mxu0 0
    %4045 = vmatpush1.bf16.msra.mxu0 0
    %4046 = vmatprep.subr.bf16.mxu0 0
    %4047 = vmatpush1.bf16.msra.mxu0 0
    %4048 = vmatprep.subr.bf16.mxu0 0
    %4049 = vmatpush1.bf16.msra.mxu0 0
    %4050 = vmatprep.subr.bf16.mxu0 0
    %4051 = vmatpush1.bf16.msra.mxu0 0
    %4052 = vmatprep.subr.bf16.mxu0 0
    %4053 = vmatpush1.bf16.msra.mxu0 0
    %4054 = vmatprep.subr.bf16.mxu0 0
    %4055 = vmatpush1.bf16.msra.mxu0 0
    %4056 = vmatprep.mubr.bf16.mxu0 0
    %4057 = vmatmul.mubr.bf16.gmra.mrb[0].mxu0 %v3858
    %v4058 = vpop.f32.mrb[0].mxu0
    %v4059 = vadd.f32 %v2525, %v4058
    %v4060 = vpop.f32.mrb[0].mxu0
    %v4061 = vadd.f32 %v2529, %v4060
    %v4062 = vpop.f32.mrb[0].mxu0
    %v4063 = vpop.f32.mrb[0].mxu0
    %4064 = vdwg.mxu0
    %4065 = vmatprep.subr.bf16.mxu0 %v3007
    %4066 = vmatpush1.bf16.msra.mxu0 %v3006
    %4067 = vmatprep.subr.bf16.mxu0 %v3009
    %4068 = vmatpush1.bf16.msra.mxu0 %v3008
    %4069 = vmatprep.subr.bf16.mxu0 %v3011
    %4070 = vmatpush1.bf16.msra.mxu0 %v3010
    %4071 = vmatprep.subr.bf16.mxu0 %v3013
    %4072 = vmatpush1.bf16.msra.mxu0 %v3012
    %4073 = vmatprep.subr.bf16.mxu0 %v3015
    %4074 = vmatpush1.bf16.msra.mxu0 %v3014
    %4075 = vmatprep.subr.bf16.mxu0 %v3017
    %4076 = vmatpush1.bf16.msra.mxu0 %v3016
    %4077 = vmatprep.subr.bf16.mxu0 %v3019
    %4078 = vmatpush1.bf16.msra.mxu0 %v3018
    %4079 = vmatprep.subr.bf16.mxu0 %v3021
    %4080 = vmatpush1.bf16.msra.mxu0 %v3020
    %4081 = vmatprep.subr.bf16.mxu0 0
    %4082 = vmatpush1.bf16.msra.mxu0 0
    %4083 = vmatprep.subr.bf16.mxu0 0
    %4084 = vmatpush1.bf16.msra.mxu0 0
    %4085 = vmatprep.subr.bf16.mxu0 0
    %4086 = vmatpush1.bf16.msra.mxu0 0
    %4087 = vmatprep.subr.bf16.mxu0 0
    %4088 = vmatpush1.bf16.msra.mxu0 0
    %4089 = vmatprep.subr.bf16.mxu0 0
    %4090 = vmatpush1.bf16.msra.mxu0 0
    %4091 = vmatprep.subr.bf16.mxu0 0
    %4092 = vmatpush1.bf16.msra.mxu0 0
    %4093 = vmatprep.subr.bf16.mxu0 0
    %4094 = vmatpush1.bf16.msra.mxu0 0
    %4095 = vmatprep.subr.bf16.mxu0 0
    %4096 = vmatpush1.bf16.msra.mxu0 0
    %4097 = vmatprep.mubr.bf16.mxu0 0
    %4098 = vmatmul.mubr.bf16.gmra.mrb[0].mxu0 %v3858
    %v4099 = vpop.f32.mrb[0].mxu0
    %v4100 = vadd.f32 %v2533, %v4099
    %v4101 = vpop.f32.mrb[0].mxu0
    %v4102 = vadd.f32 %v2537, %v4101
    %v4103 = vpop.f32.mrb[0].mxu0
    %v4104 = vpop.f32.mrb[0].mxu0
    %4105 = vdwg.mxu0
    %4106 = vmatprep.subr.bf16.mxu0 %v3258
    %4107 = vmatpush1.bf16.msra.mxu0 %v3257
    %4108 = vmatprep.subr.bf16.mxu0 %v3261
    %4109 = vmatpush1.bf16.msra.mxu0 %v3260
    %4110 = vmatprep.subr.bf16.mxu0 %v3264
    %4111 = vmatpush1.bf16.msra.mxu0 %v3263
    %4112 = vmatprep.subr.bf16.mxu0 %v3267
    %4113 = vmatpush1.bf16.msra.mxu0 %v3266
    %4114 = vmatprep.subr.bf16.mxu0 %v3270
    %4115 = vmatpush1.bf16.msra.mxu0 %v3269
    %4116 = vmatprep.subr.bf16.mxu0 %v3273
    %4117 = vmatpush1.bf16.msra.mxu0 %v3272
    %4118 = vmatprep.subr.bf16.mxu0 %v3276
    %4119 = vmatpush1.bf16.msra.mxu0 %v3275
    %4120 = vmatprep.subr.bf16.mxu0 %v3279
    %4121 = vmatpush1.bf16.msra.mxu0 %v3278
    %4122 = vmatprep.subr.bf16.mxu0 0
    %4123 = vmatpush1.bf16.msra.mxu0 0
    %4124 = vmatprep.subr.bf16.mxu0 0
    %4125 = vmatpush1.bf16.msra.mxu0 0
    %4126 = vmatprep.subr.bf16.mxu0 0
    %4127 = vmatpush1.bf16.msra.mxu0 0
    %4128 = vmatprep.subr.bf16.mxu0 0
    %4129 = vmatpush1.bf16.msra.mxu0 0
    %4130 = vmatprep.subr.bf16.mxu0 0
    %4131 = vmatpush1.bf16.msra.mxu0 0
    %4132 = vmatprep.subr.bf16.mxu0 0
    %4133 = vmatpush1.bf16.msra.mxu0 0
    %4134 = vmatprep.subr.bf16.mxu0 0
    %4135 = vmatpush1.bf16.msra.mxu0 0
    %4136 = vmatprep.subr.bf16.mxu0 0
    %4137 = vmatpush1.bf16.msra.mxu0 0
    %4138 = vmatprep.mubr.bf16.mxu0 0
    %4139 = vmatmul.mubr.bf16.gmra.mrb[0].mxu0 %v3859
    %v4140 = vpop.f32.mrb[0].mxu0
    %v4141 = vadd.f32 %v3165, %v4140
    %v4142 = vpop.f32.mrb[0].mxu0
    %v4143 = vadd.f32 %v3169, %v4142
    %v4144 = vpop.f32.mrb[0].mxu0
    %v4145 = vpop.f32.mrb[0].mxu0
    %4146 = vdwg.mxu0
    %4147 = vmatprep.subr.bf16.mxu0 0
    %4148 = vmatpush1.bf16.msra.mxu0 %v3259
    %4149 = vmatprep.subr.bf16.mxu0 0
    %4150 = vmatpush1.bf16.msra.mxu0 %v3262
    %4151 = vmatprep.subr.bf16.mxu0 0
    %4152 = vmatpush1.bf16.msra.mxu0 %v3265
    %4153 = vmatprep.subr.bf16.mxu0 0
    %4154 = vmatpush1.bf16.msra.mxu0 %v3268
    %4155 = vmatprep.subr.bf16.mxu0 0
    %4156 = vmatpush1.bf16.msra.mxu0 %v3271
    %4157 = vmatprep.subr.bf16.mxu0 0
    %4158 = vmatpush1.bf16.msra.mxu0 %v3274
    %4159 = vmatprep.subr.bf16.mxu0 0
    %4160 = vmatpush1.bf16.msra.mxu0 %v3277
    %4161 = vmatprep.subr.bf16.mxu0 0
    %4162 = vmatpush1.bf16.msra.mxu0 %v3280
    %4163 = vmatprep.subr.bf16.mxu0 0
    %4164 = vmatpush1.bf16.msra.mxu0 0
    %4165 = vmatprep.subr.bf16.mxu0 0
    %4166 = vmatpush1.bf16.msra.mxu0 0
    %4167 = vmatprep.subr.bf16.mxu0 0
    %4168 = vmatpush1.bf16.msra.mxu0 0
    %4169 = vmatprep.subr.bf16.mxu0 0
    %4170 = vmatpush1.bf16.msra.mxu0 0
    %4171 = vmatprep.subr.bf16.mxu0 0
    %4172 = vmatpush1.bf16.msra.mxu0 0
    %4173 = vmatprep.subr.bf16.mxu0 0
    %4174 = vmatpush1.bf16.msra.mxu0 0
    %4175 = vmatprep.subr.bf16.mxu0 0
    %4176 = vmatpush1.bf16.msra.mxu0 0
    %4177 = vmatprep.subr.bf16.mxu0 0
    %4178 = vmatpush1.bf16.msra.mxu0 0
    %4179 = vmatprep.mubr.bf16.mxu0 0
    %4180 = vmatmul.mubr.bf16.gmra.mrb[0].mxu0 %v3859
    %v4181 = vpop.f32.mrb[0].mxu0
    %v4182 = vadd.f32 %v3173, %v4181
    %v4183 = vpop.f32.mrb[0].mxu0
    %v4184 = vpop.f32.mrb[0].mxu0
    %v4185 = vpop.f32.mrb[0].mxu0
    %4186 = vdwg.mxu0
    %s4187 = smul.u32 4, 3
    %s4188 = smul.addr %s4187, 8
    %s4189 = scalar_lea.vmem [#allocation2], %s4188
    %v4190 = vld [vmem:[%s4189] sm:$0xff]
    %v4191 = vld [vmem:[%s4189 + $0x8] sm:$0xff]
    %v4192 = vld [vmem:[%s4189 + $0x10] sm:$0xff]
    %v4193 = vadd.f32 %v4190, %v3895
    %v4194 = vxor.u32 %v4193, 2147483648
    %v4195 = vmul.f32 %v4194, 1.442695
    %v4196 = vpow.pop %v4195
    %v4197 = vadd.f32 %v4196, 1.0
    %v4198 = vrcp.pop %v4197
    %v4199 = vmul.f32 1.0, %v4198
    %v4200 = vadd.f32 %v4191, %v3897
    %v4201 = vxor.u32 %v4200, 2147483648
    %v4202 = vmul.f32 %v4201, 1.442695
    %v4203 = vpow.pop %v4202
    %v4204 = vadd.f32 %v4203, 1.0
    %v4205 = vrcp.pop %v4204
    %v4206 = vmul.f32 1.0, %v4205
    %v4207 = vmul.f32 %v4199, %v3936
    %v4208 = vadd.f32 %v4192, %v4207
    %v4209 = vtanh.pop %v4208
    %v4210 = vsub.f32 1.0, %v4206
    %v4211 = vmul.f32 %v4210, %v4209
    %v4212 = vmul.f32 %v4206, %v3812
    %v4213 = vadd.f32 %v4211, %v4212
    %v4214 = vadd.f32 %v3938, %v4018
    %v4215 = vxor.u32 %v4214, 2147483648
    %v4216 = vmul.f32 %v4215, 1.442695
    %v4217 = vpow.pop %v4216
    %v4218 = vadd.f32 %v4217, 1.0
    %v4219 = vrcp.pop %v4218
    %v4220 = vmul.f32 1.0, %v4219
    %v4221 = vadd.f32 %v3977, %v4020
    %v4222 = vxor.u32 %v4221, 2147483648
    %v4223 = vmul.f32 %v4222, 1.442695
    %v4224 = vpow.pop %v4223
    %v4225 = vadd.f32 %v4224, 1.0
    %v4226 = vrcp.pop %v4225
    %v4227 = vmul.f32 1.0, %v4226
    %v4228 = vmul.f32 %v4220, %v4059
    %v4229 = vadd.f32 %v3979, %v4228
    %v4230 = vtanh.pop %v4229
    %v4231 = vsub.f32 1.0, %v4227
    %v4232 = vmul.f32 %v4231, %v4230
    %v4233 = vmul.f32 %v4227, %v3833
    %v4234 = vadd.f32 %v4232, %v4233
    %v4235 = vadd.f32 %v4061, %v4141
    %v4236 = vxor.u32 %v4235, 2147483648
    %v4237 = vmul.f32 %v4236, 1.442695
    %v4238 = vpow.pop %v4237
    %v4239 = vadd.f32 %v4238, 1.0
    %v4240 = vrcp.pop %v4239
    %v4241 = vmul.f32 1.0, %v4240
    %v4242 = vadd.f32 %v4100, %v4143
    %v4243 = vxor.u32 %v4242, 2147483648
    %v4244 = vmul.f32 %v4243, 1.442695
    %v4245 = vpow.pop %v4244
    %v4246 = vadd.f32 %v4245, 1.0
    %v4247 = vrcp.pop %v4246
    %v4248 = vmul.f32 1.0, %v4247
    %v4249 = vmul.f32 %v4241, %v4182
    %v4250 = vadd.f32 %v4102, %v4249
    %v4251 = vtanh.pop %v4250
    %v4252 = vsub.f32 1.0, %v4248
    %v4253 = vmul.f32 %v4252, %v4251
    %v4254 = vmul.f32 %v4248, %v3854
    %v4255 = vadd.f32 %v4253, %v4254
    %s4256 = scalar_lea.vmem [#allocation15], 16
    %4257 = vst [vmem:[%s4256] sm:$0xff] %v4255
    %v4258 = vpack.c.bf16 %v4213, %v4213
    %v4259 = vpack.c.bf16 %v4234, %v4234
    %v4260 = vpack.c.bf16 %v4255, %v4255
    %4261 = vmatprep.subr.bf16.mxu0 %v2138
    %4262 = vmatpush1.bf16.msra.mxu0 %v2137
    %4263 = vmatprep.subr.bf16.mxu0 %v2142
    %4264 = vmatpush1.bf16.msra.mxu0 %v2141
    %4265 = vmatprep.subr.bf16.mxu0 %v2146
    %4266 = vmatpush1.bf16.msra.mxu0 %v2145
    %4267 = vmatprep.subr.bf16.mxu0 %v2150
    %4268 = vmatpush1.bf16.msra.mxu0 %v2149
    %4269 = vmatprep.subr.bf16.mxu0 %v2154
    %4270 = vmatpush1.bf16.msra.mxu0 %v2153
    %4271 = vmatprep.subr.bf16.mxu0 %v2158
    %4272 = vmatpush1.bf16.msra.mxu0 %v2157
    %4273 = vmatprep.subr.bf16.mxu0 %v2162
    %4274 = vmatpush1.bf16.msra.mxu0 %v2161
    %4275 = vmatprep.subr.bf16.mxu0 %v2166
    %4276 = vmatpush1.bf16.msra.mxu0 %v2165
    %4277 = vmatprep.subr.bf16.mxu0 0
    %4278 = vmatpush1.bf16.msra.mxu0 0
    %4279 = vmatprep.subr.bf16.mxu0 0
    %4280 = vmatpush1.bf16.msra.mxu0 0
    %4281 = vmatprep.subr.bf16.mxu0 0
    %4282 = vmatpush1.bf16.msra.mxu0 0
    %4283 = vmatprep.subr.bf16.mxu0 0
    %4284 = vmatpush1.bf16.msra.mxu0 0
    %4285 = vmatprep.subr.bf16.mxu0 0
    %4286 = vmatpush1.bf16.msra.mxu0 0
    %4287 = vmatprep.subr.bf16.mxu0 0
    %4288 = vmatpush1.bf16.msra.mxu0 0
    %4289 = vmatprep.subr.bf16.mxu0 0
    %4290 = vmatpush1.bf16.msra.mxu0 0
    %4291 = vmatprep.subr.bf16.mxu0 0
    %4292 = vmatpush1.bf16.msra.mxu0 0
    %4293 = vmatprep.mubr.bf16.mxu0 0
    %4294 = vmatmul.mubr.bf16.gmra.mrb[0].mxu0 %v4258
    %v4295 = vpop.f32.mrb[0].mxu0
    %v4296 = vadd.f32 %v2014, %v4295
    %v4297 = vpop.f32.mrb[0].mxu0
    %v4298 = vadd.f32 %v2018, %v4297
    %v4299 = vpop.f32.mrb[0].mxu0
    %v4300 = vpop.f32.mrb[0].mxu0
    %4301 = vdwg.mxu0
    %4302 = vmatprep.subr.bf16.mxu0 %v2140
    %4303 = vmatpush1.bf16.msra.mxu0 %v2139
    %4304 = vmatprep.subr.bf16.mxu0 %v2144
    %4305 = vmatpush1.bf16.msra.mxu0 %v2143
    %4306 = vmatprep.subr.bf16.mxu0 %v2148
    %4307 = vmatpush1.bf16.msra.mxu0 %v2147
    %4308 = vmatprep.subr.bf16.mxu0 %v2152
    %4309 = vmatpush1.bf16.msra.mxu0 %v2151
    %4310 = vmatprep.subr.bf16.mxu0 %v2156
    %4311 = vmatpush1.bf16.msra.mxu0 %v2155
    %4312 = vmatprep.subr.bf16.mxu0 %v2160
    %4313 = vmatpush1.bf16.msra.mxu0 %v2159
    %4314 = vmatprep.subr.bf16.mxu0 %v2164
    %4315 = vmatpush1.bf16.msra.mxu0 %v2163
    %4316 = vmatprep.subr.bf16.mxu0 %v2168
    %4317 = vmatpush1.bf16.msra.mxu0 %v2167
    %4318 = vmatprep.subr.bf16.mxu0 0
    %4319 = vmatpush1.bf16.msra.mxu0 0
    %4320 = vmatprep.subr.bf16.mxu0 0
    %4321 = vmatpush1.bf16.msra.mxu0 0
    %4322 = vmatprep.subr.bf16.mxu0 0
    %4323 = vmatpush1.bf16.msra.mxu0 0
    %4324 = vmatprep.subr.bf16.mxu0 0
    %4325 = vmatpush1.bf16.msra.mxu0 0
    %4326 = vmatprep.subr.bf16.mxu0 0
    %4327 = vmatpush1.bf16.msra.mxu0 0
    %4328 = vmatprep.subr.bf16.mxu0 0
    %4329 = vmatpush1.bf16.msra.mxu0 0
    %4330 = vmatprep.subr.bf16.mxu0 0
    %4331 = vmatpush1.bf16.msra.mxu0 0
    %4332 = vmatprep.subr.bf16.mxu0 0
    %4333 = vmatpush1.bf16.msra.mxu0 0
    %4334 = vmatprep.mubr.bf16.mxu0 0
    %4335 = vmatmul.mubr.bf16.gmra.mrb[0].mxu0 %v4258
    %v4336 = vpop.f32.mrb[0].mxu0
    %v4337 = vadd.f32 %v2022, %v4336
    %v4338 = vpop.f32.mrb[0].mxu0
    %v4339 = vadd.f32 %v2026, %v4338
    %v4340 = vpop.f32.mrb[0].mxu0
    %v4341 = vpop.f32.mrb[0].mxu0
    %4342 = vdwg.mxu0
    %4343 = vmatprep.subr.bf16.mxu0 %v2359
    %4344 = vmatpush1.bf16.msra.mxu0 %v2358
    %4345 = vmatprep.subr.bf16.mxu0 %v2361
    %4346 = vmatpush1.bf16.msra.mxu0 %v2360
    %4347 = vmatprep.subr.bf16.mxu0 %v2363
    %4348 = vmatpush1.bf16.msra.mxu0 %v2362
    %4349 = vmatprep.subr.bf16.mxu0 %v2365
    %4350 = vmatpush1.bf16.msra.mxu0 %v2364
    %4351 = vmatprep.subr.bf16.mxu0 %v2367
    %4352 = vmatpush1.bf16.msra.mxu0 %v2366
    %4353 = vmatprep.subr.bf16.mxu0 %v2369
    %4354 = vmatpush1.bf16.msra.mxu0 %v2368
    %4355 = vmatprep.subr.bf16.mxu0 %v2371
    %4356 = vmatpush1.bf16.msra.mxu0 %v2370
    %4357 = vmatprep.subr.bf16.mxu0 %v2373
    %4358 = vmatpush1.bf16.msra.mxu0 %v2372
    %4359 = vmatprep.subr.bf16.mxu0 0
    %4360 = vmatpush1.bf16.msra.mxu0 0
    %4361 = vmatprep.subr.bf16.mxu0 0
    %4362 = vmatpush1.bf16.msra.mxu0 0
    %4363 = vmatprep.subr.bf16.mxu0 0
    %4364 = vmatpush1.bf16.msra.mxu0 0
    %4365 = vmatprep.subr.bf16.mxu0 0
    %4366 = vmatpush1.bf16.msra.mxu0 0
    %4367 = vmatprep.subr.bf16.mxu0 0
    %4368 = vmatpush1.bf16.msra.mxu0 0
    %4369 = vmatprep.subr.bf16.mxu0 0
    %4370 = vmatpush1.bf16.msra.mxu0 0
    %4371 = vmatprep.subr.bf16.mxu0 0
    %4372 = vmatpush1.bf16.msra.mxu0 0
    %4373 = vmatprep.subr.bf16.mxu0 0
    %4374 = vmatpush1.bf16.msra.mxu0 0
    %4375 = vmatprep.mubr.bf16.mxu0 0
    %4376 = vmatmul.mubr.bf16.gmra.mrb[0].mxu0 %v4258
    %v4377 = vpop.f32.mrb[0].mxu0
    %v4378 = vadd.f32 %v2030, %v4377
    %v4379 = vpop.f32.mrb[0].mxu0
    %v4380 = vadd.f32 %v2034, %v4379
    %v4381 = vpop.f32.mrb[0].mxu0
    %v4382 = vpop.f32.mrb[0].mxu0
    %4383 = vdwg.mxu0
    %4384 = vmatprep.subr.bf16.mxu0 %v2641
    %4385 = vmatpush1.bf16.msra.mxu0 %v2640
    %4386 = vmatprep.subr.bf16.mxu0 %v2645
    %4387 = vmatpush1.bf16.msra.mxu0 %v2644
    %4388 = vmatprep.subr.bf16.mxu0 %v2649
    %4389 = vmatpush1.bf16.msra.mxu0 %v2648
    %4390 = vmatprep.subr.bf16.mxu0 %v2653
    %4391 = vmatpush1.bf16.msra.mxu0 %v2652
    %4392 = vmatprep.subr.bf16.mxu0 %v2657
    %4393 = vmatpush1.bf16.msra.mxu0 %v2656
    %4394 = vmatprep.subr.bf16.mxu0 %v2661
    %4395 = vmatpush1.bf16.msra.mxu0 %v2660
    %4396 = vmatprep.subr.bf16.mxu0 %v2665
    %4397 = vmatpush1.bf16.msra.mxu0 %v2664
    %4398 = vmatprep.subr.bf16.mxu0 %v2669
    %4399 = vmatpush1.bf16.msra.mxu0 %v2668
    %4400 = vmatprep.subr.bf16.mxu0 0
    %4401 = vmatpush1.bf16.msra.mxu0 0
    %4402 = vmatprep.subr.bf16.mxu0 0
    %4403 = vmatpush1.bf16.msra.mxu0 0
    %4404 = vmatprep.subr.bf16.mxu0 0
    %4405 = vmatpush1.bf16.msra.mxu0 0
    %4406 = vmatprep.subr.bf16.mxu0 0
    %4407 = vmatpush1.bf16.msra.mxu0 0
    %4408 = vmatprep.subr.bf16.mxu0 0
    %4409 = vmatpush1.bf16.msra.mxu0 0
    %4410 = vmatprep.subr.bf16.mxu0 0
    %4411 = vmatpush1.bf16.msra.mxu0 0
    %4412 = vmatprep.subr.bf16.mxu0 0
    %4413 = vmatpush1.bf16.msra.mxu0 0
    %4414 = vmatprep.subr.bf16.mxu0 0
    %4415 = vmatpush1.bf16.msra.mxu0 0
    %4416 = vmatprep.mubr.bf16.mxu0 0
    %4417 = vmatmul.mubr.bf16.gmra.mrb[0].mxu0 %v4259
    %v4418 = vpop.f32.mrb[0].mxu0
    %v4419 = vadd.f32 %v2517, %v4418
    %v4420 = vpop.f32.mrb[0].mxu0
    %v4421 = vadd.f32 %v2521, %v4420
    %v4422 = vpop.f32.mrb[0].mxu0
    %v4423 = vpop.f32.mrb[0].mxu0
    %4424 = vdwg.mxu0
    %4425 = vmatprep.subr.bf16.mxu0 %v2643
    %4426 = vmatpush1.bf16.msra.mxu0 %v2642
    %4427 = vmatprep.subr.bf16.mxu0 %v2647
    %4428 = vmatpush1.bf16.msra.mxu0 %v2646
    %4429 = vmatprep.subr.bf16.mxu0 %v2651
    %4430 = vmatpush1.bf16.msra.mxu0 %v2650
    %4431 = vmatprep.subr.bf16.mxu0 %v2655
    %4432 = vmatpush1.bf16.msra.mxu0 %v2654
    %4433 = vmatprep.subr.bf16.mxu0 %v2659
    %4434 = vmatpush1.bf16.msra.mxu0 %v2658
    %4435 = vmatprep.subr.bf16.mxu0 %v2663
    %4436 = vmatpush1.bf16.msra.mxu0 %v2662
    %4437 = vmatprep.subr.bf16.mxu0 %v2667
    %4438 = vmatpush1.bf16.msra.mxu0 %v2666
    %4439 = vmatprep.subr.bf16.mxu0 %v2671
    %4440 = vmatpush1.bf16.msra.mxu0 %v2670
    %4441 = vmatprep.subr.bf16.mxu0 0
    %4442 = vmatpush1.bf16.msra.mxu0 0
    %4443 = vmatprep.subr.bf16.mxu0 0
    %4444 = vmatpush1.bf16.msra.mxu0 0
    %4445 = vmatprep.subr.bf16.mxu0 0
    %4446 = vmatpush1.bf16.msra.mxu0 0
    %4447 = vmatprep.subr.bf16.mxu0 0
    %4448 = vmatpush1.bf16.msra.mxu0 0
    %4449 = vmatprep.subr.bf16.mxu0 0
    %4450 = vmatpush1.bf16.msra.mxu0 0
    %4451 = vmatprep.subr.bf16.mxu0 0
    %4452 = vmatpush1.bf16.msra.mxu0 0
    %4453 = vmatprep.subr.bf16.mxu0 0
    %4454 = vmatpush1.bf16.msra.mxu0 0
    %4455 = vmatprep.subr.bf16.mxu0 0
    %4456 = vmatpush1.bf16.msra.mxu0 0
    %4457 = vmatprep.mubr.bf16.mxu0 0
    %4458 = vmatmul.mubr.bf16.gmra.mrb[0].mxu0 %v4259
    %v4459 = vpop.f32.mrb[0].mxu0
    %v4460 = vadd.f32 %v2525, %v4459
    %v4461 = vpop.f32.mrb[0].mxu0
    %v4462 = vadd.f32 %v2529, %v4461
    %v4463 = vpop.f32.mrb[0].mxu0
    %v4464 = vpop.f32.mrb[0].mxu0
    %4465 = vdwg.mxu0
    %4466 = vmatprep.subr.bf16.mxu0 %v3007
    %4467 = vmatpush1.bf16.msra.mxu0 %v3006
    %4468 = vmatprep.subr.bf16.mxu0 %v3009
    %4469 = vmatpush1.bf16.msra.mxu0 %v3008
    %4470 = vmatprep.subr.bf16.mxu0 %v3011
    %4471 = vmatpush1.bf16.msra.mxu0 %v3010
    %4472 = vmatprep.subr.bf16.mxu0 %v3013
    %4473 = vmatpush1.bf16.msra.mxu0 %v3012
    %4474 = vmatprep.subr.bf16.mxu0 %v3015
    %4475 = vmatpush1.bf16.msra.mxu0 %v3014
    %4476 = vmatprep.subr.bf16.mxu0 %v3017
    %4477 = vmatpush1.bf16.msra.mxu0 %v3016
    %4478 = vmatprep.subr.bf16.mxu0 %v3019
    %4479 = vmatpush1.bf16.msra.mxu0 %v3018
    %4480 = vmatprep.subr.bf16.mxu0 %v3021
    %4481 = vmatpush1.bf16.msra.mxu0 %v3020
    %4482 = vmatprep.subr.bf16.mxu0 0
    %4483 = vmatpush1.bf16.msra.mxu0 0
    %4484 = vmatprep.subr.bf16.mxu0 0
    %4485 = vmatpush1.bf16.msra.mxu0 0
    %4486 = vmatprep.subr.bf16.mxu0 0
    %4487 = vmatpush1.bf16.msra.mxu0 0
    %4488 = vmatprep.subr.bf16.mxu0 0
    %4489 = vmatpush1.bf16.msra.mxu0 0
    %4490 = vmatprep.subr.bf16.mxu0 0
    %4491 = vmatpush1.bf16.msra.mxu0 0
    %4492 = vmatprep.subr.bf16.mxu0 0
    %4493 = vmatpush1.bf16.msra.mxu0 0
    %4494 = vmatprep.subr.bf16.mxu0 0
    %4495 = vmatpush1.bf16.msra.mxu0 0
    %4496 = vmatprep.subr.bf16.mxu0 0
    %4497 = vmatpush1.bf16.msra.mxu0 0
    %4498 = vmatprep.mubr.bf16.mxu0 0
    %4499 = vmatmul.mubr.bf16.gmra.mrb[0].mxu0 %v4259
    %v4500 = vpop.f32.mrb[0].mxu0
    %v4501 = vadd.f32 %v2533, %v4500
    %v4502 = vpop.f32.mrb[0].mxu0
    %v4503 = vadd.f32 %v2537, %v4502
    %v4504 = vpop.f32.mrb[0].mxu0
    %v4505 = vpop.f32.mrb[0].mxu0
    %4506 = vdwg.mxu0
    %4507 = vmatprep.subr.bf16.mxu0 %v3258
    %4508 = vmatpush1.bf16.msra.mxu0 %v3257
    %4509 = vmatprep.subr.bf16.mxu0 %v3261
    %4510 = vmatpush1.bf16.msra.mxu0 %v3260
    %4511 = vmatprep.subr.bf16.mxu0 %v3264
    %4512 = vmatpush1.bf16.msra.mxu0 %v3263
    %4513 = vmatprep.subr.bf16.mxu0 %v3267
    %4514 = vmatpush1.bf16.msra.mxu0 %v3266
    %4515 = vmatprep.subr.bf16.mxu0 %v3270
    %4516 = vmatpush1.bf16.msra.mxu0 %v3269
    %4517 = vmatprep.subr.bf16.mxu0 %v3273
    %4518 = vmatpush1.bf16.msra.mxu0 %v3272
    %4519 = vmatprep.subr.bf16.mxu0 %v3276
    %4520 = vmatpush1.bf16.msra.mxu0 %v3275
    %4521 = vmatprep.subr.bf16.mxu0 %v3279
    %4522 = vmatpush1.bf16.msra.mxu0 %v3278
    %4523 = vmatprep.subr.bf16.mxu0 0
    %4524 = vmatpush1.bf16.msra.mxu0 0
    %4525 = vmatprep.subr.bf16.mxu0 0
    %4526 = vmatpush1.bf16.msra.mxu0 0
    %4527 = vmatprep.subr.bf16.mxu0 0
    %4528 = vmatpush1.bf16.msra.mxu0 0
    %4529 = vmatprep.subr.bf16.mxu0 0
    %4530 = vmatpush1.bf16.msra.mxu0 0
    %4531 = vmatprep.subr.bf16.mxu0 0
    %4532 = vmatpush1.bf16.msra.mxu0 0
    %4533 = vmatprep.subr.bf16.mxu0 0
    %4534 = vmatpush1.bf16.msra.mxu0 0
    %4535 = vmatprep.subr.bf16.mxu0 0
    %4536 = vmatpush1.bf16.msra.mxu0 0
    %4537 = vmatprep.subr.bf16.mxu0 0
    %4538 = vmatpush1.bf16.msra.mxu0 0
    %4539 = vmatprep.mubr.bf16.mxu0 0
    %4540 = vmatmul.mubr.bf16.gmra.mrb[0].mxu0 %v4260
    %v4541 = vpop.f32.mrb[0].mxu0
    %v4542 = vadd.f32 %v3165, %v4541
    %v4543 = vpop.f32.mrb[0].mxu0
    %v4544 = vadd.f32 %v3169, %v4543
    %v4545 = vpop.f32.mrb[0].mxu0
    %v4546 = vpop.f32.mrb[0].mxu0
    %4547 = vdwg.mxu0
    %4548 = vmatprep.subr.bf16.mxu0 0
    %4549 = vmatpush1.bf16.msra.mxu0 %v3259
    %4550 = vmatprep.subr.bf16.mxu0 0
    %4551 = vmatpush1.bf16.msra.mxu0 %v3262
    %4552 = vmatprep.subr.bf16.mxu0 0
    %4553 = vmatpush1.bf16.msra.mxu0 %v3265
    %4554 = vmatprep.subr.bf16.mxu0 0
    %4555 = vmatpush1.bf16.msra.mxu0 %v3268
    %4556 = vmatprep.subr.bf16.mxu0 0
    %4557 = vmatpush1.bf16.msra.mxu0 %v3271
    %4558 = vmatprep.subr.bf16.mxu0 0
    %4559 = vmatpush1.bf16.msra.mxu0 %v3274
    %4560 = vmatprep.subr.bf16.mxu0 0
    %4561 = vmatpush1.bf16.msra.mxu0 %v3277
    %4562 = vmatprep.subr.bf16.mxu0 0
    %4563 = vmatpush1.bf16.msra.mxu0 %v3280
    %4564 = vmatprep.subr.bf16.mxu0 0
    %4565 = vmatpush1.bf16.msra.mxu0 0
    %4566 = vmatprep.subr.bf16.mxu0 0
    %4567 = vmatpush1.bf16.msra.mxu0 0
    %4568 = vmatprep.subr.bf16.mxu0 0
    %4569 = vmatpush1.bf16.msra.mxu0 0
    %4570 = vmatprep.subr.bf16.mxu0 0
    %4571 = vmatpush1.bf16.msra.mxu0 0
    %4572 = vmatprep.subr.bf16.mxu0 0
    %4573 = vmatpush1.bf16.msra.mxu0 0
    %4574 = vmatprep.subr.bf16.mxu0 0
    %4575 = vmatpush1.bf16.msra.mxu0 0
    %4576 = vmatprep.subr.bf16.mxu0 0
    %4577 = vmatpush1.bf16.msra.mxu0 0
    %4578 = vmatprep.subr.bf16.mxu0 0
    %4579 = vmatpush1.bf16.msra.mxu0 0
    %4580 = vmatprep.mubr.bf16.mxu0 0
    %4581 = vmatmul.mubr.bf16.gmra.mrb[0].mxu0 %v4260
    %v4582 = vpop.f32.mrb[0].mxu0
    %v4583 = vadd.f32 %v3173, %v4582
    %v4584 = vpop.f32.mrb[0].mxu0
    %v4585 = vpop.f32.mrb[0].mxu0
    %v4586 = vpop.f32.mrb[0].mxu0
    %4587 = vdwg.mxu0
    %s4588 = smul.u32 5, 3
    %s4589 = smul.addr %s4588, 8
    %s4590 = scalar_lea.vmem [#allocation2], %s4589
    %v4591 = vld [vmem:[%s4590] sm:$0xff]
    %v4592 = vld [vmem:[%s4590 + $0x8] sm:$0xff]
    %v4593 = vld [vmem:[%s4590 + $0x10] sm:$0xff]
    %v4594 = vadd.f32 %v4591, %v4296
    %v4595 = vxor.u32 %v4594, 2147483648
    %v4596 = vmul.f32 %v4595, 1.442695
    %v4597 = vpow.pop %v4596
    %v4598 = vadd.f32 %v4597, 1.0
    %v4599 = vrcp.pop %v4598
    %v4600 = vmul.f32 1.0, %v4599
    %v4601 = vadd.f32 %v4592, %v4298
    %v4602 = vxor.u32 %v4601, 2147483648
    %v4603 = vmul.f32 %v4602, 1.442695
    %v4604 = vpow.pop %v4603
    %v4605 = vadd.f32 %v4604, 1.0
    %v4606 = vrcp.pop %v4605
    %v4607 = vmul.f32 1.0, %v4606
    %v4608 = vmul.f32 %v4600, %v4337
    %v4609 = vadd.f32 %v4593, %v4608
    %v4610 = vtanh.pop %v4609
    %v4611 = vsub.f32 1.0, %v4607
    %v4612 = vmul.f32 %v4611, %v4610
    %v4613 = vmul.f32 %v4607, %v4213
    %v4614 = vadd.f32 %v4612, %v4613
    %v4615 = vadd.f32 %v4339, %v4419
    %v4616 = vxor.u32 %v4615, 2147483648
    %v4617 = vmul.f32 %v4616, 1.442695
    %v4618 = vpow.pop %v4617
    %v4619 = vadd.f32 %v4618, 1.0
    %v4620 = vrcp.pop %v4619
    %v4621 = vmul.f32 1.0, %v4620
    %v4622 = vadd.f32 %v4378, %v4421
    %v4623 = vxor.u32 %v4622, 2147483648
    %v4624 = vmul.f32 %v4623, 1.442695
    %v4625 = vpow.pop %v4624
    %v4626 = vadd.f32 %v4625, 1.0
    %v4627 = vrcp.pop %v4626
    %v4628 = vmul.f32 1.0, %v4627
    %v4629 = vmul.f32 %v4621, %v4460
    %v4630 = vadd.f32 %v4380, %v4629
    %v4631 = vtanh.pop %v4630
    %v4632 = vsub.f32 1.0, %v4628
    %v4633 = vmul.f32 %v4632, %v4631
    %v4634 = vmul.f32 %v4628, %v4234
    %v4635 = vadd.f32 %v4633, %v4634
    %v4636 = vadd.f32 %v4462, %v4542
    %v4637 = vxor.u32 %v4636, 2147483648
    %v4638 = vmul.f32 %v4637, 1.442695
    %v4639 = vpow.pop %v4638
    %v4640 = vadd.f32 %v4639, 1.0
    %v4641 = vrcp.pop %v4640
    %v4642 = vmul.f32 1.0, %v4641
    %v4643 = vadd.f32 %v4501, %v4544
    %v4644 = vxor.u32 %v4643, 2147483648
    %v4645 = vmul.f32 %v4644, 1.442695
    %v4646 = vpow.pop %v4645
    %v4647 = vadd.f32 %v4646, 1.0
    %v4648 = vrcp.pop %v4647
    %v4649 = vmul.f32 1.0, %v4648
    %v4650 = vmul.f32 %v4642, %v4583
    %v4651 = vadd.f32 %v4503, %v4650
    %v4652 = vtanh.pop %v4651
    %v4653 = vsub.f32 1.0, %v4649
    %v4654 = vmul.f32 %v4653, %v4652
    %v4655 = vmul.f32 %v4649, %v4255
    %v4656 = vadd.f32 %v4654, %v4655
    %s4657 = scalar_lea.vmem [#allocation15], 24
    %4658 = vst [vmem:[%s4657] sm:$0xff] %v4656
    %v4659 = vpack.c.bf16 %v4614, %v4614
    %v4660 = vpack.c.bf16 %v4635, %v4635
    %v4661 = vpack.c.bf16 %v4656, %v4656
    %4662 = vmatprep.subr.bf16.mxu0 %v2138
    %4663 = vmatpush1.bf16.msra.mxu0 %v2137
    %4664 = vmatprep.subr.bf16.mxu0 %v2142
    %4665 = vmatpush1.bf16.msra.mxu0 %v2141
    %4666 = vmatprep.subr.bf16.mxu0 %v2146
    %4667 = vmatpush1.bf16.msra.mxu0 %v2145
    %4668 = vmatprep.subr.bf16.mxu0 %v2150
    %4669 = vmatpush1.bf16.msra.mxu0 %v2149
    %4670 = vmatprep.subr.bf16.mxu0 %v2154
    %4671 = vmatpush1.bf16.msra.mxu0 %v2153
    %4672 = vmatprep.subr.bf16.mxu0 %v2158
    %4673 = vmatpush1.bf16.msra.mxu0 %v2157
    %4674 = vmatprep.subr.bf16.mxu0 %v2162
    %4675 = vmatpush1.bf16.msra.mxu0 %v2161
    %4676 = vmatprep.subr.bf16.mxu0 %v2166
    %4677 = vmatpush1.bf16.msra.mxu0 %v2165
    %4678 = vmatprep.subr.bf16.mxu0 0
    %4679 = vmatpush1.bf16.msra.mxu0 0
    %4680 = vmatprep.subr.bf16.mxu0 0
    %4681 = vmatpush1.bf16.msra.mxu0 0
    %4682 = vmatprep.subr.bf16.mxu0 0
    %4683 = vmatpush1.bf16.msra.mxu0 0
    %4684 = vmatprep.subr.bf16.mxu0 0
    %4685 = vmatpush1.bf16.msra.mxu0 0
    %4686 = vmatprep.subr.bf16.mxu0 0
    %4687 = vmatpush1.bf16.msra.mxu0 0
    %4688 = vmatprep.subr.bf16.mxu0 0
    %4689 = vmatpush1.bf16.msra.mxu0 0
    %4690 = vmatprep.subr.bf16.mxu0 0
    %4691 = vmatpush1.bf16.msra.mxu0 0
    %4692 = vmatprep.subr.bf16.mxu0 0
    %4693 = vmatpush1.bf16.msra.mxu0 0
    %4694 = vmatprep.mubr.bf16.mxu0 0
    %4695 = vmatmul.mubr.bf16.gmra.mrb[0].mxu0 %v4659
    %v4696 = vpop.f32.mrb[0].mxu0
    %v4697 = vadd.f32 %v2014, %v4696
    %v4698 = vpop.f32.mrb[0].mxu0
    %v4699 = vadd.f32 %v2018, %v4698
    %v4700 = vpop.f32.mrb[0].mxu0
    %v4701 = vpop.f32.mrb[0].mxu0
    %4702 = vdwg.mxu0
    %4703 = vmatprep.subr.bf16.mxu0 %v2140
    %4704 = vmatpush1.bf16.msra.mxu0 %v2139
    %4705 = vmatprep.subr.bf16.mxu0 %v2144
    %4706 = vmatpush1.bf16.msra.mxu0 %v2143
    %4707 = vmatprep.subr.bf16.mxu0 %v2148
    %4708 = vmatpush1.bf16.msra.mxu0 %v2147
    %4709 = vmatprep.subr.bf16.mxu0 %v2152
    %4710 = vmatpush1.bf16.msra.mxu0 %v2151
    %4711 = vmatprep.subr.bf16.mxu0 %v2156
    %4712 = vmatpush1.bf16.msra.mxu0 %v2155
    %4713 = vmatprep.subr.bf16.mxu0 %v2160
    %4714 = vmatpush1.bf16.msra.mxu0 %v2159
    %4715 = vmatprep.subr.bf16.mxu0 %v2164
    %4716 = vmatpush1.bf16.msra.mxu0 %v2163
    %4717 = vmatprep.subr.bf16.mxu0 %v2168
    %4718 = vmatpush1.bf16.msra.mxu0 %v2167
    %4719 = vmatprep.subr.bf16.mxu0 0
    %4720 = vmatpush1.bf16.msra.mxu0 0
    %4721 = vmatprep.subr.bf16.mxu0 0
    %4722 = vmatpush1.bf16.msra.mxu0 0
    %4723 = vmatprep.subr.bf16.mxu0 0
    %4724 = vmatpush1.bf16.msra.mxu0 0
    %4725 = vmatprep.subr.bf16.mxu0 0
    %4726 = vmatpush1.bf16.msra.mxu0 0
    %4727 = vmatprep.subr.bf16.mxu0 0
    %4728 = vmatpush1.bf16.msra.mxu0 0
    %4729 = vmatprep.subr.bf16.mxu0 0
    %4730 = vmatpush1.bf16.msra.mxu0 0
    %4731 = vmatprep.subr.bf16.mxu0 0
    %4732 = vmatpush1.bf16.msra.mxu0 0
    %4733 = vmatprep.subr.bf16.mxu0 0
    %4734 = vmatpush1.bf16.msra.mxu0 0
    %4735 = vmatprep.mubr.bf16.mxu0 0
    %4736 = vmatmul.mubr.bf16.gmra.mrb[0].mxu0 %v4659
    %v4737 = vpop.f32.mrb[0].mxu0
    %v4738 = vadd.f32 %v2022, %v4737
    %v4739 = vpop.f32.mrb[0].mxu0
    %v4740 = vadd.f32 %v2026, %v4739
    %v4741 = vpop.f32.mrb[0].mxu0
    %v4742 = vpop.f32.mrb[0].mxu0
    %4743 = vdwg.mxu0
    %4744 = vmatprep.subr.bf16.mxu0 %v2359
    %4745 = vmatpush1.bf16.msra.mxu0 %v2358
    %4746 = vmatprep.subr.bf16.mxu0 %v2361
    %4747 = vmatpush1.bf16.msra.mxu0 %v2360
    %4748 = vmatprep.subr.bf16.mxu0 %v2363
    %4749 = vmatpush1.bf16.msra.mxu0 %v2362
    %4750 = vmatprep.subr.bf16.mxu0 %v2365
    %4751 = vmatpush1.bf16.msra.mxu0 %v2364
    %4752 = vmatprep.subr.bf16.mxu0 %v2367
    %4753 = vmatpush1.bf16.msra.mxu0 %v2366
    %4754 = vmatprep.subr.bf16.mxu0 %v2369
    %4755 = vmatpush1.bf16.msra.mxu0 %v2368
    %4756 = vmatprep.subr.bf16.mxu0 %v2371
    %4757 = vmatpush1.bf16.msra.mxu0 %v2370
    %4758 = vmatprep.subr.bf16.mxu0 %v2373
    %4759 = vmatpush1.bf16.msra.mxu0 %v2372
    %4760 = vmatprep.subr.bf16.mxu0 0
    %4761 = vmatpush1.bf16.msra.mxu0 0
    %4762 = vmatprep.subr.bf16.mxu0 0
    %4763 = vmatpush1.bf16.msra.mxu0 0
    %4764 = vmatprep.subr.bf16.mxu0 0
    %4765 = vmatpush1.bf16.msra.mxu0 0
    %4766 = vmatprep.subr.bf16.mxu0 0
    %4767 = vmatpush1.bf16.msra.mxu0 0
    %4768 = vmatprep.subr.bf16.mxu0 0
    %4769 = vmatpush1.bf16.msra.mxu0 0
    %4770 = vmatprep.subr.bf16.mxu0 0
    %4771 = vmatpush1.bf16.msra.mxu0 0
    %4772 = vmatprep.subr.bf16.mxu0 0
    %4773 = vmatpush1.bf16.msra.mxu0 0
    %4774 = vmatprep.subr.bf16.mxu0 0
    %4775 = vmatpush1.bf16.msra.mxu0 0
    %4776 = vmatprep.mubr.bf16.mxu0 0
    %4777 = vmatmul.mubr.bf16.gmra.mrb[0].mxu0 %v4659
    %v4778 = vpop.f32.mrb[0].mxu0
    %v4779 = vadd.f32 %v2030, %v4778
    %v4780 = vpop.f32.mrb[0].mxu0
    %v4781 = vadd.f32 %v2034, %v4780
    %v4782 = vpop.f32.mrb[0].mxu0
    %v4783 = vpop.f32.mrb[0].mxu0
    %4784 = vdwg.mxu0
    %4785 = vmatprep.subr.bf16.mxu0 %v2641
    %4786 = vmatpush1.bf16.msra.mxu0 %v2640
    %4787 = vmatprep.subr.bf16.mxu0 %v2645
    %4788 = vmatpush1.bf16.msra.mxu0 %v2644
    %4789 = vmatprep.subr.bf16.mxu0 %v2649
    %4790 = vmatpush1.bf16.msra.mxu0 %v2648
    %4791 = vmatprep.subr.bf16.mxu0 %v2653
    %4792 = vmatpush1.bf16.msra.mxu0 %v2652
    %4793 = vmatprep.subr.bf16.mxu0 %v2657
    %4794 = vmatpush1.bf16.msra.mxu0 %v2656
    %4795 = vmatprep.subr.bf16.mxu0 %v2661
    %4796 = vmatpush1.bf16.msra.mxu0 %v2660
    %4797 = vmatprep.subr.bf16.mxu0 %v2665
    %4798 = vmatpush1.bf16.msra.mxu0 %v2664
    %4799 = vmatprep.subr.bf16.mxu0 %v2669
    %4800 = vmatpush1.bf16.msra.mxu0 %v2668
    %4801 = vmatprep.subr.bf16.mxu0 0
    %4802 = vmatpush1.bf16.msra.mxu0 0
    %4803 = vmatprep.subr.bf16.mxu0 0
    %4804 = vmatpush1.bf16.msra.mxu0 0
    %4805 = vmatprep.subr.bf16.mxu0 0
    %4806 = vmatpush1.bf16.msra.mxu0 0
    %4807 = vmatprep.subr.bf16.mxu0 0
    %4808 = vmatpush1.bf16.msra.mxu0 0
    %4809 = vmatprep.subr.bf16.mxu0 0
    %4810 = vmatpush1.bf16.msra.mxu0 0
    %4811 = vmatprep.subr.bf16.mxu0 0
    %4812 = vmatpush1.bf16.msra.mxu0 0
    %4813 = vmatprep.subr.bf16.mxu0 0
    %4814 = vmatpush1.bf16.msra.mxu0 0
    %4815 = vmatprep.subr.bf16.mxu0 0
    %4816 = vmatpush1.bf16.msra.mxu0 0
    %4817 = vmatprep.mubr.bf16.mxu0 0
    %4818 = vmatmul.mubr.bf16.gmra.mrb[0].mxu0 %v4660
    %v4819 = vpop.f32.mrb[0].mxu0
    %v4820 = vadd.f32 %v2517, %v4819
    %v4821 = vpop.f32.mrb[0].mxu0
    %v4822 = vadd.f32 %v2521, %v4821
    %v4823 = vpop.f32.mrb[0].mxu0
    %v4824 = vpop.f32.mrb[0].mxu0
    %4825 = vdwg.mxu0
    %4826 = vmatprep.subr.bf16.mxu0 %v2643
    %4827 = vmatpush1.bf16.msra.mxu0 %v2642
    %4828 = vmatprep.subr.bf16.mxu0 %v2647
    %4829 = vmatpush1.bf16.msra.mxu0 %v2646
    %4830 = vmatprep.subr.bf16.mxu0 %v2651
    %4831 = vmatpush1.bf16.msra.mxu0 %v2650
    %4832 = vmatprep.subr.bf16.mxu0 %v2655
    %4833 = vmatpush1.bf16.msra.mxu0 %v2654
    %4834 = vmatprep.subr.bf16.mxu0 %v2659
    %4835 = vmatpush1.bf16.msra.mxu0 %v2658
    %4836 = vmatprep.subr.bf16.mxu0 %v2663
    %4837 = vmatpush1.bf16.msra.mxu0 %v2662
    %4838 = vmatprep.subr.bf16.mxu0 %v2667
    %4839 = vmatpush1.bf16.msra.mxu0 %v2666
    %4840 = vmatprep.subr.bf16.mxu0 %v2671
    %4841 = vmatpush1.bf16.msra.mxu0 %v2670
    %4842 = vmatprep.subr.bf16.mxu0 0
    %4843 = vmatpush1.bf16.msra.mxu0 0
    %4844 = vmatprep.subr.bf16.mxu0 0
    %4845 = vmatpush1.bf16.msra.mxu0 0
    %4846 = vmatprep.subr.bf16.mxu0 0
    %4847 = vmatpush1.bf16.msra.mxu0 0
    %4848 = vmatprep.subr.bf16.mxu0 0
    %4849 = vmatpush1.bf16.msra.mxu0 0
    %4850 = vmatprep.subr.bf16.mxu0 0
    %4851 = vmatpush1.bf16.msra.mxu0 0
    %4852 = vmatprep.subr.bf16.mxu0 0
    %4853 = vmatpush1.bf16.msra.mxu0 0
    %4854 = vmatprep.subr.bf16.mxu0 0
    %4855 = vmatpush1.bf16.msra.mxu0 0
    %4856 = vmatprep.subr.bf16.mxu0 0
    %4857 = vmatpush1.bf16.msra.mxu0 0
    %4858 = vmatprep.mubr.bf16.mxu0 0
    %4859 = vmatmul.mubr.bf16.gmra.mrb[0].mxu0 %v4660
    %v4860 = vpop.f32.mrb[0].mxu0
    %v4861 = vadd.f32 %v2525, %v4860
    %v4862 = vpop.f32.mrb[0].mxu0
    %v4863 = vadd.f32 %v2529, %v4862
    %v4864 = vpop.f32.mrb[0].mxu0
    %v4865 = vpop.f32.mrb[0].mxu0
    %4866 = vdwg.mxu0
    %4867 = vmatprep.subr.bf16.mxu0 %v3007
    %4868 = vmatpush1.bf16.msra.mxu0 %v3006
    %4869 = vmatprep.subr.bf16.mxu0 %v3009
    %4870 = vmatpush1.bf16.msra.mxu0 %v3008
    %4871 = vmatprep.subr.bf16.mxu0 %v3011
    %4872 = vmatpush1.bf16.msra.mxu0 %v3010
    %4873 = vmatprep.subr.bf16.mxu0 %v3013
    %4874 = vmatpush1.bf16.msra.mxu0 %v3012
    %4875 = vmatprep.subr.bf16.mxu0 %v3015
    %4876 = vmatpush1.bf16.msra.mxu0 %v3014
    %4877 = vmatprep.subr.bf16.mxu0 %v3017
    %4878 = vmatpush1.bf16.msra.mxu0 %v3016
    %4879 = vmatprep.subr.bf16.mxu0 %v3019
    %4880 = vmatpush1.bf16.msra.mxu0 %v3018
    %4881 = vmatprep.subr.bf16.mxu0 %v3021
    %4882 = vmatpush1.bf16.msra.mxu0 %v3020
    %4883 = vmatprep.subr.bf16.mxu0 0
    %4884 = vmatpush1.bf16.msra.mxu0 0
    %4885 = vmatprep.subr.bf16.mxu0 0
    %4886 = vmatpush1.bf16.msra.mxu0 0
    %4887 = vmatprep.subr.bf16.mxu0 0
    %4888 = vmatpush1.bf16.msra.mxu0 0
    %4889 = vmatprep.subr.bf16.mxu0 0
    %4890 = vmatpush1.bf16.msra.mxu0 0
    %4891 = vmatprep.subr.bf16.mxu0 0
    %4892 = vmatpush1.bf16.msra.mxu0 0
    %4893 = vmatprep.subr.bf16.mxu0 0
    %4894 = vmatpush1.bf16.msra.mxu0 0
    %4895 = vmatprep.subr.bf16.mxu0 0
    %4896 = vmatpush1.bf16.msra.mxu0 0
    %4897 = vmatprep.subr.bf16.mxu0 0
    %4898 = vmatpush1.bf16.msra.mxu0 0
    %4899 = vmatprep.mubr.bf16.mxu0 0
    %4900 = vmatmul.mubr.bf16.gmra.mrb[0].mxu0 %v4660
    %v4901 = vpop.f32.mrb[0].mxu0
    %v4902 = vadd.f32 %v2533, %v4901
    %v4903 = vpop.f32.mrb[0].mxu0
    %v4904 = vadd.f32 %v2537, %v4903
    %v4905 = vpop.f32.mrb[0].mxu0
    %v4906 = vpop.f32.mrb[0].mxu0
    %4907 = vdwg.mxu0
    %4908 = vmatprep.subr.bf16.mxu0 %v3258
    %4909 = vmatpush1.bf16.msra.mxu0 %v3257
    %4910 = vmatprep.subr.bf16.mxu0 %v3261
    %4911 = vmatpush1.bf16.msra.mxu0 %v3260
    %4912 = vmatprep.subr.bf16.mxu0 %v3264
    %4913 = vmatpush1.bf16.msra.mxu0 %v3263
    %4914 = vmatprep.subr.bf16.mxu0 %v3267
    %4915 = vmatpush1.bf16.msra.mxu0 %v3266
    %4916 = vmatprep.subr.bf16.mxu0 %v3270
    %4917 = vmatpush1.bf16.msra.mxu0 %v3269
    %4918 = vmatprep.subr.bf16.mxu0 %v3273
    %4919 = vmatpush1.bf16.msra.mxu0 %v3272
    %4920 = vmatprep.subr.bf16.mxu0 %v3276
    %4921 = vmatpush1.bf16.msra.mxu0 %v3275
    %4922 = vmatprep.subr.bf16.mxu0 %v3279
    %4923 = vmatpush1.bf16.msra.mxu0 %v3278
    %4924 = vmatprep.subr.bf16.mxu0 0
    %4925 = vmatpush1.bf16.msra.mxu0 0
    %4926 = vmatprep.subr.bf16.mxu0 0
    %4927 = vmatpush1.bf16.msra.mxu0 0
    %4928 = vmatprep.subr.bf16.mxu0 0
    %4929 = vmatpush1.bf16.msra.mxu0 0
    %4930 = vmatprep.subr.bf16.mxu0 0
    %4931 = vmatpush1.bf16.msra.mxu0 0
    %4932 = vmatprep.subr.bf16.mxu0 0
    %4933 = vmatpush1.bf16.msra.mxu0 0
    %4934 = vmatprep.subr.bf16.mxu0 0
    %4935 = vmatpush1.bf16.msra.mxu0 0
    %4936 = vmatprep.subr.bf16.mxu0 0
    %4937 = vmatpush1.bf16.msra.mxu0 0
    %4938 = vmatprep.subr.bf16.mxu0 0
    %4939 = vmatpush1.bf16.msra.mxu0 0
    %4940 = vmatprep.mubr.bf16.mxu0 0
    %4941 = vmatmul.mubr.bf16.gmra.mrb[0].mxu0 %v4661
    %v4942 = vpop.f32.mrb[0].mxu0
    %v4943 = vadd.f32 %v3165, %v4942
    %v4944 = vpop.f32.mrb[0].mxu0
    %v4945 = vadd.f32 %v3169, %v4944
    %v4946 = vpop.f32.mrb[0].mxu0
    %v4947 = vpop.f32.mrb[0].mxu0
    %4948 = vdwg.mxu0
    %4949 = vmatprep.subr.bf16.mxu0 0
    %4950 = vmatpush1.bf16.msra.mxu0 %v3259
    %4951 = vmatprep.subr.bf16.mxu0 0
    %4952 = vmatpush1.bf16.msra.mxu0 %v3262
    %4953 = vmatprep.subr.bf16.mxu0 0
    %4954 = vmatpush1.bf16.msra.mxu0 %v3265
    %4955 = vmatprep.subr.bf16.mxu0 0
    %4956 = vmatpush1.bf16.msra.mxu0 %v3268
    %4957 = vmatprep.subr.bf16.mxu0 0
    %4958 = vmatpush1.bf16.msra.mxu0 %v3271
    %4959 = vmatprep.subr.bf16.mxu0 0
    %4960 = vmatpush1.bf16.msra.mxu0 %v3274
    %4961 = vmatprep.subr.bf16.mxu0 0
    %4962 = vmatpush1.bf16.msra.mxu0 %v3277
    %4963 = vmatprep.subr.bf16.mxu0 0
    %4964 = vmatpush1.bf16.msra.mxu0 %v3280
    %4965 = vmatprep.subr.bf16.mxu0 0
    %4966 = vmatpush1.bf16.msra.mxu0 0
    %4967 = vmatprep.subr.bf16.mxu0 0
    %4968 = vmatpush1.bf16.msra.mxu0 0
    %4969 = vmatprep.subr.bf16.mxu0 0
    %4970 = vmatpush1.bf16.msra.mxu0 0
    %4971 = vmatprep.subr.bf16.mxu0 0
    %4972 = vmatpush1.bf16.msra.mxu0 0
    %4973 = vmatprep.subr.bf16.mxu0 0
    %4974 = vmatpush1.bf16.msra.mxu0 0
    %4975 = vmatprep.subr.bf16.mxu0 0
    %4976 = vmatpush1.bf16.msra.mxu0 0
    %4977 = vmatprep.subr.bf16.mxu0 0
    %4978 = vmatpush1.bf16.msra.mxu0 0
    %4979 = vmatprep.subr.bf16.mxu0 0
    %4980 = vmatpush1.bf16.msra.mxu0 0
    %4981 = vmatprep.mubr.bf16.mxu0 0
    %4982 = vmatmul.mubr.bf16.gmra.mrb[0].mxu0 %v4661
    %v4983 = vpop.f32.mrb[0].mxu0
    %v4984 = vadd.f32 %v3173, %v4983
    %v4985 = vpop.f32.mrb[0].mxu0
    %v4986 = vpop.f32.mrb[0].mxu0
    %v4987 = vpop.f32.mrb[0].mxu0
    %4988 = vdwg.mxu0
    %s4989 = smul.u32 6, 3
    %s4990 = smul.addr %s4989, 8
    %s4991 = scalar_lea.vmem [#allocation2], %s4990
    %v4992 = vld [vmem:[%s4991] sm:$0xff]
    %v4993 = vld [vmem:[%s4991 + $0x8] sm:$0xff]
    %v4994 = vld [vmem:[%s4991 + $0x10] sm:$0xff]
    %v4995 = vadd.f32 %v4992, %v4697
    %v4996 = vxor.u32 %v4995, 2147483648
    %v4997 = vmul.f32 %v4996, 1.442695
    %v4998 = vpow.pop %v4997
    %v4999 = vadd.f32 %v4998, 1.0
    %v5000 = vrcp.pop %v4999
    %v5001 = vmul.f32 1.0, %v5000
    %v5002 = vadd.f32 %v4993, %v4699
    %v5003 = vxor.u32 %v5002, 2147483648
    %v5004 = vmul.f32 %v5003, 1.442695
    %v5005 = vpow.pop %v5004
    %v5006 = vadd.f32 %v5005, 1.0
    %v5007 = vrcp.pop %v5006
    %v5008 = vmul.f32 1.0, %v5007
    %v5009 = vmul.f32 %v5001, %v4738
    %v5010 = vadd.f32 %v4994, %v5009
    %v5011 = vtanh.pop %v5010
    %v5012 = vsub.f32 1.0, %v5008
    %v5013 = vmul.f32 %v5012, %v5011
    %v5014 = vmul.f32 %v5008, %v4614
    %v5015 = vadd.f32 %v5013, %v5014
    %v5016 = vadd.f32 %v4740, %v4820
    %v5017 = vxor.u32 %v5016, 2147483648
    %v5018 = vmul.f32 %v5017, 1.442695
    %v5019 = vpow.pop %v5018
    %v5020 = vadd.f32 %v5019, 1.0
    %v5021 = vrcp.pop %v5020
    %v5022 = vmul.f32 1.0, %v5021
    %v5023 = vadd.f32 %v4779, %v4822
    %v5024 = vxor.u32 %v5023, 2147483648
    %v5025 = vmul.f32 %v5024, 1.442695
    %v5026 = vpow.pop %v5025
    %v5027 = vadd.f32 %v5026, 1.0
    %v5028 = vrcp.pop %v5027
    %v5029 = vmul.f32 1.0, %v5028
    %v5030 = vmul.f32 %v5022, %v4861
    %v5031 = vadd.f32 %v4781, %v5030
    %v5032 = vtanh.pop %v5031
    %v5033 = vsub.f32 1.0, %v5029
    %v5034 = vmul.f32 %v5033, %v5032
    %v5035 = vmul.f32 %v5029, %v4635
    %v5036 = vadd.f32 %v5034, %v5035
    %v5037 = vadd.f32 %v4863, %v4943
    %v5038 = vxor.u32 %v5037, 2147483648
    %v5039 = vmul.f32 %v5038, 1.442695
    %v5040 = vpow.pop %v5039
    %v5041 = vadd.f32 %v5040, 1.0
    %v5042 = vrcp.pop %v5041
    %v5043 = vmul.f32 1.0, %v5042
    %v5044 = vadd.f32 %v4902, %v4945
    %v5045 = vxor.u32 %v5044, 2147483648
    %v5046 = vmul.f32 %v5045, 1.442695
    %v5047 = vpow.pop %v5046
    %v5048 = vadd.f32 %v5047, 1.0
    %v5049 = vrcp.pop %v5048
    %v5050 = vmul.f32 1.0, %v5049
    %v5051 = vmul.f32 %v5043, %v4984
    %v5052 = vadd.f32 %v4904, %v5051
    %v5053 = vtanh.pop %v5052
    %v5054 = vsub.f32 1.0, %v5050
    %v5055 = vmul.f32 %v5054, %v5053
    %v5056 = vmul.f32 %v5050, %v4656
    %v5057 = vadd.f32 %v5055, %v5056
    %s5058 = scalar_lea.vmem [#allocation15], 32
    %5059 = vst [vmem:[%s5058] sm:$0xff] %v5057
    %v5060 = vpack.c.bf16 %v5015, %v5015
    %v5061 = vpack.c.bf16 %v5036, %v5036
    %v5062 = vpack.c.bf16 %v5057, %v5057
    %5063 = vmatprep.subr.bf16.mxu0 %v2138
    %5064 = vmatpush1.bf16.msra.mxu0 %v2137
    %5065 = vmatprep.subr.bf16.mxu0 %v2142
    %5066 = vmatpush1.bf16.msra.mxu0 %v2141
    %5067 = vmatprep.subr.bf16.mxu0 %v2146
    %5068 = vmatpush1.bf16.msra.mxu0 %v2145
    %5069 = vmatprep.subr.bf16.mxu0 %v2150
    %5070 = vmatpush1.bf16.msra.mxu0 %v2149
    %5071 = vmatprep.subr.bf16.mxu0 %v2154
    %5072 = vmatpush1.bf16.msra.mxu0 %v2153
    %5073 = vmatprep.subr.bf16.mxu0 %v2158
    %5074 = vmatpush1.bf16.msra.mxu0 %v2157
    %5075 = vmatprep.subr.bf16.mxu0 %v2162
    %5076 = vmatpush1.bf16.msra.mxu0 %v2161
    %5077 = vmatprep.subr.bf16.mxu0 %v2166
    %5078 = vmatpush1.bf16.msra.mxu0 %v2165
    %5079 = vmatprep.subr.bf16.mxu0 0
    %5080 = vmatpush1.bf16.msra.mxu0 0
    %5081 = vmatprep.subr.bf16.mxu0 0
    %5082 = vmatpush1.bf16.msra.mxu0 0
    %5083 = vmatprep.subr.bf16.mxu0 0
    %5084 = vmatpush1.bf16.msra.mxu0 0
    %5085 = vmatprep.subr.bf16.mxu0 0
    %5086 = vmatpush1.bf16.msra.mxu0 0
    %5087 = vmatprep.subr.bf16.mxu0 0
    %5088 = vmatpush1.bf16.msra.mxu0 0
    %5089 = vmatprep.subr.bf16.mxu0 0
    %5090 = vmatpush1.bf16.msra.mxu0 0
    %5091 = vmatprep.subr.bf16.mxu0 0
    %5092 = vmatpush1.bf16.msra.mxu0 0
    %5093 = vmatprep.subr.bf16.mxu0 0
    %5094 = vmatpush1.bf16.msra.mxu0 0
    %5095 = vmatprep.mubr.bf16.mxu0 0
    %5096 = vmatmul.mubr.bf16.gmra.mrb[0].mxu0 %v5060
    %v5097 = vpop.f32.mrb[0].mxu0
    %v5098 = vadd.f32 %v2014, %v5097
    %v5099 = vpop.f32.mrb[0].mxu0
    %v5100 = vadd.f32 %v2018, %v5099
    %v5101 = vpop.f32.mrb[0].mxu0
    %v5102 = vpop.f32.mrb[0].mxu0
    %5103 = vdwg.mxu0
    %5104 = vmatprep.subr.bf16.mxu0 %v2140
    %5105 = vmatpush1.bf16.msra.mxu0 %v2139
    %5106 = vmatprep.subr.bf16.mxu0 %v2144
    %5107 = vmatpush1.bf16.msra.mxu0 %v2143
    %5108 = vmatprep.subr.bf16.mxu0 %v2148
    %5109 = vmatpush1.bf16.msra.mxu0 %v2147
    %5110 = vmatprep.subr.bf16.mxu0 %v2152
    %5111 = vmatpush1.bf16.msra.mxu0 %v2151
    %5112 = vmatprep.subr.bf16.mxu0 %v2156
    %5113 = vmatpush1.bf16.msra.mxu0 %v2155
    %5114 = vmatprep.subr.bf16.mxu0 %v2160
    %5115 = vmatpush1.bf16.msra.mxu0 %v2159
    %5116 = vmatprep.subr.bf16.mxu0 %v2164
    %5117 = vmatpush1.bf16.msra.mxu0 %v2163
    %5118 = vmatprep.subr.bf16.mxu0 %v2168
    %5119 = vmatpush1.bf16.msra.mxu0 %v2167
    %5120 = vmatprep.subr.bf16.mxu0 0
    %5121 = vmatpush1.bf16.msra.mxu0 0
    %5122 = vmatprep.subr.bf16.mxu0 0
    %5123 = vmatpush1.bf16.msra.mxu0 0
    %5124 = vmatprep.subr.bf16.mxu0 0
    %5125 = vmatpush1.bf16.msra.mxu0 0
    %5126 = vmatprep.subr.bf16.mxu0 0
    %5127 = vmatpush1.bf16.msra.mxu0 0
    %5128 = vmatprep.subr.bf16.mxu0 0
    %5129 = vmatpush1.bf16.msra.mxu0 0
    %5130 = vmatprep.subr.bf16.mxu0 0
    %5131 = vmatpush1.bf16.msra.mxu0 0
    %5132 = vmatprep.subr.bf16.mxu0 0
    %5133 = vmatpush1.bf16.msra.mxu0 0
    %5134 = vmatprep.subr.bf16.mxu0 0
    %5135 = vmatpush1.bf16.msra.mxu0 0
    %5136 = vmatprep.mubr.bf16.mxu0 0
    %5137 = vmatmul.mubr.bf16.gmra.mrb[0].mxu0 %v5060
    %v5138 = vpop.f32.mrb[0].mxu0
    %v5139 = vadd.f32 %v2022, %v5138
    %v5140 = vpop.f32.mrb[0].mxu0
    %v5141 = vadd.f32 %v2026, %v5140
    %v5142 = vpop.f32.mrb[0].mxu0
    %v5143 = vpop.f32.mrb[0].mxu0
    %5144 = vdwg.mxu0
    %5145 = vmatprep.subr.bf16.mxu0 %v2359
    %5146 = vmatpush1.bf16.msra.mxu0 %v2358
    %5147 = vmatprep.subr.bf16.mxu0 %v2361
    %5148 = vmatpush1.bf16.msra.mxu0 %v2360
    %5149 = vmatprep.subr.bf16.mxu0 %v2363
    %5150 = vmatpush1.bf16.msra.mxu0 %v2362
    %5151 = vmatprep.subr.bf16.mxu0 %v2365
    %5152 = vmatpush1.bf16.msra.mxu0 %v2364
    %5153 = vmatprep.subr.bf16.mxu0 %v2367
    %5154 = vmatpush1.bf16.msra.mxu0 %v2366
    %5155 = vmatprep.subr.bf16.mxu0 %v2369
    %5156 = vmatpush1.bf16.msra.mxu0 %v2368
    %5157 = vmatprep.subr.bf16.mxu0 %v2371
    %5158 = vmatpush1.bf16.msra.mxu0 %v2370
    %5159 = vmatprep.subr.bf16.mxu0 %v2373
    %5160 = vmatpush1.bf16.msra.mxu0 %v2372
    %5161 = vmatprep.subr.bf16.mxu0 0
    %5162 = vmatpush1.bf16.msra.mxu0 0
    %5163 = vmatprep.subr.bf16.mxu0 0
    %5164 = vmatpush1.bf16.msra.mxu0 0
    %5165 = vmatprep.subr.bf16.mxu0 0
    %5166 = vmatpush1.bf16.msra.mxu0 0
    %5167 = vmatprep.subr.bf16.mxu0 0
    %5168 = vmatpush1.bf16.msra.mxu0 0
    %5169 = vmatprep.subr.bf16.mxu0 0
    %5170 = vmatpush1.bf16.msra.mxu0 0
    %5171 = vmatprep.subr.bf16.mxu0 0
    %5172 = vmatpush1.bf16.msra.mxu0 0
    %5173 = vmatprep.subr.bf16.mxu0 0
    %5174 = vmatpush1.bf16.msra.mxu0 0
    %5175 = vmatprep.subr.bf16.mxu0 0
    %5176 = vmatpush1.bf16.msra.mxu0 0
    %5177 = vmatprep.mubr.bf16.mxu0 0
    %5178 = vmatmul.mubr.bf16.gmra.mrb[0].mxu0 %v5060
    %v5179 = vpop.f32.mrb[0].mxu0
    %v5180 = vadd.f32 %v2030, %v5179
    %v5181 = vpop.f32.mrb[0].mxu0
    %v5182 = vadd.f32 %v2034, %v5181
    %v5183 = vpop.f32.mrb[0].mxu0
    %v5184 = vpop.f32.mrb[0].mxu0
    %5185 = vdwg.mxu0
    %5186 = vmatprep.subr.bf16.mxu0 %v2641
    %5187 = vmatpush1.bf16.msra.mxu0 %v2640
    %5188 = vmatprep.subr.bf16.mxu0 %v2645
    %5189 = vmatpush1.bf16.msra.mxu0 %v2644
    %5190 = vmatprep.subr.bf16.mxu0 %v2649
    %5191 = vmatpush1.bf16.msra.mxu0 %v2648
    %5192 = vmatprep.subr.bf16.mxu0 %v2653
    %5193 = vmatpush1.bf16.msra.mxu0 %v2652
    %5194 = vmatprep.subr.bf16.mxu0 %v2657
    %5195 = vmatpush1.bf16.msra.mxu0 %v2656
    %5196 = vmatprep.subr.bf16.mxu0 %v2661
    %5197 = vmatpush1.bf16.msra.mxu0 %v2660
    %5198 = vmatprep.subr.bf16.mxu0 %v2665
    %5199 = vmatpush1.bf16.msra.mxu0 %v2664
    %5200 = vmatprep.subr.bf16.mxu0 %v2669
    %5201 = vmatpush1.bf16.msra.mxu0 %v2668
    %5202 = vmatprep.subr.bf16.mxu0 0
    %5203 = vmatpush1.bf16.msra.mxu0 0
    %5204 = vmatprep.subr.bf16.mxu0 0
    %5205 = vmatpush1.bf16.msra.mxu0 0
    %5206 = vmatprep.subr.bf16.mxu0 0
    %5207 = vmatpush1.bf16.msra.mxu0 0
    %5208 = vmatprep.subr.bf16.mxu0 0
    %5209 = vmatpush1.bf16.msra.mxu0 0
    %5210 = vmatprep.subr.bf16.mxu0 0
    %5211 = vmatpush1.bf16.msra.mxu0 0
    %5212 = vmatprep.subr.bf16.mxu0 0
    %5213 = vmatpush1.bf16.msra.mxu0 0
    %5214 = vmatprep.subr.bf16.mxu0 0
    %5215 = vmatpush1.bf16.msra.mxu0 0
    %5216 = vmatprep.subr.bf16.mxu0 0
    %5217 = vmatpush1.bf16.msra.mxu0 0
    %5218 = vmatprep.mubr.bf16.mxu0 0
    %5219 = vmatmul.mubr.bf16.gmra.mrb[0].mxu0 %v5061
    %v5220 = vpop.f32.mrb[0].mxu0
    %v5221 = vadd.f32 %v2517, %v5220
    %v5222 = vpop.f32.mrb[0].mxu0
    %v5223 = vadd.f32 %v2521, %v5222
    %v5224 = vpop.f32.mrb[0].mxu0
    %v5225 = vpop.f32.mrb[0].mxu0
    %5226 = vdwg.mxu0
    %5227 = vmatprep.subr.bf16.mxu0 %v2643
    %5228 = vmatpush1.bf16.msra.mxu0 %v2642
    %5229 = vmatprep.subr.bf16.mxu0 %v2647
    %5230 = vmatpush1.bf16.msra.mxu0 %v2646
    %5231 = vmatprep.subr.bf16.mxu0 %v2651
    %5232 = vmatpush1.bf16.msra.mxu0 %v2650
    %5233 = vmatprep.subr.bf16.mxu0 %v2655
    %5234 = vmatpush1.bf16.msra.mxu0 %v2654
    %5235 = vmatprep.subr.bf16.mxu0 %v2659
    %5236 = vmatpush1.bf16.msra.mxu0 %v2658
    %5237 = vmatprep.subr.bf16.mxu0 %v2663
    %5238 = vmatpush1.bf16.msra.mxu0 %v2662
    %5239 = vmatprep.subr.bf16.mxu0 %v2667
    %5240 = vmatpush1.bf16.msra.mxu0 %v2666
    %5241 = vmatprep.subr.bf16.mxu0 %v2671
    %5242 = vmatpush1.bf16.msra.mxu0 %v2670
    %5243 = vmatprep.subr.bf16.mxu0 0
    %5244 = vmatpush1.bf16.msra.mxu0 0
    %5245 = vmatprep.subr.bf16.mxu0 0
    %5246 = vmatpush1.bf16.msra.mxu0 0
    %5247 = vmatprep.subr.bf16.mxu0 0
    %5248 = vmatpush1.bf16.msra.mxu0 0
    %5249 = vmatprep.subr.bf16.mxu0 0
    %5250 = vmatpush1.bf16.msra.mxu0 0
    %5251 = vmatprep.subr.bf16.mxu0 0
    %5252 = vmatpush1.bf16.msra.mxu0 0
    %5253 = vmatprep.subr.bf16.mxu0 0
    %5254 = vmatpush1.bf16.msra.mxu0 0
    %5255 = vmatprep.subr.bf16.mxu0 0
    %5256 = vmatpush1.bf16.msra.mxu0 0
    %5257 = vmatprep.subr.bf16.mxu0 0
    %5258 = vmatpush1.bf16.msra.mxu0 0
    %5259 = vmatprep.mubr.bf16.mxu0 0
    %5260 = vmatmul.mubr.bf16.gmra.mrb[0].mxu0 %v5061
    %v5261 = vpop.f32.mrb[0].mxu0
    %v5262 = vadd.f32 %v2525, %v5261
    %v5263 = vpop.f32.mrb[0].mxu0
    %v5264 = vadd.f32 %v2529, %v5263
    %v5265 = vpop.f32.mrb[0].mxu0
    %v5266 = vpop.f32.mrb[0].mxu0
    %5267 = vdwg.mxu0
    %5268 = vmatprep.subr.bf16.mxu0 %v3007
    %5269 = vmatpush1.bf16.msra.mxu0 %v3006
    %5270 = vmatprep.subr.bf16.mxu0 %v3009
    %5271 = vmatpush1.bf16.msra.mxu0 %v3008
    %5272 = vmatprep.subr.bf16.mxu0 %v3011
    %5273 = vmatpush1.bf16.msra.mxu0 %v3010
    %5274 = vmatprep.subr.bf16.mxu0 %v3013
    %5275 = vmatpush1.bf16.msra.mxu0 %v3012
    %5276 = vmatprep.subr.bf16.mxu0 %v3015
    %5277 = vmatpush1.bf16.msra.mxu0 %v3014
    %5278 = vmatprep.subr.bf16.mxu0 %v3017
    %5279 = vmatpush1.bf16.msra.mxu0 %v3016
    %5280 = vmatprep.subr.bf16.mxu0 %v3019
    %5281 = vmatpush1.bf16.msra.mxu0 %v3018
    %5282 = vmatprep.subr.bf16.mxu0 %v3021
    %5283 = vmatpush1.bf16.msra.mxu0 %v3020
    %5284 = vmatprep.subr.bf16.mxu0 0
    %5285 = vmatpush1.bf16.msra.mxu0 0
    %5286 = vmatprep.subr.bf16.mxu0 0
    %5287 = vmatpush1.bf16.msra.mxu0 0
    %5288 = vmatprep.subr.bf16.mxu0 0
    %5289 = vmatpush1.bf16.msra.mxu0 0
    %5290 = vmatprep.subr.bf16.mxu0 0
    %5291 = vmatpush1.bf16.msra.mxu0 0
    %5292 = vmatprep.subr.bf16.mxu0 0
    %5293 = vmatpush1.bf16.msra.mxu0 0
    %5294 = vmatprep.subr.bf16.mxu0 0
    %5295 = vmatpush1.bf16.msra.mxu0 0
    %5296 = vmatprep.subr.bf16.mxu0 0
    %5297 = vmatpush1.bf16.msra.mxu0 0
    %5298 = vmatprep.subr.bf16.mxu0 0
    %5299 = vmatpush1.bf16.msra.mxu0 0
    %5300 = vmatprep.mubr.bf16.mxu0 0
    %5301 = vmatmul.mubr.bf16.gmra.mrb[0].mxu0 %v5061
    %v5302 = vpop.f32.mrb[0].mxu0
    %v5303 = vadd.f32 %v2533, %v5302
    %v5304 = vpop.f32.mrb[0].mxu0
    %v5305 = vadd.f32 %v2537, %v5304
    %v5306 = vpop.f32.mrb[0].mxu0
    %v5307 = vpop.f32.mrb[0].mxu0
    %5308 = vdwg.mxu0
    %5309 = vmatprep.subr.bf16.mxu0 %v3258
    %5310 = vmatpush1.bf16.msra.mxu0 %v3257
    %5311 = vmatprep.subr.bf16.mxu0 %v3261
    %5312 = vmatpush1.bf16.msra.mxu0 %v3260
    %5313 = vmatprep.subr.bf16.mxu0 %v3264
    %5314 = vmatpush1.bf16.msra.mxu0 %v3263
    %5315 = vmatprep.subr.bf16.mxu0 %v3267
    %5316 = vmatpush1.bf16.msra.mxu0 %v3266
    %5317 = vmatprep.subr.bf16.mxu0 %v3270
    %5318 = vmatpush1.bf16.msra.mxu0 %v3269
    %5319 = vmatprep.subr.bf16.mxu0 %v3273
    %5320 = vmatpush1.bf16.msra.mxu0 %v3272
    %5321 = vmatprep.subr.bf16.mxu0 %v3276
    %5322 = vmatpush1.bf16.msra.mxu0 %v3275
    %5323 = vmatprep.subr.bf16.mxu0 %v3279
    %5324 = vmatpush1.bf16.msra.mxu0 %v3278
    %5325 = vmatprep.subr.bf16.mxu0 0
    %5326 = vmatpush1.bf16.msra.mxu0 0
    %5327 = vmatprep.subr.bf16.mxu0 0
    %5328 = vmatpush1.bf16.msra.mxu0 0
    %5329 = vmatprep.subr.bf16.mxu0 0
    %5330 = vmatpush1.bf16.msra.mxu0 0
    %5331 = vmatprep.subr.bf16.mxu0 0
    %5332 = vmatpush1.bf16.msra.mxu0 0
    %5333 = vmatprep.subr.bf16.mxu0 0
    %5334 = vmatpush1.bf16.msra.mxu0 0
    %5335 = vmatprep.subr.bf16.mxu0 0
    %5336 = vmatpush1.bf16.msra.mxu0 0
    %5337 = vmatprep.subr.bf16.mxu0 0
    %5338 = vmatpush1.bf16.msra.mxu0 0
    %5339 = vmatprep.subr.bf16.mxu0 0
    %5340 = vmatpush1.bf16.msra.mxu0 0
    %5341 = vmatprep.mubr.bf16.mxu0 0
    %5342 = vmatmul.mubr.bf16.gmra.mrb[0].mxu0 %v5062
    %v5343 = vpop.f32.mrb[0].mxu0
    %v5344 = vadd.f32 %v3165, %v5343
    %v5345 = vpop.f32.mrb[0].mxu0
    %v5346 = vadd.f32 %v3169, %v5345
    %v5347 = vpop.f32.mrb[0].mxu0
    %v5348 = vpop.f32.mrb[0].mxu0
    %5349 = vdwg.mxu0
    %5350 = vmatprep.subr.bf16.mxu0 0
    %5351 = vmatpush1.bf16.msra.mxu0 %v3259
    %5352 = vmatprep.subr.bf16.mxu0 0
    %5353 = vmatpush1.bf16.msra.mxu0 %v3262
    %5354 = vmatprep.subr.bf16.mxu0 0
    %5355 = vmatpush1.bf16.msra.mxu0 %v3265
    %5356 = vmatprep.subr.bf16.mxu0 0
    %5357 = vmatpush1.bf16.msra.mxu0 %v3268
    %5358 = vmatprep.subr.bf16.mxu0 0
    %5359 = vmatpush1.bf16.msra.mxu0 %v3271
    %5360 = vmatprep.subr.bf16.mxu0 0
    %5361 = vmatpush1.bf16.msra.mxu0 %v3274
    %5362 = vmatprep.subr.bf16.mxu0 0
    %5363 = vmatpush1.bf16.msra.mxu0 %v3277
    %5364 = vmatprep.subr.bf16.mxu0 0
    %5365 = vmatpush1.bf16.msra.mxu0 %v3280
    %5366 = vmatprep.subr.bf16.mxu0 0
    %5367 = vmatpush1.bf16.msra.mxu0 0
    %5368 = vmatprep.subr.bf16.mxu0 0
    %5369 = vmatpush1.bf16.msra.mxu0 0
    %5370 = vmatprep.subr.bf16.mxu0 0
    %5371 = vmatpush1.bf16.msra.mxu0 0
    %5372 = vmatprep.subr.bf16.mxu0 0
    %5373 = vmatpush1.bf16.msra.mxu0 0
    %5374 = vmatprep.subr.bf16.mxu0 0
    %5375 = vmatpush1.bf16.msra.mxu0 0
    %5376 = vmatprep.subr.bf16.mxu0 0
    %5377 = vmatpush1.bf16.msra.mxu0 0
    %5378 = vmatprep.subr.bf16.mxu0 0
    %5379 = vmatpush1.bf16.msra.mxu0 0
    %5380 = vmatprep.subr.bf16.mxu0 0
    %5381 = vmatpush1.bf16.msra.mxu0 0
    %5382 = vmatprep.mubr.bf16.mxu0 0
    %5383 = vmatmul.mubr.bf16.gmra.mrb[0].mxu0 %v5062
    %v5384 = vpop.f32.mrb[0].mxu0
    %v5385 = vadd.f32 %v3173, %v5384
    %v5386 = vpop.f32.mrb[0].mxu0
    %v5387 = vpop.f32.mrb[0].mxu0
    %v5388 = vpop.f32.mrb[0].mxu0
    %5389 = vdwg.mxu0
    %s5390 = smul.u32 7, 3
    %s5391 = smul.addr %s5390, 8
    %s5392 = scalar_lea.vmem [#allocation2], %s5391
    %v5393 = vld [vmem:[%s5392] sm:$0xff]
    %v5394 = vld [vmem:[%s5392 + $0x8] sm:$0xff]
    %v5395 = vld [vmem:[%s5392 + $0x10] sm:$0xff]
    %v5396 = vadd.f32 %v5393, %v5098
    %v5397 = vxor.u32 %v5396, 2147483648
    %v5398 = vmul.f32 %v5397, 1.442695
    %v5399 = vpow.pop %v5398
    %v5400 = vadd.f32 %v5399, 1.0
    %v5401 = vrcp.pop %v5400
    %v5402 = vmul.f32 1.0, %v5401
    %v5403 = vadd.f32 %v5394, %v5100
    %v5404 = vxor.u32 %v5403, 2147483648
    %v5405 = vmul.f32 %v5404, 1.442695
    %v5406 = vpow.pop %v5405
    %v5407 = vadd.f32 %v5406, 1.0
    %v5408 = vrcp.pop %v5407
    %v5409 = vmul.f32 1.0, %v5408
    %v5410 = vmul.f32 %v5402, %v5139
    %v5411 = vadd.f32 %v5395, %v5410
    %v5412 = vtanh.pop %v5411
    %v5413 = vsub.f32 1.0, %v5409
    %v5414 = vmul.f32 %v5413, %v5412
    %v5415 = vmul.f32 %v5409, %v5015
    %v5416 = vadd.f32 %v5414, %v5415
    %v5417 = vadd.f32 %v5141, %v5221
    %v5418 = vxor.u32 %v5417, 2147483648
    %v5419 = vmul.f32 %v5418, 1.442695
    %v5420 = vpow.pop %v5419
    %v5421 = vadd.f32 %v5420, 1.0
    %v5422 = vrcp.pop %v5421
    %v5423 = vmul.f32 1.0, %v5422
    %v5424 = vadd.f32 %v5180, %v5223
    %v5425 = vxor.u32 %v5424, 2147483648
    %v5426 = vmul.f32 %v5425, 1.442695
    %v5427 = vpow.pop %v5426
    %v5428 = vadd.f32 %v5427, 1.0
    %v5429 = vrcp.pop %v5428
    %v5430 = vmul.f32 1.0, %v5429
    %v5431 = vmul.f32 %v5423, %v5262
    %v5432 = vadd.f32 %v5182, %v5431
    %v5433 = vtanh.pop %v5432
    %v5434 = vsub.f32 1.0, %v5430
    %v5435 = vmul.f32 %v5434, %v5433
    %v5436 = vmul.f32 %v5430, %v5036
    %v5437 = vadd.f32 %v5435, %v5436
    %v5438 = vadd.f32 %v5264, %v5344
    %v5439 = vxor.u32 %v5438, 2147483648
    %v5440 = vmul.f32 %v5439, 1.442695
    %v5441 = vpow.pop %v5440
    %v5442 = vadd.f32 %v5441, 1.0
    %v5443 = vrcp.pop %v5442
    %v5444 = vmul.f32 1.0, %v5443
    %v5445 = vadd.f32 %v5303, %v5346
    %v5446 = vxor.u32 %v5445, 2147483648
    %v5447 = vmul.f32 %v5446, 1.442695
    %v5448 = vpow.pop %v5447
    %v5449 = vadd.f32 %v5448, 1.0
    %v5450 = vrcp.pop %v5449
    %v5451 = vmul.f32 1.0, %v5450
    %v5452 = vmul.f32 %v5444, %v5385
    %v5453 = vadd.f32 %v5305, %v5452
    %v5454 = vtanh.pop %v5453
    %v5455 = vsub.f32 1.0, %v5451
    %v5456 = vmul.f32 %v5455, %v5454
    %v5457 = vmul.f32 %v5451, %v5057
    %v5458 = vadd.f32 %v5456, %v5457
    %s5459 = scalar_lea.vmem [#allocation15], 40
    %5460 = vst [vmem:[%s5459] sm:$0xff] %v5458
    %v5461 = vpack.c.bf16 %v5416, %v5416
    %v5462 = vpack.c.bf16 %v5437, %v5437
    %v5463 = vpack.c.bf16 %v5458, %v5458
    %5464 = vmatprep.subr.bf16.mxu0 %v2140
    %5465 = vmatpush1.bf16.msra.mxu0 %v2139
    %5466 = vmatprep.subr.bf16.mxu0 %v2144
    %5467 = vmatpush1.bf16.msra.mxu0 %v2143
    %5468 = vmatprep.subr.bf16.mxu0 %v2148
    %5469 = vmatpush1.bf16.msra.mxu0 %v2147
    %5470 = vmatprep.subr.bf16.mxu0 %v2152
    %5471 = vmatpush1.bf16.msra.mxu0 %v2151
    %5472 = vmatprep.subr.bf16.mxu0 %v2156
    %5473 = vmatpush1.bf16.msra.mxu0 %v2155
    %5474 = vmatprep.subr.bf16.mxu0 %v2160
    %5475 = vmatpush1.bf16.msra.mxu0 %v2159
    %5476 = vmatprep.subr.bf16.mxu0 %v2164
    %5477 = vmatpush1.bf16.msra.mxu0 %v2163
    %5478 = vmatprep.subr.bf16.mxu0 %v2168
    %5479 = vmatpush1.bf16.msra.mxu0 %v2167
    %5480 = vmatprep.subr.bf16.mxu0 0
    %5481 = vmatpush1.bf16.msra.mxu0 0
    %5482 = vmatprep.subr.bf16.mxu0 0
    %5483 = vmatpush1.bf16.msra.mxu0 0
    %5484 = vmatprep.subr.bf16.mxu0 0
    %5485 = vmatpush1.bf16.msra.mxu0 0
    %5486 = vmatprep.subr.bf16.mxu0 0
    %5487 = vmatpush1.bf16.msra.mxu0 0
    %5488 = vmatprep.subr.bf16.mxu0 0
    %5489 = vmatpush1.bf16.msra.mxu0 0
    %5490 = vmatprep.subr.bf16.mxu0 0
    %5491 = vmatpush1.bf16.msra.mxu0 0
    %5492 = vmatprep.subr.bf16.mxu0 0
    %5493 = vmatpush1.bf16.msra.mxu0 0
    %5494 = vmatprep.subr.bf16.mxu0 0
    %5495 = vmatpush1.bf16.msra.mxu0 0
    %5496 = vmatprep.mubr.bf16.mxu0 0
    %5497 = vmatmul.mubr.bf16.gmra.mrb[0].mxu0 %v5461
    %v5498 = vpop.f32.mrb[0].mxu0
    %v5499 = vpop.f32.mrb[0].mxu0
    %v5500 = vadd.f32 %v2026, %v5499
    %v5501 = vpop.f32.mrb[0].mxu0
    %v5502 = vpop.f32.mrb[0].mxu0
    %5503 = vdwg.mxu0
    %5504 = vmatprep.subr.bf16.mxu0 %v2359
    %5505 = vmatpush1.bf16.msra.mxu0 %v2358
    %5506 = vmatprep.subr.bf16.mxu0 %v2361
    %5507 = vmatpush1.bf16.msra.mxu0 %v2360
    %5508 = vmatprep.subr.bf16.mxu0 %v2363
    %5509 = vmatpush1.bf16.msra.mxu0 %v2362
    %5510 = vmatprep.subr.bf16.mxu0 %v2365
    %5511 = vmatpush1.bf16.msra.mxu0 %v2364
    %5512 = vmatprep.subr.bf16.mxu0 %v2367
    %5513 = vmatpush1.bf16.msra.mxu0 %v2366
    %5514 = vmatprep.subr.bf16.mxu0 %v2369
    %5515 = vmatpush1.bf16.msra.mxu0 %v2368
    %5516 = vmatprep.subr.bf16.mxu0 %v2371
    %5517 = vmatpush1.bf16.msra.mxu0 %v2370
    %5518 = vmatprep.subr.bf16.mxu0 %v2373
    %5519 = vmatpush1.bf16.msra.mxu0 %v2372
    %5520 = vmatprep.subr.bf16.mxu0 0
    %5521 = vmatpush1.bf16.msra.mxu0 0
    %5522 = vmatprep.subr.bf16.mxu0 0
    %5523 = vmatpush1.bf16.msra.mxu0 0
    %5524 = vmatprep.subr.bf16.mxu0 0
    %5525 = vmatpush1.bf16.msra.mxu0 0
    %5526 = vmatprep.subr.bf16.mxu0 0
    %5527 = vmatpush1.bf16.msra.mxu0 0
    %5528 = vmatprep.subr.bf16.mxu0 0
    %5529 = vmatpush1.bf16.msra.mxu0 0
    %5530 = vmatprep.subr.bf16.mxu0 0
    %5531 = vmatpush1.bf16.msra.mxu0 0
    %5532 = vmatprep.subr.bf16.mxu0 0
    %5533 = vmatpush1.bf16.msra.mxu0 0
    %5534 = vmatprep.subr.bf16.mxu0 0
    %5535 = vmatpush1.bf16.msra.mxu0 0
    %5536 = vmatprep.mubr.bf16.mxu0 0
    %5537 = vmatmul.mubr.bf16.gmra.mrb[0].mxu0 %v5461
    %v5538 = vpop.f32.mrb[0].mxu0
    %v5539 = vadd.f32 %v2030, %v5538
    %v5540 = vpop.f32.mrb[0].mxu0
    %v5541 = vadd.f32 %v2034, %v5540
    %v5542 = vpop.f32.mrb[0].mxu0
    %v5543 = vpop.f32.mrb[0].mxu0
    %5544 = vdwg.mxu0
    %5545 = vmatprep.subr.bf16.mxu0 %v2641
    %5546 = vmatpush1.bf16.msra.mxu0 %v2640
    %5547 = vmatprep.subr.bf16.mxu0 %v2645
    %5548 = vmatpush1.bf16.msra.mxu0 %v2644
    %5549 = vmatprep.subr.bf16.mxu0 %v2649
    %5550 = vmatpush1.bf16.msra.mxu0 %v2648
    %5551 = vmatprep.subr.bf16.mxu0 %v2653
    %5552 = vmatpush1.bf16.msra.mxu0 %v2652
    %5553 = vmatprep.subr.bf16.mxu0 %v2657
    %5554 = vmatpush1.bf16.msra.mxu0 %v2656
    %5555 = vmatprep.subr.bf16.mxu0 %v2661
    %5556 = vmatpush1.bf16.msra.mxu0 %v2660
    %5557 = vmatprep.subr.bf16.mxu0 %v2665
    %5558 = vmatpush1.bf16.msra.mxu0 %v2664
    %5559 = vmatprep.subr.bf16.mxu0 %v2669
    %5560 = vmatpush1.bf16.msra.mxu0 %v2668
    %5561 = vmatprep.subr.bf16.mxu0 0
    %5562 = vmatpush1.bf16.msra.mxu0 0
    %5563 = vmatprep.subr.bf16.mxu0 0
    %5564 = vmatpush1.bf16.msra.mxu0 0
    %5565 = vmatprep.subr.bf16.mxu0 0
    %5566 = vmatpush1.bf16.msra.mxu0 0
    %5567 = vmatprep.subr.bf16.mxu0 0
    %5568 = vmatpush1.bf16.msra.mxu0 0
    %5569 = vmatprep.subr.bf16.mxu0 0
    %5570 = vmatpush1.bf16.msra.mxu0 0
    %5571 = vmatprep.subr.bf16.mxu0 0
    %5572 = vmatpush1.bf16.msra.mxu0 0
    %5573 = vmatprep.subr.bf16.mxu0 0
    %5574 = vmatpush1.bf16.msra.mxu0 0
    %5575 = vmatprep.subr.bf16.mxu0 0
    %5576 = vmatpush1.bf16.msra.mxu0 0
    %5577 = vmatprep.mubr.bf16.mxu0 0
    %5578 = vmatmul.mubr.bf16.gmra.mrb[0].mxu0 %v5462
    %v5579 = vpop.f32.mrb[0].mxu0
    %v5580 = vadd.f32 %v2517, %v5579
    %v5581 = vpop.f32.mrb[0].mxu0
    %v5582 = vadd.f32 %v2521, %v5581
    %v5583 = vpop.f32.mrb[0].mxu0
    %v5584 = vpop.f32.mrb[0].mxu0
    %5585 = vdwg.mxu0
    %5586 = vmatprep.subr.bf16.mxu0 %v2643
    %5587 = vmatpush1.bf16.msra.mxu0 %v2642
    %5588 = vmatprep.subr.bf16.mxu0 %v2647
    %5589 = vmatpush1.bf16.msra.mxu0 %v2646
    %5590 = vmatprep.subr.bf16.mxu0 %v2651
    %5591 = vmatpush1.bf16.msra.mxu0 %v2650
    %5592 = vmatprep.subr.bf16.mxu0 %v2655
    %5593 = vmatpush1.bf16.msra.mxu0 %v2654
    %5594 = vmatprep.subr.bf16.mxu0 %v2659
    %5595 = vmatpush1.bf16.msra.mxu0 %v2658
    %5596 = vmatprep.subr.bf16.mxu0 %v2663
    %5597 = vmatpush1.bf16.msra.mxu0 %v2662
    %5598 = vmatprep.subr.bf16.mxu0 %v2667
    %5599 = vmatpush1.bf16.msra.mxu0 %v2666
    %5600 = vmatprep.subr.bf16.mxu0 %v2671
    %5601 = vmatpush1.bf16.msra.mxu0 %v2670
    %5602 = vmatprep.subr.bf16.mxu0 0
    %5603 = vmatpush1.bf16.msra.mxu0 0
    %5604 = vmatprep.subr.bf16.mxu0 0
    %5605 = vmatpush1.bf16.msra.mxu0 0
    %5606 = vmatprep.subr.bf16.mxu0 0
    %5607 = vmatpush1.bf16.msra.mxu0 0
    %5608 = vmatprep.subr.bf16.mxu0 0
    %5609 = vmatpush1.bf16.msra.mxu0 0
    %5610 = vmatprep.subr.bf16.mxu0 0
    %5611 = vmatpush1.bf16.msra.mxu0 0
    %5612 = vmatprep.subr.bf16.mxu0 0
    %5613 = vmatpush1.bf16.msra.mxu0 0
    %5614 = vmatprep.subr.bf16.mxu0 0
    %5615 = vmatpush1.bf16.msra.mxu0 0
    %5616 = vmatprep.subr.bf16.mxu0 0
    %5617 = vmatpush1.bf16.msra.mxu0 0
    %5618 = vmatprep.mubr.bf16.mxu0 0
    %5619 = vmatmul.mubr.bf16.gmra.mrb[0].mxu0 %v5462
    %v5620 = vpop.f32.mrb[0].mxu0
    %v5621 = vadd.f32 %v2525, %v5620
    %v5622 = vpop.f32.mrb[0].mxu0
    %v5623 = vadd.f32 %v2529, %v5622
    %v5624 = vpop.f32.mrb[0].mxu0
    %v5625 = vpop.f32.mrb[0].mxu0
    %5626 = vdwg.mxu0
    %5627 = vmatprep.subr.bf16.mxu0 %v3007
    %5628 = vmatpush1.bf16.msra.mxu0 %v3006
    %5629 = vmatprep.subr.bf16.mxu0 %v3009
    %5630 = vmatpush1.bf16.msra.mxu0 %v3008
    %5631 = vmatprep.subr.bf16.mxu0 %v3011
    %5632 = vmatpush1.bf16.msra.mxu0 %v3010
    %5633 = vmatprep.subr.bf16.mxu0 %v3013
    %5634 = vmatpush1.bf16.msra.mxu0 %v3012
    %5635 = vmatprep.subr.bf16.mxu0 %v3015
    %5636 = vmatpush1.bf16.msra.mxu0 %v3014
    %5637 = vmatprep.subr.bf16.mxu0 %v3017
    %5638 = vmatpush1.bf16.msra.mxu0 %v3016
    %5639 = vmatprep.subr.bf16.mxu0 %v3019
    %5640 = vmatpush1.bf16.msra.mxu0 %v3018
    %5641 = vmatprep.subr.bf16.mxu0 %v3021
    %5642 = vmatpush1.bf16.msra.mxu0 %v3020
    %5643 = vmatprep.subr.bf16.mxu0 0
    %5644 = vmatpush1.bf16.msra.mxu0 0
    %5645 = vmatprep.subr.bf16.mxu0 0
    %5646 = vmatpush1.bf16.msra.mxu0 0
    %5647 = vmatprep.subr.bf16.mxu0 0
    %5648 = vmatpush1.bf16.msra.mxu0 0
    %5649 = vmatprep.subr.bf16.mxu0 0
    %5650 = vmatpush1.bf16.msra.mxu0 0
    %5651 = vmatprep.subr.bf16.mxu0 0
    %5652 = vmatpush1.bf16.msra.mxu0 0
    %5653 = vmatprep.subr.bf16.mxu0 0
    %5654 = vmatpush1.bf16.msra.mxu0 0
    %5655 = vmatprep.subr.bf16.mxu0 0
    %5656 = vmatpush1.bf16.msra.mxu0 0
    %5657 = vmatprep.subr.bf16.mxu0 0
    %5658 = vmatpush1.bf16.msra.mxu0 0
    %5659 = vmatprep.mubr.bf16.mxu0 0
    %5660 = vmatmul.mubr.bf16.gmra.mrb[0].mxu0 %v5462
    %v5661 = vpop.f32.mrb[0].mxu0
    %v5662 = vadd.f32 %v2533, %v5661
    %v5663 = vpop.f32.mrb[0].mxu0
    %v5664 = vadd.f32 %v2537, %v5663
    %v5665 = vpop.f32.mrb[0].mxu0
    %v5666 = vpop.f32.mrb[0].mxu0
    %5667 = vdwg.mxu0
    %5668 = vmatprep.subr.bf16.mxu0 %v3258
    %5669 = vmatpush1.bf16.msra.mxu0 %v3257
    %5670 = vmatprep.subr.bf16.mxu0 %v3261
    %5671 = vmatpush1.bf16.msra.mxu0 %v3260
    %5672 = vmatprep.subr.bf16.mxu0 %v3264
    %5673 = vmatpush1.bf16.msra.mxu0 %v3263
    %5674 = vmatprep.subr.bf16.mxu0 %v3267
    %5675 = vmatpush1.bf16.msra.mxu0 %v3266
    %5676 = vmatprep.subr.bf16.mxu0 %v3270
    %5677 = vmatpush1.bf16.msra.mxu0 %v3269
    %5678 = vmatprep.subr.bf16.mxu0 %v3273
    %5679 = vmatpush1.bf16.msra.mxu0 %v3272
    %5680 = vmatprep.subr.bf16.mxu0 %v3276
    %5681 = vmatpush1.bf16.msra.mxu0 %v3275
    %5682 = vmatprep.subr.bf16.mxu0 %v3279
    %5683 = vmatpush1.bf16.msra.mxu0 %v3278
    %5684 = vmatprep.subr.bf16.mxu0 0
    %5685 = vmatpush1.bf16.msra.mxu0 0
    %5686 = vmatprep.subr.bf16.mxu0 0
    %5687 = vmatpush1.bf16.msra.mxu0 0
    %5688 = vmatprep.subr.bf16.mxu0 0
    %5689 = vmatpush1.bf16.msra.mxu0 0
    %5690 = vmatprep.subr.bf16.mxu0 0
    %5691 = vmatpush1.bf16.msra.mxu0 0
    %5692 = vmatprep.subr.bf16.mxu0 0
    %5693 = vmatpush1.bf16.msra.mxu0 0
    %5694 = vmatprep.subr.bf16.mxu0 0
    %5695 = vmatpush1.bf16.msra.mxu0 0
    %5696 = vmatprep.subr.bf16.mxu0 0
    %5697 = vmatpush1.bf16.msra.mxu0 0
    %5698 = vmatprep.subr.bf16.mxu0 0
    %5699 = vmatpush1.bf16.msra.mxu0 0
    %5700 = vmatprep.mubr.bf16.mxu0 0
    %5701 = vmatmul.mubr.bf16.gmra.mrb[0].mxu0 %v5463
    %v5702 = vpop.f32.mrb[0].mxu0
    %v5703 = vadd.f32 %v3165, %v5702
    %v5704 = vpop.f32.mrb[0].mxu0
    %v5705 = vadd.f32 %v3169, %v5704
    %v5706 = vpop.f32.mrb[0].mxu0
    %v5707 = vpop.f32.mrb[0].mxu0
    %5708 = vdwg.mxu0
    %5709 = vmatprep.subr.bf16.mxu0 0
    %5710 = vmatpush1.bf16.msra.mxu0 %v3259
    %5711 = vmatprep.subr.bf16.mxu0 0
    %5712 = vmatpush1.bf16.msra.mxu0 %v3262
    %5713 = vmatprep.subr.bf16.mxu0 0
    %5714 = vmatpush1.bf16.msra.mxu0 %v3265
    %5715 = vmatprep.subr.bf16.mxu0 0
    %5716 = vmatpush1.bf16.msra.mxu0 %v3268
    %5717 = vmatprep.subr.bf16.mxu0 0
    %5718 = vmatpush1.bf16.msra.mxu0 %v3271
    %5719 = vmatprep.subr.bf16.mxu0 0
    %5720 = vmatpush1.bf16.msra.mxu0 %v3274
    %5721 = vmatprep.subr.bf16.mxu0 0
    %5722 = vmatpush1.bf16.msra.mxu0 %v3277
    %5723 = vmatprep.subr.bf16.mxu0 0
    %5724 = vmatpush1.bf16.msra.mxu0 %v3280
    %5725 = vmatprep.subr.bf16.mxu0 0
    %5726 = vmatpush1.bf16.msra.mxu0 0
    %5727 = vmatprep.subr.bf16.mxu0 0
    %5728 = vmatpush1.bf16.msra.mxu0 0
    %5729 = vmatprep.subr.bf16.mxu0 0
    %5730 = vmatpush1.bf16.msra.mxu0 0
    %5731 = vmatprep.subr.bf16.mxu0 0
    %5732 = vmatpush1.bf16.msra.mxu0 0
    %5733 = vmatprep.subr.bf16.mxu0 0
    %5734 = vmatpush1.bf16.msra.mxu0 0
    %5735 = vmatprep.subr.bf16.mxu0 0
    %5736 = vmatpush1.bf16.msra.mxu0 0
    %5737 = vmatprep.subr.bf16.mxu0 0
    %5738 = vmatpush1.bf16.msra.mxu0 0
    %5739 = vmatprep.subr.bf16.mxu0 0
    %5740 = vmatpush1.bf16.msra.mxu0 0
    %5741 = vmatprep.mubr.bf16.mxu0 0
    %5742 = vmatmul.mubr.bf16.gmra.mrb[0].mxu0 %v5463
    %v5743 = vpop.f32.mrb[0].mxu0
    %v5744 = vadd.f32 %v3173, %v5743
    %v5745 = vpop.f32.mrb[0].mxu0
    %v5746 = vpop.f32.mrb[0].mxu0
    %v5747 = vpop.f32.mrb[0].mxu0
    %5748 = vdwg.mxu0
    %v5749 = vadd.f32 %v5500, %v5580
    %v5750 = vxor.u32 %v5749, 2147483648
    %v5751 = vmul.f32 %v5750, 1.442695
    %v5752 = vpow.pop %v5751
    %v5753 = vadd.f32 %v5752, 1.0
    %v5754 = vrcp.pop %v5753
    %v5755 = vmul.f32 1.0, %v5754
    %v5756 = vadd.f32 %v5539, %v5582
    %v5757 = vxor.u32 %v5756, 2147483648
    %v5758 = vmul.f32 %v5757, 1.442695
    %v5759 = vpow.pop %v5758
    %v5760 = vadd.f32 %v5759, 1.0
    %v5761 = vrcp.pop %v5760
    %v5762 = vmul.f32 1.0, %v5761
    %v5763 = vmul.f32 %v5755, %v5621
    %v5764 = vadd.f32 %v5541, %v5763
    %v5765 = vtanh.pop %v5764
    %v5766 = vsub.f32 1.0, %v5762
    %v5767 = vmul.f32 %v5766, %v5765
    %v5768 = vmul.f32 %v5762, %v5437
    %v5769 = vadd.f32 %v5767, %v5768
    %v5770 = vadd.f32 %v5623, %v5703
    %v5771 = vxor.u32 %v5770, 2147483648
    %v5772 = vmul.f32 %v5771, 1.442695
    %v5773 = vpow.pop %v5772
    %v5774 = vadd.f32 %v5773, 1.0
    %v5775 = vrcp.pop %v5774
    %v5776 = vmul.f32 1.0, %v5775
    %v5777 = vadd.f32 %v5662, %v5705
    %v5778 = vxor.u32 %v5777, 2147483648
    %v5779 = vmul.f32 %v5778, 1.442695
    %v5780 = vpow.pop %v5779
    %v5781 = vadd.f32 %v5780, 1.0
    %v5782 = vrcp.pop %v5781
    %v5783 = vmul.f32 1.0, %v5782
    %v5784 = vmul.f32 %v5776, %v5744
    %v5785 = vadd.f32 %v5664, %v5784
    %v5786 = vtanh.pop %v5785
    %v5787 = vsub.f32 1.0, %v5783
    %v5788 = vmul.f32 %v5787, %v5786
    %v5789 = vmul.f32 %v5783, %v5458
    %v5790 = vadd.f32 %v5788, %v5789
    %s5791 = scalar_lea.vmem [#allocation15], 48
    %5792 = vst [vmem:[%s5791] sm:$0xff] %v5790
    %v5793 = vpack.c.bf16 %v5769, %v5769
    %v5794 = vpack.c.bf16 %v5790, %v5790
    %5795 = vmatprep.subr.bf16.mxu0 %v2643
    %5796 = vmatpush1.bf16.msra.mxu0 %v2642
    %5797 = vmatprep.subr.bf16.mxu0 %v2647
    %5798 = vmatpush1.bf16.msra.mxu0 %v2646
    %5799 = vmatprep.subr.bf16.mxu0 %v2651
    %5800 = vmatpush1.bf16.msra.mxu0 %v2650
    %5801 = vmatprep.subr.bf16.mxu0 %v2655
    %5802 = vmatpush1.bf16.msra.mxu0 %v2654
    %5803 = vmatprep.subr.bf16.mxu0 %v2659
    %5804 = vmatpush1.bf16.msra.mxu0 %v2658
    %5805 = vmatprep.subr.bf16.mxu0 %v2663
    %5806 = vmatpush1.bf16.msra.mxu0 %v2662
    %5807 = vmatprep.subr.bf16.mxu0 %v2667
    %5808 = vmatpush1.bf16.msra.mxu0 %v2666
    %5809 = vmatprep.subr.bf16.mxu0 %v2671
    %5810 = vmatpush1.bf16.msra.mxu0 %v2670
    %5811 = vmatprep.subr.bf16.mxu0 0
    %5812 = vmatpush1.bf16.msra.mxu0 0
    %5813 = vmatprep.subr.bf16.mxu0 0
    %5814 = vmatpush1.bf16.msra.mxu0 0
    %5815 = vmatprep.subr.bf16.mxu0 0
    %5816 = vmatpush1.bf16.msra.mxu0 0
    %5817 = vmatprep.subr.bf16.mxu0 0
    %5818 = vmatpush1.bf16.msra.mxu0 0
    %5819 = vmatprep.subr.bf16.mxu0 0
    %5820 = vmatpush1.bf16.msra.mxu0 0
    %5821 = vmatprep.subr.bf16.mxu0 0
    %5822 = vmatpush1.bf16.msra.mxu0 0
    %5823 = vmatprep.subr.bf16.mxu0 0
    %5824 = vmatpush1.bf16.msra.mxu0 0
    %5825 = vmatprep.subr.bf16.mxu0 0
    %5826 = vmatpush1.bf16.msra.mxu0 0
    %5827 = vmatprep.mubr.bf16.mxu0 0
    %5828 = vmatmul.mubr.bf16.gmra.mrb[0].mxu0 %v5793
    %v5829 = vpop.f32.mrb[0].mxu0
    %v5830 = vpop.f32.mrb[0].mxu0
    %v5831 = vadd.f32 %v2529, %v5830
    %v5832 = vpop.f32.mrb[0].mxu0
    %v5833 = vpop.f32.mrb[0].mxu0
    %5834 = vdwg.mxu0
    %5835 = vmatprep.subr.bf16.mxu0 %v3007
    %5836 = vmatpush1.bf16.msra.mxu0 %v3006
    %5837 = vmatprep.subr.bf16.mxu0 %v3009
    %5838 = vmatpush1.bf16.msra.mxu0 %v3008
    %5839 = vmatprep.subr.bf16.mxu0 %v3011
    %5840 = vmatpush1.bf16.msra.mxu0 %v3010
    %5841 = vmatprep.subr.bf16.mxu0 %v3013
    %5842 = vmatpush1.bf16.msra.mxu0 %v3012
    %5843 = vmatprep.subr.bf16.mxu0 %v3015
    %5844 = vmatpush1.bf16.msra.mxu0 %v3014
    %5845 = vmatprep.subr.bf16.mxu0 %v3017
    %5846 = vmatpush1.bf16.msra.mxu0 %v3016
    %5847 = vmatprep.subr.bf16.mxu0 %v3019
    %5848 = vmatpush1.bf16.msra.mxu0 %v3018
    %5849 = vmatprep.subr.bf16.mxu0 %v3021
    %5850 = vmatpush1.bf16.msra.mxu0 %v3020
    %5851 = vmatprep.subr.bf16.mxu0 0
    %5852 = vmatpush1.bf16.msra.mxu0 0
    %5853 = vmatprep.subr.bf16.mxu0 0
    %5854 = vmatpush1.bf16.msra.mxu0 0
    %5855 = vmatprep.subr.bf16.mxu0 0
    %5856 = vmatpush1.bf16.msra.mxu0 0
    %5857 = vmatprep.subr.bf16.mxu0 0
    %5858 = vmatpush1.bf16.msra.mxu0 0
    %5859 = vmatprep.subr.bf16.mxu0 0
    %5860 = vmatpush1.bf16.msra.mxu0 0
    %5861 = vmatprep.subr.bf16.mxu0 0
    %5862 = vmatpush1.bf16.msra.mxu0 0
    %5863 = vmatprep.subr.bf16.mxu0 0
    %5864 = vmatpush1.bf16.msra.mxu0 0
    %5865 = vmatprep.subr.bf16.mxu0 0
    %5866 = vmatpush1.bf16.msra.mxu0 0
    %5867 = vmatprep.mubr.bf16.mxu0 0
    %5868 = vmatmul.mubr.bf16.gmra.mrb[0].mxu0 %v5793
    %v5869 = vpop.f32.mrb[0].mxu0
    %v5870 = vadd.f32 %v2533, %v5869
    %v5871 = vpop.f32.mrb[0].mxu0
    %v5872 = vadd.f32 %v2537, %v5871
    %v5873 = vpop.f32.mrb[0].mxu0
    %v5874 = vpop.f32.mrb[0].mxu0
    %5875 = vdwg.mxu0
    %5876 = vmatprep.subr.bf16.mxu0 %v3258
    %5877 = vmatpush1.bf16.msra.mxu0 %v3257
    %5878 = vmatprep.subr.bf16.mxu0 %v3261
    %5879 = vmatpush1.bf16.msra.mxu0 %v3260
    %5880 = vmatprep.subr.bf16.mxu0 %v3264
    %5881 = vmatpush1.bf16.msra.mxu0 %v3263
    %5882 = vmatprep.subr.bf16.mxu0 %v3267
    %5883 = vmatpush1.bf16.msra.mxu0 %v3266
    %5884 = vmatprep.subr.bf16.mxu0 %v3270
    %5885 = vmatpush1.bf16.msra.mxu0 %v3269
    %5886 = vmatprep.subr.bf16.mxu0 %v3273
    %5887 = vmatpush1.bf16.msra.mxu0 %v3272
    %5888 = vmatprep.subr.bf16.mxu0 %v3276
    %5889 = vmatpush1.bf16.msra.mxu0 %v3275
    %5890 = vmatprep.subr.bf16.mxu0 %v3279
    %5891 = vmatpush1.bf16.msra.mxu0 %v3278
    %5892 = vmatprep.subr.bf16.mxu0 0
    %5893 = vmatpush1.bf16.msra.mxu0 0
    %5894 = vmatprep.subr.bf16.mxu0 0
    %5895 = vmatpush1.bf16.msra.mxu0 0
    %5896 = vmatprep.subr.bf16.mxu0 0
    %5897 = vmatpush1.bf16.msra.mxu0 0
    %5898 = vmatprep.subr.bf16.mxu0 0
    %5899 = vmatpush1.bf16.msra.mxu0 0
    %5900 = vmatprep.subr.bf16.mxu0 0
    %5901 = vmatpush1.bf16.msra.mxu0 0
    %5902 = vmatprep.subr.bf16.mxu0 0
    %5903 = vmatpush1.bf16.msra.mxu0 0
    %5904 = vmatprep.subr.bf16.mxu0 0
    %5905 = vmatpush1.bf16.msra.mxu0 0
    %5906 = vmatprep.subr.bf16.mxu0 0
    %5907 = vmatpush1.bf16.msra.mxu0 0
    %5908 = vmatprep.mubr.bf16.mxu0 0
    %5909 = vmatmul.mubr.bf16.gmra.mrb[0].mxu0 %v5794
    %v5910 = vpop.f32.mrb[0].mxu0
    %v5911 = vadd.f32 %v3165, %v5910
    %v5912 = vpop.f32.mrb[0].mxu0
    %v5913 = vadd.f32 %v3169, %v5912
    %v5914 = vpop.f32.mrb[0].mxu0
    %v5915 = vpop.f32.mrb[0].mxu0
    %5916 = vdwg.mxu0
    %5917 = vmatprep.subr.bf16.mxu0 0
    %5918 = vmatpush1.bf16.msra.mxu0 %v3259
    %5919 = vmatprep.subr.bf16.mxu0 0
    %5920 = vmatpush1.bf16.msra.mxu0 %v3262
    %5921 = vmatprep.subr.bf16.mxu0 0
    %5922 = vmatpush1.bf16.msra.mxu0 %v3265
    %5923 = vmatprep.subr.bf16.mxu0 0
    %5924 = vmatpush1.bf16.msra.mxu0 %v3268
    %5925 = vmatprep.subr.bf16.mxu0 0
    %5926 = vmatpush1.bf16.msra.mxu0 %v3271
    %5927 = vmatprep.subr.bf16.mxu0 0
    %5928 = vmatpush1.bf16.msra.mxu0 %v3274
    %5929 = vmatprep.subr.bf16.mxu0 0
    %5930 = vmatpush1.bf16.msra.mxu0 %v3277
    %5931 = vmatprep.subr.bf16.mxu0 0
    %5932 = vmatpush1.bf16.msra.mxu0 %v3280
    %5933 = vmatprep.subr.bf16.mxu0 0
    %5934 = vmatpush1.bf16.msra.mxu0 0
    %5935 = vmatprep.subr.bf16.mxu0 0
    %5936 = vmatpush1.bf16.msra.mxu0 0
    %5937 = vmatprep.subr.bf16.mxu0 0
    %5938 = vmatpush1.bf16.msra.mxu0 0
    %5939 = vmatprep.subr.bf16.mxu0 0
    %5940 = vmatpush1.bf16.msra.mxu0 0
    %5941 = vmatprep.subr.bf16.mxu0 0
    %5942 = vmatpush1.bf16.msra.mxu0 0
    %5943 = vmatprep.subr.bf16.mxu0 0
    %5944 = vmatpush1.bf16.msra.mxu0 0
    %5945 = vmatprep.subr.bf16.mxu0 0
    %5946 = vmatpush1.bf16.msra.mxu0 0
    %5947 = vmatprep.subr.bf16.mxu0 0
    %5948 = vmatpush1.bf16.msra.mxu0 0
    %5949 = vmatprep.mubr.bf16.mxu0 0
    %5950 = vmatmul.mubr.bf16.gmra.mrb[0].mxu0 %v5794
    %v5951 = vpop.f32.mrb[0].mxu0
    %v5952 = vadd.f32 %v3173, %v5951
    %v5953 = vpop.f32.mrb[0].mxu0
    %v5954 = vpop.f32.mrb[0].mxu0
    %v5955 = vpop.f32.mrb[0].mxu0
    %5956 = vdwg.mxu0
    %v5957 = vadd.f32 %v5831, %v5911
    %v5958 = vxor.u32 %v5957, 2147483648
    %v5959 = vmul.f32 %v5958, 1.442695
    %v5960 = vpow.pop %v5959
    %v5961 = vadd.f32 %v5960, 1.0
    %v5962 = vrcp.pop %v5961
    %v5963 = vmul.f32 1.0, %v5962
    %v5964 = vadd.f32 %v5870, %v5913
    %v5965 = vxor.u32 %v5964, 2147483648
    %v5966 = vmul.f32 %v5965, 1.442695
    %v5967 = vpow.pop %v5966
    %v5968 = vadd.f32 %v5967, 1.0
    %v5969 = vrcp.pop %v5968
    %v5970 = vmul.f32 1.0, %v5969
    %v5971 = vmul.f32 %v5963, %v5952
    %v5972 = vadd.f32 %v5872, %v5971
    %v5973 = vtanh.pop %v5972
    %v5974 = vsub.f32 1.0, %v5970
    %v5975 = vmul.f32 %v5974, %v5973
    %v5976 = vmul.f32 %v5970, %v5790
    %v5977 = vadd.f32 %v5975, %v5976
    %s5978 = scalar_lea.vmem [#allocation15], 56
    %5979 = vst [vmem:[%s5978] sm:$0xff] %v5977
    %v5980 = vpack.c.bf16 %v5977, %v5977
    %v5981 = vld [vmem:[%s13] sm:$0xf]
    %v5982 = vld [vmem:[%s13 + $0x4] sm:$0xf]
    %v5983 = vld [vmem:[%s13 + $0x8] sm:$0xf]
    %v5984 = vld [vmem:[%s13 + $0xc] sm:$0xf]
    %v5985 = vld [vmem:[%s13 + $0x10] sm:$0xf]
    %v5986 = vld [vmem:[%s13 + $0x14] sm:$0xf]
    %v5987 = vld [vmem:[%s13 + $0x18] sm:$0xf]
    %v5988 = vld [vmem:[%s13 + $0x1c] sm:$0xf]
    %v5989 = vld [vmem:[%s13 + $0x20] sm:$0xf]
    %v5990 = vld [vmem:[%s13 + $0x24] sm:$0xf]
    %v5991 = vld [vmem:[%s13 + $0x28] sm:$0xf]
    %v5992 = vld [vmem:[%s13 + $0x2c] sm:$0xf]
    %v5993 = vld [vmem:[%s13 + $0x30] sm:$0xf]
    %v5994 = vld [vmem:[%s13 + $0x34] sm:$0xf]
    %v5995 = vld [vmem:[%s13 + $0x38] sm:$0xf]
    %v5996 = vld [vmem:[%s13 + $0x3c] sm:$0xf]
    %v5997 = vld [vmem:[%s14] sm:$0x1]
    %v5999 = vlaneseq
    %v6000 = vshrl.u32 %v5999, 7
    %v6001 = vsub.s32 0, %v6000
    %v6002 = vrot.slane %v5997, %v6001
    %v6020 = vunpack.c.l.b16 %v5981
    %v6021 = vunpack.c.l.b16 %v5982
    %v6022 = vunpack.c.l.b16 %v5983
    %v6023 = vunpack.c.l.b16 %v5984
    %v6024 = vunpack.c.l.b16 %v5985
    %v6025 = vunpack.c.l.b16 %v5986
    %v6026 = vunpack.c.l.b16 %v5987
    %v6027 = vunpack.c.l.b16 %v5988
    %v6028 = vunpack.c.l.b16 %v5989
    %v6029 = vunpack.c.l.b16 %v5990
    %v6030 = vunpack.c.l.b16 %v5991
    %v6031 = vunpack.c.l.b16 %v5992
    %v6032 = vunpack.c.l.b16 %v5993
    %v6033 = vunpack.c.l.b16 %v5994
    %v6034 = vunpack.c.l.b16 %v5995
    %v6035 = vunpack.c.l.b16 %v5996
    %v6036 = vpack.c.b16 %v6021, %v6020
    %v6037 = vpack.c.b16 %v6023, %v6022
    %v6038 = vpack.c.b16 %v6025, %v6024
    %v6039 = vpack.c.b16 %v6027, %v6026
    %v6040 = vpack.c.b16 %v6029, %v6028
    %v6041 = vpack.c.b16 %v6031, %v6030
    %v6042 = vpack.c.b16 %v6033, %v6032
    %v6043 = vpack.c.b16 %v6035, %v6034
    %6052 = vmatprep.subr.bf16.mxu0 0
    %6053 = vmatpush1.bf16.msra.mxu0 %v6036
    %6054 = vmatprep.subr.bf16.mxu0 0
    %6055 = vmatpush1.bf16.msra.mxu0 %v6037
    %6056 = vmatprep.subr.bf16.mxu0 0
    %6057 = vmatpush1.bf16.msra.mxu0 %v6038
    %6058 = vmatprep.subr.bf16.mxu0 0
    %6059 = vmatpush1.bf16.msra.mxu0 %v6039
    %6060 = vmatprep.subr.bf16.mxu0 0
    %6061 = vmatpush1.bf16.msra.mxu0 %v6040
    %6062 = vmatprep.subr.bf16.mxu0 0
    %6063 = vmatpush1.bf16.msra.mxu0 %v6041
    %6064 = vmatprep.subr.bf16.mxu0 0
    %6065 = vmatpush1.bf16.msra.mxu0 %v6042
    %6066 = vmatprep.subr.bf16.mxu0 0
    %6067 = vmatpush1.bf16.msra.mxu0 %v6043
    %6068 = vmatprep.subr.bf16.mxu0 0
    %6069 = vmatpush1.bf16.msra.mxu0 0
    %6070 = vmatprep.subr.bf16.mxu0 0
    %6071 = vmatpush1.bf16.msra.mxu0 0
    %6072 = vmatprep.subr.bf16.mxu0 0
    %6073 = vmatpush1.bf16.msra.mxu0 0
    %6074 = vmatprep.subr.bf16.mxu0 0
    %6075 = vmatpush1.bf16.msra.mxu0 0
    %6076 = vmatprep.subr.bf16.mxu0 0
    %6077 = vmatpush1.bf16.msra.mxu0 0
    %6078 = vmatprep.subr.bf16.mxu0 0
    %6079 = vmatpush1.bf16.msra.mxu0 0
    %6080 = vmatprep.subr.bf16.mxu0 0
    %6081 = vmatpush1.bf16.msra.mxu0 0
    %6082 = vmatprep.subr.bf16.mxu0 0
    %6083 = vmatpush1.bf16.msra.mxu0 0
    %6084 = vmatprep.mubr.bf16.mxu0 0
    %6085 = vmatmul.mubr.bf16.gmra.mrb[0].mxu0 %v5980
    %v6086 = vpop.f32.mrb[0].mxu0
    %v6087 = vadd.f32 %v6002, %v6086
    %v6088 = vpop.f32.mrb[0].mxu0
    %v6089 = vpop.f32.mrb[0].mxu0
    %v6090 = vpop.f32.mrb[0].mxu0
    %6091 = vdwg.mxu0
    %6092 = vst [vmem:[#allocation16] sm:$0xff] %v6087
    // Predicated region
    $region90: #{tpu_custom_call.1} parent=1 // pred_check
      _
    $region91: #{tpu_custom_call.1} parent=1 // pred_check_branch
      %6094 = sbr.rel (0) target = $region93
    $region92: #{tpu_custom_call.1} parent=1 // pred_region
      %s6096 = ssub.s32 1024, 1024
      %6097 = vsyncadd [#allocation5], %s6096
      %s6098 = sshll.u32 [#allocation15], 4
      %s6099 = int_to_ptr.vmem [resolvable:$true] %s6098
      %6104 = dma.vmem_to_hbm [thread:$0]  %s6099, 1024, %s15, [#allocation5], 128, 128, 8
    $region93: #{tpu_custom_call.1} parent=1 // pred_fallthru
      _
    // Predicated region
    $region94: #{tpu_custom_call.1} parent=1 // pred_check
      _
    $region95: #{tpu_custom_call.1} parent=1 // pred_check_branch
      %6106 = sbr.rel (0) target = $region97
    $region96: #{tpu_custom_call.1} parent=1 // pred_region
      %s6108 = ssub.s32 128, 128
      %6109 = vsyncadd [#allocation17], %s6108
      %s6111 = sshll.u32 [#allocation16], 4
      %s6112 = int_to_ptr.vmem [resolvable:$true] %s6111
      %6114 = dma.vmem_to_hbm [thread:$0]  %s6112, 128, %s16, [#allocation17]
    $region97: #{tpu_custom_call.1} parent=1 // pred_fallthru
      _
    // Predicated region
    $region98: #{tpu_custom_call.1} parent=1 // pred_check
      _
    $region99: #{tpu_custom_call.1} parent=1 // pred_check_branch
      %6116 = sbr.rel (0) target = $region101
    $region100: #{tpu_custom_call.1} parent=1 // pred_region
      %6117 = dma.done [#allocation5], 1024
    $region101: #{tpu_custom_call.1} parent=1 // pred_fallthru
      _
    // Predicated region
    $region102: #{tpu_custom_call.1} parent=1 // pred_check
      _
    $region103: #{tpu_custom_call.1} parent=1 // pred_check_branch
      %6119 = sbr.rel (0) target = $region105
    $region104: #{tpu_custom_call.1} parent=1 // pred_region
      %6120 = dma.done [#allocation17], 128
    $region105: #{tpu_custom_call.1} parent=1 // pred_fallthru
      _
    %6121 = vsyncpa [#allocation4], 1
    %6122 = vsyncpa [#allocation7], 1
    %6123 = vsyncpa [#allocation10], 1
    %6124 = vsyncpa [#allocation13], 1
    %6125 = vsyncpa [#allocation5], 1
    %6126 = vsyncpa [#allocation17], 1

</llo_original>
